<compile_context>
chip_gen: v6e
topology: v6e:2x2x1
jax: 0.10.0
libtpu: 0.0.40
codegen_flags: <defaults>
</compile_context>

<pallas_src>
import functools

import jax
import jax.numpy as jnp
from jax.experimental import pallas as pl
from jax.experimental.pallas import tpu as pltpu

BN_EPS = 1e-5          # PyTorch BatchNorm2d default
LANE = 128             # output-channel pad: keeps every HBM activation store lane-dense
CIN_ALIGN = 64         # per-tap contraction (K) pad; 64-wide MXU operands are well supported
                       # and cut weight traffic 2-8x vs padding every layer's K to 128


def _round_up(x, m):
    return ((max(int(x), 1) + m - 1) // m) * m


def _vmem_limit_bytes():
    # Generation-aware scoped-VMEM budget (v5e/v6e: 128 MiB physical, v7x: 64 MiB per core).
    cap = None
    try:
        cap = getattr(pltpu.get_tpu_info(), "vmem_capacity_bytes", None)
    except Exception:
        cap = None
    if not cap:
        cap = 64 * 1024 * 1024
    return int(min(cap * 3 // 4, 96 * 1024 * 1024))


_VMEM_LIMIT = _vmem_limit_bytes()


def _pick_tile_h(n, h, w):
    """Row-tile height: aim for >=4 grid steps (pipeline overlap, megacore) while keeping
    the matmul M = tile_h * W at >=128 rows."""
    th = h
    while n * (h // th) < 4 and th % 2 == 0 and (th // 2) * w >= 128:
        th //= 2
    return th


# --------------------------------------------------------------------------------------
# Fused kernel: [folded BN + ReLU prologue] -> 3x3 conv (9 accumulating matmuls)
#               -> [bias] -> [per-tile BN partial stats] -> [sigmoid epilogue]
# --------------------------------------------------------------------------------------
def _conv_block_kernel(*refs, prologue_relu, epilogue_sigmoid, add_bias, emit_stats):
    # refs: x, w, scale, shift, [bias], y, [sum, centered-sqsum], xpad_scratch
    x_ref, w_ref, scale_ref, shift_ref = refs[:4]
    i = 4
    bias_ref = None
    if add_bias:
        bias_ref = refs[i]
        i += 1
    y_ref = refs[i]
    i += 1
    s_ref = q_ref = None
    if emit_stats:
        s_ref, q_ref = refs[i], refs[i + 1]
        i += 2
    xpad_ref = refs[i]

    H = x_ref.shape[1]                       # full image height (input block = full image)
    _, TH, W, COUT = y_ref.shape             # this step's output row tile
    CIN = xpad_ref.shape[-1]                 # per-tap contraction width (Cin padded to 64)

    t = pl.program_id(1)
    n_tiles = pl.num_programs(1)
    row0 = pl.multiple_of(t * TH, TH)

    scale = scale_ref[...].reshape(1, 1, CIN)
    shift = shift_ref[...].reshape(1, 1, CIN)

    def activate(rows):                      # previous layer's folded BN + ReLU, in f32
        v = rows.astype(jnp.float32) * scale + shift
        if prologue_relu:
            v = jnp.maximum(v, 0.0)
        return v

    def load_rows(start, nrows):             # (nrows, W, CIN), only the real K lanes
        return x_ref[0, pl.ds(start, nrows), :, :][..., :CIN]

    # ---- bf16 zero-halo buffer (VMEM only): write the 4 halo strips + interior, ----
    # ---- never zero-fill the whole buffer.                                       ----
    zcol = jnp.zeros((TH + 2, 1, CIN), jnp.bfloat16)
    xpad_ref[pl.ds(0, TH + 2), pl.ds(0, 1), :] = zcol          # left halo column
    xpad_ref[pl.ds(0, TH + 2), pl.ds(W + 1, 1), :] = zcol      # right halo column

    top_valid = (t > 0).astype(jnp.float32)
    bot_valid = (t < n_tiles - 1).astype(jnp.float32)
    top = activate(load_rows(jnp.maximum(row0 - 1, 0), 1)) * top_valid
    bot = activate(load_rows(jnp.minimum(row0 + TH, H - 1), 1)) * bot_valid
    xpad_ref[pl.ds(0, 1), pl.ds(1, W), :] = top.astype(jnp.bfloat16)
    xpad_ref[pl.ds(TH + 1, 1), pl.ds(1, W), :] = bot.astype(jnp.bfloat16)
    xpad_ref[pl.ds(1, TH), pl.ds(1, W), :] = activate(load_rows(row0, TH)).astype(jnp.bfloat16)

    # ---- 3x3 conv: 9 accumulating MXU matmuls straight from the halo buffer --------
    acc = jnp.zeros((TH * W, COUT), jnp.float32)
    for k in range(9):                        # unrolled at trace time; static tap offsets
        dy, dx = k // 3, k % 3
        patch = xpad_ref[pl.ds(dy, TH), pl.ds(dx, W), :].reshape(TH * W, CIN)
        acc = acc + jnp.dot(patch, w_ref[k], preferred_element_type=jnp.float32)

    if add_bias:
        acc = acc + bias_ref[...]             # (1, COUT) broadcast (outc layer only)

    # ---- per-(image, row-tile) centered partial BN stats (combined in the wrapper) --
    if emit_stats:
        s = jnp.sum(acc, axis=0, keepdims=True)                 # (1, COUT)
        d = acc - s * (1.0 / (TH * W))
        s_ref[...] = s.reshape(1, 1, COUT)
        q_ref[...] = jnp.sum(d * d, axis=0, keepdims=True).reshape(1, 1, COUT)

    if epilogue_sigmoid:
        acc = jax.nn.sigmoid(acc)

    y_ref[...] = acc.reshape(1, TH, W, COUT).astype(y_ref.dtype)


def conv_layer(x, w, scale, shift, bias=None, *, tile_h, prologue_relu,
               epilogue_sigmoid=False, add_bias=False, emit_stats=True,
               out_dtype=jnp.bfloat16):
    """x: (N,H,W,Cpad) bf16. w: (9, Cin_p, Cout_p) bf16. scale/shift: (1, Cin_p) f32.
    bias: (1, Cout_p) f32 (only when add_bias)."""
    N, H, W, _ = x.shape
    _, cin_p, cout_p = w.shape
    T = H // tile_h

    kernel = functools.partial(
        _conv_block_kernel, prologue_relu=prologue_relu,
        epilogue_sigmoid=epilogue_sigmoid, add_bias=add_bias, emit_stats=emit_stats)

    in_specs = [
        pl.BlockSpec((1, H, W, x.shape[-1]), lambda n, t: (n, 0, 0, 0)),   # full image, reused across t
        pl.BlockSpec((9, cin_p, cout_p), lambda n, t: (0, 0, 0)),          # weights, fetched once
        pl.BlockSpec((1, cin_p), lambda n, t: (0, 0)),
        pl.BlockSpec((1, cin_p), lambda n, t: (0, 0)),
    ]
    operands = [x, w, scale, shift]
    if add_bias:
        in_specs.append(pl.BlockSpec((1, cout_p), lambda n, t: (0, 0)))
        operands.append(bias)

    y_spec = pl.BlockSpec((1, tile_h, W, cout_p), lambda n, t: (n, t, 0, 0))
    y_shape = jax.ShapeDtypeStruct((N, H, W, cout_p), out_dtype)
    if emit_stats:
        stat_spec = pl.BlockSpec((1, 1, cout_p), lambda n, t: (n * T + t, 0, 0))
        out_shape = (y_shape,
                     jax.ShapeDtypeStruct((N * T, 1, cout_p), jnp.float32),
                     jax.ShapeDtypeStruct((N * T, 1, cout_p), jnp.float32))
        out_specs = (y_spec, stat_spec, stat_spec)
    else:
        out_shape = y_shape
        out_specs = y_spec

    return pl.pallas_call(
        kernel,
        out_shape=out_shape,
        grid_spec=pltpu.PrefetchScalarGridSpec(
            num_scalar_prefetch=0,
            grid=(N, T),
            in_specs=in_specs,
            out_specs=out_specs,
            scratch_shapes=[pltpu.VMEM((tile_h + 2, W + 2, cin_p), jnp.bfloat16)],
        ),
        compiler_params=pltpu.CompilerParams(
            dimension_semantics=("parallel", "parallel"),
            vmem_limit_bytes=_VMEM_LIMIT,
        ),
    )(*operands)


# --------------------------------------------------------------------------------------
# BatchNorm fold: combine per-group partial stats (Chan pooled variance) -> scale/shift
# --------------------------------------------------------------------------------------
def _bn_fold(s, q, cnt, gamma, beta):
    s = s.reshape(-1, s.shape[-1])                 # (G, C) per-group channel sums
    q = q.reshape(-1, q.shape[-1])                 # (G, C) per-group centered sq-sums
    n = s.shape[0] * cnt
    mean = jnp.sum(s, axis=0) / n
    gmean = s / cnt
    var = (jnp.sum(q, axis=0) + cnt * jnp.sum((gmean - mean[None, :]) ** 2, axis=0)) / n
    var = jnp.maximum(var, 0.0)                    # biased variance, as in BN training mode
    scale = gamma * jax.lax.rsqrt(var + BN_EPS)
    shift = beta - mean * scale
    return scale.reshape(1, -1), shift.reshape(1, -1)


# --------------------------------------------------------------------------------------
# Parameter construction (channel/K-padded, weights pre-packed to (9, Cin_p, Cout_p))
# --------------------------------------------------------------------------------------
def build_conv_specs(in_channels, out_channels, features):
    f = features
    specs = [(in_channels, f[0]), (f[0], f[0])]                  # inc: CBRCBR
    for i in range(len(f) - 1):                                  # downs: CBRCBR each
        specs += [(f[i], f[i + 1]), (f[i + 1], f[i + 1])]
    specs += [(f[-1], f[-1])]                                    # bottle: CBR
    for i in range(len(f) - 2, 0, -1):                           # ups: CBR each
        specs += [(f[i + 1], f[i])]
    specs += [(f[1], f[0])]
    return specs, (f[0], out_channels)                           # outc: conv (+bias) + sigmoid


def _pack_weight(w):
    """(3,3,cin,cout) f32 -> (9, cin_p, cout_p) bf16; K padded to 64, Cout to 128."""
    _, _, cin, cout = w.shape
    cin_p, cout_p = _round_up(cin, CIN_ALIGN), _round_up(cout, LANE)
    wp = jnp.pad(w, ((0, 0), (0, 0), (0, cin_p - cin), (0, cout_p - cout)))
    return wp.reshape(9, cin_p, cout_p).astype(jnp.bfloat16)


def init_params(key, in_channels, out_channels, features):
    cbr_specs, out_spec = build_conv_specs(in_channels, out_channels, features)
    cbr_params = []
    for (cin, cout) in cbr_specs:
        key, k1 = jax.random.split(key)
        bound = 1.0 / (cin * 9) ** 0.5
        w = jax.random.uniform(k1, (3, 3, cin, cout), jnp.float32, -bound, bound)
        cout_p = _round_up(cout, LANE)
        # gamma zero-padded -> padded channels get scale 0 and stay exactly zero downstream;
        # the conv bias of C-B-R layers is dropped: it is cancelled exactly by the BN mean.
        gamma = jnp.pad(jnp.ones((cout,), jnp.float32), (0, cout_p - cout))
        beta = jnp.zeros((cout_p,), jnp.float32)
        cbr_params.append((_pack_weight(w), gamma, beta))

    cin, cout = out_spec
    key, k1, k2 = jax.random.split(key, 3)
    bound = 1.0 / (cin * 9) ** 0.5
    wo = jax.random.uniform(k1, (3, 3, cin, cout), jnp.float32, -bound, bound)
    bo = jax.random.uniform(k2, (cout,), jnp.float32, -bound, bound)
    cout_p = _round_up(cout, LANE)
    out_params = (_pack_weight(wo), jnp.pad(bo, (0, cout_p - cout)).reshape(1, cout_p))
    return cbr_params, out_params


# --------------------------------------------------------------------------------------
# Forward pass (reduce_spatial=False): chain of fused conv layers + final conv+sigmoid
# --------------------------------------------------------------------------------------
def autoencoder_forward(x_nchw, cbr_params, out_params, out_channels):
    x = jnp.transpose(x_nchw, (0, 2, 3, 1))                       # NCHW -> NHWC
    N, H, W, cin = x.shape
    x = jnp.pad(x, ((0, 0), (0, 0), (0, 0), (0, _round_up(cin, LANE) - cin)))
    x = x.astype(jnp.bfloat16)                                    # one-time pad + bf16 cast
    tile_h = _pick_tile_h(N, H, W)
    cnt = tile_h * W

    # layer 0 prologue = identity (raw input, no preceding BN/ReLU)
    scale = jnp.ones((1, x.shape[-1]), jnp.float32)
    shift = jnp.zeros((1, x.shape[-1]), jnp.float32)
    relu = False
    for (w, gamma, beta) in cbr_params:
        cin_p = w.shape[1]
        y, s, q = conv_layer(x, w, scale[:, :cin_p], shift[:, :cin_p],
                             tile_h=tile_h, prologue_relu=relu,
                             emit_stats=True, out_dtype=jnp.bfloat16)
        # this layer's BN + ReLU is applied inside the NEXT layer's prologue
        scale, shift = _bn_fold(s, q, cnt, gamma, beta)
        x, relu = y, True

    w_o, b_o = out_params
    cin_p = w_o.shape[1]
    y = conv_layer(x, w_o, scale[:, :cin_p], shift[:, :cin_p], b_o,
                   tile_h=tile_h, prologue_relu=True, epilogue_sigmoid=True,
                   add_bias=True, emit_stats=False, out_dtype=jnp.float32)
    out = y[..., :out_channels]                                   # drop channel padding
    return jnp.transpose(out, (0, 3, 1, 2))                       # NHWC -> NCHW


if __name__ == "__main__":
    key = jax.random.PRNGKey(0)
    k_in, k_par = jax.random.split(key)

    # Small shapes consistent with the module: NCHW input, in_channels=1, out_channels=1.
    batch, in_channels, out_channels, spatial = 2, 1, 1, 16
    features = [8, 16, 32, 64]

    x = jax.random.normal(k_in, (batch, in_channels, spatial, spatial), jnp.float32)
    cbr_params, out_params = init_params(k_par, in_channels, out_channels, features)

    fwd = jax.jit(functools.partial(autoencoder_forward, out_channels=out_channels))
    out = jax.block_until_ready(fwd(x, cbr_params, out_params))

    assert out.shape == (batch, out_channels, spatial, spatial), out.shape
    assert bool(jnp.all(jnp.isfinite(out)))
    assert bool(jnp.all((out >= 0.0) & (out <= 1.0)))             # sigmoid output range
    print("KERNEL_OK")
</pallas_src>

<mosaic_0001>
module attributes {stable_mosaic.version = 11 : i64} {
  func.func @_conv_block_kernel(%arg0: i32, %arg1: i32, %arg2: memref<1x16x16x128xbf16, #tpu.memory_space<vmem>>, %arg3: memref<9x64x128xbf16, #tpu.memory_space<vmem>>, %arg4: memref<1x64xf32, #tpu.memory_space<vmem>>, %arg5: memref<1x64xf32, #tpu.memory_space<vmem>>, %arg6: memref<1x8x16x128xbf16, #tpu.memory_space<vmem>>, %arg7: memref<1x1x128xf32, #tpu.memory_space<vmem>>, %arg8: memref<1x1x128xf32, #tpu.memory_space<vmem>>, %arg9: memref<10x18x64xbf16, #tpu.memory_space<vmem>>) attributes {dimension_semantics = [#tpu.dimension_semantics<parallel>, #tpu.dimension_semantics<parallel>], iteration_bounds = array<i64: 2, 2>, scalar_prefetch = 0 : i64, scratch_operands = 1 : i64, tpu.core_type = #tpu.core_type<tc>, window_params = [{transform_indices = @transform_0, window_bounds = array<i64: 1, 16, 16, 128>}, {pipeline_mode = #tpu.pipeline_mode<synchronous>, transform_indices = @transform_1, window_bounds = array<i64: 9, 64, 128>}, {pipeline_mode = #tpu.pipeline_mode<synchronous>, transform_indices = @transform_2, window_bounds = array<i64: 1, 64>}, {pipeline_mode = #tpu.pipeline_mode<synchronous>, transform_indices = @transform_3, window_bounds = array<i64: 1, 64>}, {transform_indices = @transform_4, window_bounds = array<i64: 1, 8, 16, 128>}, {transform_indices = @transform_5, window_bounds = array<i64: 1, 1, 128>}, {transform_indices = @transform_6, window_bounds = array<i64: 1, 1, 128>}]} {
    %c8_i32 = arith.constant 8 : i32
    %0 = arith.muli %arg1, %c8_i32 : i32
    %1 = tpu.assume_multiple %0, 8 : i32
    %c0 = arith.constant 0 : index
    %c0_0 = arith.constant 0 : index
    %2 = vector.load %arg4[%c0, %c0_0] : memref<1x64xf32, #tpu.memory_space<vmem>>, vector<1x64xf32>
    %3 = vector.shape_cast %2 : vector<1x64xf32> to vector<1x1x64xf32>
    %c0_1 = arith.constant 0 : index
    %c0_2 = arith.constant 0 : index
    %4 = vector.load %arg5[%c0_1, %c0_2] : memref<1x64xf32, #tpu.memory_space<vmem>>, vector<1x64xf32>
    %5 = vector.shape_cast %4 : vector<1x64xf32> to vector<1x1x64xf32>
    %cst = arith.constant 0.000000e+00 : bf16
    %6 = vector.broadcast %cst : bf16 to vector<10x1x64xbf16>
    %c0_3 = arith.constant 0 : index
    %c0_4 = arith.constant 0 : index
    %c0_5 = arith.constant 0 : index
    %7 = vector.load %arg9[%c0_3, %c0_4, %c0_5] : memref<10x18x64xbf16, #tpu.memory_space<vmem>>, vector<10x1x64xbf16>
    tpu.vector_store %arg9[%c0_3, %c0_4, %c0_5], %6 {strides = array<i32>} : memref<10x18x64xbf16, #tpu.memory_space<vmem>>, vector<10x1x64xbf16>,
    %c0_6 = arith.constant 0 : index
    %c17 = arith.constant 17 : index
    %c0_7 = arith.constant 0 : index
    %8 = vector.load %arg9[%c0_6, %c17, %c0_7] : memref<10x18x64xbf16, #tpu.memory_space<vmem>>, vector<10x1x64xbf16>
    tpu.vector_store %arg9[%c0_6, %c17, %c0_7], %6 {strides = array<i32>} : memref<10x18x64xbf16, #tpu.memory_space<vmem>>, vector<10x1x64xbf16>,
    %c0_i32 = arith.constant 0 : i32
    %9 = arith.cmpi sgt, %arg1, %c0_i32 : i32
    %10 = arith.extui %9 : i1 to i32
    %11 = arith.sitofp %10 : i32 to f32
    %c1_i32 = arith.constant 1 : i32
    %12 = arith.cmpi slt, %arg1, %c1_i32 : i32
    %13 = arith.extui %12 : i1 to i32
    %14 = arith.sitofp %13 : i32 to f32
    %c1_i32_8 = arith.constant 1 : i32
    %15 = arith.subi %1, %c1_i32_8 : i32
    %c0_i32_9 = arith.constant 0 : i32
    %16 = arith.maxsi %15, %c0_i32_9 : i32
    %c0_10 = arith.constant 0 : index
    %17 = arith.index_cast %16 : i32 to index
    %c0_11 = arith.constant 0 : index
    %c0_12 = arith.constant 0 : index
    %18 = vector.load %arg2[%c0_10, %17, %c0_11, %c0_12] : memref<1x16x16x128xbf16, #tpu.memory_space<vmem>>, vector<1x1x16x128xbf16>
    %19 = vector.shape_cast %18 : vector<1x1x16x128xbf16> to vector<1x16x128xbf16>
    %20 = vector.extract_strided_slice %19 {offsets = [0, 0, 0], sizes = [1, 16, 64], strides = [1, 1, 1]} : vector<1x16x128xbf16> to vector<1x16x64xbf16>
    %21 = arith.extf %20 : vector<1x16x64xbf16> to vector<1x16x64xf32>
    %22 = vector.broadcast %3 : vector<1x1x64xf32> to vector<1x16x64xf32>
    %23 = arith.mulf %21, %22 : vector<1x16x64xf32>
    %24 = vector.broadcast %5 : vector<1x1x64xf32> to vector<1x16x64xf32>
    %25 = arith.addf %23, %24 : vector<1x16x64xf32>
    %26 = vector.broadcast %11 : f32 to vector<1x16x64xf32>
    %27 = arith.mulf %25, %26 : vector<1x16x64xf32>
    %c8_i32_13 = arith.constant 8 : i32
    %28 = arith.addi %1, %c8_i32_13 : i32
    %c15_i32 = arith.constant 15 : i32
    %29 = arith.minsi %28, %c15_i32 : i32
    %c0_14 = arith.constant 0 : index
    %30 = arith.index_cast %29 : i32 to index
    %c0_15 = arith.constant 0 : index
    %c0_16 = arith.constant 0 : index
    %31 = vector.load %arg2[%c0_14, %30, %c0_15, %c0_16] : memref<1x16x16x128xbf16, #tpu.memory_space<vmem>>, vector<1x1x16x128xbf16>
    %32 = vector.shape_cast %31 : vector<1x1x16x128xbf16> to vector<1x16x128xbf16>
    %33 = vector.extract_strided_slice %32 {offsets = [0, 0, 0], sizes = [1, 16, 64], strides = [1, 1, 1]} : vector<1x16x128xbf16> to vector<1x16x64xbf16>
    %34 = arith.extf %33 : vector<1x16x64xbf16> to vector<1x16x64xf32>
    %35 = vector.broadcast %3 : vector<1x1x64xf32> to vector<1x16x64xf32>
    %36 = arith.mulf %34, %35 : vector<1x16x64xf32>
    %37 = vector.broadcast %5 : vector<1x1x64xf32> to vector<1x16x64xf32>
    %38 = arith.addf %36, %37 : vector<1x16x64xf32>
    %39 = vector.broadcast %14 : f32 to vector<1x16x64xf32>
    %40 = arith.mulf %38, %39 : vector<1x16x64xf32>
    %41 = arith.truncf %27 : vector<1x16x64xf32> to vector<1x16x64xbf16>
    %c0_17 = arith.constant 0 : index
    %c1 = arith.constant 1 : index
    %c0_18 = arith.constant 0 : index
    %42 = vector.load %arg9[%c0_17, %c1, %c0_18] : memref<10x18x64xbf16, #tpu.memory_space<vmem>>, vector<1x16x64xbf16>
    tpu.vector_store %arg9[%c0_17, %c1, %c0_18], %41 {strides = array<i32>} : memref<10x18x64xbf16, #tpu.memory_space<vmem>>, vector<1x16x64xbf16>,
    %43 = arith.truncf %40 : vector<1x16x64xf32> to vector<1x16x64xbf16>
    %c9 = arith.constant 9 : index
    %c1_19 = arith.constant 1 : index
    %c0_20 = arith.constant 0 : index
    %44 = vector.load %arg9[%c9, %c1_19, %c0_20] : memref<10x18x64xbf16, #tpu.memory_space<vmem>>, vector<1x16x64xbf16>
    tpu.vector_store %arg9[%c9, %c1_19, %c0_20], %43 {strides = array<i32>} : memref<10x18x64xbf16, #tpu.memory_space<vmem>>, vector<1x16x64xbf16>,
    %c0_21 = arith.constant 0 : index
    %45 = arith.index_cast %1 : i32 to index
    %c0_22 = arith.constant 0 : index
    %c0_23 = arith.constant 0 : index
    %46 = vector.load %arg2[%c0_21, %45, %c0_22, %c0_23] : memref<1x16x16x128xbf16, #tpu.memory_space<vmem>>, vector<1x8x16x128xbf16>
    %47 = vector.shape_cast %46 : vector<1x8x16x128xbf16> to vector<8x16x128xbf16>
    %48 = vector.extract_strided_slice %47 {offsets = [0, 0, 0], sizes = [8, 16, 64], strides = [1, 1, 1]} : vector<8x16x128xbf16> to vector<8x16x64xbf16>
    %49 = arith.extf %48 : vector<8x16x64xbf16> to vector<8x16x64xf32>
    %50 = vector.broadcast %3 : vector<1x1x64xf32> to vector<8x16x64xf32>
    %51 = arith.mulf %49, %50 : vector<8x16x64xf32>
    %52 = vector.broadcast %5 : vector<1x1x64xf32> to vector<8x16x64xf32>
    %53 = arith.addf %51, %52 : vector<8x16x64xf32>
    %54 = arith.truncf %53 : vector<8x16x64xf32> to vector<8x16x64xbf16>
    %c1_24 = arith.constant 1 : index
    %c1_25 = arith.constant 1 : index
    %c0_26 = arith.constant 0 : index
    %55 = vector.load %arg9[%c1_24, %c1_25, %c0_26] : memref<10x18x64xbf16, #tpu.memory_space<vmem>>, vector<8x16x64xbf16>
    tpu.vector_store %arg9[%c1_24, %c1_25, %c0_26], %54 {strides = array<i32>} : memref<10x18x64xbf16, #tpu.memory_space<vmem>>, vector<8x16x64xbf16>,
    %cst_27 = arith.constant 0.000000e+00 : f32
    %56 = vector.broadcast %cst_27 : f32 to vector<128x128xf32>
    %c0_28 = arith.constant 0 : index
    %c0_29 = arith.constant 0 : index
    %c0_30 = arith.constant 0 : index
    %57 = vector.load %arg9[%c0_28, %c0_29, %c0_30] : memref<10x18x64xbf16, #tpu.memory_space<vmem>>, vector<8x16x64xbf16>
    %58 = vector.shape_cast %57 : vector<8x16x64xbf16> to vector<128x64xbf16>
    %c0_31 = arith.constant 0 : index
    %c0_32 = arith.constant 0 : index
    %c0_33 = arith.constant 0 : index
    %59 = vector.load %arg3[%c0_31, %c0_32, %c0_33] : memref<9x64x128xbf16, #tpu.memory_space<vmem>>, vector<1x64x128xbf16>
    %60 = vector.shape_cast %59 : vector<1x64x128xbf16> to vector<64x128xbf16>
    %cst_34 = arith.constant dense<0.000000e+00> : vector<128x128xf32>
    %61 = tpu.matmul %58, %60, %cst_34 {dimension_numbers = #tpu.dot_dimension_numbers<[1], [0], [0], [1], [0, 0, 1, 1], [], []>} : vector<128x64xbf16>, vector<64x128xbf16>, vector<128x128xf32> -> vector<128x128xf32>
    %62 = arith.addf %56, %61 : vector<128x128xf32>
    %c0_35 = arith.constant 0 : index
    %c1_36 = arith.constant 1 : index
    %c0_37 = arith.constant 0 : index
    %63 = vector.load %arg9[%c0_35, %c1_36, %c0_37] : memref<10x18x64xbf16, #tpu.memory_space<vmem>>, vector<8x16x64xbf16>
    %64 = vector.shape_cast %63 : vector<8x16x64xbf16> to vector<128x64xbf16>
    %c1_38 = arith.constant 1 : index
    %c0_39 = arith.constant 0 : index
    %c0_40 = arith.constant 0 : index
    %65 = vector.load %arg3[%c1_38, %c0_39, %c0_40] : memref<9x64x128xbf16, #tpu.memory_space<vmem>>, vector<1x64x128xbf16>
    %66 = vector.shape_cast %65 : vector<1x64x128xbf16> to vector<64x128xbf16>
    %cst_41 = arith.constant dense<0.000000e+00> : vector<128x128xf32>
    %67 = tpu.matmul %64, %66, %cst_41 {dimension_numbers = #tpu.dot_dimension_numbers<[1], [0], [0], [1], [0, 0, 1, 1], [], []>} : vector<128x64xbf16>, vector<64x128xbf16>, vector<128x128xf32> -> vector<128x128xf32>
    %68 = arith.addf %62, %67 : vector<128x128xf32>
    %c0_42 = arith.constant 0 : index
    %c2 = arith.constant 2 : index
    %c0_43 = arith.constant 0 : index
    %69 = vector.load %arg9[%c0_42, %c2, %c0_43] : memref<10x18x64xbf16, #tpu.memory_space<vmem>>, vector<8x16x64xbf16>
    %70 = vector.shape_cast %69 : vector<8x16x64xbf16> to vector<128x64xbf16>
    %c2_44 = arith.constant 2 : index
    %c0_45 = arith.constant 0 : index
    %c0_46 = arith.constant 0 : index
    %71 = vector.load %arg3[%c2_44, %c0_45, %c0_46] : memref<9x64x128xbf16, #tpu.memory_space<vmem>>, vector<1x64x128xbf16>
    %72 = vector.shape_cast %71 : vector<1x64x128xbf16> to vector<64x128xbf16>
    %cst_47 = arith.constant dense<0.000000e+00> : vector<128x128xf32>
    %73 = tpu.matmul %70, %72, %cst_47 {dimension_numbers = #tpu.dot_dimension_numbers<[1], [0], [0], [1], [0, 0, 1, 1], [], []>} : vector<128x64xbf16>, vector<64x128xbf16>, vector<128x128xf32> -> vector<128x128xf32>
    %74 = arith.addf %68, %73 : vector<128x128xf32>
    %c1_48 = arith.constant 1 : index
    %c0_49 = arith.constant 0 : index
    %c0_50 = arith.constant 0 : index
    %75 = vector.load %arg9[%c1_48, %c0_49, %c0_50] : memref<10x18x64xbf16, #tpu.memory_space<vmem>>, vector<8x16x64xbf16>
    %76 = vector.shape_cast %75 : vector<8x16x64xbf16> to vector<128x64xbf16>
    %c3 = arith.constant 3 : index
    %c0_51 = arith.constant 0 : index
    %c0_52 = arith.constant 0 : index
    %77 = vector.load %arg3[%c3, %c0_51, %c0_52] : memref<9x64x128xbf16, #tpu.memory_space<vmem>>, vector<1x64x128xbf16>
    %78 = vector.shape_cast %77 : vector<1x64x128xbf16> to vector<64x128xbf16>
    %cst_53 = arith.constant dense<0.000000e+00> : vector<128x128xf32>
    %79 = tpu.matmul %76, %78, %cst_53 {dimension_numbers = #tpu.dot_dimension_numbers<[1], [0], [0], [1], [0, 0, 1, 1], [], []>} : vector<128x64xbf16>, vector<64x128xbf16>, vector<128x128xf32> -> vector<128x128xf32>
    %80 = arith.addf %74, %79 : vector<128x128xf32>
    %c1_54 = arith.constant 1 : index
    %c1_55 = arith.constant 1 : index
    %c0_56 = arith.constant 0 : index
    %81 = vector.load %arg9[%c1_54, %c1_55, %c0_56] : memref<10x18x64xbf16, #tpu.memory_space<vmem>>, vector<8x16x64xbf16>
    %82 = vector.shape_cast %81 : vector<8x16x64xbf16> to vector<128x64xbf16>
    %c4 = arith.constant 4 : index
    %c0_57 = arith.constant 0 : index
    %c0_58 = arith.constant 0 : index
    %83 = vector.load %arg3[%c4, %c0_57, %c0_58] : memref<9x64x128xbf16, #tpu.memory_space<vmem>>, vector<1x64x128xbf16>
    %84 = vector.shape_cast %83 : vector<1x64x128xbf16> to vector<64x128xbf16>
    %cst_59 = arith.constant dense<0.000000e+00> : vector<128x128xf32>
    %85 = tpu.matmul %82, %84, %cst_59 {dimension_numbers = #tpu.dot_dimension_numbers<[1], [0], [0], [1], [0, 0, 1, 1], [], []>} : vector<128x64xbf16>, vector<64x128xbf16>, vector<128x128xf32> -> vector<128x128xf32>
    %86 = arith.addf %80, %85 : vector<128x128xf32>
    %c1_60 = arith.constant 1 : index
    %c2_61 = arith.constant 2 : index
    %c0_62 = arith.constant 0 : index
    %87 = vector.load %arg9[%c1_60, %c2_61, %c0_62] : memref<10x18x64xbf16, #tpu.memory_space<vmem>>, vector<8x16x64xbf16>
    %88 = vector.shape_cast %87 : vector<8x16x64xbf16> to vector<128x64xbf16>
    %c5 = arith.constant 5 : index
    %c0_63 = arith.constant 0 : index
    %c0_64 = arith.constant 0 : index
    %89 = vector.load %arg3[%c5, %c0_63, %c0_64] : memref<9x64x128xbf16, #tpu.memory_space<vmem>>, vector<1x64x128xbf16>
    %90 = vector.shape_cast %89 : vector<1x64x128xbf16> to vector<64x128xbf16>
    %cst_65 = arith.constant dense<0.000000e+00> : vector<128x128xf32>
    %91 = tpu.matmul %88, %90, %cst_65 {dimension_numbers = #tpu.dot_dimension_numbers<[1], [0], [0], [1], [0, 0, 1, 1], [], []>} : vector<128x64xbf16>, vector<64x128xbf16>, vector<128x128xf32> -> vector<128x128xf32>
    %92 = arith.addf %86, %91 : vector<128x128xf32>
    %c2_66 = arith.constant 2 : index
    %c0_67 = arith.constant 0 : index
    %c0_68 = arith.constant 0 : index
    %93 = vector.load %arg9[%c2_66, %c0_67, %c0_68] : memref<10x18x64xbf16, #tpu.memory_space<vmem>>, vector<8x16x64xbf16>
    %94 = vector.shape_cast %93 : vector<8x16x64xbf16> to vector<128x64xbf16>
    %c6 = arith.constant 6 : index
    %c0_69 = arith.constant 0 : index
    %c0_70 = arith.constant 0 : index
    %95 = vector.load %arg3[%c6, %c0_69, %c0_70] : memref<9x64x128xbf16, #tpu.memory_space<vmem>>, vector<1x64x128xbf16>
    %96 = vector.shape_cast %95 : vector<1x64x128xbf16> to vector<64x128xbf16>
    %cst_71 = arith.constant dense<0.000000e+00> : vector<128x128xf32>
    %97 = tpu.matmul %94, %96, %cst_71 {dimension_numbers = #tpu.dot_dimension_numbers<[1], [0], [0], [1], [0, 0, 1, 1], [], []>} : vector<128x64xbf16>, vector<64x128xbf16>, vector<128x128xf32> -> vector<128x128xf32>
    %98 = arith.addf %92, %97 : vector<128x128xf32>
    %c2_72 = arith.constant 2 : index
    %c1_73 = arith.constant 1 : index
    %c0_74 = arith.constant 0 : index
    %99 = vector.load %arg9[%c2_72, %c1_73, %c0_74] : memref<10x18x64xbf16, #tpu.memory_space<vmem>>, vector<8x16x64xbf16>
    %100 = vector.shape_cast %99 : vector<8x16x64xbf16> to vector<128x64xbf16>
    %c7 = arith.constant 7 : index
    %c0_75 = arith.constant 0 : index
    %c0_76 = arith.constant 0 : index
    %101 = vector.load %arg3[%c7, %c0_75, %c0_76] : memref<9x64x128xbf16, #tpu.memory_space<vmem>>, vector<1x64x128xbf16>
    %102 = vector.shape_cast %101 : vector<1x64x128xbf16> to vector<64x128xbf16>
    %cst_77 = arith.constant dense<0.000000e+00> : vector<128x128xf32>
    %103 = tpu.matmul %100, %102, %cst_77 {dimension_numbers = #tpu.dot_dimension_numbers<[1], [0], [0], [1], [0, 0, 1, 1], [], []>} : vector<128x64xbf16>, vector<64x128xbf16>, vector<128x128xf32> -> vector<128x128xf32>
    %104 = arith.addf %98, %103 : vector<128x128xf32>
    %c2_78 = arith.constant 2 : index
    %c2_79 = arith.constant 2 : index
    %c0_80 = arith.constant 0 : index
    %105 = vector.load %arg9[%c2_78, %c2_79, %c0_80] : memref<10x18x64xbf16, #tpu.memory_space<vmem>>, vector<8x16x64xbf16>
    %106 = vector.shape_cast %105 : vector<8x16x64xbf16> to vector<128x64xbf16>
    %c8 = arith.constant 8 : index
    %c0_81 = arith.constant 0 : index
    %c0_82 = arith.constant 0 : index
    %107 = vector.load %arg3[%c8, %c0_81, %c0_82] : memref<9x64x128xbf16, #tpu.memory_space<vmem>>, vector<1x64x128xbf16>
    %108 = vector.shape_cast %107 : vector<1x64x128xbf16> to vector<64x128xbf16>
    %cst_83 = arith.constant dense<0.000000e+00> : vector<128x128xf32>
    %109 = tpu.matmul %106, %108, %cst_83 {dimension_numbers = #tpu.dot_dimension_numbers<[1], [0], [0], [1], [0, 0, 1, 1], [], []>} : vector<128x64xbf16>, vector<64x128xbf16>, vector<128x128xf32> -> vector<128x128xf32>
    %110 = arith.addf %104, %109 : vector<128x128xf32>
    %cst_84 = arith.constant dense<0.000000e+00> : vector<128xf32>
    %111 = vector.multi_reduction <add>, %110, %cst_84 [0] : vector<128x128xf32> to vector<128xf32>
    %112 = vector.shape_cast %111 : vector<128xf32> to vector<1x128xf32>
    %cst_85 = arith.constant 7.812500e-03 : f32
    %113 = vector.broadcast %cst_85 : f32 to vector<1x128xf32>
    %114 = arith.mulf %112, %113 : vector<1x128xf32>
    %115 = vector.broadcast %114 : vector<1x128xf32> to vector<128x128xf32>
    %116 = arith.subf %110, %115 : vector<128x128xf32>
    %117 = vector.shape_cast %112 : vector<1x128xf32> to vector<1x1x128xf32>
    %c0_86 = arith.constant 0 : index
    %c0_87 = arith.constant 0 : index
    %c0_88 = arith.constant 0 : index
    %118 = vector.load %arg7[%c0_86, %c0_87, %c0_88] : memref<1x1x128xf32, #tpu.memory_space<vmem>>, vector<1x1x128xf32>
    tpu.vector_store %arg7[%c0_86, %c0_87, %c0_88], %117 {strides = array<i32>} : memref<1x1x128xf32, #tpu.memory_space<vmem>>, vector<1x1x128xf32>,
    %119 = arith.mulf %116, %116 : vector<128x128xf32>
    %cst_89 = arith.constant dense<0.000000e+00> : vector<128xf32>
    %120 = vector.multi_reduction <add>, %119, %cst_89 [0] : vector<128x128xf32> to vector<128xf32>
    %121 = vector.shape_cast %120 : vector<128xf32> to vector<1x128xf32>
    %122 = vector.shape_cast %121 : vector<1x128xf32> to vector<1x1x128xf32>
    %c0_90 = arith.constant 0 : index
    %c0_91 = arith.constant 0 : index
    %c0_92 = arith.constant 0 : index
    %123 = vector.load %arg8[%c0_90, %c0_91, %c0_92] : memref<1x1x128xf32, #tpu.memory_space<vmem>>, vector<1x1x128xf32>
    tpu.vector_store %arg8[%c0_90, %c0_91, %c0_92], %122 {strides = array<i32>} : memref<1x1x128xf32, #tpu.memory_space<vmem>>, vector<1x1x128xf32>,
    %124 = vector.shape_cast %110 : vector<128x128xf32> to vector<1x8x16x128xf32>
    %125 = arith.truncf %124 : vector<1x8x16x128xf32> to vector<1x8x16x128xbf16>
    %c0_93 = arith.constant 0 : index
    %c0_94 = arith.constant 0 : index
    %c0_95 = arith.constant 0 : index
    %c0_96 = arith.constant 0 : index
    %126 = vector.load %arg6[%c0_93, %c0_94, %c0_95, %c0_96] : memref<1x8x16x128xbf16, #tpu.memory_space<vmem>>, vector<1x8x16x128xbf16>
    tpu.vector_store %arg6[%c0_93, %c0_94, %c0_95, %c0_96], %125 {strides = array<i32>} : memref<1x8x16x128xbf16, #tpu.memory_space<vmem>>, vector<1x8x16x128xbf16>,
    return
  }
  func.func @transform_0(%arg0: i32, %arg1: i32) -> (i32, i32, i32, i32) {
    %c0_i32 = arith.constant 0 : i32
    %c0_i32_0 = arith.constant 0 : i32
    %c0_i32_1 = arith.constant 0 : i32
    %c0_i32_2 = arith.constant 0 : i32
    return %arg0, %c0_i32, %c0_i32_0, %c0_i32_1 : i32, i32, i32, i32
  }
  func.func @transform_1(%arg0: i32, %arg1: i32) -> (i32, i32, i32) {
    %c0_i32 = arith.constant 0 : i32
    %c0_i32_0 = arith.constant 0 : i32
    %c0_i32_1 = arith.constant 0 : i32
    %c0_i32_2 = arith.constant 0 : i32
    return %c0_i32, %c0_i32_0, %c0_i32_1 : i32, i32, i32
  }
  func.func @transform_2(%arg0: i32, %arg1: i32) -> (i32, i32) {
    %c0_i32 = arith.constant 0 : i32
    %c0_i32_0 = arith.constant 0 : i32
    %c0_i32_1 = arith.constant 0 : i32
    return %c0_i32, %c0_i32_0 : i32, i32
  }
  func.func @transform_3(%arg0: i32, %arg1: i32) -> (i32, i32) {
    %c0_i32 = arith.constant 0 : i32
    %c0_i32_0 = arith.constant 0 : i32
    %c0_i32_1 = arith.constant 0 : i32
    return %c0_i32, %c0_i32_0 : i32, i32
  }
  func.func @transform_4(%arg0: i32, %arg1: i32) -> (i32, i32, i32, i32) {
    %c0_i32 = arith.constant 0 : i32
    %c0_i32_0 = arith.constant 0 : i32
    %c0_i32_1 = arith.constant 0 : i32
    return %arg0, %arg1, %c0_i32, %c0_i32_0 : i32, i32, i32, i32
  }
  func.func @transform_5(%arg0: i32, %arg1: i32) -> (i32, i32, i32) {
    %c2_i32 = arith.constant 2 : i32
    %0 = arith.muli %arg0, %c2_i32 : i32
    %1 = arith.addi %0, %arg1 : i32
    %c0_i32 = arith.constant 0 : i32
    %c0_i32_0 = arith.constant 0 : i32
    %c0_i32_1 = arith.constant 0 : i32
    return %1, %c0_i32, %c0_i32_0 : i32, i32, i32
  }
  func.func @transform_6(%arg0: i32, %arg1: i32) -> (i32, i32, i32) {
    %c2_i32 = arith.constant 2 : i32
    %0 = arith.muli %arg0, %c2_i32 : i32
    %1 = arith.addi %0, %arg1 : i32
    %c0_i32 = arith.constant 0 : i32
    %c0_i32_0 = arith.constant 0 : i32
    %c0_i32_1 = arith.constant 0 : i32
    return %1, %c0_i32, %c0_i32_0 : i32, i32, i32
  }
}

module attributes {stable_mosaic.version = 11 : i64} {
  func.func @_conv_block_kernel(%arg0: i32, %arg1: i32, %arg2: memref<1x16x16x128xbf16, #tpu.memory_space<vmem>>, %arg3: memref<9x64x128xbf16, #tpu.memory_space<vmem>>, %arg4: memref<1x64xf32, #tpu.memory_space<vmem>>, %arg5: memref<1x64xf32, #tpu.memory_space<vmem>>, %arg6: memref<1x8x16x128xbf16, #tpu.memory_space<vmem>>, %arg7: memref<1x1x128xf32, #tpu.memory_space<vmem>>, %arg8: memref<1x1x128xf32, #tpu.memory_space<vmem>>, %arg9: memref<10x18x64xbf16, #tpu.memory_space<vmem>>) attributes {dimension_semantics = [#tpu.dimension_semantics<parallel>, #tpu.dimension_semantics<parallel>], iteration_bounds = array<i64: 2, 2>, scalar_prefetch = 0 : i64, scratch_operands = 1 : i64, tpu.core_type = #tpu.core_type<tc>, window_params = [{transform_indices = @transform_0, window_bounds = array<i64: 1, 16, 16, 128>}, {pipeline_mode = #tpu.pipeline_mode<synchronous>, transform_indices = @transform_1, window_bounds = array<i64: 9, 64, 128>}, {pipeline_mode = #tpu.pipeline_mode<synchronous>, transform_indices = @transform_2, window_bounds = array<i64: 1, 64>}, {pipeline_mode = #tpu.pipeline_mode<synchronous>, transform_indices = @transform_3, window_bounds = array<i64: 1, 64>}, {transform_indices = @transform_4, window_bounds = array<i64: 1, 8, 16, 128>}, {transform_indices = @transform_5, window_bounds = array<i64: 1, 1, 128>}, {transform_indices = @transform_6, window_bounds = array<i64: 1, 1, 128>}]} {
    %c8_i32 = arith.constant 8 : i32
    %0 = arith.muli %arg1, %c8_i32 : i32
    %1 = tpu.assume_multiple %0, 8 : i32
    %c0 = arith.constant 0 : index
    %c0_0 = arith.constant 0 : index
    %2 = vector.load %arg4[%c0, %c0_0] : memref<1x64xf32, #tpu.memory_space<vmem>>, vector<1x64xf32>
    %3 = vector.shape_cast %2 : vector<1x64xf32> to vector<1x1x64xf32>
    %c0_1 = arith.constant 0 : index
    %c0_2 = arith.constant 0 : index
    %4 = vector.load %arg5[%c0_1, %c0_2] : memref<1x64xf32, #tpu.memory_space<vmem>>, vector<1x64xf32>
    %5 = vector.shape_cast %4 : vector<1x64xf32> to vector<1x1x64xf32>
    %cst = arith.constant 0.000000e+00 : bf16
    %6 = vector.broadcast %cst : bf16 to vector<10x1x64xbf16>
    %c0_3 = arith.constant 0 : index
    %c0_4 = arith.constant 0 : index
    %c0_5 = arith.constant 0 : index
    %7 = vector.load %arg9[%c0_3, %c0_4, %c0_5] : memref<10x18x64xbf16, #tpu.memory_space<vmem>>, vector<10x1x64xbf16>
    tpu.vector_store %arg9[%c0_3, %c0_4, %c0_5], %6 {strides = array<i32>} : memref<10x18x64xbf16, #tpu.memory_space<vmem>>, vector<10x1x64xbf16>,
    %c0_6 = arith.constant 0 : index
    %c17 = arith.constant 17 : index
    %c0_7 = arith.constant 0 : index
    %8 = vector.load %arg9[%c0_6, %c17, %c0_7] : memref<10x18x64xbf16, #tpu.memory_space<vmem>>, vector<10x1x64xbf16>
    tpu.vector_store %arg9[%c0_6, %c17, %c0_7], %6 {strides = array<i32>} : memref<10x18x64xbf16, #tpu.memory_space<vmem>>, vector<10x1x64xbf16>,
    %c0_i32 = arith.constant 0 : i32
    %9 = arith.cmpi sgt, %arg1, %c0_i32 : i32
    %10 = arith.extui %9 : i1 to i32
    %11 = arith.sitofp %10 : i32 to f32
    %c1_i32 = arith.constant 1 : i32
    %12 = arith.cmpi slt, %arg1, %c1_i32 : i32
    %13 = arith.extui %12 : i1 to i32
    %14 = arith.sitofp %13 : i32 to f32
    %c1_i32_8 = arith.constant 1 : i32
    %15 = arith.subi %1, %c1_i32_8 : i32
    %c0_i32_9 = arith.constant 0 : i32
    %16 = arith.maxsi %15, %c0_i32_9 : i32
    %c0_10 = arith.constant 0 : index
    %17 = arith.index_cast %16 : i32 to index
    %c0_11 = arith.constant 0 : index
    %c0_12 = arith.constant 0 : index
    %18 = vector.load %arg2[%c0_10, %17, %c0_11, %c0_12] : memref<1x16x16x128xbf16, #tpu.memory_space<vmem>>, vector<1x1x16x128xbf16>
    %19 = vector.shape_cast %18 : vector<1x1x16x128xbf16> to vector<1x16x128xbf16>
    %20 = vector.extract_strided_slice %19 {offsets = [0, 0, 0], sizes = [1, 16, 64], strides = [1, 1, 1]} : vector<1x16x128xbf16> to vector<1x16x64xbf16>
    %21 = arith.extf %20 : vector<1x16x64xbf16> to vector<1x16x64xf32>
    %22 = vector.broadcast %3 : vector<1x1x64xf32> to vector<1x16x64xf32>
    %23 = arith.mulf %21, %22 : vector<1x16x64xf32>
    %24 = vector.broadcast %5 : vector<1x1x64xf32> to vector<1x16x64xf32>
    %25 = arith.addf %23, %24 : vector<1x16x64xf32>
    %cst_13 = arith.constant 0.000000e+00 : f32
    %26 = vector.broadcast %cst_13 : f32 to vector<1x16x64xf32>
    %27 = arith.maximumf %25, %26 : vector<1x16x64xf32>
    %28 = vector.broadcast %11 : f32 to vector<1x16x64xf32>
    %29 = arith.mulf %27, %28 : vector<1x16x64xf32>
    %c8_i32_14 = arith.constant 8 : i32
    %30 = arith.addi %1, %c8_i32_14 : i32
    %c15_i32 = arith.constant 15 : i32
    %31 = arith.minsi %30, %c15_i32 : i32
    %c0_15 = arith.constant 0 : index
    %32 = arith.index_cast %31 : i32 to index
    %c0_16 = arith.constant 0 : index
    %c0_17 = arith.constant 0 : index
    %33 = vector.load %arg2[%c0_15, %32, %c0_16, %c0_17] : memref<1x16x16x128xbf16, #tpu.memory_space<vmem>>, vector<1x1x16x128xbf16>
    %34 = vector.shape_cast %33 : vector<1x1x16x128xbf16> to vector<1x16x128xbf16>
    %35 = vector.extract_strided_slice %34 {offsets = [0, 0, 0], sizes = [1, 16, 64], strides = [1, 1, 1]} : vector<1x16x128xbf16> to vector<1x16x64xbf16>
    %36 = arith.extf %35 : vector<1x16x64xbf16> to vector<1x16x64xf32>
    %37 = vector.broadcast %3 : vector<1x1x64xf32> to vector<1x16x64xf32>
    %38 = arith.mulf %36, %37 : vector<1x16x64xf32>
    %39 = vector.broadcast %5 : vector<1x1x64xf32> to vector<1x16x64xf32>
    %40 = arith.addf %38, %39 : vector<1x16x64xf32>
    %cst_18 = arith.constant 0.000000e+00 : f32
    %41 = vector.broadcast %cst_18 : f32 to vector<1x16x64xf32>
    %42 = arith.maximumf %40, %41 : vector<1x16x64xf32>
    %43 = vector.broadcast %14 : f32 to vector<1x16x64xf32>
    %44 = arith.mulf %42, %43 : vector<1x16x64xf32>
    %45 = arith.truncf %29 : vector<1x16x64xf32> to vector<1x16x64xbf16>
    %c0_19 = arith.constant 0 : index
    %c1 = arith.constant 1 : index
    %c0_20 = arith.constant 0 : index
    %46 = vector.load %arg9[%c0_19, %c1, %c0_20] : memref<10x18x64xbf16, #tpu.memory_space<vmem>>, vector<1x16x64xbf16>
    tpu.vector_store %arg9[%c0_19, %c1, %c0_20], %45 {strides = array<i32>} : memref<10x18x64xbf16, #tpu.memory_space<vmem>>, vector<1x16x64xbf16>,
    %47 = arith.truncf %44 : vector<1x16x64xf32> to vector<1x16x64xbf16>
    %c9 = arith.constant 9 : index
    %c1_21 = arith.constant 1 : index
    %c0_22 = arith.constant 0 : index
    %48 = vector.load %arg9[%c9, %c1_21, %c0_22] : memref<10x18x64xbf16, #tpu.memory_space<vmem>>, vector<1x16x64xbf16>
    tpu.vector_store %arg9[%c9, %c1_21, %c0_22], %47 {strides = array<i32>} : memref<10x18x64xbf16, #tpu.memory_space<vmem>>, vector<1x16x64xbf16>,
    %c0_23 = arith.constant 0 : index
    %49 = arith.index_cast %1 : i32 to index
    %c0_24 = arith.constant 0 : index
    %c0_25 = arith.constant 0 : index
    %50 = vector.load %arg2[%c0_23, %49, %c0_24, %c0_25] : memref<1x16x16x128xbf16, #tpu.memory_space<vmem>>, vector<1x8x16x128xbf16>
    %51 = vector.shape_cast %50 : vector<1x8x16x128xbf16> to vector<8x16x128xbf16>
    %52 = vector.extract_strided_slice %51 {offsets = [0, 0, 0], sizes = [8, 16, 64], strides = [1, 1, 1]} : vector<8x16x128xbf16> to vector<8x16x64xbf16>
    %53 = arith.extf %52 : vector<8x16x64xbf16> to vector<8x16x64xf32>
    %54 = vector.broadcast %3 : vector<1x1x64xf32> to vector<8x16x64xf32>
    %55 = arith.mulf %53, %54 : vector<8x16x64xf32>
    %56 = vector.broadcast %5 : vector<1x1x64xf32> to vector<8x16x64xf32>
    %57 = arith.addf %55, %56 : vector<8x16x64xf32>
    %cst_26 = arith.constant 0.000000e+00 : f32
    %58 = vector.broadcast %cst_26 : f32 to vector<8x16x64xf32>
    %59 = arith.maximumf %57, %58 : vector<8x16x64xf32>
    %60 = arith.truncf %59 : vector<8x16x64xf32> to vector<8x16x64xbf16>
    %c1_27 = arith.constant 1 : index
    %c1_28 = arith.constant 1 : index
    %c0_29 = arith.constant 0 : index
    %61 = vector.load %arg9[%c1_27, %c1_28, %c0_29] : memref<10x18x64xbf16, #tpu.memory_space<vmem>>, vector<8x16x64xbf16>
    tpu.vector_store %arg9[%c1_27, %c1_28, %c0_29], %60 {strides = array<i32>} : memref<10x18x64xbf16, #tpu.memory_space<vmem>>, vector<8x16x64xbf16>,
    %cst_30 = arith.constant 0.000000e+00 : f32
    %62 = vector.broadcast %cst_30 : f32 to vector<128x128xf32>
    %c0_31 = arith.constant 0 : index
    %c0_32 = arith.constant 0 : index
    %c0_33 = arith.constant 0 : index
    %63 = vector.load %arg9[%c0_31, %c0_32, %c0_33] : memref<10x18x64xbf16, #tpu.memory_space<vmem>>, vector<8x16x64xbf16>
    %64 = vector.shape_cast %63 : vector<8x16x64xbf16> to vector<128x64xbf16>
    %c0_34 = arith.constant 0 : index
    %c0_35 = arith.constant 0 : index
    %c0_36 = arith.constant 0 : index
    %65 = vector.load %arg3[%c0_34, %c0_35, %c0_36] : memref<9x64x128xbf16, #tpu.memory_space<vmem>>, vector<1x64x128xbf16>
    %66 = vector.shape_cast %65 : vector<1x64x128xbf16> to vector<64x128xbf16>
    %cst_37 = arith.constant dense<0.000000e+00> : vector<128x128xf32>
    %67 = tpu.matmul %64, %66, %cst_37 {dimension_numbers = #tpu.dot_dimension_numbers<[1], [0], [0], [1], [0, 0, 1, 1], [], []>} : vector<128x64xbf16>, vector<64x128xbf16>, vector<128x128xf32> -> vector<128x128xf32>
    %68 = arith.addf %62, %67 : vector<128x128xf32>
    %c0_38 = arith.constant 0 : index
    %c1_39 = arith.constant 1 : index
    %c0_40 = arith.constant 0 : index
    %69 = vector.load %arg9[%c0_38, %c1_39, %c0_40] : memref<10x18x64xbf16, #tpu.memory_space<vmem>>, vector<8x16x64xbf16>
    %70 = vector.shape_cast %69 : vector<8x16x64xbf16> to vector<128x64xbf16>
    %c1_41 = arith.constant 1 : index
    %c0_42 = arith.constant 0 : index
    %c0_43 = arith.constant 0 : index
    %71 = vector.load %arg3[%c1_41, %c0_42, %c0_43] : memref<9x64x128xbf16, #tpu.memory_space<vmem>>, vector<1x64x128xbf16>
    %72 = vector.shape_cast %71 : vector<1x64x128xbf16> to vector<64x128xbf16>
    %cst_44 = arith.constant dense<0.000000e+00> : vector<128x128xf32>
    %73 = tpu.matmul %70, %72, %cst_44 {dimension_numbers = #tpu.dot_dimension_numbers<[1], [0], [0], [1], [0, 0, 1, 1], [], []>} : vector<128x64xbf16>, vector<64x128xbf16>, vector<128x128xf32> -> vector<128x128xf32>
    %74 = arith.addf %68, %73 : vector<128x128xf32>
    %c0_45 = arith.constant 0 : index
    %c2 = arith.constant 2 : index
    %c0_46 = arith.constant 0 : index
    %75 = vector.load %arg9[%c0_45, %c2, %c0_46] : memref<10x18x64xbf16, #tpu.memory_space<vmem>>, vector<8x16x64xbf16>
    %76 = vector.shape_cast %75 : vector<8x16x64xbf16> to vector<128x64xbf16>
    %c2_47 = arith.constant 2 : index
    %c0_48 = arith.constant 0 : index
    %c0_49 = arith.constant 0 : index
    %77 = vector.load %arg3[%c2_47, %c0_48, %c0_49] : memref<9x64x128xbf16, #tpu.memory_space<vmem>>, vector<1x64x128xbf16>
    %78 = vector.shape_cast %77 : vector<1x64x128xbf16> to vector<64x128xbf16>
    %cst_50 = arith.constant dense<0.000000e+00> : vector<128x128xf32>
    %79 = tpu.matmul %76, %78, %cst_50 {dimension_numbers = #tpu.dot_dimension_numbers<[1], [0], [0], [1], [0, 0, 1, 1], [], []>} : vector<128x64xbf16>, vector<64x128xbf16>, vector<128x128xf32> -> vector<128x128xf32>
    %80 = arith.addf %74, %79 : vector<128x128xf32>
    %c1_51 = arith.constant 1 : index
    %c0_52 = arith.constant 0 : index
    %c0_53 = arith.constant 0 : index
    %81 = vector.load %arg9[%c1_51, %c0_52, %c0_53] : memref<10x18x64xbf16, #tpu.memory_space<vmem>>, vector<8x16x64xbf16>
    %82 = vector.shape_cast %81 : vector<8x16x64xbf16> to vector<128x64xbf16>
    %c3 = arith.constant 3 : index
    %c0_54 = arith.constant 0 : index
    %c0_55 = arith.constant 0 : index
    %83 = vector.load %arg3[%c3, %c0_54, %c0_55] : memref<9x64x128xbf16, #tpu.memory_space<vmem>>, vector<1x64x128xbf16>
    %84 = vector.shape_cast %83 : vector<1x64x128xbf16> to vector<64x128xbf16>
    %cst_56 = arith.constant dense<0.000000e+00> : vector<128x128xf32>
    %85 = tpu.matmul %82, %84, %cst_56 {dimension_numbers = #tpu.dot_dimension_numbers<[1], [0], [0], [1], [0, 0, 1, 1], [], []>} : vector<128x64xbf16>, vector<64x128xbf16>, vector<128x128xf32> -> vector<128x128xf32>
    %86 = arith.addf %80, %85 : vector<128x128xf32>
    %c1_57 = arith.constant 1 : index
    %c1_58 = arith.constant 1 : index
    %c0_59 = arith.constant 0 : index
    %87 = vector.load %arg9[%c1_57, %c1_58, %c0_59] : memref<10x18x64xbf16, #tpu.memory_space<vmem>>, vector<8x16x64xbf16>
    %88 = vector.shape_cast %87 : vector<8x16x64xbf16> to vector<128x64xbf16>
    %c4 = arith.constant 4 : index
    %c0_60 = arith.constant 0 : index
    %c0_61 = arith.constant 0 : index
    %89 = vector.load %arg3[%c4, %c0_60, %c0_61] : memref<9x64x128xbf16, #tpu.memory_space<vmem>>, vector<1x64x128xbf16>
    %90 = vector.shape_cast %89 : vector<1x64x128xbf16> to vector<64x128xbf16>
    %cst_62 = arith.constant dense<0.000000e+00> : vector<128x128xf32>
    %91 = tpu.matmul %88, %90, %cst_62 {dimension_numbers = #tpu.dot_dimension_numbers<[1], [0], [0], [1], [0, 0, 1, 1], [], []>} : vector<128x64xbf16>, vector<64x128xbf16>, vector<128x128xf32> -> vector<128x128xf32>
    %92 = arith.addf %86, %91 : vector<128x128xf32>
    %c1_63 = arith.constant 1 : index
    %c2_64 = arith.constant 2 : index
    %c0_65 = arith.constant 0 : index
    %93 = vector.load %arg9[%c1_63, %c2_64, %c0_65] : memref<10x18x64xbf16, #tpu.memory_space<vmem>>, vector<8x16x64xbf16>
    %94 = vector.shape_cast %93 : vector<8x16x64xbf16> to vector<128x64xbf16>
    %c5 = arith.constant 5 : index
    %c0_66 = arith.constant 0 : index
    %c0_67 = arith.constant 0 : index
    %95 = vector.load %arg3[%c5, %c0_66, %c0_67] : memref<9x64x128xbf16, #tpu.memory_space<vmem>>, vector<1x64x128xbf16>
    %96 = vector.shape_cast %95 : vector<1x64x128xbf16> to vector<64x128xbf16>
    %cst_68 = arith.constant dense<0.000000e+00> : vector<128x128xf32>
    %97 = tpu.matmul %94, %96, %cst_68 {dimension_numbers = #tpu.dot_dimension_numbers<[1], [0], [0], [1], [0, 0, 1, 1], [], []>} : vector<128x64xbf16>, vector<64x128xbf16>, vector<128x128xf32> -> vector<128x128xf32>
    %98 = arith.addf %92, %97 : vector<128x128xf32>
    %c2_69 = arith.constant 2 : index
    %c0_70 = arith.constant 0 : index
    %c0_71 = arith.constant 0 : index
    %99 = vector.load %arg9[%c2_69, %c0_70, %c0_71] : memref<10x18x64xbf16, #tpu.memory_space<vmem>>, vector<8x16x64xbf16>
    %100 = vector.shape_cast %99 : vector<8x16x64xbf16> to vector<128x64xbf16>
    %c6 = arith.constant 6 : index
    %c0_72 = arith.constant 0 : index
    %c0_73 = arith.constant 0 : index
    %101 = vector.load %arg3[%c6, %c0_72, %c0_73] : memref<9x64x128xbf16, #tpu.memory_space<vmem>>, vector<1x64x128xbf16>
    %102 = vector.shape_cast %101 : vector<1x64x128xbf16> to vector<64x128xbf16>
    %cst_74 = arith.constant dense<0.000000e+00> : vector<128x128xf32>
    %103 = tpu.matmul %100, %102, %cst_74 {dimension_numbers = #tpu.dot_dimension_numbers<[1], [0], [0], [1], [0, 0, 1, 1], [], []>} : vector<128x64xbf16>, vector<64x128xbf16>, vector<128x128xf32> -> vector<128x128xf32>
    %104 = arith.addf %98, %103 : vector<128x128xf32>
    %c2_75 = arith.constant 2 : index
    %c1_76 = arith.constant 1 : index
    %c0_77 = arith.constant 0 : index
    %105 = vector.load %arg9[%c2_75, %c1_76, %c0_77] : memref<10x18x64xbf16, #tpu.memory_space<vmem>>, vector<8x16x64xbf16>
    %106 = vector.shape_cast %105 : vector<8x16x64xbf16> to vector<128x64xbf16>
    %c7 = arith.constant 7 : index
    %c0_78 = arith.constant 0 : index
    %c0_79 = arith.constant 0 : index
    %107 = vector.load %arg3[%c7, %c0_78, %c0_79] : memref<9x64x128xbf16, #tpu.memory_space<vmem>>, vector<1x64x128xbf16>
    %108 = vector.shape_cast %107 : vector<1x64x128xbf16> to vector<64x128xbf16>
    %cst_80 = arith.constant dense<0.000000e+00> : vector<128x128xf32>
    %109 = tpu.matmul %106, %108, %cst_80 {dimension_numbers = #tpu.dot_dimension_numbers<[1], [0], [0], [1], [0, 0, 1, 1], [], []>} : vector<128x64xbf16>, vector<64x128xbf16>, vector<128x128xf32> -> vector<128x128xf32>
    %110 = arith.addf %104, %109 : vector<128x128xf32>
    %c2_81 = arith.constant 2 : index
    %c2_82 = arith.constant 2 : index
    %c0_83 = arith.constant 0 : index
    %111 = vector.load %arg9[%c2_81, %c2_82, %c0_83] : memref<10x18x64xbf16, #tpu.memory_space<vmem>>, vector<8x16x64xbf16>
    %112 = vector.shape_cast %111 : vector<8x16x64xbf16> to vector<128x64xbf16>
    %c8 = arith.constant 8 : index
    %c0_84 = arith.constant 0 : index
    %c0_85 = arith.constant 0 : index
    %113 = vector.load %arg3[%c8, %c0_84, %c0_85] : memref<9x64x128xbf16, #tpu.memory_space<vmem>>, vector<1x64x128xbf16>
    %114 = vector.shape_cast %113 : vector<1x64x128xbf16> to vector<64x128xbf16>
    %cst_86 = arith.constant dense<0.000000e+00> : vector<128x128xf32>
    %115 = tpu.matmul %112, %114, %cst_86 {dimension_numbers = #tpu.dot_dimension_numbers<[1], [0], [0], [1], [0, 0, 1, 1], [], []>} : vector<128x64xbf16>, vector<64x128xbf16>, vector<128x128xf32> -> vector<128x128xf32>
    %116 = arith.addf %110, %115 : vector<128x128xf32>
    %cst_87 = arith.constant dense<0.000000e+00> : vector<128xf32>
    %117 = vector.multi_reduction <add>, %116, %cst_87 [0] : vector<128x128xf32> to vector<128xf32>
    %118 = vector.shape_cast %117 : vector<128xf32> to vector<1x128xf32>
    %cst_88 = arith.constant 7.812500e-03 : f32
    %119 = vector.broadcast %cst_88 : f32 to vector<1x128xf32>
    %120 = arith.mulf %118, %119 : vector<1x128xf32>
    %121 = vector.broadcast %120 : vector<1x128xf32> to vector<128x128xf32>
    %122 = arith.subf %116, %121 : vector<128x128xf32>
    %123 = vector.shape_cast %118 : vector<1x128xf32> to vector<1x1x128xf32>
    %c0_89 = arith.constant 0 : index
    %c0_90 = arith.constant 0 : index
    %c0_91 = arith.constant 0 : index
    %124 = vector.load %arg7[%c0_89, %c0_90, %c0_91] : memref<1x1x128xf32, #tpu.memory_space<vmem>>, vector<1x1x128xf32>
    tpu.vector_store %arg7[%c0_89, %c0_90, %c0_91], %123 {strides = array<i32>} : memref<1x1x128xf32, #tpu.memory_space<vmem>>, vector<1x1x128xf32>,
    %125 = arith.mulf %122, %122 : vector<128x128xf32>
    %cst_92 = arith.constant dense<0.000000e+00> : vector<128xf32>
    %126 = vector.multi_reduction <add>, %125, %cst_92 [0] : vector<128x128xf32> to vector<128xf32>
    %127 = vector.shape_cast %126 : vector<128xf32> to vector<1x128xf32>
    %128 = vector.shape_cast %127 : vector<1x128xf32> to vector<1x1x128xf32>
    %c0_93 = arith.constant 0 : index
    %c0_94 = arith.constant 0 : index
    %c0_95 = arith.constant 0 : index
    %129 = vector.load %arg8[%c0_93, %c0_94, %c0_95] : memref<1x1x128xf32, #tpu.memory_space<vmem>>, vector<1x1x128xf32>
    tpu.vector_store %arg8[%c0_93, %c0_94, %c0_95], %128 {strides = array<i32>} : memref<1x1x128xf32, #tpu.memory_space<vmem>>, vector<1x1x128xf32>,
    %130 = vector.shape_cast %116 : vector<128x128xf32> to vector<1x8x16x128xf32>
    %131 = arith.truncf %130 : vector<1x8x16x128xf32> to vector<1x8x16x128xbf16>
    %c0_96 = arith.constant 0 : index
    %c0_97 = arith.constant 0 : index
    %c0_98 = arith.constant 0 : index
    %c0_99 = arith.constant 0 : index
    %132 = vector.load %arg6[%c0_96, %c0_97, %c0_98, %c0_99] : memref<1x8x16x128xbf16, #tpu.memory_space<vmem>>, vector<1x8x16x128xbf16>
    tpu.vector_store %arg6[%c0_96, %c0_97, %c0_98, %c0_99], %131 {strides = array<i32>} : memref<1x8x16x128xbf16, #tpu.memory_space<vmem>>, vector<1x8x16x128xbf16>,
    return
  }
  func.func @transform_0(%arg0: i32, %arg1: i32) -> (i32, i32, i32, i32) {
    %c0_i32 = arith.constant 0 : i32
    %c0_i32_0 = arith.constant 0 : i32
    %c0_i32_1 = arith.constant 0 : i32
    %c0_i32_2 = arith.constant 0 : i32
    return %arg0, %c0_i32, %c0_i32_0, %c0_i32_1 : i32, i32, i32, i32
  }
  func.func @transform_1(%arg0: i32, %arg1: i32) -> (i32, i32, i32) {
    %c0_i32 = arith.constant 0 : i32
    %c0_i32_0 = arith.constant 0 : i32
    %c0_i32_1 = arith.constant 0 : i32
    %c0_i32_2 = arith.constant 0 : i32
    return %c0_i32, %c0_i32_0, %c0_i32_1 : i32, i32, i32
  }
  func.func @transform_2(%arg0: i32, %arg1: i32) -> (i32, i32) {
    %c0_i32 = arith.constant 0 : i32
    %c0_i32_0 = arith.constant 0 : i32
    %c0_i32_1 = arith.constant 0 : i32
    return %c0_i32, %c0_i32_0 : i32, i32
  }
  func.func @transform_3(%arg0: i32, %arg1: i32) -> (i32, i32) {
    %c0_i32 = arith.constant 0 : i32
    %c0_i32_0 = arith.constant 0 : i32
    %c0_i32_1 = arith.constant 0 : i32
    return %c0_i32, %c0_i32_0 : i32, i32
  }
  func.func @transform_4(%arg0: i32, %arg1: i32) -> (i32, i32, i32, i32) {
    %c0_i32 = arith.constant 0 : i32
    %c0_i32_0 = arith.constant 0 : i32
    %c0_i32_1 = arith.constant 0 : i32
    return %arg0, %arg1, %c0_i32, %c0_i32_0 : i32, i32, i32, i32
  }
  func.func @transform_5(%arg0: i32, %arg1: i32) -> (i32, i32, i32) {
    %c2_i32 = arith.constant 2 : i32
    %0 = arith.muli %arg0, %c2_i32 : i32
    %1 = arith.addi %0, %arg1 : i32
    %c0_i32 = arith.constant 0 : i32
    %c0_i32_0 = arith.constant 0 : i32
    %c0_i32_1 = arith.constant 0 : i32
    return %1, %c0_i32, %c0_i32_0 : i32, i32, i32
  }
  func.func @transform_6(%arg0: i32, %arg1: i32) -> (i32, i32, i32) {
    %c2_i32 = arith.constant 2 : i32
    %0 = arith.muli %arg0, %c2_i32 : i32
    %1 = arith.addi %0, %arg1 : i32
    %c0_i32 = arith.constant 0 : i32
    %c0_i32_0 = arith.constant 0 : i32
    %c0_i32_1 = arith.constant 0 : i32
    return %1, %c0_i32, %c0_i32_0 : i32, i32, i32
  }
}

module attributes {stable_mosaic.version = 11 : i64} {
  func.func @_conv_block_kernel(%arg0: i32, %arg1: i32, %arg2: memref<1x16x16x128xbf16, #tpu.memory_space<vmem>>, %arg3: memref<9x64x128xbf16, #tpu.memory_space<vmem>>, %arg4: memref<1x64xf32, #tpu.memory_space<vmem>>, %arg5: memref<1x64xf32, #tpu.memory_space<vmem>>, %arg6: memref<1x128xf32, #tpu.memory_space<vmem>>, %arg7: memref<1x8x16x128xf32, #tpu.memory_space<vmem>>, %arg8: memref<10x18x64xbf16, #tpu.memory_space<vmem>>) attributes {dimension_semantics = [#tpu.dimension_semantics<parallel>, #tpu.dimension_semantics<parallel>], iteration_bounds = array<i64: 2, 2>, scalar_prefetch = 0 : i64, scratch_operands = 1 : i64, tpu.core_type = #tpu.core_type<tc>, window_params = [{transform_indices = @transform_0, window_bounds = array<i64: 1, 16, 16, 128>}, {pipeline_mode = #tpu.pipeline_mode<synchronous>, transform_indices = @transform_1, window_bounds = array<i64: 9, 64, 128>}, {pipeline_mode = #tpu.pipeline_mode<synchronous>, transform_indices = @transform_2, window_bounds = array<i64: 1, 64>}, {pipeline_mode = #tpu.pipeline_mode<synchronous>, transform_indices = @transform_3, window_bounds = array<i64: 1, 64>}, {pipeline_mode = #tpu.pipeline_mode<synchronous>, transform_indices = @transform_4, window_bounds = array<i64: 1, 128>}, {transform_indices = @transform_5, window_bounds = array<i64: 1, 8, 16, 128>}]} {
    %c8_i32 = arith.constant 8 : i32
    %0 = arith.muli %arg1, %c8_i32 : i32
    %1 = tpu.assume_multiple %0, 8 : i32
    %c0 = arith.constant 0 : index
    %c0_0 = arith.constant 0 : index
    %2 = vector.load %arg4[%c0, %c0_0] : memref<1x64xf32, #tpu.memory_space<vmem>>, vector<1x64xf32>
    %3 = vector.shape_cast %2 : vector<1x64xf32> to vector<1x1x64xf32>
    %c0_1 = arith.constant 0 : index
    %c0_2 = arith.constant 0 : index
    %4 = vector.load %arg5[%c0_1, %c0_2] : memref<1x64xf32, #tpu.memory_space<vmem>>, vector<1x64xf32>
    %5 = vector.shape_cast %4 : vector<1x64xf32> to vector<1x1x64xf32>
    %cst = arith.constant 0.000000e+00 : bf16
    %6 = vector.broadcast %cst : bf16 to vector<10x1x64xbf16>
    %c0_3 = arith.constant 0 : index
    %c0_4 = arith.constant 0 : index
    %c0_5 = arith.constant 0 : index
    %7 = vector.load %arg8[%c0_3, %c0_4, %c0_5] : memref<10x18x64xbf16, #tpu.memory_space<vmem>>, vector<10x1x64xbf16>
    tpu.vector_store %arg8[%c0_3, %c0_4, %c0_5], %6 {strides = array<i32>} : memref<10x18x64xbf16, #tpu.memory_space<vmem>>, vector<10x1x64xbf16>,
    %c0_6 = arith.constant 0 : index
    %c17 = arith.constant 17 : index
    %c0_7 = arith.constant 0 : index
    %8 = vector.load %arg8[%c0_6, %c17, %c0_7] : memref<10x18x64xbf16, #tpu.memory_space<vmem>>, vector<10x1x64xbf16>
    tpu.vector_store %arg8[%c0_6, %c17, %c0_7], %6 {strides = array<i32>} : memref<10x18x64xbf16, #tpu.memory_space<vmem>>, vector<10x1x64xbf16>,
    %c0_i32 = arith.constant 0 : i32
    %9 = arith.cmpi sgt, %arg1, %c0_i32 : i32
    %10 = arith.extui %9 : i1 to i32
    %11 = arith.sitofp %10 : i32 to f32
    %c1_i32 = arith.constant 1 : i32
    %12 = arith.cmpi slt, %arg1, %c1_i32 : i32
    %13 = arith.extui %12 : i1 to i32
    %14 = arith.sitofp %13 : i32 to f32
    %c1_i32_8 = arith.constant 1 : i32
    %15 = arith.subi %1, %c1_i32_8 : i32
    %c0_i32_9 = arith.constant 0 : i32
    %16 = arith.maxsi %15, %c0_i32_9 : i32
    %c0_10 = arith.constant 0 : index
    %17 = arith.index_cast %16 : i32 to index
    %c0_11 = arith.constant 0 : index
    %c0_12 = arith.constant 0 : index
    %18 = vector.load %arg2[%c0_10, %17, %c0_11, %c0_12] : memref<1x16x16x128xbf16, #tpu.memory_space<vmem>>, vector<1x1x16x128xbf16>
    %19 = vector.shape_cast %18 : vector<1x1x16x128xbf16> to vector<1x16x128xbf16>
    %20 = vector.extract_strided_slice %19 {offsets = [0, 0, 0], sizes = [1, 16, 64], strides = [1, 1, 1]} : vector<1x16x128xbf16> to vector<1x16x64xbf16>
    %21 = arith.extf %20 : vector<1x16x64xbf16> to vector<1x16x64xf32>
    %22 = vector.broadcast %3 : vector<1x1x64xf32> to vector<1x16x64xf32>
    %23 = arith.mulf %21, %22 : vector<1x16x64xf32>
    %24 = vector.broadcast %5 : vector<1x1x64xf32> to vector<1x16x64xf32>
    %25 = arith.addf %23, %24 : vector<1x16x64xf32>
    %cst_13 = arith.constant 0.000000e+00 : f32
    %26 = vector.broadcast %cst_13 : f32 to vector<1x16x64xf32>
    %27 = arith.maximumf %25, %26 : vector<1x16x64xf32>
    %28 = vector.broadcast %11 : f32 to vector<1x16x64xf32>
    %29 = arith.mulf %27, %28 : vector<1x16x64xf32>
    %c8_i32_14 = arith.constant 8 : i32
    %30 = arith.addi %1, %c8_i32_14 : i32
    %c15_i32 = arith.constant 15 : i32
    %31 = arith.minsi %30, %c15_i32 : i32
    %c0_15 = arith.constant 0 : index
    %32 = arith.index_cast %31 : i32 to index
    %c0_16 = arith.constant 0 : index
    %c0_17 = arith.constant 0 : index
    %33 = vector.load %arg2[%c0_15, %32, %c0_16, %c0_17] : memref<1x16x16x128xbf16, #tpu.memory_space<vmem>>, vector<1x1x16x128xbf16>
    %34 = vector.shape_cast %33 : vector<1x1x16x128xbf16> to vector<1x16x128xbf16>
    %35 = vector.extract_strided_slice %34 {offsets = [0, 0, 0], sizes = [1, 16, 64], strides = [1, 1, 1]} : vector<1x16x128xbf16> to vector<1x16x64xbf16>
    %36 = arith.extf %35 : vector<1x16x64xbf16> to vector<1x16x64xf32>
    %37 = vector.broadcast %3 : vector<1x1x64xf32> to vector<1x16x64xf32>
    %38 = arith.mulf %36, %37 : vector<1x16x64xf32>
    %39 = vector.broadcast %5 : vector<1x1x64xf32> to vector<1x16x64xf32>
    %40 = arith.addf %38, %39 : vector<1x16x64xf32>
    %cst_18 = arith.constant 0.000000e+00 : f32
    %41 = vector.broadcast %cst_18 : f32 to vector<1x16x64xf32>
    %42 = arith.maximumf %40, %41 : vector<1x16x64xf32>
    %43 = vector.broadcast %14 : f32 to vector<1x16x64xf32>
    %44 = arith.mulf %42, %43 : vector<1x16x64xf32>
    %45 = arith.truncf %29 : vector<1x16x64xf32> to vector<1x16x64xbf16>
    %c0_19 = arith.constant 0 : index
    %c1 = arith.constant 1 : index
    %c0_20 = arith.constant 0 : index
    %46 = vector.load %arg8[%c0_19, %c1, %c0_20] : memref<10x18x64xbf16, #tpu.memory_space<vmem>>, vector<1x16x64xbf16>
    tpu.vector_store %arg8[%c0_19, %c1, %c0_20], %45 {strides = array<i32>} : memref<10x18x64xbf16, #tpu.memory_space<vmem>>, vector<1x16x64xbf16>,
    %47 = arith.truncf %44 : vector<1x16x64xf32> to vector<1x16x64xbf16>
    %c9 = arith.constant 9 : index
    %c1_21 = arith.constant 1 : index
    %c0_22 = arith.constant 0 : index
    %48 = vector.load %arg8[%c9, %c1_21, %c0_22] : memref<10x18x64xbf16, #tpu.memory_space<vmem>>, vector<1x16x64xbf16>
    tpu.vector_store %arg8[%c9, %c1_21, %c0_22], %47 {strides = array<i32>} : memref<10x18x64xbf16, #tpu.memory_space<vmem>>, vector<1x16x64xbf16>,
    %c0_23 = arith.constant 0 : index
    %49 = arith.index_cast %1 : i32 to index
    %c0_24 = arith.constant 0 : index
    %c0_25 = arith.constant 0 : index
    %50 = vector.load %arg2[%c0_23, %49, %c0_24, %c0_25] : memref<1x16x16x128xbf16, #tpu.memory_space<vmem>>, vector<1x8x16x128xbf16>
    %51 = vector.shape_cast %50 : vector<1x8x16x128xbf16> to vector<8x16x128xbf16>
    %52 = vector.extract_strided_slice %51 {offsets = [0, 0, 0], sizes = [8, 16, 64], strides = [1, 1, 1]} : vector<8x16x128xbf16> to vector<8x16x64xbf16>
    %53 = arith.extf %52 : vector<8x16x64xbf16> to vector<8x16x64xf32>
    %54 = vector.broadcast %3 : vector<1x1x64xf32> to vector<8x16x64xf32>
    %55 = arith.mulf %53, %54 : vector<8x16x64xf32>
    %56 = vector.broadcast %5 : vector<1x1x64xf32> to vector<8x16x64xf32>
    %57 = arith.addf %55, %56 : vector<8x16x64xf32>
    %cst_26 = arith.constant 0.000000e+00 : f32
    %58 = vector.broadcast %cst_26 : f32 to vector<8x16x64xf32>
    %59 = arith.maximumf %57, %58 : vector<8x16x64xf32>
    %60 = arith.truncf %59 : vector<8x16x64xf32> to vector<8x16x64xbf16>
    %c1_27 = arith.constant 1 : index
    %c1_28 = arith.constant 1 : index
    %c0_29 = arith.constant 0 : index
    %61 = vector.load %arg8[%c1_27, %c1_28, %c0_29] : memref<10x18x64xbf16, #tpu.memory_space<vmem>>, vector<8x16x64xbf16>
    tpu.vector_store %arg8[%c1_27, %c1_28, %c0_29], %60 {strides = array<i32>} : memref<10x18x64xbf16, #tpu.memory_space<vmem>>, vector<8x16x64xbf16>,
    %cst_30 = arith.constant 0.000000e+00 : f32
    %62 = vector.broadcast %cst_30 : f32 to vector<128x128xf32>
    %c0_31 = arith.constant 0 : index
    %c0_32 = arith.constant 0 : index
    %c0_33 = arith.constant 0 : index
    %63 = vector.load %arg8[%c0_31, %c0_32, %c0_33] : memref<10x18x64xbf16, #tpu.memory_space<vmem>>, vector<8x16x64xbf16>
    %64 = vector.shape_cast %63 : vector<8x16x64xbf16> to vector<128x64xbf16>
    %c0_34 = arith.constant 0 : index
    %c0_35 = arith.constant 0 : index
    %c0_36 = arith.constant 0 : index
    %65 = vector.load %arg3[%c0_34, %c0_35, %c0_36] : memref<9x64x128xbf16, #tpu.memory_space<vmem>>, vector<1x64x128xbf16>
    %66 = vector.shape_cast %65 : vector<1x64x128xbf16> to vector<64x128xbf16>
    %cst_37 = arith.constant dense<0.000000e+00> : vector<128x128xf32>
    %67 = tpu.matmul %64, %66, %cst_37 {dimension_numbers = #tpu.dot_dimension_numbers<[1], [0], [0], [1], [0, 0, 1, 1], [], []>} : vector<128x64xbf16>, vector<64x128xbf16>, vector<128x128xf32> -> vector<128x128xf32>
    %68 = arith.addf %62, %67 : vector<128x128xf32>
    %c0_38 = arith.constant 0 : index
    %c1_39 = arith.constant 1 : index
    %c0_40 = arith.constant 0 : index
    %69 = vector.load %arg8[%c0_38, %c1_39, %c0_40] : memref<10x18x64xbf16, #tpu.memory_space<vmem>>, vector<8x16x64xbf16>
    %70 = vector.shape_cast %69 : vector<8x16x64xbf16> to vector<128x64xbf16>
    %c1_41 = arith.constant 1 : index
    %c0_42 = arith.constant 0 : index
    %c0_43 = arith.constant 0 : index
    %71 = vector.load %arg3[%c1_41, %c0_42, %c0_43] : memref<9x64x128xbf16, #tpu.memory_space<vmem>>, vector<1x64x128xbf16>
    %72 = vector.shape_cast %71 : vector<1x64x128xbf16> to vector<64x128xbf16>
    %cst_44 = arith.constant dense<0.000000e+00> : vector<128x128xf32>
    %73 = tpu.matmul %70, %72, %cst_44 {dimension_numbers = #tpu.dot_dimension_numbers<[1], [0], [0], [1], [0, 0, 1, 1], [], []>} : vector<128x64xbf16>, vector<64x128xbf16>, vector<128x128xf32> -> vector<128x128xf32>
    %74 = arith.addf %68, %73 : vector<128x128xf32>
    %c0_45 = arith.constant 0 : index
    %c2 = arith.constant 2 : index
    %c0_46 = arith.constant 0 : index
    %75 = vector.load %arg8[%c0_45, %c2, %c0_46] : memref<10x18x64xbf16, #tpu.memory_space<vmem>>, vector<8x16x64xbf16>
    %76 = vector.shape_cast %75 : vector<8x16x64xbf16> to vector<128x64xbf16>
    %c2_47 = arith.constant 2 : index
    %c0_48 = arith.constant 0 : index
    %c0_49 = arith.constant 0 : index
    %77 = vector.load %arg3[%c2_47, %c0_48, %c0_49] : memref<9x64x128xbf16, #tpu.memory_space<vmem>>, vector<1x64x128xbf16>
    %78 = vector.shape_cast %77 : vector<1x64x128xbf16> to vector<64x128xbf16>
    %cst_50 = arith.constant dense<0.000000e+00> : vector<128x128xf32>
    %79 = tpu.matmul %76, %78, %cst_50 {dimension_numbers = #tpu.dot_dimension_numbers<[1], [0], [0], [1], [0, 0, 1, 1], [], []>} : vector<128x64xbf16>, vector<64x128xbf16>, vector<128x128xf32> -> vector<128x128xf32>
    %80 = arith.addf %74, %79 : vector<128x128xf32>
    %c1_51 = arith.constant 1 : index
    %c0_52 = arith.constant 0 : index
    %c0_53 = arith.constant 0 : index
    %81 = vector.load %arg8[%c1_51, %c0_52, %c0_53] : memref<10x18x64xbf16, #tpu.memory_space<vmem>>, vector<8x16x64xbf16>
    %82 = vector.shape_cast %81 : vector<8x16x64xbf16> to vector<128x64xbf16>
    %c3 = arith.constant 3 : index
    %c0_54 = arith.constant 0 : index
    %c0_55 = arith.constant 0 : index
    %83 = vector.load %arg3[%c3, %c0_54, %c0_55] : memref<9x64x128xbf16, #tpu.memory_space<vmem>>, vector<1x64x128xbf16>
    %84 = vector.shape_cast %83 : vector<1x64x128xbf16> to vector<64x128xbf16>
    %cst_56 = arith.constant dense<0.000000e+00> : vector<128x128xf32>
    %85 = tpu.matmul %82, %84, %cst_56 {dimension_numbers = #tpu.dot_dimension_numbers<[1], [0], [0], [1], [0, 0, 1, 1], [], []>} : vector<128x64xbf16>, vector<64x128xbf16>, vector<128x128xf32> -> vector<128x128xf32>
    %86 = arith.addf %80, %85 : vector<128x128xf32>
    %c1_57 = arith.constant 1 : index
    %c1_58 = arith.constant 1 : index
    %c0_59 = arith.constant 0 : index
    %87 = vector.load %arg8[%c1_57, %c1_58, %c0_59] : memref<10x18x64xbf16, #tpu.memory_space<vmem>>, vector<8x16x64xbf16>
    %88 = vector.shape_cast %87 : vector<8x16x64xbf16> to vector<128x64xbf16>
    %c4 = arith.constant 4 : index
    %c0_60 = arith.constant 0 : index
    %c0_61 = arith.constant 0 : index
    %89 = vector.load %arg3[%c4, %c0_60, %c0_61] : memref<9x64x128xbf16, #tpu.memory_space<vmem>>, vector<1x64x128xbf16>
    %90 = vector.shape_cast %89 : vector<1x64x128xbf16> to vector<64x128xbf16>
    %cst_62 = arith.constant dense<0.000000e+00> : vector<128x128xf32>
    %91 = tpu.matmul %88, %90, %cst_62 {dimension_numbers = #tpu.dot_dimension_numbers<[1], [0], [0], [1], [0, 0, 1, 1], [], []>} : vector<128x64xbf16>, vector<64x128xbf16>, vector<128x128xf32> -> vector<128x128xf32>
    %92 = arith.addf %86, %91 : vector<128x128xf32>
    %c1_63 = arith.constant 1 : index
    %c2_64 = arith.constant 2 : index
    %c0_65 = arith.constant 0 : index
    %93 = vector.load %arg8[%c1_63, %c2_64, %c0_65] : memref<10x18x64xbf16, #tpu.memory_space<vmem>>, vector<8x16x64xbf16>
    %94 = vector.shape_cast %93 : vector<8x16x64xbf16> to vector<128x64xbf16>
    %c5 = arith.constant 5 : index
    %c0_66 = arith.constant 0 : index
    %c0_67 = arith.constant 0 : index
    %95 = vector.load %arg3[%c5, %c0_66, %c0_67] : memref<9x64x128xbf16, #tpu.memory_space<vmem>>, vector<1x64x128xbf16>
    %96 = vector.shape_cast %95 : vector<1x64x128xbf16> to vector<64x128xbf16>
    %cst_68 = arith.constant dense<0.000000e+00> : vector<128x128xf32>
    %97 = tpu.matmul %94, %96, %cst_68 {dimension_numbers = #tpu.dot_dimension_numbers<[1], [0], [0], [1], [0, 0, 1, 1], [], []>} : vector<128x64xbf16>, vector<64x128xbf16>, vector<128x128xf32> -> vector<128x128xf32>
    %98 = arith.addf %92, %97 : vector<128x128xf32>
    %c2_69 = arith.constant 2 : index
    %c0_70 = arith.constant 0 : index
    %c0_71 = arith.constant 0 : index
    %99 = vector.load %arg8[%c2_69, %c0_70, %c0_71] : memref<10x18x64xbf16, #tpu.memory_space<vmem>>, vector<8x16x64xbf16>
    %100 = vector.shape_cast %99 : vector<8x16x64xbf16> to vector<128x64xbf16>
    %c6 = arith.constant 6 : index
    %c0_72 = arith.constant 0 : index
    %c0_73 = arith.constant 0 : index
    %101 = vector.load %arg3[%c6, %c0_72, %c0_73] : memref<9x64x128xbf16, #tpu.memory_space<vmem>>, vector<1x64x128xbf16>
    %102 = vector.shape_cast %101 : vector<1x64x128xbf16> to vector<64x128xbf16>
    %cst_74 = arith.constant dense<0.000000e+00> : vector<128x128xf32>
    %103 = tpu.matmul %100, %102, %cst_74 {dimension_numbers = #tpu.dot_dimension_numbers<[1], [0], [0], [1], [0, 0, 1, 1], [], []>} : vector<128x64xbf16>, vector<64x128xbf16>, vector<128x128xf32> -> vector<128x128xf32>
    %104 = arith.addf %98, %103 : vector<128x128xf32>
    %c2_75 = arith.constant 2 : index
    %c1_76 = arith.constant 1 : index
    %c0_77 = arith.constant 0 : index
    %105 = vector.load %arg8[%c2_75, %c1_76, %c0_77] : memref<10x18x64xbf16, #tpu.memory_space<vmem>>, vector<8x16x64xbf16>
    %106 = vector.shape_cast %105 : vector<8x16x64xbf16> to vector<128x64xbf16>
    %c7 = arith.constant 7 : index
    %c0_78 = arith.constant 0 : index
    %c0_79 = arith.constant 0 : index
    %107 = vector.load %arg3[%c7, %c0_78, %c0_79] : memref<9x64x128xbf16, #tpu.memory_space<vmem>>, vector<1x64x128xbf16>
    %108 = vector.shape_cast %107 : vector<1x64x128xbf16> to vector<64x128xbf16>
    %cst_80 = arith.constant dense<0.000000e+00> : vector<128x128xf32>
    %109 = tpu.matmul %106, %108, %cst_80 {dimension_numbers = #tpu.dot_dimension_numbers<[1], [0], [0], [1], [0, 0, 1, 1], [], []>} : vector<128x64xbf16>, vector<64x128xbf16>, vector<128x128xf32> -> vector<128x128xf32>
    %110 = arith.addf %104, %109 : vector<128x128xf32>
    %c2_81 = arith.constant 2 : index
    %c2_82 = arith.constant 2 : index
    %c0_83 = arith.constant 0 : index
    %111 = vector.load %arg8[%c2_81, %c2_82, %c0_83] : memref<10x18x64xbf16, #tpu.memory_space<vmem>>, vector<8x16x64xbf16>
    %112 = vector.shape_cast %111 : vector<8x16x64xbf16> to vector<128x64xbf16>
    %c8 = arith.constant 8 : index
    %c0_84 = arith.constant 0 : index
    %c0_85 = arith.constant 0 : index
    %113 = vector.load %arg3[%c8, %c0_84, %c0_85] : memref<9x64x128xbf16, #tpu.memory_space<vmem>>, vector<1x64x128xbf16>
    %114 = vector.shape_cast %113 : vector<1x64x128xbf16> to vector<64x128xbf16>
    %cst_86 = arith.constant dense<0.000000e+00> : vector<128x128xf32>
    %115 = tpu.matmul %112, %114, %cst_86 {dimension_numbers = #tpu.dot_dimension_numbers<[1], [0], [0], [1], [0, 0, 1, 1], [], []>} : vector<128x64xbf16>, vector<64x128xbf16>, vector<128x128xf32> -> vector<128x128xf32>
    %116 = arith.addf %110, %115 : vector<128x128xf32>
    %c0_87 = arith.constant 0 : index
    %c0_88 = arith.constant 0 : index
    %117 = vector.load %arg6[%c0_87, %c0_88] : memref<1x128xf32, #tpu.memory_space<vmem>>, vector<1x128xf32>
    %118 = vector.broadcast %117 : vector<1x128xf32> to vector<128x128xf32>
    %119 = arith.addf %116, %118 : vector<128x128xf32>
    %120 = arith.negf %119 : vector<128x128xf32>
    %121 = math.exp %120 : vector<128x128xf32>
    %cst_89 = arith.constant 1.000000e+00 : f32
    %122 = vector.broadcast %cst_89 : f32 to vector<128x128xf32>
    %123 = arith.addf %122, %121 : vector<128x128xf32>
    %124 = arith.divf %122, %123 : vector<128x128xf32>
    %125 = vector.shape_cast %124 : vector<128x128xf32> to vector<1x8x16x128xf32>
    %c0_90 = arith.constant 0 : index
    %c0_91 = arith.constant 0 : index
    %c0_92 = arith.constant 0 : index
    %c0_93 = arith.constant 0 : index
    %126 = vector.load %arg7[%c0_90, %c0_91, %c0_92, %c0_93] : memref<1x8x16x128xf32, #tpu.memory_space<vmem>>, vector<1x8x16x128xf32>
    tpu.vector_store %arg7[%c0_90, %c0_91, %c0_92, %c0_93], %125 {strides = array<i32>} : memref<1x8x16x128xf32, #tpu.memory_space<vmem>>, vector<1x8x16x128xf32>,
    return
  }
  func.func @transform_0(%arg0: i32, %arg1: i32) -> (i32, i32, i32, i32) {
    %c0_i32 = arith.constant 0 : i32
    %c0_i32_0 = arith.constant 0 : i32
    %c0_i32_1 = arith.constant 0 : i32
    %c0_i32_2 = arith.constant 0 : i32
    return %arg0, %c0_i32, %c0_i32_0, %c0_i32_1 : i32, i32, i32, i32
  }
  func.func @transform_1(%arg0: i32, %arg1: i32) -> (i32, i32, i32) {
    %c0_i32 = arith.constant 0 : i32
    %c0_i32_0 = arith.constant 0 : i32
    %c0_i32_1 = arith.constant 0 : i32
    %c0_i32_2 = arith.constant 0 : i32
    return %c0_i32, %c0_i32_0, %c0_i32_1 : i32, i32, i32
  }
  func.func @transform_2(%arg0: i32, %arg1: i32) -> (i32, i32) {
    %c0_i32 = arith.constant 0 : i32
    %c0_i32_0 = arith.constant 0 : i32
    %c0_i32_1 = arith.constant 0 : i32
    return %c0_i32, %c0_i32_0 : i32, i32
  }
  func.func @transform_3(%arg0: i32, %arg1: i32) -> (i32, i32) {
    %c0_i32 = arith.constant 0 : i32
    %c0_i32_0 = arith.constant 0 : i32
    %c0_i32_1 = arith.constant 0 : i32
    return %c0_i32, %c0_i32_0 : i32, i32
  }
  func.func @transform_4(%arg0: i32, %arg1: i32) -> (i32, i32) {
    %c0_i32 = arith.constant 0 : i32
    %c0_i32_0 = arith.constant 0 : i32
    %c0_i32_1 = arith.constant 0 : i32
    return %c0_i32, %c0_i32_0 : i32, i32
  }
  func.func @transform_5(%arg0: i32, %arg1: i32) -> (i32, i32, i32, i32) {
    %c0_i32 = arith.constant 0 : i32
    %c0_i32_0 = arith.constant 0 : i32
    %c0_i32_1 = arith.constant 0 : i32
    return %arg0, %arg1, %c0_i32, %c0_i32_0 : i32, i32, i32, i32
  }
}

</mosaic_0001>

<llo_original>
// kernel: autoencoder_forward.25
$region0: #{autoencoder_forward.25}
  #allocation0 [shape = 'u32[]', space=smem, size = 0x4, offset = 0x4, fixed_abs, tag = 'smem constant byte address 0x4 - core index']
  #allocation1 [shape = 'u32[144,128]{1,0:T(1,128)}', space=vmem, size = 0x12000, scoped, tag = 'internal scratch']
  #allocation2 [shape = 'bf16[10,18,64]{2,1,0:T(8,128)(2,1)}', space=vmem, size = 0xf000, scoped, tag = 'scratch operand']
  %s0 = inlined_call_operand.vmem [shape: bf16[2,16,16,128], index: 0, kind: input, shape index: {}]
  %s1 = inlined_call_operand.vmem [shape: bf16[9,64,128], index: 1, kind: input, shape index: {}]
  %s2 = inlined_call_operand.vmem [shape: f32[1,64], index: 2, kind: input, shape index: {}]
  %s3 = inlined_call_operand.vmem [shape: f32[1,64], index: 3, kind: input, shape index: {}]
  %s4 = inlined_call_operand.vmem [shape: f32[1,128], index: 4, kind: input, shape index: {}]
  %s5 = inlined_call_operand.vmem [shape: f32[2,16,16,128], index: 5, kind: output, shape index: {}]
  %s6 = sld [smem:[#allocation0]]
  $region53: #{autoencoder_forward.25} parent=0
    _
  %s8 = ssub.s32 1, %s6
  %s9 = scalar_select 0, %s8, %s6
  loop: start=0, step=1, limit=6
  $region2: #{autoencoder_forward.25} parent=0 // loop_pre_header
    _
  $region3: #{autoencoder_forward.25} parent=0 // loop_header
    %s11 = sphi 0, %s15
    %p12 = scmp.ge.s32.totalorder %s11, 6
    %s18 = sphi 0, %s30
    %s19 = sphi 0, %s26
    %s20 = sphi 0, %s18
    %s21 = sphi 0, %s19
    %s22 = sphi 0, %s20
    %s23 = sphi 0, %s21
    %s33 = sphi 0, %s35
    %s36 = sphi 0, %s33
    %s37 = sphi 0, %s36
    %s53 = sphi 0, %s37
    %s57 = sphi 0, %s57
    %s59 = sphi 0, %s57
    %s60 = sphi 0, %s59
    %s74 = sphi 0, %s60
    %s78 = sphi 0, %s78
    %s80 = sphi 0, %s78
    %s81 = sphi 0, %s80
    %s95 = sphi 0, %s81
    %s99 = sphi 0, %s99
    %s101 = sphi 0, %s99
    %s102 = sphi 0, %s101
    %s116 = sphi 0, %s102
    %s120 = sphi 0, %s120
    %s122 = sphi 0, %s120
    %s123 = sphi 0, %s122
    %s137 = sphi 0, %s123
    %s145 = sphi 0, %s147
    %s148 = sphi 0, %s145
    %s149 = sphi 0, %s148
    %s165 = sphi 0, %s149
  $region4: #{autoencoder_forward.25} parent=0 // loop_header_branch
    %14 = sbr.rel (%p12) target = $region8
  $region5: #{autoencoder_forward.25} parent=0 // loop_body
    %s16 = ssub.s32 %s11, 1
    %s17 = ssub.s32 %s11, 2
    %s24 = sadd.s32 1, %s19
    %p25 = scmp.ge.s32.totalorder %s24, 2
    %s26 = scalar_select %p25, 0, %s24
    %s27 = sadd.s32 1, %s18
    %s28 = scalar_select %p25, %s27, %s18
    %p29 = scmp.ge.s32.totalorder %s28, 2
    %s30 = scalar_select %p29, 0, %s28
    %s31 = ssub.s32 %s18, %s30
    %p32 = scmp.eq.s32.totalorder %s31, 0
    %s34 = sadd.s32 %s33, 1
    %s35 = scalar_select %p32, %s33, %s34
    %p38 = pneg %p32
    %p39 = scmp.eq.s32.totalorder %s11, 3
    %p40 = por %p38, %p39
    %p41 = scmp.ne.s32.totalorder %s33, %s36
    %p42 = scmp.eq.s32.totalorder %s11, 0
    %p43 = por %p41, %p42
    %p44 = scmp.ne.s32.totalorder %s33, %s36
    %p45 = scmp.eq.s32.totalorder %s16, 3
    %p46 = por %p44, %p45
    %p47 = scmp.ne.s32.totalorder %s36, %s37
    %p48 = scmp.eq.s32.totalorder %s16, 0
    %p49 = por %p47, %p48
    %p50 = scmp.ne.s32.totalorder %s36, %s37
    %p51 = scmp.eq.s32.totalorder %s17, 3
    %p52 = por %p50, %p51
    %p54 = scmp.ne.s32.totalorder %s37, %s53
    %p55 = scmp.eq.s32.totalorder %s17, 0
    %p56 = por %p54, %p55
    %s58 = sadd.s32 %s57, 1
    %p61 = scmp.eq.s32.totalorder %s11, 3
    %p62 = scmp.ne.s32.totalorder %s57, %s59
    %p63 = scmp.eq.s32.totalorder %s11, 0
    %p64 = por %p62, %p63
    %p65 = scmp.ne.s32.totalorder %s57, %s59
    %p66 = scmp.eq.s32.totalorder %s16, 3
    %p67 = por %p65, %p66
    %p68 = scmp.ne.s32.totalorder %s59, %s60
    %p69 = scmp.eq.s32.totalorder %s16, 0
    %p70 = por %p68, %p69
    %p71 = scmp.ne.s32.totalorder %s59, %s60
    %p72 = scmp.eq.s32.totalorder %s17, 3
    %p73 = por %p71, %p72
    %p75 = scmp.ne.s32.totalorder %s60, %s74
    %p76 = scmp.eq.s32.totalorder %s17, 0
    %p77 = por %p75, %p76
    %s79 = sadd.s32 %s78, 1
    %p82 = scmp.eq.s32.totalorder %s11, 3
    %p83 = scmp.ne.s32.totalorder %s78, %s80
    %p84 = scmp.eq.s32.totalorder %s11, 0
    %p85 = por %p83, %p84
    %p86 = scmp.ne.s32.totalorder %s78, %s80
    %p87 = scmp.eq.s32.totalorder %s16, 3
    %p88 = por %p86, %p87
    %p89 = scmp.ne.s32.totalorder %s80, %s81
    %p90 = scmp.eq.s32.totalorder %s16, 0
    %p91 = por %p89, %p90
    %p92 = scmp.ne.s32.totalorder %s80, %s81
    %p93 = scmp.eq.s32.totalorder %s17, 3
    %p94 = por %p92, %p93
    %p96 = scmp.ne.s32.totalorder %s81, %s95
    %p97 = scmp.eq.s32.totalorder %s17, 0
    %p98 = por %p96, %p97
    %s100 = sadd.s32 %s99, 1
    %p103 = scmp.eq.s32.totalorder %s11, 3
    %p104 = scmp.ne.s32.totalorder %s99, %s101
    %p105 = scmp.eq.s32.totalorder %s11, 0
    %p106 = por %p104, %p105
    %p107 = scmp.ne.s32.totalorder %s99, %s101
    %p108 = scmp.eq.s32.totalorder %s16, 3
    %p109 = por %p107, %p108
    %p110 = scmp.ne.s32.totalorder %s101, %s102
    %p111 = scmp.eq.s32.totalorder %s16, 0
    %p112 = por %p110, %p111
    %p113 = scmp.ne.s32.totalorder %s101, %s102
    %p114 = scmp.eq.s32.totalorder %s17, 3
    %p115 = por %p113, %p114
    %p117 = scmp.ne.s32.totalorder %s102, %s116
    %p118 = scmp.eq.s32.totalorder %s17, 0
    %p119 = por %p117, %p118
    %s121 = sadd.s32 %s120, 1
    %p124 = scmp.eq.s32.totalorder %s11, 3
    %p125 = scmp.ne.s32.totalorder %s120, %s122
    %p126 = scmp.eq.s32.totalorder %s11, 0
    %p127 = por %p125, %p126
    %p128 = scmp.ne.s32.totalorder %s120, %s122
    %p129 = scmp.eq.s32.totalorder %s16, 3
    %p130 = por %p128, %p129
    %p131 = scmp.ne.s32.totalorder %s122, %s123
    %p132 = scmp.eq.s32.totalorder %s16, 0
    %p133 = por %p131, %p132
    %p134 = scmp.ne.s32.totalorder %s122, %s123
    %p135 = scmp.eq.s32.totalorder %s17, 3
    %p136 = por %p134, %p135
    %p138 = scmp.ne.s32.totalorder %s123, %s137
    %p139 = scmp.eq.s32.totalorder %s17, 0
    %p140 = por %p138, %p139
    %s141 = ssub.s32 %s18, %s30
    %s142 = ssub.s32 %s19, %s26
    %s143 = sor.u32 %s141, %s142
    %p144 = scmp.eq.s32.totalorder %s143, 0
    %s146 = sadd.s32 %s145, 1
    %s147 = scalar_select %p144, %s145, %s146
    %p150 = pneg %p144
    %p151 = scmp.eq.s32.totalorder %s11, 3
    %p152 = por %p150, %p151
    %p153 = scmp.ne.s32.totalorder %s145, %s148
    %p154 = scmp.eq.s32.totalorder %s11, 0
    %p155 = por %p153, %p154
    %p156 = scmp.ne.s32.totalorder %s145, %s148
    %p157 = scmp.eq.s32.totalorder %s16, 3
    %p158 = por %p156, %p157
    %p159 = scmp.ne.s32.totalorder %s148, %s149
    %p160 = scmp.eq.s32.totalorder %s16, 0
    %p161 = por %p159, %p160
    %p162 = scmp.ne.s32.totalorder %s148, %s149
    %p163 = scmp.eq.s32.totalorder %s17, 3
    %p164 = por %p162, %p163
    %p166 = scmp.ne.s32.totalorder %s149, %s165
    %p167 = scmp.eq.s32.totalorder %s17, 0
    %p168 = por %p166, %p167
    %p169 = scmp.le.s32.totalorder 1, %s11
    %p170 = scmp.lt.s32.totalorder %s11, 5
    %p171 = pnand %p169, %p170
    %p172 = pneg %p171
    // Predicated region
    $region9: #{autoencoder_forward.25} parent=5 // pred_check
      _
    $region10: #{autoencoder_forward.25} parent=5 // pred_check_branch
      %174 = sbr.rel (%p171) target = $region12
    $region11: #{autoencoder_forward.25} parent=5 // pred_region
      %s175 = ssub.s32 %s11, 1
      // Predicated region
      $region13: #{autoencoder_forward.25} parent=11 // pred_check
        %p176 = pneg %p70
      $region14: #{autoencoder_forward.25} parent=11 // pred_check_branch
        %178 = sbr.rel (%p176) target = $region16
      $region15: #{autoencoder_forward.25} parent=11 // pred_region
        _
      $region16: #{autoencoder_forward.25} parent=11 // pred_fallthru
        _
      // Predicated region
      $region17: #{autoencoder_forward.25} parent=11 // pred_check
        %p179 = pneg %p91
      $region18: #{autoencoder_forward.25} parent=11 // pred_check_branch
        %181 = sbr.rel (%p179) target = $region20
      $region19: #{autoencoder_forward.25} parent=11 // pred_region
        _
      $region20: #{autoencoder_forward.25} parent=11 // pred_fallthru
        _
      // Predicated region
      $region21: #{autoencoder_forward.25} parent=11 // pred_check
        %p182 = pneg %p112
      $region22: #{autoencoder_forward.25} parent=11 // pred_check_branch
        %184 = sbr.rel (%p182) target = $region24
      $region23: #{autoencoder_forward.25} parent=11 // pred_region
        _
      $region24: #{autoencoder_forward.25} parent=11 // pred_fallthru
        _
      // Predicated region
      $region25: #{autoencoder_forward.25} parent=11 // pred_check
        %p185 = pneg %p133
      $region26: #{autoencoder_forward.25} parent=11 // pred_check_branch
        %187 = sbr.rel (%p185) target = $region28
      $region27: #{autoencoder_forward.25} parent=11 // pred_region
        _
      $region28: #{autoencoder_forward.25} parent=11 // pred_fallthru
        _
    $region12: #{autoencoder_forward.25} parent=5 // pred_fallthru
      _
    %p188 = scmp.lt.s32.totalorder %s11, 4
    // Predicated region
    $region29: #{autoencoder_forward.25} parent=5 // pred_check
      %p189 = pneg %p188
    $region30: #{autoencoder_forward.25} parent=5 // pred_check_branch
      %191 = sbr.rel (%p189) target = $region32
    $region31: #{autoencoder_forward.25} parent=5 // pred_region
      // Predicated region
      $region33: #{autoencoder_forward.25} parent=31 // pred_check
        %p192 = pneg %p43
      $region34: #{autoencoder_forward.25} parent=31 // pred_check_branch
        %194 = sbr.rel (%p192) target = $region36
      $region35: #{autoencoder_forward.25} parent=31 // pred_region
        %p195 = scmp.lt.s32.totalorder %s18, 1
        %s196 = scalar_select %p195, %s18, 1
        %s197 = smul.addr %s196, 32
        %s198 = smul.addr %s197, 4
        %s199 = scalar_lea.vmem %s0, %s198
      $region36: #{autoencoder_forward.25} parent=31 // pred_fallthru
        _
    $region32: #{autoencoder_forward.25} parent=5 // pred_fallthru
      _
    %p200 = scmp.le.s32.totalorder 1, %s11
    %p201 = scmp.lt.s32.totalorder %s11, 5
    %p202 = pnand %p200, %p201
    %p203 = pneg %p202
    // Predicated region
    $region37: #{autoencoder_forward.25} parent=5 // pred_check
      _
    $region38: #{autoencoder_forward.25} parent=5 // pred_check_branch
      %205 = sbr.rel (%p202) target = $region40
    $region39: #{autoencoder_forward.25} parent=5 // pred_region
      %s206 = ssub.s32 %s11, 1
      %p207 = scmp.lt.s32.totalorder %s20, 1
      %s208 = scalar_select %p207, %s20, 1
      %s209 = smul.addr %s208, 32
      %s210 = smul.addr %s209, 4
      %s211 = scalar_lea.vmem %s0, %s210
      %p212 = pneg %p49
      %p213 = pneg %p46
      %p214 = pneg %p70
      %p215 = pneg %p67
      %p216 = pneg %p91
      %p217 = pneg %p88
      %p218 = pneg %p112
      %p219 = pneg %p109
      %p220 = pneg %p133
      %p221 = pneg %p130
      %p222 = pneg %p161
      %p223 = pneg %p158
      %s224 = smul.u32 8, %s21
      %p225 = scmp.lt.s32.totalorder %s20, 1
      %s226 = scalar_select %p225, %s20, 1
      %p227 = scmp.lt.s32.totalorder %s224, 15
      %s228 = scalar_select %p227, %s224, 15
      %s229 = smul.addr %s228, 2
      %s230 = smul.addr %s226, 32
      %s231 = sadd.s32 %s229, %s230
      %s232 = smul.addr %s231, 8
      %s233 = scalar_lea.vmem %s5, %s232
      %p234 = scmp.lt.s32.totalorder %s20, 1
      %s235 = scalar_select %p234, %s20, 1
      %s236 = smul.addr %s235, 32
      %s237 = smul.addr %s236, 4
      %s238 = scalar_lea.vmem %s0, %s237
      %s239 = smul.u32 8, %s21
      %p240 = scmp.lt.s32.totalorder %s20, 1
      %s241 = scalar_select %p240, %s20, 1
      %p242 = scmp.lt.s32.totalorder %s239, 15
      %s243 = scalar_select %p242, %s239, 15
      %s244 = smul.addr %s243, 2
      %s245 = smul.addr %s241, 32
      %s246 = sadd.s32 %s244, %s245
      %s247 = smul.addr %s246, 8
      %s248 = scalar_lea.vmem %s5, %s247
      %s249 = smul.u32 8, %s21
      %s251 = smul.u32 %s21, 8
      %v252 = vld [vmem:[%s2] sm:$0x1]
      %v253 = vld [vmem:[%s3] sm:$0x1]
      %vm254 = vcmask 516096
      %vm255 = vsmask.f32 256
      %vm256 = vmand %vm254, %vm255
      %v257 = vld [vmem:[#allocation2] sm:$0x1]
      %v258 = vsel %vm256, 0, %v257
      %259 = vst [vmem:[#allocation2] sm:$0x1] %v258
      %v260 = vld [vmem:[#allocation2 + $0xc] sm:$0x1]
      %v261 = vsel %vm256, 0, %v260
      %262 = vst [vmem:[#allocation2 + $0xc] sm:$0x1] %v261
      %v263 = vld [vmem:[#allocation2 + $0x18] sm:$0x1]
      %v264 = vsel %vm256, 0, %v263
      %265 = vst [vmem:[#allocation2 + $0x18] sm:$0x1] %v264
      %v266 = vld [vmem:[#allocation2 + $0x24] sm:$0x1]
      %v267 = vsel %vm256, 0, %v266
      %268 = vst [vmem:[#allocation2 + $0x24] sm:$0x1] %v267
      %v269 = vld [vmem:[#allocation2 + $0x30] sm:$0x1]
      %v270 = vsel %vm256, 0, %v269
      %271 = vst [vmem:[#allocation2 + $0x30] sm:$0x1] %v270
      %v272 = vld [vmem:[#allocation2 + $0x3c] sm:$0x1]
      %v273 = vsel %vm256, 0, %v272
      %274 = vst [vmem:[#allocation2 + $0x3c] sm:$0x1] %v273
      %v275 = vld [vmem:[#allocation2 + $0x48] sm:$0x1]
      %v276 = vsel %vm256, 0, %v275
      %277 = vst [vmem:[#allocation2 + $0x48] sm:$0x1] %v276
      %v278 = vld [vmem:[#allocation2 + $0x54] sm:$0x1]
      %v279 = vsel %vm256, 0, %v278
      %280 = vst [vmem:[#allocation2 + $0x54] sm:$0x1] %v279
      %v281 = vld [vmem:[#allocation2 + $0x60] sm:$0x1]
      %v282 = vsel %vm256, 0, %v281
      %283 = vst [vmem:[#allocation2 + $0x60] sm:$0x1] %v282
      %v284 = vld [vmem:[#allocation2 + $0x6c] sm:$0x1]
      %v285 = vsel %vm256, 0, %v284
      %286 = vst [vmem:[#allocation2 + $0x6c] sm:$0x1] %v285
      %vm287 = vsmask.f32 7938
      %vm288 = vmand %vm254, %vm287
      %v289 = vld [vmem:[#allocation2 + $0x8] sm:$0x1]
      %v290 = vsel %vm288, 0, %v289
      %291 = vst [vmem:[#allocation2 + $0x8] sm:$0x1] %v290
      %v292 = vld [vmem:[#allocation2 + $0x14] sm:$0x1]
      %v293 = vsel %vm288, 0, %v292
      %294 = vst [vmem:[#allocation2 + $0x14] sm:$0x1] %v293
      %v295 = vld [vmem:[#allocation2 + $0x20] sm:$0x1]
      %v296 = vsel %vm288, 0, %v295
      %297 = vst [vmem:[#allocation2 + $0x20] sm:$0x1] %v296
      %v298 = vld [vmem:[#allocation2 + $0x2c] sm:$0x1]
      %v299 = vsel %vm288, 0, %v298
      %300 = vst [vmem:[#allocation2 + $0x2c] sm:$0x1] %v299
      %v301 = vld [vmem:[#allocation2 + $0x38] sm:$0x1]
      %v302 = vsel %vm288, 0, %v301
      %303 = vst [vmem:[#allocation2 + $0x38] sm:$0x1] %v302
      %v304 = vld [vmem:[#allocation2 + $0x44] sm:$0x1]
      %v305 = vsel %vm288, 0, %v304
      %306 = vst [vmem:[#allocation2 + $0x44] sm:$0x1] %v305
      %v307 = vld [vmem:[#allocation2 + $0x50] sm:$0x1]
      %v308 = vsel %vm288, 0, %v307
      %309 = vst [vmem:[#allocation2 + $0x50] sm:$0x1] %v308
      %v310 = vld [vmem:[#allocation2 + $0x5c] sm:$0x1]
      %v311 = vsel %vm288, 0, %v310
      %312 = vst [vmem:[#allocation2 + $0x5c] sm:$0x1] %v311
      %v313 = vld [vmem:[#allocation2 + $0x68] sm:$0x1]
      %v314 = vsel %vm288, 0, %v313
      %315 = vst [vmem:[#allocation2 + $0x68] sm:$0x1] %v314
      %v316 = vld [vmem:[#allocation2 + $0x74] sm:$0x1]
      %v317 = vsel %vm288, 0, %v316
      %318 = vst [vmem:[#allocation2 + $0x74] sm:$0x1] %v317
      %p319 = scmp.gt.s32.totalorder %s21, 0
      %s320 = scalar_select %p319, 1, 0
      %s321 = scvt.s32.f32 %s320
      %p322 = scmp.lt.s32.totalorder %s21, 1
      %s323 = scalar_select %p322, 1, 0
      %s324 = scvt.s32.f32 %s323
      %s325 = ssub.s32 %s251, 1
      %p326 = scmp.gt.s32.totalorder %s325, 0
      %s327 = scalar_select %p326, %s325, 0
      %s328 = smul.u32 %s327, 2
      %s329 = smul.addr %s328, 4
      %s330 = scalar_lea.vmem %s238, %s329
      %v331 = vld [vmem:[%s330] sm:$0xf]
      %v332 = vld [vmem:[%s330 + $0x4] sm:$0xf]
      %v333 = vunpack.c.l.bf16 %v331
      %v334 = vunpack.c.l.bf16 %v332
      %v336 = vlaneseq
      %v337 = vshrl.u32 %v336, 7
      %v338 = vsub.s32 0, %v337
      %v339 = vrot.slane %v252, %v338
      %v341 = vmul.f32 %v333, %v339
      %v342 = vmul.f32 %v334, %v339
      %v344 = vlaneseq
      %v345 = vshrl.u32 %v344, 7
      %v346 = vsub.s32 0, %v345
      %v347 = vrot.slane %v253, %v346
      %v349 = vadd.f32 %v341, %v347
      %v350 = vadd.f32 %v342, %v347
      %v351 = vmax.f32 %v349, 0.0
      %v352 = vmax.f32 %v350, 0.0
      %v353 = vstv %s321
      %v354 = vmul.f32 %v351, %v353
      %v355 = vmul.f32 %v352, %v353
      %s356 = sadd.s32 %s251, 8
      %p357 = scmp.lt.s32.totalorder %s356, 15
      %s358 = scalar_select %p357, %s356, 15
      %s359 = smul.u32 %s358, 2
      %s360 = smul.addr %s359, 4
      %s361 = scalar_lea.vmem %s238, %s360
      %v362 = vld [vmem:[%s361] sm:$0xf]
      %v363 = vld [vmem:[%s361 + $0x4] sm:$0xf]
      %v364 = vunpack.c.l.bf16 %v362
      %v365 = vunpack.c.l.bf16 %v363
      %v366 = vmul.f32 %v364, %v339
      %v367 = vmul.f32 %v365, %v339
      %v368 = vadd.f32 %v366, %v347
      %v369 = vadd.f32 %v367, %v347
      %v370 = vmax.f32 %v368, 0.0
      %v371 = vmax.f32 %v369, 0.0
      %v372 = vstv %s324
      %v373 = vmul.f32 %v370, %v372
      %v374 = vmul.f32 %v371, %v372
      %v375 = vpack.c.bf16 %v355, %v354
      %v377 = vunpack.c.l.b16 %v375
      %v378 = vunpack.c.h.b16 %v375
      %v379 = vpack.c.b16 %v377, %v377
      %v380 = vpack.c.b16 %v378, %v378
      %vm381 = vsmask.f32 4368
      %vm382 = vmor %vm255, %vm381
      %v384 = vshrl.u32 %v379, 16
      %v386 = vrot.slane %v384, 7
      %v387 = vshll.u32 %v379, 16
      %v389 = vor.u32 %v386, %v387
      %v390 = vrot.slane %v386, 4
      %v392 = vshrl.u32 %v380, 16
      %v394 = vrot.slane %v392, 7
      %v395 = vshll.u32 %v380, 16
      %v397 = vor.u32 %v394, %v395
      %v398 = vsel %vm382, %v390, %v397
      %v399 = vrot.slane %v394, 4
      %vm403 = vcmask 519168
      %vm404 = vmand %vm403, %vm287
      %v405 = vld [vmem:[#allocation2] sm:$0xf]
      %v406 = vsel %vm404, %v389, %v405
      %407 = vst [vmem:[#allocation2] sm:$0xf] %v406
      %vm408 = vcmask 519168
      %409 = vst.msk [vmem:[#allocation2 + $0x4] sm:$0xf] %vm408, %v398
      %v410 = vld [vmem:[#allocation2 + $0x8] sm:$0x1]
      %v411 = vsel %vm256, %v399, %v410
      %412 = vst [vmem:[#allocation2 + $0x8] sm:$0x1] %v411
      %v413 = vpack.c.bf16 %v374, %v373
      %v415 = vunpack.c.l.b16 %v413
      %v416 = vunpack.c.h.b16 %v413
      %v417 = vpack.c.b16 %v415, %v415
      %v418 = vpack.c.b16 %v416, %v416
      %v420 = vshrl.u32 %v417, 16
      %v422 = vrot.slane %v420, 7
      %v423 = vshll.u32 %v417, 16
      %v425 = vor.u32 %v422, %v423
      %v426 = vrot.slane %v422, 4
      %v428 = vshrl.u32 %v418, 16
      %v430 = vrot.slane %v428, 7
      %v431 = vshll.u32 %v418, 16
      %v433 = vor.u32 %v430, %v431
      %v434 = vsel %vm382, %v426, %v433
      %v435 = vrot.slane %v430, 4
      %s439 = scalar_lea.vmem [#allocation2], 108
      %v440 = vld [vmem:[%s439] sm:$0xf]
      %v441 = vsel %vm404, %v425, %v440
      %442 = vst [vmem:[%s439] sm:$0xf] %v441
      %443 = vst.msk [vmem:[%s439 + $0x4] sm:$0xf] %vm408, %v434
      %v444 = vld [vmem:[%s439 + $0x8] sm:$0x1]
      %v445 = vsel %vm256, %v435, %v444
      %446 = vst [vmem:[%s439 + $0x8] sm:$0x1] %v445
      %s447 = smul.u32 %s251, 2
      %s448 = smul.addr %s447, 4
      %s449 = scalar_lea.vmem %s238, %s448
      %v450 = vld [vmem:[%s449] sm:$0xf]
      %v451 = vld [vmem:[%s449 + $0x4] sm:$0xf]
      %v452 = vld [vmem:[%s449 + $0x8] sm:$0xf]
      %v453 = vld [vmem:[%s449 + $0xc] sm:$0xf]
      %v454 = vld [vmem:[%s449 + $0x10] sm:$0xf]
      %v455 = vld [vmem:[%s449 + $0x14] sm:$0xf]
      %v456 = vld [vmem:[%s449 + $0x18] sm:$0xf]
      %v457 = vld [vmem:[%s449 + $0x1c] sm:$0xf]
      %v458 = vld [vmem:[%s449 + $0x20] sm:$0xf]
      %v459 = vld [vmem:[%s449 + $0x24] sm:$0xf]
      %v460 = vld [vmem:[%s449 + $0x28] sm:$0xf]
      %v461 = vld [vmem:[%s449 + $0x2c] sm:$0xf]
      %v462 = vld [vmem:[%s449 + $0x30] sm:$0xf]
      %v463 = vld [vmem:[%s449 + $0x34] sm:$0xf]
      %v464 = vld [vmem:[%s449 + $0x38] sm:$0xf]
      %v465 = vld [vmem:[%s449 + $0x3c] sm:$0xf]
      %v466 = vunpack.c.l.bf16 %v450
      %v467 = vunpack.c.l.bf16 %v451
      %v468 = vunpack.c.l.bf16 %v452
      %v469 = vunpack.c.l.bf16 %v453
      %v470 = vunpack.c.l.bf16 %v454
      %v471 = vunpack.c.l.bf16 %v455
      %v472 = vunpack.c.l.bf16 %v456
      %v473 = vunpack.c.l.bf16 %v457
      %v474 = vunpack.c.l.bf16 %v458
      %v475 = vunpack.c.l.bf16 %v459
      %v476 = vunpack.c.l.bf16 %v460
      %v477 = vunpack.c.l.bf16 %v461
      %v478 = vunpack.c.l.bf16 %v462
      %v479 = vunpack.c.l.bf16 %v463
      %v480 = vunpack.c.l.bf16 %v464
      %v481 = vunpack.c.l.bf16 %v465
      %v482 = vmul.f32 %v466, %v339
      %v483 = vmul.f32 %v467, %v339
      %v484 = vmul.f32 %v468, %v339
      %v485 = vmul.f32 %v469, %v339
      %v486 = vmul.f32 %v470, %v339
      %v487 = vmul.f32 %v471, %v339
      %v488 = vmul.f32 %v472, %v339
      %v489 = vmul.f32 %v473, %v339
      %v490 = vmul.f32 %v474, %v339
      %v491 = vmul.f32 %v475, %v339
      %v492 = vmul.f32 %v476, %v339
      %v493 = vmul.f32 %v477, %v339
      %v494 = vmul.f32 %v478, %v339
      %v495 = vmul.f32 %v479, %v339
      %v496 = vmul.f32 %v480, %v339
      %v497 = vmul.f32 %v481, %v339
      %v498 = vadd.f32 %v482, %v347
      %v499 = vadd.f32 %v483, %v347
      %v500 = vadd.f32 %v484, %v347
      %v501 = vadd.f32 %v485, %v347
      %v502 = vadd.f32 %v486, %v347
      %v503 = vadd.f32 %v487, %v347
      %v504 = vadd.f32 %v488, %v347
      %v505 = vadd.f32 %v489, %v347
      %v506 = vadd.f32 %v490, %v347
      %v507 = vadd.f32 %v491, %v347
      %v508 = vadd.f32 %v492, %v347
      %v509 = vadd.f32 %v493, %v347
      %v510 = vadd.f32 %v494, %v347
      %v511 = vadd.f32 %v495, %v347
      %v512 = vadd.f32 %v496, %v347
      %v513 = vadd.f32 %v497, %v347
      %v514 = vmax.f32 %v498, 0.0
      %v515 = vmax.f32 %v499, 0.0
      %v516 = vmax.f32 %v500, 0.0
      %v517 = vmax.f32 %v501, 0.0
      %v518 = vmax.f32 %v502, 0.0
      %v519 = vmax.f32 %v503, 0.0
      %v520 = vmax.f32 %v504, 0.0
      %v521 = vmax.f32 %v505, 0.0
      %v522 = vmax.f32 %v506, 0.0
      %v523 = vmax.f32 %v507, 0.0
      %v524 = vmax.f32 %v508, 0.0
      %v525 = vmax.f32 %v509, 0.0
      %v526 = vmax.f32 %v510, 0.0
      %v527 = vmax.f32 %v511, 0.0
      %v528 = vmax.f32 %v512, 0.0
      %v529 = vmax.f32 %v513, 0.0
      %v530 = vpack.c.bf16 %v515, %v514
      %v531 = vpack.c.bf16 %v517, %v516
      %v532 = vpack.c.bf16 %v519, %v518
      %v533 = vpack.c.bf16 %v521, %v520
      %v534 = vpack.c.bf16 %v523, %v522
      %v535 = vpack.c.bf16 %v525, %v524
      %v536 = vpack.c.bf16 %v527, %v526
      %v537 = vpack.c.bf16 %v529, %v528
      %v546 = vunpack.c.l.b16 %v530
      %v547 = vunpack.c.h.b16 %v530
      %v548 = vunpack.c.l.b16 %v531
      %v549 = vunpack.c.h.b16 %v531
      %v550 = vunpack.c.l.b16 %v532
      %v551 = vunpack.c.h.b16 %v532
      %v552 = vunpack.c.l.b16 %v533
      %v553 = vunpack.c.h.b16 %v533
      %v554 = vunpack.c.l.b16 %v534
      %v555 = vunpack.c.h.b16 %v534
      %v556 = vunpack.c.l.b16 %v535
      %v557 = vunpack.c.h.b16 %v535
      %v558 = vunpack.c.l.b16 %v536
      %v559 = vunpack.c.h.b16 %v536
      %v560 = vunpack.c.l.b16 %v537
      %v561 = vunpack.c.h.b16 %v537
      %v562 = vpack.c.b16 %v546, %v546
      %v563 = vpack.c.b16 %v547, %v547
      %v564 = vpack.c.b16 %v548, %v548
      %v565 = vpack.c.b16 %v549, %v549
      %v566 = vpack.c.b16 %v550, %v550
      %v567 = vpack.c.b16 %v551, %v551
      %v568 = vpack.c.b16 %v552, %v552
      %v569 = vpack.c.b16 %v553, %v553
      %v570 = vpack.c.b16 %v554, %v554
      %v571 = vpack.c.b16 %v555, %v555
      %v572 = vpack.c.b16 %v556, %v556
      %v573 = vpack.c.b16 %v557, %v557
      %v574 = vpack.c.b16 %v558, %v558
      %v575 = vpack.c.b16 %v559, %v559
      %v576 = vpack.c.b16 %v560, %v560
      %v577 = vpack.c.b16 %v561, %v561
      %v579 = vshrl.u32 %v562, 16
      %v581 = vrot.slane %v579, 7
      %v582 = vshll.u32 %v562, 16
      %v584 = vor.u32 %v581, %v582
      %v585 = vrot.slane %v581, 4
      %v587 = vshrl.u32 %v563, 16
      %v589 = vrot.slane %v587, 7
      %v590 = vshll.u32 %v563, 16
      %v592 = vor.u32 %v589, %v590
      %v593 = vsel %vm382, %v585, %v592
      %v594 = vrot.slane %v589, 4
      %v596 = vshrl.u32 %v564, 16
      %v598 = vrot.slane %v596, 7
      %v599 = vshll.u32 %v564, 16
      %v601 = vor.u32 %v598, %v599
      %v602 = vrot.slane %v598, 4
      %v604 = vshrl.u32 %v565, 16
      %v606 = vrot.slane %v604, 7
      %v607 = vshll.u32 %v565, 16
      %v609 = vor.u32 %v606, %v607
      %v610 = vsel %vm382, %v602, %v609
      %v611 = vrot.slane %v606, 4
      %v613 = vshrl.u32 %v566, 16
      %v615 = vrot.slane %v613, 7
      %v616 = vshll.u32 %v566, 16
      %v618 = vor.u32 %v615, %v616
      %v619 = vrot.slane %v615, 4
      %v621 = vshrl.u32 %v567, 16
      %v623 = vrot.slane %v621, 7
      %v624 = vshll.u32 %v567, 16
      %v626 = vor.u32 %v623, %v624
      %v627 = vsel %vm382, %v619, %v626
      %v628 = vrot.slane %v623, 4
      %v630 = vshrl.u32 %v568, 16
      %v632 = vrot.slane %v630, 7
      %v633 = vshll.u32 %v568, 16
      %v635 = vor.u32 %v632, %v633
      %v636 = vrot.slane %v632, 4
      %v638 = vshrl.u32 %v569, 16
      %v640 = vrot.slane %v638, 7
      %v641 = vshll.u32 %v569, 16
      %v643 = vor.u32 %v640, %v641
      %v644 = vsel %vm382, %v636, %v643
      %v645 = vrot.slane %v640, 4
      %v647 = vshrl.u32 %v570, 16
      %v649 = vrot.slane %v647, 7
      %v650 = vshll.u32 %v570, 16
      %v652 = vor.u32 %v649, %v650
      %v653 = vrot.slane %v649, 4
      %v655 = vshrl.u32 %v571, 16
      %v657 = vrot.slane %v655, 7
      %v658 = vshll.u32 %v571, 16
      %v660 = vor.u32 %v657, %v658
      %v661 = vsel %vm382, %v653, %v660
      %v662 = vrot.slane %v657, 4
      %v664 = vshrl.u32 %v572, 16
      %v666 = vrot.slane %v664, 7
      %v667 = vshll.u32 %v572, 16
      %v669 = vor.u32 %v666, %v667
      %v670 = vrot.slane %v666, 4
      %v672 = vshrl.u32 %v573, 16
      %v674 = vrot.slane %v672, 7
      %v675 = vshll.u32 %v573, 16
      %v677 = vor.u32 %v674, %v675
      %v678 = vsel %vm382, %v670, %v677
      %v679 = vrot.slane %v674, 4
      %v681 = vshrl.u32 %v574, 16
      %v683 = vrot.slane %v681, 7
      %v684 = vshll.u32 %v574, 16
      %v686 = vor.u32 %v683, %v684
      %v687 = vrot.slane %v683, 4
      %v689 = vshrl.u32 %v575, 16
      %v691 = vrot.slane %v689, 7
      %v692 = vshll.u32 %v575, 16
      %v694 = vor.u32 %v691, %v692
      %v695 = vsel %vm382, %v687, %v694
      %v696 = vrot.slane %v691, 4
      %v698 = vshrl.u32 %v576, 16
      %v700 = vrot.slane %v698, 7
      %v701 = vshll.u32 %v576, 16
      %v703 = vor.u32 %v700, %v701
      %v704 = vrot.slane %v700, 4
      %v706 = vshrl.u32 %v577, 16
      %v708 = vrot.slane %v706, 7
      %v709 = vshll.u32 %v577, 16
      %v711 = vor.u32 %v708, %v709
      %v712 = vsel %vm382, %v704, %v711
      %v713 = vrot.slane %v708, 4
      %s738 = scalar_lea.vmem [#allocation2], 12
      %v739 = vld [vmem:[%s738] sm:$0xf]
      %v740 = vsel %vm404, %v584, %v739
      %741 = vst [vmem:[%s738] sm:$0xf] %v740
      %742 = vst.msk [vmem:[%s738 + $0x4] sm:$0xf] %vm408, %v593
      %v743 = vld [vmem:[%s738 + $0x8] sm:$0x1]
      %v744 = vsel %vm256, %v594, %v743
      %745 = vst [vmem:[%s738 + $0x8] sm:$0x1] %v744
      %v746 = vld [vmem:[%s738 + $0xc] sm:$0xf]
      %v747 = vsel %vm404, %v601, %v746
      %748 = vst [vmem:[%s738 + $0xc] sm:$0xf] %v747
      %749 = vst.msk [vmem:[%s738 + $0x10] sm:$0xf] %vm408, %v610
      %v750 = vld [vmem:[%s738 + $0x14] sm:$0x1]
      %v751 = vsel %vm256, %v611, %v750
      %752 = vst [vmem:[%s738 + $0x14] sm:$0x1] %v751
      %v753 = vld [vmem:[%s738 + $0x18] sm:$0xf]
      %v754 = vsel %vm404, %v618, %v753
      %755 = vst [vmem:[%s738 + $0x18] sm:$0xf] %v754
      %756 = vst.msk [vmem:[%s738 + $0x1c] sm:$0xf] %vm408, %v627
      %v757 = vld [vmem:[%s738 + $0x20] sm:$0x1]
      %v758 = vsel %vm256, %v628, %v757
      %759 = vst [vmem:[%s738 + $0x20] sm:$0x1] %v758
      %v760 = vld [vmem:[%s738 + $0x24] sm:$0xf]
      %v761 = vsel %vm404, %v635, %v760
      %762 = vst [vmem:[%s738 + $0x24] sm:$0xf] %v761
      %763 = vst.msk [vmem:[%s738 + $0x28] sm:$0xf] %vm408, %v644
      %v764 = vld [vmem:[%s738 + $0x2c] sm:$0x1]
      %v765 = vsel %vm256, %v645, %v764
      %766 = vst [vmem:[%s738 + $0x2c] sm:$0x1] %v765
      %v767 = vld [vmem:[%s738 + $0x30] sm:$0xf]
      %v768 = vsel %vm404, %v652, %v767
      %769 = vst [vmem:[%s738 + $0x30] sm:$0xf] %v768
      %770 = vst.msk [vmem:[%s738 + $0x34] sm:$0xf] %vm408, %v661
      %v771 = vld [vmem:[%s738 + $0x38] sm:$0x1]
      %v772 = vsel %vm256, %v662, %v771
      %773 = vst [vmem:[%s738 + $0x38] sm:$0x1] %v772
      %v774 = vld [vmem:[%s738 + $0x3c] sm:$0xf]
      %v775 = vsel %vm404, %v669, %v774
      %776 = vst [vmem:[%s738 + $0x3c] sm:$0xf] %v775
      %777 = vst.msk [vmem:[%s738 + $0x40] sm:$0xf] %vm408, %v678
      %v778 = vld [vmem:[%s738 + $0x44] sm:$0x1]
      %v779 = vsel %vm256, %v679, %v778
      %780 = vst [vmem:[%s738 + $0x44] sm:$0x1] %v779
      %v781 = vld [vmem:[%s738 + $0x48] sm:$0xf]
      %v782 = vsel %vm404, %v686, %v781
      %783 = vst [vmem:[%s738 + $0x48] sm:$0xf] %v782
      %784 = vst.msk [vmem:[%s738 + $0x4c] sm:$0xf] %vm408, %v695
      %v785 = vld [vmem:[%s738 + $0x50] sm:$0x1]
      %v786 = vsel %vm256, %v696, %v785
      %787 = vst [vmem:[%s738 + $0x50] sm:$0x1] %v786
      %v788 = vld [vmem:[%s738 + $0x54] sm:$0xf]
      %v789 = vsel %vm404, %v703, %v788
      %790 = vst [vmem:[%s738 + $0x54] sm:$0xf] %v789
      %791 = vst.msk [vmem:[%s738 + $0x58] sm:$0xf] %vm408, %v712
      %v792 = vld [vmem:[%s738 + $0x5c] sm:$0x1]
      %v793 = vsel %vm256, %v713, %v792
      %794 = vst [vmem:[%s738 + $0x5c] sm:$0x1] %v793
      %v795 = vld [vmem:[#allocation2] sm:$0xf]
      %v796 = vld [vmem:[#allocation2 + $0x4] sm:$0xf]
      %v797 = vld [vmem:[#allocation2 + $0xc] sm:$0xf]
      %v798 = vld [vmem:[#allocation2 + $0x10] sm:$0xf]
      %v799 = vld [vmem:[#allocation2 + $0x18] sm:$0xf]
      %v800 = vld [vmem:[#allocation2 + $0x1c] sm:$0xf]
      %v801 = vld [vmem:[#allocation2 + $0x24] sm:$0xf]
      %v802 = vld [vmem:[#allocation2 + $0x28] sm:$0xf]
      %v803 = vld [vmem:[#allocation2 + $0x30] sm:$0xf]
      %v804 = vld [vmem:[#allocation2 + $0x34] sm:$0xf]
      %v805 = vld [vmem:[#allocation2 + $0x3c] sm:$0xf]
      %v806 = vld [vmem:[#allocation2 + $0x40] sm:$0xf]
      %v807 = vld [vmem:[#allocation2 + $0x48] sm:$0xf]
      %v808 = vld [vmem:[#allocation2 + $0x4c] sm:$0xf]
      %v809 = vld [vmem:[#allocation2 + $0x54] sm:$0xf]
      %v810 = vld [vmem:[#allocation2 + $0x58] sm:$0xf]
      %v811 = vld [vmem:[%s1] sm:$0xf]
      %v812 = vld [vmem:[%s1 + $0x4] sm:$0xf]
      %v813 = vld [vmem:[%s1 + $0x8] sm:$0xf]
      %v814 = vld [vmem:[%s1 + $0xc] sm:$0xf]
      %v815 = vld [vmem:[%s1 + $0x10] sm:$0xf]
      %v816 = vld [vmem:[%s1 + $0x14] sm:$0xf]
      %v817 = vld [vmem:[%s1 + $0x18] sm:$0xf]
      %v818 = vld [vmem:[%s1 + $0x1c] sm:$0xf]
      %v819 = vld [vmem:[#allocation2 + $0x8] sm:$0x1]
      %v820 = vld [vmem:[#allocation2 + $0x14] sm:$0x1]
      %v821 = vld [vmem:[#allocation2 + $0x20] sm:$0x1]
      %v822 = vld [vmem:[#allocation2 + $0x2c] sm:$0x1]
      %v823 = vld [vmem:[#allocation2 + $0x38] sm:$0x1]
      %v824 = vld [vmem:[#allocation2 + $0x44] sm:$0x1]
      %v825 = vld [vmem:[#allocation2 + $0x50] sm:$0x1]
      %v826 = vld [vmem:[#allocation2 + $0x5c] sm:$0x1]
      %vm827 = vsmask.f32 3328
      %vm828 = vsmask.f32 7440
      %vm829 = vmor %vm827, %vm828
      %v831 = vshrl.u32 %v795, 16
      %v833 = vrot.slane %v831, 4
      %v834 = vshll.u32 %v795, 16
      %v836 = vrot.slane %v834, 5
      %v837 = vor.u32 %v833, %v836
      %v838 = vrot.slane %v837, 4
      %v840 = vshll.u32 %v796, 16
      %v842 = vrot.slane %v840, 5
      %v843 = vsel %vm829, %v838, %v842
      %v844 = vshrl.u32 %v796, 16
      %v846 = vrot.slane %v844, 4
      %v847 = vor.u32 %v846, %v842
      %v848 = vrot.slane %v847, 4
      %v850 = vshll.u32 %v819, 16
      %v852 = vrot.slane %v850, 5
      %v853 = vsel %vm829, %v848, %v852
      %v855 = vshrl.u32 %v797, 16
      %v857 = vrot.slane %v855, 4
      %v858 = vshll.u32 %v797, 16
      %v860 = vrot.slane %v858, 5
      %v861 = vor.u32 %v857, %v860
      %v862 = vrot.slane %v861, 4
      %v864 = vshll.u32 %v798, 16
      %v866 = vrot.slane %v864, 5
      %v867 = vsel %vm829, %v862, %v866
      %v868 = vshrl.u32 %v798, 16
      %v870 = vrot.slane %v868, 4
      %v871 = vor.u32 %v870, %v866
      %v872 = vrot.slane %v871, 4
      %v874 = vshll.u32 %v820, 16
      %v876 = vrot.slane %v874, 5
      %v877 = vsel %vm829, %v872, %v876
      %v879 = vshrl.u32 %v799, 16
      %v881 = vrot.slane %v879, 4
      %v882 = vshll.u32 %v799, 16
      %v884 = vrot.slane %v882, 5
      %v885 = vor.u32 %v881, %v884
      %v886 = vrot.slane %v885, 4
      %v888 = vshll.u32 %v800, 16
      %v890 = vrot.slane %v888, 5
      %v891 = vsel %vm829, %v886, %v890
      %v892 = vshrl.u32 %v800, 16
      %v894 = vrot.slane %v892, 4
      %v895 = vor.u32 %v894, %v890
      %v896 = vrot.slane %v895, 4
      %v898 = vshll.u32 %v821, 16
      %v900 = vrot.slane %v898, 5
      %v901 = vsel %vm829, %v896, %v900
      %v903 = vshrl.u32 %v801, 16
      %v905 = vrot.slane %v903, 4
      %v906 = vshll.u32 %v801, 16
      %v908 = vrot.slane %v906, 5
      %v909 = vor.u32 %v905, %v908
      %v910 = vrot.slane %v909, 4
      %v912 = vshll.u32 %v802, 16
      %v914 = vrot.slane %v912, 5
      %v915 = vsel %vm829, %v910, %v914
      %v916 = vshrl.u32 %v802, 16
      %v918 = vrot.slane %v916, 4
      %v919 = vor.u32 %v918, %v914
      %v920 = vrot.slane %v919, 4
      %v922 = vshll.u32 %v822, 16
      %v924 = vrot.slane %v922, 5
      %v925 = vsel %vm829, %v920, %v924
      %v927 = vshrl.u32 %v803, 16
      %v929 = vrot.slane %v927, 4
      %v930 = vshll.u32 %v803, 16
      %v932 = vrot.slane %v930, 5
      %v933 = vor.u32 %v929, %v932
      %v934 = vrot.slane %v933, 4
      %v936 = vshll.u32 %v804, 16
      %v938 = vrot.slane %v936, 5
      %v939 = vsel %vm829, %v934, %v938
      %v940 = vshrl.u32 %v804, 16
      %v942 = vrot.slane %v940, 4
      %v943 = vor.u32 %v942, %v938
      %v944 = vrot.slane %v943, 4
      %v946 = vshll.u32 %v823, 16
      %v948 = vrot.slane %v946, 5
      %v949 = vsel %vm829, %v944, %v948
      %v951 = vshrl.u32 %v805, 16
      %v953 = vrot.slane %v951, 4
      %v954 = vshll.u32 %v805, 16
      %v956 = vrot.slane %v954, 5
      %v957 = vor.u32 %v953, %v956
      %v958 = vrot.slane %v957, 4
      %v960 = vshll.u32 %v806, 16
      %v962 = vrot.slane %v960, 5
      %v963 = vsel %vm829, %v958, %v962
      %v964 = vshrl.u32 %v806, 16
      %v966 = vrot.slane %v964, 4
      %v967 = vor.u32 %v966, %v962
      %v968 = vrot.slane %v967, 4
      %v970 = vshll.u32 %v824, 16
      %v972 = vrot.slane %v970, 5
      %v973 = vsel %vm829, %v968, %v972
      %v975 = vshrl.u32 %v807, 16
      %v977 = vrot.slane %v975, 4
      %v978 = vshll.u32 %v807, 16
      %v980 = vrot.slane %v978, 5
      %v981 = vor.u32 %v977, %v980
      %v982 = vrot.slane %v981, 4
      %v984 = vshll.u32 %v808, 16
      %v986 = vrot.slane %v984, 5
      %v987 = vsel %vm829, %v982, %v986
      %v988 = vshrl.u32 %v808, 16
      %v990 = vrot.slane %v988, 4
      %v991 = vor.u32 %v990, %v986
      %v992 = vrot.slane %v991, 4
      %v994 = vshll.u32 %v825, 16
      %v996 = vrot.slane %v994, 5
      %v997 = vsel %vm829, %v992, %v996
      %v999 = vshrl.u32 %v809, 16
      %v1001 = vrot.slane %v999, 4
      %v1002 = vshll.u32 %v809, 16
      %v1004 = vrot.slane %v1002, 5
      %v1005 = vor.u32 %v1001, %v1004
      %v1006 = vrot.slane %v1005, 4
      %v1008 = vshll.u32 %v810, 16
      %v1010 = vrot.slane %v1008, 5
      %v1011 = vsel %vm829, %v1006, %v1010
      %v1012 = vshrl.u32 %v810, 16
      %v1014 = vrot.slane %v1012, 4
      %v1015 = vor.u32 %v1014, %v1010
      %v1016 = vrot.slane %v1015, 4
      %v1018 = vshll.u32 %v826, 16
      %v1020 = vrot.slane %v1018, 5
      %v1021 = vsel %vm829, %v1016, %v1020
      %s1022 = scalar_lea.vmem %s1, 32
      %v1023 = vld [vmem:[%s1022] sm:$0xf]
      %v1024 = vld [vmem:[%s1022 + $0x4] sm:$0xf]
      %v1025 = vld [vmem:[%s1022 + $0x8] sm:$0xf]
      %v1026 = vld [vmem:[%s1022 + $0xc] sm:$0xf]
      %v1027 = vld [vmem:[%s1022 + $0x10] sm:$0xf]
      %v1028 = vld [vmem:[%s1022 + $0x14] sm:$0xf]
      %v1029 = vld [vmem:[%s1022 + $0x18] sm:$0xf]
      %v1030 = vld [vmem:[%s1022 + $0x1c] sm:$0xf]
      %v1031 = vunpack.c.l.b16 %v843
      %v1032 = vunpack.c.l.b16 %v853
      %v1033 = vunpack.c.l.b16 %v867
      %v1034 = vunpack.c.l.b16 %v877
      %v1035 = vunpack.c.l.b16 %v891
      %v1036 = vunpack.c.l.b16 %v901
      %v1037 = vunpack.c.l.b16 %v915
      %v1038 = vunpack.c.l.b16 %v925
      %v1039 = vunpack.c.l.b16 %v939
      %v1040 = vunpack.c.l.b16 %v949
      %v1041 = vunpack.c.l.b16 %v963
      %v1042 = vunpack.c.l.b16 %v973
      %v1043 = vunpack.c.l.b16 %v987
      %v1044 = vunpack.c.l.b16 %v997
      %v1045 = vunpack.c.l.b16 %v1011
      %v1046 = vunpack.c.l.b16 %v1021
      %v1047 = vpack.c.b16 %v1032, %v1031
      %v1048 = vpack.c.b16 %v1034, %v1033
      %v1049 = vpack.c.b16 %v1036, %v1035
      %v1050 = vpack.c.b16 %v1038, %v1037
      %v1051 = vpack.c.b16 %v1040, %v1039
      %v1052 = vpack.c.b16 %v1042, %v1041
      %v1053 = vpack.c.b16 %v1044, %v1043
      %v1054 = vpack.c.b16 %v1046, %v1045
      %v1063 = vunpack.c.l.b16 %v1023
      %v1064 = vunpack.c.l.b16 %v1024
      %v1065 = vunpack.c.l.b16 %v1025
      %v1066 = vunpack.c.l.b16 %v1026
      %v1067 = vunpack.c.l.b16 %v1027
      %v1068 = vunpack.c.l.b16 %v1028
      %v1069 = vunpack.c.l.b16 %v1029
      %v1070 = vunpack.c.l.b16 %v1030
      %v1071 = vpack.c.b16 %v1064, %v1063
      %v1072 = vpack.c.b16 %v1066, %v1065
      %v1073 = vpack.c.b16 %v1068, %v1067
      %v1074 = vpack.c.b16 %v1070, %v1069
      %vm1079 = vcmask 523264
      %v1081 = vsel %vm1079, %v1047, 0
      %v1084 = vsel %vm1079, %v1048, 0
      %v1087 = vsel %vm1079, %v1049, 0
      %v1090 = vsel %vm1079, %v1050, 0
      %v1093 = vsel %vm1079, %v1051, 0
      %v1096 = vsel %vm1079, %v1052, 0
      %v1099 = vsel %vm1079, %v1053, 0
      %v1102 = vsel %vm1079, %v1054, 0
      %1104 = vmatprep.subr.bf16.mxu0 0
      %1105 = vmatpush1.bf16.msra.mxu0 0
      %1106 = vmatprep.subr.bf16.mxu0 0
      %1107 = vmatpush1.bf16.msra.mxu0 0
      %1108 = vmatprep.subr.bf16.mxu0 0
      %1109 = vmatpush1.bf16.msra.mxu0 0
      %1110 = vmatprep.subr.bf16.mxu0 0
      %1111 = vmatpush1.bf16.msra.mxu0 0
      %1112 = vmatprep.subr.bf16.mxu0 0
      %1113 = vmatpush1.bf16.msra.mxu0 %v1074
      %1114 = vmatprep.subr.bf16.mxu0 0
      %1115 = vmatpush1.bf16.msra.mxu0 %v1073
      %1116 = vmatprep.subr.bf16.mxu0 0
      %1117 = vmatpush1.bf16.msra.mxu0 %v1072
      %1118 = vmatprep.subr.bf16.mxu0 0
      %1119 = vmatpush1.bf16.msra.mxu0 %v1071
      %1120 = vmatprep.subr.bf16.mxu0 0
      %1121 = vmatpush2.bf16.msra.mxu0 0
      %1122 = vmatprep.subr.bf16.mxu0 0
      %1123 = vmatpush2.bf16.msra.mxu0 0
      %1124 = vmatprep.subr.bf16.mxu0 0
      %1125 = vmatpush2.bf16.msra.mxu0 0
      %1126 = vmatprep.subr.bf16.mxu0 0
      %1127 = vmatpush2.bf16.msra.mxu0 0
      %1128 = vmatprep.subr.bf16.mxu0 0
      %1129 = vmatpush2.bf16.msra.mxu0 0
      %1130 = vmatprep.subr.bf16.mxu0 0
      %1131 = vmatpush2.bf16.msra.mxu0 0
      %1132 = vmatprep.subr.bf16.mxu0 0
      %1133 = vmatpush2.bf16.msra.mxu0 0
      %1134 = vmatprep.subr.bf16.mxu0 0
      %1135 = vmatpush2.bf16.msra.mxu0 0
      %1136 = vmatprep.mubr.bf16.mxu0 0
      %1137 = vmatmul.mubr.bf16.gmra.mxu0 %v1081
      %v1138 = vpop.f32.mrf.mxu0
      %v1139 = vadd.f32 0.0, %v1138
      %v1140 = vpop.f32.mrf.mxu0
      %v1141 = vpop.f32.mrf.mxu0
      %v1142 = vadd.f32 0.0, %v1141
      %v1143 = vpop.f32.mrf.mxu0
      %1144 = vmatprep.mubr.bf16.mxu0 0
      %1145 = vmatmul.mubr.bf16.gmra.mxu0 %v1084
      %v1146 = vpop.f32.mrf.mxu0
      %v1147 = vadd.f32 0.0, %v1146
      %v1148 = vpop.f32.mrf.mxu0
      %v1149 = vpop.f32.mrf.mxu0
      %v1150 = vadd.f32 0.0, %v1149
      %v1151 = vpop.f32.mrf.mxu0
      %1152 = vmatprep.mubr.bf16.mxu0 0
      %1153 = vmatmul.mubr.bf16.gmra.mxu0 %v1087
      %v1154 = vpop.f32.mrf.mxu0
      %v1155 = vadd.f32 0.0, %v1154
      %v1156 = vpop.f32.mrf.mxu0
      %v1157 = vpop.f32.mrf.mxu0
      %v1158 = vadd.f32 0.0, %v1157
      %v1159 = vpop.f32.mrf.mxu0
      %1160 = vmatprep.mubr.bf16.mxu0 0
      %1161 = vmatmul.mubr.bf16.gmra.mxu0 %v1090
      %v1162 = vpop.f32.mrf.mxu0
      %v1163 = vadd.f32 0.0, %v1162
      %v1164 = vpop.f32.mrf.mxu0
      %v1165 = vpop.f32.mrf.mxu0
      %v1166 = vadd.f32 0.0, %v1165
      %v1167 = vpop.f32.mrf.mxu0
      %1168 = vmatprep.mubr.bf16.mxu0 0
      %1169 = vmatmul.mubr.bf16.gmra.mxu0 %v1093
      %v1170 = vpop.f32.mrf.mxu0
      %v1171 = vadd.f32 0.0, %v1170
      %v1172 = vpop.f32.mrf.mxu0
      %v1173 = vpop.f32.mrf.mxu0
      %v1174 = vadd.f32 0.0, %v1173
      %v1175 = vpop.f32.mrf.mxu0
      %1176 = vmatprep.mubr.bf16.mxu0 0
      %1177 = vmatmul.mubr.bf16.gmra.mxu0 %v1096
      %v1178 = vpop.f32.mrf.mxu0
      %v1179 = vadd.f32 0.0, %v1178
      %v1180 = vpop.f32.mrf.mxu0
      %v1181 = vpop.f32.mrf.mxu0
      %v1182 = vadd.f32 0.0, %v1181
      %v1183 = vpop.f32.mrf.mxu0
      %1184 = vmatprep.mubr.bf16.mxu0 0
      %1185 = vmatmul.mubr.bf16.gmra.mxu0 %v1099
      %v1186 = vpop.f32.mrf.mxu0
      %v1187 = vadd.f32 0.0, %v1186
      %v1188 = vpop.f32.mrf.mxu0
      %v1189 = vpop.f32.mrf.mxu0
      %v1190 = vadd.f32 0.0, %v1189
      %v1191 = vpop.f32.mrf.mxu0
      %1192 = vmatprep.mubr.bf16.mxu0 0
      %1193 = vmatmul.mubr.bf16.gmra.mxu0 %v1102
      %v1194 = vpop.f32.mrf.mxu0
      %v1195 = vadd.f32 0.0, %v1194
      %v1196 = vpop.f32.mrf.mxu0
      %v1197 = vpop.f32.mrf.mxu0
      %v1198 = vadd.f32 0.0, %v1197
      %v1199 = vpop.f32.mrf.mxu0
      %1200 = vdwg.mxu0
      %v1217 = vunpack.c.l.b16 %v795
      %v1218 = vunpack.c.l.b16 %v796
      %v1219 = vunpack.c.l.b16 %v797
      %v1220 = vunpack.c.l.b16 %v798
      %v1221 = vunpack.c.l.b16 %v799
      %v1222 = vunpack.c.l.b16 %v800
      %v1223 = vunpack.c.l.b16 %v801
      %v1224 = vunpack.c.l.b16 %v802
      %v1225 = vunpack.c.l.b16 %v803
      %v1226 = vunpack.c.l.b16 %v804
      %v1227 = vunpack.c.l.b16 %v805
      %v1228 = vunpack.c.l.b16 %v806
      %v1229 = vunpack.c.l.b16 %v807
      %v1230 = vunpack.c.l.b16 %v808
      %v1231 = vunpack.c.l.b16 %v809
      %v1232 = vunpack.c.l.b16 %v810
      %v1233 = vpack.c.b16 %v1218, %v1217
      %v1234 = vpack.c.b16 %v1220, %v1219
      %v1235 = vpack.c.b16 %v1222, %v1221
      %v1236 = vpack.c.b16 %v1224, %v1223
      %v1237 = vpack.c.b16 %v1226, %v1225
      %v1238 = vpack.c.b16 %v1228, %v1227
      %v1239 = vpack.c.b16 %v1230, %v1229
      %v1240 = vpack.c.b16 %v1232, %v1231
      %v1249 = vunpack.c.l.b16 %v811
      %v1250 = vunpack.c.l.b16 %v812
      %v1251 = vunpack.c.l.b16 %v813
      %v1252 = vunpack.c.l.b16 %v814
      %v1253 = vunpack.c.l.b16 %v815
      %v1254 = vunpack.c.l.b16 %v816
      %v1255 = vunpack.c.l.b16 %v817
      %v1256 = vunpack.c.l.b16 %v818
      %v1257 = vpack.c.b16 %v1250, %v1249
      %v1258 = vpack.c.b16 %v1252, %v1251
      %v1259 = vpack.c.b16 %v1254, %v1253
      %v1260 = vpack.c.b16 %v1256, %v1255
      %v1266 = vsel %vm1079, %v1233, 0
      %v1269 = vsel %vm1079, %v1234, 0
      %v1272 = vsel %vm1079, %v1235, 0
      %v1275 = vsel %vm1079, %v1236, 0
      %v1278 = vsel %vm1079, %v1237, 0
      %v1281 = vsel %vm1079, %v1238, 0
      %v1284 = vsel %vm1079, %v1239, 0
      %v1287 = vsel %vm1079, %v1240, 0
      %1289 = vmatprep.subr.bf16.mxu0 0
      %1290 = vmatpush1.bf16.msra.mxu0 0
      %1291 = vmatprep.subr.bf16.mxu0 0
      %1292 = vmatpush1.bf16.msra.mxu0 0
      %1293 = vmatprep.subr.bf16.mxu0 0
      %1294 = vmatpush1.bf16.msra.mxu0 0
      %1295 = vmatprep.subr.bf16.mxu0 0
      %1296 = vmatpush1.bf16.msra.mxu0 0
      %1297 = vmatprep.subr.bf16.mxu0 0
      %1298 = vmatpush1.bf16.msra.mxu0 %v1260
      %1299 = vmatprep.subr.bf16.mxu0 0
      %1300 = vmatpush1.bf16.msra.mxu0 %v1259
      %1301 = vmatprep.subr.bf16.mxu0 0
      %1302 = vmatpush1.bf16.msra.mxu0 %v1258
      %1303 = vmatprep.subr.bf16.mxu0 0
      %1304 = vmatpush1.bf16.msra.mxu0 %v1257
      %1305 = vmatprep.subr.bf16.mxu0 0
      %1306 = vmatpush2.bf16.msra.mxu0 0
      %1307 = vmatprep.subr.bf16.mxu0 0
      %1308 = vmatpush2.bf16.msra.mxu0 0
      %1309 = vmatprep.subr.bf16.mxu0 0
      %1310 = vmatpush2.bf16.msra.mxu0 0
      %1311 = vmatprep.subr.bf16.mxu0 0
      %1312 = vmatpush2.bf16.msra.mxu0 0
      %1313 = vmatprep.subr.bf16.mxu0 0
      %1314 = vmatpush2.bf16.msra.mxu0 0
      %1315 = vmatprep.subr.bf16.mxu0 0
      %1316 = vmatpush2.bf16.msra.mxu0 0
      %1317 = vmatprep.subr.bf16.mxu0 0
      %1318 = vmatpush2.bf16.msra.mxu0 0
      %1319 = vmatprep.subr.bf16.mxu0 0
      %1320 = vmatpush2.bf16.msra.mxu0 0
      %1321 = vmatprep.mubr.bf16.mxu0 0
      %1322 = vmatmul.mubr.bf16.gmra.mxu0 %v1266
      %v1323 = vpop.f32.mrf.mxu0
      %v1324 = vadd.f32 %v1139, %v1323
      %v1325 = vpop.f32.mrf.mxu0
      %v1326 = vpop.f32.mrf.mxu0
      %v1327 = vadd.f32 %v1142, %v1326
      %v1328 = vpop.f32.mrf.mxu0
      %1329 = vmatprep.mubr.bf16.mxu0 0
      %1330 = vmatmul.mubr.bf16.gmra.mxu0 %v1269
      %v1331 = vpop.f32.mrf.mxu0
      %v1332 = vadd.f32 %v1147, %v1331
      %v1333 = vpop.f32.mrf.mxu0
      %v1334 = vpop.f32.mrf.mxu0
      %v1335 = vadd.f32 %v1150, %v1334
      %v1336 = vpop.f32.mrf.mxu0
      %1337 = vmatprep.mubr.bf16.mxu0 0
      %1338 = vmatmul.mubr.bf16.gmra.mxu0 %v1272
      %v1339 = vpop.f32.mrf.mxu0
      %v1340 = vadd.f32 %v1155, %v1339
      %v1341 = vpop.f32.mrf.mxu0
      %v1342 = vpop.f32.mrf.mxu0
      %v1343 = vadd.f32 %v1158, %v1342
      %v1344 = vpop.f32.mrf.mxu0
      %1345 = vmatprep.mubr.bf16.mxu0 0
      %1346 = vmatmul.mubr.bf16.gmra.mxu0 %v1275
      %v1347 = vpop.f32.mrf.mxu0
      %v1348 = vadd.f32 %v1163, %v1347
      %v1349 = vpop.f32.mrf.mxu0
      %v1350 = vpop.f32.mrf.mxu0
      %v1351 = vadd.f32 %v1166, %v1350
      %v1352 = vpop.f32.mrf.mxu0
      %1353 = vmatprep.mubr.bf16.mxu0 0
      %1354 = vmatmul.mubr.bf16.gmra.mxu0 %v1278
      %v1355 = vpop.f32.mrf.mxu0
      %v1356 = vadd.f32 %v1171, %v1355
      %v1357 = vpop.f32.mrf.mxu0
      %v1358 = vpop.f32.mrf.mxu0
      %v1359 = vadd.f32 %v1174, %v1358
      %v1360 = vpop.f32.mrf.mxu0
      %1361 = vmatprep.mubr.bf16.mxu0 0
      %1362 = vmatmul.mubr.bf16.gmra.mxu0 %v1281
      %v1363 = vpop.f32.mrf.mxu0
      %v1364 = vadd.f32 %v1179, %v1363
      %v1365 = vpop.f32.mrf.mxu0
      %v1366 = vpop.f32.mrf.mxu0
      %v1367 = vadd.f32 %v1182, %v1366
      %v1368 = vpop.f32.mrf.mxu0
      %1369 = vmatprep.mubr.bf16.mxu0 0
      %1370 = vmatmul.mubr.bf16.gmra.mxu0 %v1284
      %v1371 = vpop.f32.mrf.mxu0
      %v1372 = vadd.f32 %v1187, %v1371
      %v1373 = vpop.f32.mrf.mxu0
      %v1374 = vpop.f32.mrf.mxu0
      %v1375 = vadd.f32 %v1190, %v1374
      %v1376 = vpop.f32.mrf.mxu0
      %1377 = vmatprep.mubr.bf16.mxu0 0
      %1378 = vmatmul.mubr.bf16.gmra.mxu0 %v1287
      %v1379 = vpop.f32.mrf.mxu0
      %v1380 = vadd.f32 %v1195, %v1379
      %v1381 = vpop.f32.mrf.mxu0
      %v1382 = vpop.f32.mrf.mxu0
      %v1383 = vadd.f32 %v1198, %v1382
      %v1384 = vpop.f32.mrf.mxu0
      %1385 = vdwg.mxu0
      %v1386 = vld [vmem:[#allocation2] sm:$0xe]
      %v1387 = vld [vmem:[#allocation2 + $0xc] sm:$0xe]
      %v1388 = vld [vmem:[#allocation2 + $0x18] sm:$0xe]
      %v1389 = vld [vmem:[#allocation2 + $0x24] sm:$0xe]
      %v1390 = vld [vmem:[#allocation2 + $0x30] sm:$0xe]
      %v1391 = vld [vmem:[#allocation2 + $0x3c] sm:$0xe]
      %v1392 = vld [vmem:[#allocation2 + $0x48] sm:$0xe]
      %v1393 = vld [vmem:[#allocation2 + $0x54] sm:$0xe]
      %vm1410 = vcmask 1042432
      %vm1411 = vcmask 1046532
      %vm1412 = vmor %vm1410, %vm1411
      %v1413 = vrot.slane %v1386, 5
      %v1414 = vrot.slane %v1413, 4
      %v1415 = vrot.slane %v796, 5
      %v1416 = vsel %vm1412, %v1414, %v1415
      %v1417 = vrot.slane %v1415, 4
      %v1418 = vrot.slane %v819, 5
      %v1419 = vsel %vm1412, %v1417, %v1418
      %v1420 = vrot.slane %v1387, 5
      %v1421 = vrot.slane %v1420, 4
      %v1422 = vrot.slane %v798, 5
      %v1423 = vsel %vm1412, %v1421, %v1422
      %v1424 = vrot.slane %v1422, 4
      %v1425 = vrot.slane %v820, 5
      %v1426 = vsel %vm1412, %v1424, %v1425
      %v1427 = vrot.slane %v1388, 5
      %v1428 = vrot.slane %v1427, 4
      %v1429 = vrot.slane %v800, 5
      %v1430 = vsel %vm1412, %v1428, %v1429
      %v1431 = vrot.slane %v1429, 4
      %v1432 = vrot.slane %v821, 5
      %v1433 = vsel %vm1412, %v1431, %v1432
      %v1434 = vrot.slane %v1389, 5
      %v1435 = vrot.slane %v1434, 4
      %v1436 = vrot.slane %v802, 5
      %v1437 = vsel %vm1412, %v1435, %v1436
      %v1438 = vrot.slane %v1436, 4
      %v1439 = vrot.slane %v822, 5
      %v1440 = vsel %vm1412, %v1438, %v1439
      %v1441 = vrot.slane %v1390, 5
      %v1442 = vrot.slane %v1441, 4
      %v1443 = vrot.slane %v804, 5
      %v1444 = vsel %vm1412, %v1442, %v1443
      %v1445 = vrot.slane %v1443, 4
      %v1446 = vrot.slane %v823, 5
      %v1447 = vsel %vm1412, %v1445, %v1446
      %v1448 = vrot.slane %v1391, 5
      %v1449 = vrot.slane %v1448, 4
      %v1450 = vrot.slane %v806, 5
      %v1451 = vsel %vm1412, %v1449, %v1450
      %v1452 = vrot.slane %v1450, 4
      %v1453 = vrot.slane %v824, 5
      %v1454 = vsel %vm1412, %v1452, %v1453
      %v1455 = vrot.slane %v1392, 5
      %v1456 = vrot.slane %v1455, 4
      %v1457 = vrot.slane %v808, 5
      %v1458 = vsel %vm1412, %v1456, %v1457
      %v1459 = vrot.slane %v1457, 4
      %v1460 = vrot.slane %v825, 5
      %v1461 = vsel %vm1412, %v1459, %v1460
      %v1462 = vrot.slane %v1393, 5
      %v1463 = vrot.slane %v1462, 4
      %v1464 = vrot.slane %v810, 5
      %v1465 = vsel %vm1412, %v1463, %v1464
      %v1466 = vrot.slane %v1464, 4
      %v1467 = vrot.slane %v826, 5
      %v1468 = vsel %vm1412, %v1466, %v1467
      %s1469 = scalar_lea.vmem %s1, 64
      %v1470 = vld [vmem:[%s1469] sm:$0xf]
      %v1471 = vld [vmem:[%s1469 + $0x4] sm:$0xf]
      %v1472 = vld [vmem:[%s1469 + $0x8] sm:$0xf]
      %v1473 = vld [vmem:[%s1469 + $0xc] sm:$0xf]
      %v1474 = vld [vmem:[%s1469 + $0x10] sm:$0xf]
      %v1475 = vld [vmem:[%s1469 + $0x14] sm:$0xf]
      %v1476 = vld [vmem:[%s1469 + $0x18] sm:$0xf]
      %v1477 = vld [vmem:[%s1469 + $0x1c] sm:$0xf]
      %v1478 = vunpack.c.l.b16 %v1416
      %v1479 = vunpack.c.l.b16 %v1419
      %v1480 = vunpack.c.l.b16 %v1423
      %v1481 = vunpack.c.l.b16 %v1426
      %v1482 = vunpack.c.l.b16 %v1430
      %v1483 = vunpack.c.l.b16 %v1433
      %v1484 = vunpack.c.l.b16 %v1437
      %v1485 = vunpack.c.l.b16 %v1440
      %v1486 = vunpack.c.l.b16 %v1444
      %v1487 = vunpack.c.l.b16 %v1447
      %v1488 = vunpack.c.l.b16 %v1451
      %v1489 = vunpack.c.l.b16 %v1454
      %v1490 = vunpack.c.l.b16 %v1458
      %v1491 = vunpack.c.l.b16 %v1461
      %v1492 = vunpack.c.l.b16 %v1465
      %v1493 = vunpack.c.l.b16 %v1468
      %v1494 = vpack.c.b16 %v1479, %v1478
      %v1495 = vpack.c.b16 %v1481, %v1480
      %v1496 = vpack.c.b16 %v1483, %v1482
      %v1497 = vpack.c.b16 %v1485, %v1484
      %v1498 = vpack.c.b16 %v1487, %v1486
      %v1499 = vpack.c.b16 %v1489, %v1488
      %v1500 = vpack.c.b16 %v1491, %v1490
      %v1501 = vpack.c.b16 %v1493, %v1492
      %v1510 = vunpack.c.l.b16 %v1470
      %v1511 = vunpack.c.l.b16 %v1471
      %v1512 = vunpack.c.l.b16 %v1472
      %v1513 = vunpack.c.l.b16 %v1473
      %v1514 = vunpack.c.l.b16 %v1474
      %v1515 = vunpack.c.l.b16 %v1475
      %v1516 = vunpack.c.l.b16 %v1476
      %v1517 = vunpack.c.l.b16 %v1477
      %v1518 = vpack.c.b16 %v1511, %v1510
      %v1519 = vpack.c.b16 %v1513, %v1512
      %v1520 = vpack.c.b16 %v1515, %v1514
      %v1521 = vpack.c.b16 %v1517, %v1516
      %v1527 = vsel %vm1079, %v1494, 0
      %v1530 = vsel %vm1079, %v1495, 0
      %v1533 = vsel %vm1079, %v1496, 0
      %v1536 = vsel %vm1079, %v1497, 0
      %v1539 = vsel %vm1079, %v1498, 0
      %v1542 = vsel %vm1079, %v1499, 0
      %v1545 = vsel %vm1079, %v1500, 0
      %v1548 = vsel %vm1079, %v1501, 0
      %1550 = vmatprep.subr.bf16.mxu0 0
      %1551 = vmatpush1.bf16.msra.mxu0 0
      %1552 = vmatprep.subr.bf16.mxu0 0
      %1553 = vmatpush1.bf16.msra.mxu0 0
      %1554 = vmatprep.subr.bf16.mxu0 0
      %1555 = vmatpush1.bf16.msra.mxu0 0
      %1556 = vmatprep.subr.bf16.mxu0 0
      %1557 = vmatpush1.bf16.msra.mxu0 0
      %1558 = vmatprep.subr.bf16.mxu0 0
      %1559 = vmatpush1.bf16.msra.mxu0 %v1521
      %1560 = vmatprep.subr.bf16.mxu0 0
      %1561 = vmatpush1.bf16.msra.mxu0 %v1520
      %1562 = vmatprep.subr.bf16.mxu0 0
      %1563 = vmatpush1.bf16.msra.mxu0 %v1519
      %1564 = vmatprep.subr.bf16.mxu0 0
      %1565 = vmatpush1.bf16.msra.mxu0 %v1518
      %1566 = vmatprep.subr.bf16.mxu0 0
      %1567 = vmatpush2.bf16.msra.mxu0 0
      %1568 = vmatprep.subr.bf16.mxu0 0
      %1569 = vmatpush2.bf16.msra.mxu0 0
      %1570 = vmatprep.subr.bf16.mxu0 0
      %1571 = vmatpush2.bf16.msra.mxu0 0
      %1572 = vmatprep.subr.bf16.mxu0 0
      %1573 = vmatpush2.bf16.msra.mxu0 0
      %1574 = vmatprep.subr.bf16.mxu0 0
      %1575 = vmatpush2.bf16.msra.mxu0 0
      %1576 = vmatprep.subr.bf16.mxu0 0
      %1577 = vmatpush2.bf16.msra.mxu0 0
      %1578 = vmatprep.subr.bf16.mxu0 0
      %1579 = vmatpush2.bf16.msra.mxu0 0
      %1580 = vmatprep.subr.bf16.mxu0 0
      %1581 = vmatpush2.bf16.msra.mxu0 0
      %1582 = vmatprep.mubr.bf16.mxu0 0
      %1583 = vmatmul.mubr.bf16.gmra.mxu0 %v1527
      %v1584 = vpop.f32.mrf.mxu0
      %v1585 = vadd.f32 0.0, %v1584
      %v1586 = vpop.f32.mrf.mxu0
      %v1587 = vpop.f32.mrf.mxu0
      %v1588 = vadd.f32 0.0, %v1587
      %v1589 = vpop.f32.mrf.mxu0
      %1590 = vmatprep.mubr.bf16.mxu0 0
      %1591 = vmatmul.mubr.bf16.gmra.mxu0 %v1530
      %v1592 = vpop.f32.mrf.mxu0
      %v1593 = vadd.f32 0.0, %v1592
      %v1594 = vpop.f32.mrf.mxu0
      %v1595 = vpop.f32.mrf.mxu0
      %v1596 = vadd.f32 0.0, %v1595
      %v1597 = vpop.f32.mrf.mxu0
      %1598 = vmatprep.mubr.bf16.mxu0 0
      %1599 = vmatmul.mubr.bf16.gmra.mxu0 %v1533
      %v1600 = vpop.f32.mrf.mxu0
      %v1601 = vadd.f32 0.0, %v1600
      %v1602 = vpop.f32.mrf.mxu0
      %v1603 = vpop.f32.mrf.mxu0
      %v1604 = vadd.f32 0.0, %v1603
      %v1605 = vpop.f32.mrf.mxu0
      %1606 = vmatprep.mubr.bf16.mxu0 0
      %1607 = vmatmul.mubr.bf16.gmra.mxu0 %v1536
      %v1608 = vpop.f32.mrf.mxu0
      %v1609 = vadd.f32 0.0, %v1608
      %v1610 = vpop.f32.mrf.mxu0
      %v1611 = vpop.f32.mrf.mxu0
      %v1612 = vadd.f32 0.0, %v1611
      %v1613 = vpop.f32.mrf.mxu0
      %1614 = vmatprep.mubr.bf16.mxu0 0
      %1615 = vmatmul.mubr.bf16.gmra.mxu0 %v1539
      %v1616 = vpop.f32.mrf.mxu0
      %v1617 = vadd.f32 0.0, %v1616
      %v1618 = vpop.f32.mrf.mxu0
      %v1619 = vpop.f32.mrf.mxu0
      %v1620 = vadd.f32 0.0, %v1619
      %v1621 = vpop.f32.mrf.mxu0
      %1622 = vmatprep.mubr.bf16.mxu0 0
      %1623 = vmatmul.mubr.bf16.gmra.mxu0 %v1542
      %v1624 = vpop.f32.mrf.mxu0
      %v1625 = vadd.f32 0.0, %v1624
      %v1626 = vpop.f32.mrf.mxu0
      %v1627 = vpop.f32.mrf.mxu0
      %v1628 = vadd.f32 0.0, %v1627
      %v1629 = vpop.f32.mrf.mxu0
      %1630 = vmatprep.mubr.bf16.mxu0 0
      %1631 = vmatmul.mubr.bf16.gmra.mxu0 %v1545
      %v1632 = vpop.f32.mrf.mxu0
      %v1633 = vadd.f32 0.0, %v1632
      %v1634 = vpop.f32.mrf.mxu0
      %v1635 = vpop.f32.mrf.mxu0
      %v1636 = vadd.f32 0.0, %v1635
      %v1637 = vpop.f32.mrf.mxu0
      %1638 = vmatprep.mubr.bf16.mxu0 0
      %1639 = vmatmul.mubr.bf16.gmra.mxu0 %v1548
      %v1640 = vpop.f32.mrf.mxu0
      %v1641 = vadd.f32 0.0, %v1640
      %v1642 = vpop.f32.mrf.mxu0
      %v1643 = vpop.f32.mrf.mxu0
      %v1644 = vadd.f32 0.0, %v1643
      %v1645 = vpop.f32.mrf.mxu0
      %1646 = vdwg.mxu0
      %v1647 = vadd.f32 %v1324, %v1585
      %v1648 = vadd.f32 %v1327, %v1588
      %v1649 = vadd.f32 %v1332, %v1593
      %v1650 = vadd.f32 %v1335, %v1596
      %v1651 = vadd.f32 %v1340, %v1601
      %v1652 = vadd.f32 %v1343, %v1604
      %v1653 = vadd.f32 %v1348, %v1609
      %v1654 = vadd.f32 %v1351, %v1612
      %v1655 = vadd.f32 %v1356, %v1617
      %v1656 = vadd.f32 %v1359, %v1620
      %v1657 = vadd.f32 %v1364, %v1625
      %v1658 = vadd.f32 %v1367, %v1628
      %v1659 = vadd.f32 %v1372, %v1633
      %v1660 = vadd.f32 %v1375, %v1636
      %v1661 = vadd.f32 %v1380, %v1641
      %v1662 = vadd.f32 %v1383, %v1644
      %v1663 = vld [vmem:[%s738] sm:$0xf]
      %v1664 = vld [vmem:[%s738 + $0x4] sm:$0xf]
      %v1665 = vld [vmem:[%s738 + $0xc] sm:$0xf]
      %v1666 = vld [vmem:[%s738 + $0x10] sm:$0xf]
      %v1667 = vld [vmem:[%s738 + $0x18] sm:$0xf]
      %v1668 = vld [vmem:[%s738 + $0x1c] sm:$0xf]
      %v1669 = vld [vmem:[%s738 + $0x24] sm:$0xf]
      %v1670 = vld [vmem:[%s738 + $0x28] sm:$0xf]
      %v1671 = vld [vmem:[%s738 + $0x30] sm:$0xf]
      %v1672 = vld [vmem:[%s738 + $0x34] sm:$0xf]
      %v1673 = vld [vmem:[%s738 + $0x3c] sm:$0xf]
      %v1674 = vld [vmem:[%s738 + $0x40] sm:$0xf]
      %v1675 = vld [vmem:[%s738 + $0x48] sm:$0xf]
      %v1676 = vld [vmem:[%s738 + $0x4c] sm:$0xf]
      %v1677 = vld [vmem:[%s738 + $0x54] sm:$0xf]
      %v1678 = vld [vmem:[%s738 + $0x58] sm:$0xf]
      %s1679 = scalar_lea.vmem %s1, 96
      %v1680 = vld [vmem:[%s1679] sm:$0xf]
      %v1681 = vld [vmem:[%s1679 + $0x4] sm:$0xf]
      %v1682 = vld [vmem:[%s1679 + $0x8] sm:$0xf]
      %v1683 = vld [vmem:[%s1679 + $0xc] sm:$0xf]
      %v1684 = vld [vmem:[%s1679 + $0x10] sm:$0xf]
      %v1685 = vld [vmem:[%s1679 + $0x14] sm:$0xf]
      %v1686 = vld [vmem:[%s1679 + $0x18] sm:$0xf]
      %v1687 = vld [vmem:[%s1679 + $0x1c] sm:$0xf]
      %v1704 = vunpack.c.l.b16 %v1663
      %v1705 = vunpack.c.l.b16 %v1664
      %v1706 = vunpack.c.l.b16 %v1665
      %v1707 = vunpack.c.l.b16 %v1666
      %v1708 = vunpack.c.l.b16 %v1667
      %v1709 = vunpack.c.l.b16 %v1668
      %v1710 = vunpack.c.l.b16 %v1669
      %v1711 = vunpack.c.l.b16 %v1670
      %v1712 = vunpack.c.l.b16 %v1671
      %v1713 = vunpack.c.l.b16 %v1672
      %v1714 = vunpack.c.l.b16 %v1673
      %v1715 = vunpack.c.l.b16 %v1674
      %v1716 = vunpack.c.l.b16 %v1675
      %v1717 = vunpack.c.l.b16 %v1676
      %v1718 = vunpack.c.l.b16 %v1677
      %v1719 = vunpack.c.l.b16 %v1678
      %v1720 = vpack.c.b16 %v1705, %v1704
      %v1721 = vpack.c.b16 %v1707, %v1706
      %v1722 = vpack.c.b16 %v1709, %v1708
      %v1723 = vpack.c.b16 %v1711, %v1710
      %v1724 = vpack.c.b16 %v1713, %v1712
      %v1725 = vpack.c.b16 %v1715, %v1714
      %v1726 = vpack.c.b16 %v1717, %v1716
      %v1727 = vpack.c.b16 %v1719, %v1718
      %v1736 = vunpack.c.l.b16 %v1680
      %v1737 = vunpack.c.l.b16 %v1681
      %v1738 = vunpack.c.l.b16 %v1682
      %v1739 = vunpack.c.l.b16 %v1683
      %v1740 = vunpack.c.l.b16 %v1684
      %v1741 = vunpack.c.l.b16 %v1685
      %v1742 = vunpack.c.l.b16 %v1686
      %v1743 = vunpack.c.l.b16 %v1687
      %v1744 = vpack.c.b16 %v1737, %v1736
      %v1745 = vpack.c.b16 %v1739, %v1738
      %v1746 = vpack.c.b16 %v1741, %v1740
      %v1747 = vpack.c.b16 %v1743, %v1742
      %v1753 = vsel %vm1079, %v1720, 0
      %v1756 = vsel %vm1079, %v1721, 0
      %v1759 = vsel %vm1079, %v1722, 0
      %v1762 = vsel %vm1079, %v1723, 0
      %v1765 = vsel %vm1079, %v1724, 0
      %v1768 = vsel %vm1079, %v1725, 0
      %v1771 = vsel %vm1079, %v1726, 0
      %v1774 = vsel %vm1079, %v1727, 0
      %1776 = vmatprep.subr.bf16.mxu0 0
      %1777 = vmatpush1.bf16.msra.mxu0 0
      %1778 = vmatprep.subr.bf16.mxu0 0
      %1779 = vmatpush1.bf16.msra.mxu0 0
      %1780 = vmatprep.subr.bf16.mxu0 0
      %1781 = vmatpush1.bf16.msra.mxu0 0
      %1782 = vmatprep.subr.bf16.mxu0 0
      %1783 = vmatpush1.bf16.msra.mxu0 0
      %1784 = vmatprep.subr.bf16.mxu0 0
      %1785 = vmatpush1.bf16.msra.mxu0 %v1747
      %1786 = vmatprep.subr.bf16.mxu0 0
      %1787 = vmatpush1.bf16.msra.mxu0 %v1746
      %1788 = vmatprep.subr.bf16.mxu0 0
      %1789 = vmatpush1.bf16.msra.mxu0 %v1745
      %1790 = vmatprep.subr.bf16.mxu0 0
      %1791 = vmatpush1.bf16.msra.mxu0 %v1744
      %1792 = vmatprep.subr.bf16.mxu0 0
      %1793 = vmatpush2.bf16.msra.mxu0 0
      %1794 = vmatprep.subr.bf16.mxu0 0
      %1795 = vmatpush2.bf16.msra.mxu0 0
      %1796 = vmatprep.subr.bf16.mxu0 0
      %1797 = vmatpush2.bf16.msra.mxu0 0
      %1798 = vmatprep.subr.bf16.mxu0 0
      %1799 = vmatpush2.bf16.msra.mxu0 0
      %1800 = vmatprep.subr.bf16.mxu0 0
      %1801 = vmatpush2.bf16.msra.mxu0 0
      %1802 = vmatprep.subr.bf16.mxu0 0
      %1803 = vmatpush2.bf16.msra.mxu0 0
      %1804 = vmatprep.subr.bf16.mxu0 0
      %1805 = vmatpush2.bf16.msra.mxu0 0
      %1806 = vmatprep.subr.bf16.mxu0 0
      %1807 = vmatpush2.bf16.msra.mxu0 0
      %1808 = vmatprep.mubr.bf16.mxu0 0
      %1809 = vmatmul.mubr.bf16.gmra.mxu0 %v1753
      %v1810 = vpop.f32.mrf.mxu0
      %v1811 = vadd.f32 0.0, %v1810
      %v1812 = vpop.f32.mrf.mxu0
      %v1813 = vpop.f32.mrf.mxu0
      %v1814 = vadd.f32 0.0, %v1813
      %v1815 = vpop.f32.mrf.mxu0
      %1816 = vmatprep.mubr.bf16.mxu0 0
      %1817 = vmatmul.mubr.bf16.gmra.mxu0 %v1756
      %v1818 = vpop.f32.mrf.mxu0
      %v1819 = vadd.f32 0.0, %v1818
      %v1820 = vpop.f32.mrf.mxu0
      %v1821 = vpop.f32.mrf.mxu0
      %v1822 = vadd.f32 0.0, %v1821
      %v1823 = vpop.f32.mrf.mxu0
      %1824 = vmatprep.mubr.bf16.mxu0 0
      %1825 = vmatmul.mubr.bf16.gmra.mxu0 %v1759
      %v1826 = vpop.f32.mrf.mxu0
      %v1827 = vadd.f32 0.0, %v1826
      %v1828 = vpop.f32.mrf.mxu0
      %v1829 = vpop.f32.mrf.mxu0
      %v1830 = vadd.f32 0.0, %v1829
      %v1831 = vpop.f32.mrf.mxu0
      %1832 = vmatprep.mubr.bf16.mxu0 0
      %1833 = vmatmul.mubr.bf16.gmra.mxu0 %v1762
      %v1834 = vpop.f32.mrf.mxu0
      %v1835 = vadd.f32 0.0, %v1834
      %v1836 = vpop.f32.mrf.mxu0
      %v1837 = vpop.f32.mrf.mxu0
      %v1838 = vadd.f32 0.0, %v1837
      %v1839 = vpop.f32.mrf.mxu0
      %1840 = vmatprep.mubr.bf16.mxu0 0
      %1841 = vmatmul.mubr.bf16.gmra.mxu0 %v1765
      %v1842 = vpop.f32.mrf.mxu0
      %v1843 = vadd.f32 0.0, %v1842
      %v1844 = vpop.f32.mrf.mxu0
      %v1845 = vpop.f32.mrf.mxu0
      %v1846 = vadd.f32 0.0, %v1845
      %v1847 = vpop.f32.mrf.mxu0
      %1848 = vmatprep.mubr.bf16.mxu0 0
      %1849 = vmatmul.mubr.bf16.gmra.mxu0 %v1768
      %v1850 = vpop.f32.mrf.mxu0
      %v1851 = vadd.f32 0.0, %v1850
      %v1852 = vpop.f32.mrf.mxu0
      %v1853 = vpop.f32.mrf.mxu0
      %v1854 = vadd.f32 0.0, %v1853
      %v1855 = vpop.f32.mrf.mxu0
      %1856 = vmatprep.mubr.bf16.mxu0 0
      %1857 = vmatmul.mubr.bf16.gmra.mxu0 %v1771
      %v1858 = vpop.f32.mrf.mxu0
      %v1859 = vadd.f32 0.0, %v1858
      %v1860 = vpop.f32.mrf.mxu0
      %v1861 = vpop.f32.mrf.mxu0
      %v1862 = vadd.f32 0.0, %v1861
      %v1863 = vpop.f32.mrf.mxu0
      %1864 = vmatprep.mubr.bf16.mxu0 0
      %1865 = vmatmul.mubr.bf16.gmra.mxu0 %v1774
      %v1866 = vpop.f32.mrf.mxu0
      %v1867 = vadd.f32 0.0, %v1866
      %v1868 = vpop.f32.mrf.mxu0
      %v1869 = vpop.f32.mrf.mxu0
      %v1870 = vadd.f32 0.0, %v1869
      %v1871 = vpop.f32.mrf.mxu0
      %1872 = vdwg.mxu0
      %v1873 = vadd.f32 %v1647, %v1811
      %v1874 = vadd.f32 %v1648, %v1814
      %v1875 = vadd.f32 %v1649, %v1819
      %v1876 = vadd.f32 %v1650, %v1822
      %v1877 = vadd.f32 %v1651, %v1827
      %v1878 = vadd.f32 %v1652, %v1830
      %v1879 = vadd.f32 %v1653, %v1835
      %v1880 = vadd.f32 %v1654, %v1838
      %v1881 = vadd.f32 %v1655, %v1843
      %v1882 = vadd.f32 %v1656, %v1846
      %v1883 = vadd.f32 %v1657, %v1851
      %v1884 = vadd.f32 %v1658, %v1854
      %v1885 = vadd.f32 %v1659, %v1859
      %v1886 = vadd.f32 %v1660, %v1862
      %v1887 = vadd.f32 %v1661, %v1867
      %v1888 = vadd.f32 %v1662, %v1870
      %v1889 = vld [vmem:[%s738] sm:$0xf]
      %v1890 = vld [vmem:[%s738 + $0x4] sm:$0xf]
      %v1891 = vld [vmem:[%s738 + $0x8] sm:$0x1]
      %v1892 = vld [vmem:[%s738 + $0xc] sm:$0xf]
      %v1893 = vld [vmem:[%s738 + $0x10] sm:$0xf]
      %v1894 = vld [vmem:[%s738 + $0x14] sm:$0x1]
      %v1895 = vld [vmem:[%s738 + $0x18] sm:$0xf]
      %v1896 = vld [vmem:[%s738 + $0x1c] sm:$0xf]
      %v1897 = vld [vmem:[%s738 + $0x20] sm:$0x1]
      %v1898 = vld [vmem:[%s738 + $0x24] sm:$0xf]
      %v1899 = vld [vmem:[%s738 + $0x28] sm:$0xf]
      %v1900 = vld [vmem:[%s738 + $0x2c] sm:$0x1]
      %v1901 = vld [vmem:[%s738 + $0x30] sm:$0xf]
      %v1902 = vld [vmem:[%s738 + $0x34] sm:$0xf]
      %v1903 = vld [vmem:[%s738 + $0x38] sm:$0x1]
      %v1904 = vld [vmem:[%s738 + $0x3c] sm:$0xf]
      %v1905 = vld [vmem:[%s738 + $0x40] sm:$0xf]
      %v1906 = vld [vmem:[%s738 + $0x44] sm:$0x1]
      %v1907 = vld [vmem:[%s738 + $0x48] sm:$0xf]
      %v1908 = vld [vmem:[%s738 + $0x4c] sm:$0xf]
      %v1909 = vld [vmem:[%s738 + $0x50] sm:$0x1]
      %v1910 = vld [vmem:[%s738 + $0x54] sm:$0xf]
      %v1911 = vld [vmem:[%s738 + $0x58] sm:$0xf]
      %v1912 = vld [vmem:[%s738 + $0x5c] sm:$0x1]
      %v1914 = vshrl.u32 %v1889, 16
      %v1916 = vrot.slane %v1914, 4
      %v1917 = vshll.u32 %v1889, 16
      %v1919 = vrot.slane %v1917, 5
      %v1920 = vor.u32 %v1916, %v1919
      %v1921 = vrot.slane %v1920, 4
      %v1923 = vshll.u32 %v1890, 16
      %v1925 = vrot.slane %v1923, 5
      %v1926 = vsel %vm829, %v1921, %v1925
      %v1927 = vshrl.u32 %v1890, 16
      %v1929 = vrot.slane %v1927, 4
      %v1930 = vor.u32 %v1929, %v1925
      %v1931 = vrot.slane %v1930, 4
      %v1933 = vshll.u32 %v1891, 16
      %v1935 = vrot.slane %v1933, 5
      %v1936 = vsel %vm829, %v1931, %v1935
      %v1938 = vshrl.u32 %v1892, 16
      %v1940 = vrot.slane %v1938, 4
      %v1941 = vshll.u32 %v1892, 16
      %v1943 = vrot.slane %v1941, 5
      %v1944 = vor.u32 %v1940, %v1943
      %v1945 = vrot.slane %v1944, 4
      %v1947 = vshll.u32 %v1893, 16
      %v1949 = vrot.slane %v1947, 5
      %v1950 = vsel %vm829, %v1945, %v1949
      %v1951 = vshrl.u32 %v1893, 16
      %v1953 = vrot.slane %v1951, 4
      %v1954 = vor.u32 %v1953, %v1949
      %v1955 = vrot.slane %v1954, 4
      %v1957 = vshll.u32 %v1894, 16
      %v1959 = vrot.slane %v1957, 5
      %v1960 = vsel %vm829, %v1955, %v1959
      %v1962 = vshrl.u32 %v1895, 16
      %v1964 = vrot.slane %v1962, 4
      %v1965 = vshll.u32 %v1895, 16
      %v1967 = vrot.slane %v1965, 5
      %v1968 = vor.u32 %v1964, %v1967
      %v1969 = vrot.slane %v1968, 4
      %v1971 = vshll.u32 %v1896, 16
      %v1973 = vrot.slane %v1971, 5
      %v1974 = vsel %vm829, %v1969, %v1973
      %v1975 = vshrl.u32 %v1896, 16
      %v1977 = vrot.slane %v1975, 4
      %v1978 = vor.u32 %v1977, %v1973
      %v1979 = vrot.slane %v1978, 4
      %v1981 = vshll.u32 %v1897, 16
      %v1983 = vrot.slane %v1981, 5
      %v1984 = vsel %vm829, %v1979, %v1983
      %v1986 = vshrl.u32 %v1898, 16
      %v1988 = vrot.slane %v1986, 4
      %v1989 = vshll.u32 %v1898, 16
      %v1991 = vrot.slane %v1989, 5
      %v1992 = vor.u32 %v1988, %v1991
      %v1993 = vrot.slane %v1992, 4
      %v1995 = vshll.u32 %v1899, 16
      %v1997 = vrot.slane %v1995, 5
      %v1998 = vsel %vm829, %v1993, %v1997
      %v1999 = vshrl.u32 %v1899, 16
      %v2001 = vrot.slane %v1999, 4
      %v2002 = vor.u32 %v2001, %v1997
      %v2003 = vrot.slane %v2002, 4
      %v2005 = vshll.u32 %v1900, 16
      %v2007 = vrot.slane %v2005, 5
      %v2008 = vsel %vm829, %v2003, %v2007
      %v2010 = vshrl.u32 %v1901, 16
      %v2012 = vrot.slane %v2010, 4
      %v2013 = vshll.u32 %v1901, 16
      %v2015 = vrot.slane %v2013, 5
      %v2016 = vor.u32 %v2012, %v2015
      %v2017 = vrot.slane %v2016, 4
      %v2019 = vshll.u32 %v1902, 16
      %v2021 = vrot.slane %v2019, 5
      %v2022 = vsel %vm829, %v2017, %v2021
      %v2023 = vshrl.u32 %v1902, 16
      %v2025 = vrot.slane %v2023, 4
      %v2026 = vor.u32 %v2025, %v2021
      %v2027 = vrot.slane %v2026, 4
      %v2029 = vshll.u32 %v1903, 16
      %v2031 = vrot.slane %v2029, 5
      %v2032 = vsel %vm829, %v2027, %v2031
      %v2034 = vshrl.u32 %v1904, 16
      %v2036 = vrot.slane %v2034, 4
      %v2037 = vshll.u32 %v1904, 16
      %v2039 = vrot.slane %v2037, 5
      %v2040 = vor.u32 %v2036, %v2039
      %v2041 = vrot.slane %v2040, 4
      %v2043 = vshll.u32 %v1905, 16
      %v2045 = vrot.slane %v2043, 5
      %v2046 = vsel %vm829, %v2041, %v2045
      %v2047 = vshrl.u32 %v1905, 16
      %v2049 = vrot.slane %v2047, 4
      %v2050 = vor.u32 %v2049, %v2045
      %v2051 = vrot.slane %v2050, 4
      %v2053 = vshll.u32 %v1906, 16
      %v2055 = vrot.slane %v2053, 5
      %v2056 = vsel %vm829, %v2051, %v2055
      %v2058 = vshrl.u32 %v1907, 16
      %v2060 = vrot.slane %v2058, 4
      %v2061 = vshll.u32 %v1907, 16
      %v2063 = vrot.slane %v2061, 5
      %v2064 = vor.u32 %v2060, %v2063
      %v2065 = vrot.slane %v2064, 4
      %v2067 = vshll.u32 %v1908, 16
      %v2069 = vrot.slane %v2067, 5
      %v2070 = vsel %vm829, %v2065, %v2069
      %v2071 = vshrl.u32 %v1908, 16
      %v2073 = vrot.slane %v2071, 4
      %v2074 = vor.u32 %v2073, %v2069
      %v2075 = vrot.slane %v2074, 4
      %v2077 = vshll.u32 %v1909, 16
      %v2079 = vrot.slane %v2077, 5
      %v2080 = vsel %vm829, %v2075, %v2079
      %v2082 = vshrl.u32 %v1910, 16
      %v2084 = vrot.slane %v2082, 4
      %v2085 = vshll.u32 %v1910, 16
      %v2087 = vrot.slane %v2085, 5
      %v2088 = vor.u32 %v2084, %v2087
      %v2089 = vrot.slane %v2088, 4
      %v2091 = vshll.u32 %v1911, 16
      %v2093 = vrot.slane %v2091, 5
      %v2094 = vsel %vm829, %v2089, %v2093
      %v2095 = vshrl.u32 %v1911, 16
      %v2097 = vrot.slane %v2095, 4
      %v2098 = vor.u32 %v2097, %v2093
      %v2099 = vrot.slane %v2098, 4
      %v2101 = vshll.u32 %v1912, 16
      %v2103 = vrot.slane %v2101, 5
      %v2104 = vsel %vm829, %v2099, %v2103
      %s2105 = scalar_lea.vmem %s1, 128
      %v2106 = vld [vmem:[%s2105] sm:$0xf]
      %v2107 = vld [vmem:[%s2105 + $0x4] sm:$0xf]
      %v2108 = vld [vmem:[%s2105 + $0x8] sm:$0xf]
      %v2109 = vld [vmem:[%s2105 + $0xc] sm:$0xf]
      %v2110 = vld [vmem:[%s2105 + $0x10] sm:$0xf]
      %v2111 = vld [vmem:[%s2105 + $0x14] sm:$0xf]
      %v2112 = vld [vmem:[%s2105 + $0x18] sm:$0xf]
      %v2113 = vld [vmem:[%s2105 + $0x1c] sm:$0xf]
      %v2114 = vunpack.c.l.b16 %v1926
      %v2115 = vunpack.c.l.b16 %v1936
      %v2116 = vunpack.c.l.b16 %v1950
      %v2117 = vunpack.c.l.b16 %v1960
      %v2118 = vunpack.c.l.b16 %v1974
      %v2119 = vunpack.c.l.b16 %v1984
      %v2120 = vunpack.c.l.b16 %v1998
      %v2121 = vunpack.c.l.b16 %v2008
      %v2122 = vunpack.c.l.b16 %v2022
      %v2123 = vunpack.c.l.b16 %v2032
      %v2124 = vunpack.c.l.b16 %v2046
      %v2125 = vunpack.c.l.b16 %v2056
      %v2126 = vunpack.c.l.b16 %v2070
      %v2127 = vunpack.c.l.b16 %v2080
      %v2128 = vunpack.c.l.b16 %v2094
      %v2129 = vunpack.c.l.b16 %v2104
      %v2130 = vpack.c.b16 %v2115, %v2114
      %v2131 = vpack.c.b16 %v2117, %v2116
      %v2132 = vpack.c.b16 %v2119, %v2118
      %v2133 = vpack.c.b16 %v2121, %v2120
      %v2134 = vpack.c.b16 %v2123, %v2122
      %v2135 = vpack.c.b16 %v2125, %v2124
      %v2136 = vpack.c.b16 %v2127, %v2126
      %v2137 = vpack.c.b16 %v2129, %v2128
      %v2146 = vunpack.c.l.b16 %v2106
      %v2147 = vunpack.c.l.b16 %v2107
      %v2148 = vunpack.c.l.b16 %v2108
      %v2149 = vunpack.c.l.b16 %v2109
      %v2150 = vunpack.c.l.b16 %v2110
      %v2151 = vunpack.c.l.b16 %v2111
      %v2152 = vunpack.c.l.b16 %v2112
      %v2153 = vunpack.c.l.b16 %v2113
      %v2154 = vpack.c.b16 %v2147, %v2146
      %v2155 = vpack.c.b16 %v2149, %v2148
      %v2156 = vpack.c.b16 %v2151, %v2150
      %v2157 = vpack.c.b16 %v2153, %v2152
      %v2163 = vsel %vm1079, %v2130, 0
      %v2166 = vsel %vm1079, %v2131, 0
      %v2169 = vsel %vm1079, %v2132, 0
      %v2172 = vsel %vm1079, %v2133, 0
      %v2175 = vsel %vm1079, %v2134, 0
      %v2178 = vsel %vm1079, %v2135, 0
      %v2181 = vsel %vm1079, %v2136, 0
      %v2184 = vsel %vm1079, %v2137, 0
      %2186 = vmatprep.subr.bf16.mxu0 0
      %2187 = vmatpush1.bf16.msra.mxu0 0
      %2188 = vmatprep.subr.bf16.mxu0 0
      %2189 = vmatpush1.bf16.msra.mxu0 0
      %2190 = vmatprep.subr.bf16.mxu0 0
      %2191 = vmatpush1.bf16.msra.mxu0 0
      %2192 = vmatprep.subr.bf16.mxu0 0
      %2193 = vmatpush1.bf16.msra.mxu0 0
      %2194 = vmatprep.subr.bf16.mxu0 0
      %2195 = vmatpush1.bf16.msra.mxu0 %v2157
      %2196 = vmatprep.subr.bf16.mxu0 0
      %2197 = vmatpush1.bf16.msra.mxu0 %v2156
      %2198 = vmatprep.subr.bf16.mxu0 0
      %2199 = vmatpush1.bf16.msra.mxu0 %v2155
      %2200 = vmatprep.subr.bf16.mxu0 0
      %2201 = vmatpush1.bf16.msra.mxu0 %v2154
      %2202 = vmatprep.subr.bf16.mxu0 0
      %2203 = vmatpush2.bf16.msra.mxu0 0
      %2204 = vmatprep.subr.bf16.mxu0 0
      %2205 = vmatpush2.bf16.msra.mxu0 0
      %2206 = vmatprep.subr.bf16.mxu0 0
      %2207 = vmatpush2.bf16.msra.mxu0 0
      %2208 = vmatprep.subr.bf16.mxu0 0
      %2209 = vmatpush2.bf16.msra.mxu0 0
      %2210 = vmatprep.subr.bf16.mxu0 0
      %2211 = vmatpush2.bf16.msra.mxu0 0
      %2212 = vmatprep.subr.bf16.mxu0 0
      %2213 = vmatpush2.bf16.msra.mxu0 0
      %2214 = vmatprep.subr.bf16.mxu0 0
      %2215 = vmatpush2.bf16.msra.mxu0 0
      %2216 = vmatprep.subr.bf16.mxu0 0
      %2217 = vmatpush2.bf16.msra.mxu0 0
      %2218 = vmatprep.mubr.bf16.mxu0 0
      %2219 = vmatmul.mubr.bf16.gmra.mxu0 %v2163
      %v2220 = vpop.f32.mrf.mxu0
      %v2221 = vadd.f32 0.0, %v2220
      %v2222 = vpop.f32.mrf.mxu0
      %v2223 = vpop.f32.mrf.mxu0
      %v2224 = vadd.f32 0.0, %v2223
      %v2225 = vpop.f32.mrf.mxu0
      %2226 = vmatprep.mubr.bf16.mxu0 0
      %2227 = vmatmul.mubr.bf16.gmra.mxu0 %v2166
      %v2228 = vpop.f32.mrf.mxu0
      %v2229 = vadd.f32 0.0, %v2228
      %v2230 = vpop.f32.mrf.mxu0
      %v2231 = vpop.f32.mrf.mxu0
      %v2232 = vadd.f32 0.0, %v2231
      %v2233 = vpop.f32.mrf.mxu0
      %2234 = vmatprep.mubr.bf16.mxu0 0
      %2235 = vmatmul.mubr.bf16.gmra.mxu0 %v2169
      %v2236 = vpop.f32.mrf.mxu0
      %v2237 = vadd.f32 0.0, %v2236
      %v2238 = vpop.f32.mrf.mxu0
      %v2239 = vpop.f32.mrf.mxu0
      %v2240 = vadd.f32 0.0, %v2239
      %v2241 = vpop.f32.mrf.mxu0
      %2242 = vmatprep.mubr.bf16.mxu0 0
      %2243 = vmatmul.mubr.bf16.gmra.mxu0 %v2172
      %v2244 = vpop.f32.mrf.mxu0
      %v2245 = vadd.f32 0.0, %v2244
      %v2246 = vpop.f32.mrf.mxu0
      %v2247 = vpop.f32.mrf.mxu0
      %v2248 = vadd.f32 0.0, %v2247
      %v2249 = vpop.f32.mrf.mxu0
      %2250 = vmatprep.mubr.bf16.mxu0 0
      %2251 = vmatmul.mubr.bf16.gmra.mxu0 %v2175
      %v2252 = vpop.f32.mrf.mxu0
      %v2253 = vadd.f32 0.0, %v2252
      %v2254 = vpop.f32.mrf.mxu0
      %v2255 = vpop.f32.mrf.mxu0
      %v2256 = vadd.f32 0.0, %v2255
      %v2257 = vpop.f32.mrf.mxu0
      %2258 = vmatprep.mubr.bf16.mxu0 0
      %2259 = vmatmul.mubr.bf16.gmra.mxu0 %v2178
      %v2260 = vpop.f32.mrf.mxu0
      %v2261 = vadd.f32 0.0, %v2260
      %v2262 = vpop.f32.mrf.mxu0
      %v2263 = vpop.f32.mrf.mxu0
      %v2264 = vadd.f32 0.0, %v2263
      %v2265 = vpop.f32.mrf.mxu0
      %2266 = vmatprep.mubr.bf16.mxu0 0
      %2267 = vmatmul.mubr.bf16.gmra.mxu0 %v2181
      %v2268 = vpop.f32.mrf.mxu0
      %v2269 = vadd.f32 0.0, %v2268
      %v2270 = vpop.f32.mrf.mxu0
      %v2271 = vpop.f32.mrf.mxu0
      %v2272 = vadd.f32 0.0, %v2271
      %v2273 = vpop.f32.mrf.mxu0
      %2274 = vmatprep.mubr.bf16.mxu0 0
      %2275 = vmatmul.mubr.bf16.gmra.mxu0 %v2184
      %v2276 = vpop.f32.mrf.mxu0
      %v2277 = vadd.f32 0.0, %v2276
      %v2278 = vpop.f32.mrf.mxu0
      %v2279 = vpop.f32.mrf.mxu0
      %v2280 = vadd.f32 0.0, %v2279
      %v2281 = vpop.f32.mrf.mxu0
      %2282 = vdwg.mxu0
      %v2283 = vadd.f32 %v1873, %v2221
      %v2284 = vadd.f32 %v1874, %v2224
      %v2285 = vadd.f32 %v1875, %v2229
      %v2286 = vadd.f32 %v1876, %v2232
      %v2287 = vadd.f32 %v1877, %v2237
      %v2288 = vadd.f32 %v1878, %v2240
      %v2289 = vadd.f32 %v1879, %v2245
      %v2290 = vadd.f32 %v1880, %v2248
      %v2291 = vadd.f32 %v1881, %v2253
      %v2292 = vadd.f32 %v1882, %v2256
      %v2293 = vadd.f32 %v1883, %v2261
      %v2294 = vadd.f32 %v1884, %v2264
      %v2295 = vadd.f32 %v1885, %v2269
      %v2296 = vadd.f32 %v1886, %v2272
      %v2297 = vadd.f32 %v1887, %v2277
      %v2298 = vadd.f32 %v1888, %v2280
      %v2299 = vld [vmem:[%s738] sm:$0xe]
      %v2300 = vld [vmem:[%s738 + $0xc] sm:$0xe]
      %v2301 = vld [vmem:[%s738 + $0x18] sm:$0xe]
      %v2302 = vld [vmem:[%s738 + $0x24] sm:$0xe]
      %v2303 = vld [vmem:[%s738 + $0x30] sm:$0xe]
      %v2304 = vld [vmem:[%s738 + $0x3c] sm:$0xe]
      %v2305 = vld [vmem:[%s738 + $0x48] sm:$0xe]
      %v2306 = vld [vmem:[%s738 + $0x54] sm:$0xe]
      %v2331 = vrot.slane %v2299, 5
      %v2332 = vrot.slane %v2331, 4
      %v2333 = vrot.slane %v1890, 5
      %v2334 = vsel %vm1412, %v2332, %v2333
      %v2335 = vrot.slane %v2333, 4
      %v2336 = vrot.slane %v1891, 5
      %v2337 = vsel %vm1412, %v2335, %v2336
      %v2338 = vrot.slane %v2300, 5
      %v2339 = vrot.slane %v2338, 4
      %v2340 = vrot.slane %v1893, 5
      %v2341 = vsel %vm1412, %v2339, %v2340
      %v2342 = vrot.slane %v2340, 4
      %v2343 = vrot.slane %v1894, 5
      %v2344 = vsel %vm1412, %v2342, %v2343
      %v2345 = vrot.slane %v2301, 5
      %v2346 = vrot.slane %v2345, 4
      %v2347 = vrot.slane %v1896, 5
      %v2348 = vsel %vm1412, %v2346, %v2347
      %v2349 = vrot.slane %v2347, 4
      %v2350 = vrot.slane %v1897, 5
      %v2351 = vsel %vm1412, %v2349, %v2350
      %v2352 = vrot.slane %v2302, 5
      %v2353 = vrot.slane %v2352, 4
      %v2354 = vrot.slane %v1899, 5
      %v2355 = vsel %vm1412, %v2353, %v2354
      %v2356 = vrot.slane %v2354, 4
      %v2357 = vrot.slane %v1900, 5
      %v2358 = vsel %vm1412, %v2356, %v2357
      %v2359 = vrot.slane %v2303, 5
      %v2360 = vrot.slane %v2359, 4
      %v2361 = vrot.slane %v1902, 5
      %v2362 = vsel %vm1412, %v2360, %v2361
      %v2363 = vrot.slane %v2361, 4
      %v2364 = vrot.slane %v1903, 5
      %v2365 = vsel %vm1412, %v2363, %v2364
      %v2366 = vrot.slane %v2304, 5
      %v2367 = vrot.slane %v2366, 4
      %v2368 = vrot.slane %v1905, 5
      %v2369 = vsel %vm1412, %v2367, %v2368
      %v2370 = vrot.slane %v2368, 4
      %v2371 = vrot.slane %v1906, 5
      %v2372 = vsel %vm1412, %v2370, %v2371
      %v2373 = vrot.slane %v2305, 5
      %v2374 = vrot.slane %v2373, 4
      %v2375 = vrot.slane %v1908, 5
      %v2376 = vsel %vm1412, %v2374, %v2375
      %v2377 = vrot.slane %v2375, 4
      %v2378 = vrot.slane %v1909, 5
      %v2379 = vsel %vm1412, %v2377, %v2378
      %v2380 = vrot.slane %v2306, 5
      %v2381 = vrot.slane %v2380, 4
      %v2382 = vrot.slane %v1911, 5
      %v2383 = vsel %vm1412, %v2381, %v2382
      %v2384 = vrot.slane %v2382, 4
      %v2385 = vrot.slane %v1912, 5
      %v2386 = vsel %vm1412, %v2384, %v2385
      %s2387 = scalar_lea.vmem %s1, 160
      %v2388 = vld [vmem:[%s2387] sm:$0xf]
      %v2389 = vld [vmem:[%s2387 + $0x4] sm:$0xf]
      %v2390 = vld [vmem:[%s2387 + $0x8] sm:$0xf]
      %v2391 = vld [vmem:[%s2387 + $0xc] sm:$0xf]
      %v2392 = vld [vmem:[%s2387 + $0x10] sm:$0xf]
      %v2393 = vld [vmem:[%s2387 + $0x14] sm:$0xf]
      %v2394 = vld [vmem:[%s2387 + $0x18] sm:$0xf]
      %v2395 = vld [vmem:[%s2387 + $0x1c] sm:$0xf]
      %v2396 = vunpack.c.l.b16 %v2334
      %v2397 = vunpack.c.l.b16 %v2337
      %v2398 = vunpack.c.l.b16 %v2341
      %v2399 = vunpack.c.l.b16 %v2344
      %v2400 = vunpack.c.l.b16 %v2348
      %v2401 = vunpack.c.l.b16 %v2351
      %v2402 = vunpack.c.l.b16 %v2355
      %v2403 = vunpack.c.l.b16 %v2358
      %v2404 = vunpack.c.l.b16 %v2362
      %v2405 = vunpack.c.l.b16 %v2365
      %v2406 = vunpack.c.l.b16 %v2369
      %v2407 = vunpack.c.l.b16 %v2372
      %v2408 = vunpack.c.l.b16 %v2376
      %v2409 = vunpack.c.l.b16 %v2379
      %v2410 = vunpack.c.l.b16 %v2383
      %v2411 = vunpack.c.l.b16 %v2386
      %v2412 = vpack.c.b16 %v2397, %v2396
      %v2413 = vpack.c.b16 %v2399, %v2398
      %v2414 = vpack.c.b16 %v2401, %v2400
      %v2415 = vpack.c.b16 %v2403, %v2402
      %v2416 = vpack.c.b16 %v2405, %v2404
      %v2417 = vpack.c.b16 %v2407, %v2406
      %v2418 = vpack.c.b16 %v2409, %v2408
      %v2419 = vpack.c.b16 %v2411, %v2410
      %v2428 = vunpack.c.l.b16 %v2388
      %v2429 = vunpack.c.l.b16 %v2389
      %v2430 = vunpack.c.l.b16 %v2390
      %v2431 = vunpack.c.l.b16 %v2391
      %v2432 = vunpack.c.l.b16 %v2392
      %v2433 = vunpack.c.l.b16 %v2393
      %v2434 = vunpack.c.l.b16 %v2394
      %v2435 = vunpack.c.l.b16 %v2395
      %v2436 = vpack.c.b16 %v2429, %v2428
      %v2437 = vpack.c.b16 %v2431, %v2430
      %v2438 = vpack.c.b16 %v2433, %v2432
      %v2439 = vpack.c.b16 %v2435, %v2434
      %v2445 = vsel %vm1079, %v2412, 0
      %v2448 = vsel %vm1079, %v2413, 0
      %v2451 = vsel %vm1079, %v2414, 0
      %v2454 = vsel %vm1079, %v2415, 0
      %v2457 = vsel %vm1079, %v2416, 0
      %v2460 = vsel %vm1079, %v2417, 0
      %v2463 = vsel %vm1079, %v2418, 0
      %v2466 = vsel %vm1079, %v2419, 0
      %2468 = vmatprep.subr.bf16.mxu0 0
      %2469 = vmatpush1.bf16.msra.mxu0 0
      %2470 = vmatprep.subr.bf16.mxu0 0
      %2471 = vmatpush1.bf16.msra.mxu0 0
      %2472 = vmatprep.subr.bf16.mxu0 0
      %2473 = vmatpush1.bf16.msra.mxu0 0
      %2474 = vmatprep.subr.bf16.mxu0 0
      %2475 = vmatpush1.bf16.msra.mxu0 0
      %2476 = vmatprep.subr.bf16.mxu0 0
      %2477 = vmatpush1.bf16.msra.mxu0 %v2439
      %2478 = vmatprep.subr.bf16.mxu0 0
      %2479 = vmatpush1.bf16.msra.mxu0 %v2438
      %2480 = vmatprep.subr.bf16.mxu0 0
      %2481 = vmatpush1.bf16.msra.mxu0 %v2437
      %2482 = vmatprep.subr.bf16.mxu0 0
      %2483 = vmatpush1.bf16.msra.mxu0 %v2436
      %2484 = vmatprep.subr.bf16.mxu0 0
      %2485 = vmatpush2.bf16.msra.mxu0 0
      %2486 = vmatprep.subr.bf16.mxu0 0
      %2487 = vmatpush2.bf16.msra.mxu0 0
      %2488 = vmatprep.subr.bf16.mxu0 0
      %2489 = vmatpush2.bf16.msra.mxu0 0
      %2490 = vmatprep.subr.bf16.mxu0 0
      %2491 = vmatpush2.bf16.msra.mxu0 0
      %2492 = vmatprep.subr.bf16.mxu0 0
      %2493 = vmatpush2.bf16.msra.mxu0 0
      %2494 = vmatprep.subr.bf16.mxu0 0
      %2495 = vmatpush2.bf16.msra.mxu0 0
      %2496 = vmatprep.subr.bf16.mxu0 0
      %2497 = vmatpush2.bf16.msra.mxu0 0
      %2498 = vmatprep.subr.bf16.mxu0 0
      %2499 = vmatpush2.bf16.msra.mxu0 0
      %2500 = vmatprep.mubr.bf16.mxu0 0
      %2501 = vmatmul.mubr.bf16.gmra.mxu0 %v2445
      %v2502 = vpop.f32.mrf.mxu0
      %v2503 = vadd.f32 0.0, %v2502
      %v2504 = vpop.f32.mrf.mxu0
      %v2505 = vpop.f32.mrf.mxu0
      %v2506 = vadd.f32 0.0, %v2505
      %v2507 = vpop.f32.mrf.mxu0
      %2508 = vmatprep.mubr.bf16.mxu0 0
      %2509 = vmatmul.mubr.bf16.gmra.mxu0 %v2448
      %v2510 = vpop.f32.mrf.mxu0
      %v2511 = vadd.f32 0.0, %v2510
      %v2512 = vpop.f32.mrf.mxu0
      %v2513 = vpop.f32.mrf.mxu0
      %v2514 = vadd.f32 0.0, %v2513
      %v2515 = vpop.f32.mrf.mxu0
      %2516 = vmatprep.mubr.bf16.mxu0 0
      %2517 = vmatmul.mubr.bf16.gmra.mxu0 %v2451
      %v2518 = vpop.f32.mrf.mxu0
      %v2519 = vadd.f32 0.0, %v2518
      %v2520 = vpop.f32.mrf.mxu0
      %v2521 = vpop.f32.mrf.mxu0
      %v2522 = vadd.f32 0.0, %v2521
      %v2523 = vpop.f32.mrf.mxu0
      %2524 = vmatprep.mubr.bf16.mxu0 0
      %2525 = vmatmul.mubr.bf16.gmra.mxu0 %v2454
      %v2526 = vpop.f32.mrf.mxu0
      %v2527 = vadd.f32 0.0, %v2526
      %v2528 = vpop.f32.mrf.mxu0
      %v2529 = vpop.f32.mrf.mxu0
      %v2530 = vadd.f32 0.0, %v2529
      %v2531 = vpop.f32.mrf.mxu0
      %2532 = vmatprep.mubr.bf16.mxu0 0
      %2533 = vmatmul.mubr.bf16.gmra.mxu0 %v2457
      %v2534 = vpop.f32.mrf.mxu0
      %v2535 = vadd.f32 0.0, %v2534
      %v2536 = vpop.f32.mrf.mxu0
      %v2537 = vpop.f32.mrf.mxu0
      %v2538 = vadd.f32 0.0, %v2537
      %v2539 = vpop.f32.mrf.mxu0
      %2540 = vmatprep.mubr.bf16.mxu0 0
      %2541 = vmatmul.mubr.bf16.gmra.mxu0 %v2460
      %v2542 = vpop.f32.mrf.mxu0
      %v2543 = vadd.f32 0.0, %v2542
      %v2544 = vpop.f32.mrf.mxu0
      %v2545 = vpop.f32.mrf.mxu0
      %v2546 = vadd.f32 0.0, %v2545
      %v2547 = vpop.f32.mrf.mxu0
      %2548 = vmatprep.mubr.bf16.mxu0 0
      %2549 = vmatmul.mubr.bf16.gmra.mxu0 %v2463
      %v2550 = vpop.f32.mrf.mxu0
      %v2551 = vadd.f32 0.0, %v2550
      %v2552 = vpop.f32.mrf.mxu0
      %v2553 = vpop.f32.mrf.mxu0
      %v2554 = vadd.f32 0.0, %v2553
      %v2555 = vpop.f32.mrf.mxu0
      %2556 = vmatprep.mubr.bf16.mxu0 0
      %2557 = vmatmul.mubr.bf16.gmra.mxu0 %v2466
      %v2558 = vpop.f32.mrf.mxu0
      %v2559 = vadd.f32 0.0, %v2558
      %v2560 = vpop.f32.mrf.mxu0
      %v2561 = vpop.f32.mrf.mxu0
      %v2562 = vadd.f32 0.0, %v2561
      %v2563 = vpop.f32.mrf.mxu0
      %2564 = vdwg.mxu0
      %v2565 = vadd.f32 %v2283, %v2503
      %v2566 = vadd.f32 %v2284, %v2506
      %v2567 = vadd.f32 %v2285, %v2511
      %v2568 = vadd.f32 %v2286, %v2514
      %v2569 = vadd.f32 %v2287, %v2519
      %v2570 = vadd.f32 %v2288, %v2522
      %v2571 = vadd.f32 %v2289, %v2527
      %v2572 = vadd.f32 %v2290, %v2530
      %v2573 = vadd.f32 %v2291, %v2535
      %v2574 = vadd.f32 %v2292, %v2538
      %v2575 = vadd.f32 %v2293, %v2543
      %v2576 = vadd.f32 %v2294, %v2546
      %v2577 = vadd.f32 %v2295, %v2551
      %v2578 = vadd.f32 %v2296, %v2554
      %v2579 = vadd.f32 %v2297, %v2559
      %v2580 = vadd.f32 %v2298, %v2562
      %s2581 = scalar_lea.vmem [#allocation2], 24
      %v2582 = vld [vmem:[%s2581] sm:$0xf]
      %v2583 = vld [vmem:[%s2581 + $0x4] sm:$0xf]
      %v2584 = vld [vmem:[%s2581 + $0xc] sm:$0xf]
      %v2585 = vld [vmem:[%s2581 + $0x10] sm:$0xf]
      %v2586 = vld [vmem:[%s2581 + $0x18] sm:$0xf]
      %v2587 = vld [vmem:[%s2581 + $0x1c] sm:$0xf]
      %v2588 = vld [vmem:[%s2581 + $0x24] sm:$0xf]
      %v2589 = vld [vmem:[%s2581 + $0x28] sm:$0xf]
      %v2590 = vld [vmem:[%s2581 + $0x30] sm:$0xf]
      %v2591 = vld [vmem:[%s2581 + $0x34] sm:$0xf]
      %v2592 = vld [vmem:[%s2581 + $0x3c] sm:$0xf]
      %v2593 = vld [vmem:[%s2581 + $0x40] sm:$0xf]
      %v2594 = vld [vmem:[%s2581 + $0x48] sm:$0xf]
      %v2595 = vld [vmem:[%s2581 + $0x4c] sm:$0xf]
      %v2596 = vld [vmem:[%s2581 + $0x54] sm:$0xf]
      %v2597 = vld [vmem:[%s2581 + $0x58] sm:$0xf]
      %s2598 = scalar_lea.vmem %s1, 192
      %v2599 = vld [vmem:[%s2598] sm:$0xf]
      %v2600 = vld [vmem:[%s2598 + $0x4] sm:$0xf]
      %v2601 = vld [vmem:[%s2598 + $0x8] sm:$0xf]
      %v2602 = vld [vmem:[%s2598 + $0xc] sm:$0xf]
      %v2603 = vld [vmem:[%s2598 + $0x10] sm:$0xf]
      %v2604 = vld [vmem:[%s2598 + $0x14] sm:$0xf]
      %v2605 = vld [vmem:[%s2598 + $0x18] sm:$0xf]
      %v2606 = vld [vmem:[%s2598 + $0x1c] sm:$0xf]
      %v2623 = vunpack.c.l.b16 %v2582
      %v2624 = vunpack.c.l.b16 %v2583
      %v2625 = vunpack.c.l.b16 %v2584
      %v2626 = vunpack.c.l.b16 %v2585
      %v2627 = vunpack.c.l.b16 %v2586
      %v2628 = vunpack.c.l.b16 %v2587
      %v2629 = vunpack.c.l.b16 %v2588
      %v2630 = vunpack.c.l.b16 %v2589
      %v2631 = vunpack.c.l.b16 %v2590
      %v2632 = vunpack.c.l.b16 %v2591
      %v2633 = vunpack.c.l.b16 %v2592
      %v2634 = vunpack.c.l.b16 %v2593
      %v2635 = vunpack.c.l.b16 %v2594
      %v2636 = vunpack.c.l.b16 %v2595
      %v2637 = vunpack.c.l.b16 %v2596
      %v2638 = vunpack.c.l.b16 %v2597
      %v2639 = vpack.c.b16 %v2624, %v2623
      %v2640 = vpack.c.b16 %v2626, %v2625
      %v2641 = vpack.c.b16 %v2628, %v2627
      %v2642 = vpack.c.b16 %v2630, %v2629
      %v2643 = vpack.c.b16 %v2632, %v2631
      %v2644 = vpack.c.b16 %v2634, %v2633
      %v2645 = vpack.c.b16 %v2636, %v2635
      %v2646 = vpack.c.b16 %v2638, %v2637
      %v2655 = vunpack.c.l.b16 %v2599
      %v2656 = vunpack.c.l.b16 %v2600
      %v2657 = vunpack.c.l.b16 %v2601
      %v2658 = vunpack.c.l.b16 %v2602
      %v2659 = vunpack.c.l.b16 %v2603
      %v2660 = vunpack.c.l.b16 %v2604
      %v2661 = vunpack.c.l.b16 %v2605
      %v2662 = vunpack.c.l.b16 %v2606
      %v2663 = vpack.c.b16 %v2656, %v2655
      %v2664 = vpack.c.b16 %v2658, %v2657
      %v2665 = vpack.c.b16 %v2660, %v2659
      %v2666 = vpack.c.b16 %v2662, %v2661
      %v2672 = vsel %vm1079, %v2639, 0
      %v2675 = vsel %vm1079, %v2640, 0
      %v2678 = vsel %vm1079, %v2641, 0
      %v2681 = vsel %vm1079, %v2642, 0
      %v2684 = vsel %vm1079, %v2643, 0
      %v2687 = vsel %vm1079, %v2644, 0
      %v2690 = vsel %vm1079, %v2645, 0
      %v2693 = vsel %vm1079, %v2646, 0
      %2695 = vmatprep.subr.bf16.mxu0 0
      %2696 = vmatpush1.bf16.msra.mxu0 0
      %2697 = vmatprep.subr.bf16.mxu0 0
      %2698 = vmatpush1.bf16.msra.mxu0 0
      %2699 = vmatprep.subr.bf16.mxu0 0
      %2700 = vmatpush1.bf16.msra.mxu0 0
      %2701 = vmatprep.subr.bf16.mxu0 0
      %2702 = vmatpush1.bf16.msra.mxu0 0
      %2703 = vmatprep.subr.bf16.mxu0 0
      %2704 = vmatpush1.bf16.msra.mxu0 %v2666
      %2705 = vmatprep.subr.bf16.mxu0 0
      %2706 = vmatpush1.bf16.msra.mxu0 %v2665
      %2707 = vmatprep.subr.bf16.mxu0 0
      %2708 = vmatpush1.bf16.msra.mxu0 %v2664
      %2709 = vmatprep.subr.bf16.mxu0 0
      %2710 = vmatpush1.bf16.msra.mxu0 %v2663
      %2711 = vmatprep.subr.bf16.mxu0 0
      %2712 = vmatpush2.bf16.msra.mxu0 0
      %2713 = vmatprep.subr.bf16.mxu0 0
      %2714 = vmatpush2.bf16.msra.mxu0 0
      %2715 = vmatprep.subr.bf16.mxu0 0
      %2716 = vmatpush2.bf16.msra.mxu0 0
      %2717 = vmatprep.subr.bf16.mxu0 0
      %2718 = vmatpush2.bf16.msra.mxu0 0
      %2719 = vmatprep.subr.bf16.mxu0 0
      %2720 = vmatpush2.bf16.msra.mxu0 0
      %2721 = vmatprep.subr.bf16.mxu0 0
      %2722 = vmatpush2.bf16.msra.mxu0 0
      %2723 = vmatprep.subr.bf16.mxu0 0
      %2724 = vmatpush2.bf16.msra.mxu0 0
      %2725 = vmatprep.subr.bf16.mxu0 0
      %2726 = vmatpush2.bf16.msra.mxu0 0
      %2727 = vmatprep.mubr.bf16.mxu0 0
      %2728 = vmatmul.mubr.bf16.gmra.mxu0 %v2672
      %v2729 = vpop.f32.mrf.mxu0
      %v2730 = vadd.f32 0.0, %v2729
      %v2731 = vpop.f32.mrf.mxu0
      %v2732 = vpop.f32.mrf.mxu0
      %v2733 = vadd.f32 0.0, %v2732
      %v2734 = vpop.f32.mrf.mxu0
      %2735 = vmatprep.mubr.bf16.mxu0 0
      %2736 = vmatmul.mubr.bf16.gmra.mxu0 %v2675
      %v2737 = vpop.f32.mrf.mxu0
      %v2738 = vadd.f32 0.0, %v2737
      %v2739 = vpop.f32.mrf.mxu0
      %v2740 = vpop.f32.mrf.mxu0
      %v2741 = vadd.f32 0.0, %v2740
      %v2742 = vpop.f32.mrf.mxu0
      %2743 = vmatprep.mubr.bf16.mxu0 0
      %2744 = vmatmul.mubr.bf16.gmra.mxu0 %v2678
      %v2745 = vpop.f32.mrf.mxu0
      %v2746 = vadd.f32 0.0, %v2745
      %v2747 = vpop.f32.mrf.mxu0
      %v2748 = vpop.f32.mrf.mxu0
      %v2749 = vadd.f32 0.0, %v2748
      %v2750 = vpop.f32.mrf.mxu0
      %2751 = vmatprep.mubr.bf16.mxu0 0
      %2752 = vmatmul.mubr.bf16.gmra.mxu0 %v2681
      %v2753 = vpop.f32.mrf.mxu0
      %v2754 = vadd.f32 0.0, %v2753
      %v2755 = vpop.f32.mrf.mxu0
      %v2756 = vpop.f32.mrf.mxu0
      %v2757 = vadd.f32 0.0, %v2756
      %v2758 = vpop.f32.mrf.mxu0
      %2759 = vmatprep.mubr.bf16.mxu0 0
      %2760 = vmatmul.mubr.bf16.gmra.mxu0 %v2684
      %v2761 = vpop.f32.mrf.mxu0
      %v2762 = vadd.f32 0.0, %v2761
      %v2763 = vpop.f32.mrf.mxu0
      %v2764 = vpop.f32.mrf.mxu0
      %v2765 = vadd.f32 0.0, %v2764
      %v2766 = vpop.f32.mrf.mxu0
      %2767 = vmatprep.mubr.bf16.mxu0 0
      %2768 = vmatmul.mubr.bf16.gmra.mxu0 %v2687
      %v2769 = vpop.f32.mrf.mxu0
      %v2770 = vadd.f32 0.0, %v2769
      %v2771 = vpop.f32.mrf.mxu0
      %v2772 = vpop.f32.mrf.mxu0
      %v2773 = vadd.f32 0.0, %v2772
      %v2774 = vpop.f32.mrf.mxu0
      %2775 = vmatprep.mubr.bf16.mxu0 0
      %2776 = vmatmul.mubr.bf16.gmra.mxu0 %v2690
      %v2777 = vpop.f32.mrf.mxu0
      %v2778 = vadd.f32 0.0, %v2777
      %v2779 = vpop.f32.mrf.mxu0
      %v2780 = vpop.f32.mrf.mxu0
      %v2781 = vadd.f32 0.0, %v2780
      %v2782 = vpop.f32.mrf.mxu0
      %2783 = vmatprep.mubr.bf16.mxu0 0
      %2784 = vmatmul.mubr.bf16.gmra.mxu0 %v2693
      %v2785 = vpop.f32.mrf.mxu0
      %v2786 = vadd.f32 0.0, %v2785
      %v2787 = vpop.f32.mrf.mxu0
      %v2788 = vpop.f32.mrf.mxu0
      %v2789 = vadd.f32 0.0, %v2788
      %v2790 = vpop.f32.mrf.mxu0
      %2791 = vdwg.mxu0
      %v2792 = vadd.f32 %v2565, %v2730
      %v2793 = vadd.f32 %v2566, %v2733
      %v2794 = vadd.f32 %v2567, %v2738
      %v2795 = vadd.f32 %v2568, %v2741
      %v2796 = vadd.f32 %v2569, %v2746
      %v2797 = vadd.f32 %v2570, %v2749
      %v2798 = vadd.f32 %v2571, %v2754
      %v2799 = vadd.f32 %v2572, %v2757
      %v2800 = vadd.f32 %v2573, %v2762
      %v2801 = vadd.f32 %v2574, %v2765
      %v2802 = vadd.f32 %v2575, %v2770
      %v2803 = vadd.f32 %v2576, %v2773
      %v2804 = vadd.f32 %v2577, %v2778
      %v2805 = vadd.f32 %v2578, %v2781
      %v2806 = vadd.f32 %v2579, %v2786
      %v2807 = vadd.f32 %v2580, %v2789
      %v2808 = vld [vmem:[%s2581] sm:$0xf]
      %v2809 = vld [vmem:[%s2581 + $0x4] sm:$0xf]
      %v2810 = vld [vmem:[%s2581 + $0x8] sm:$0x1]
      %v2811 = vld [vmem:[%s2581 + $0xc] sm:$0xf]
      %v2812 = vld [vmem:[%s2581 + $0x10] sm:$0xf]
      %v2813 = vld [vmem:[%s2581 + $0x14] sm:$0x1]
      %v2814 = vld [vmem:[%s2581 + $0x18] sm:$0xf]
      %v2815 = vld [vmem:[%s2581 + $0x1c] sm:$0xf]
      %v2816 = vld [vmem:[%s2581 + $0x20] sm:$0x1]
      %v2817 = vld [vmem:[%s2581 + $0x24] sm:$0xf]
      %v2818 = vld [vmem:[%s2581 + $0x28] sm:$0xf]
      %v2819 = vld [vmem:[%s2581 + $0x2c] sm:$0x1]
      %v2820 = vld [vmem:[%s2581 + $0x30] sm:$0xf]
      %v2821 = vld [vmem:[%s2581 + $0x34] sm:$0xf]
      %v2822 = vld [vmem:[%s2581 + $0x38] sm:$0x1]
      %v2823 = vld [vmem:[%s2581 + $0x3c] sm:$0xf]
      %v2824 = vld [vmem:[%s2581 + $0x40] sm:$0xf]
      %v2825 = vld [vmem:[%s2581 + $0x44] sm:$0x1]
      %v2826 = vld [vmem:[%s2581 + $0x48] sm:$0xf]
      %v2827 = vld [vmem:[%s2581 + $0x4c] sm:$0xf]
      %v2828 = vld [vmem:[%s2581 + $0x50] sm:$0x1]
      %v2829 = vld [vmem:[%s2581 + $0x54] sm:$0xf]
      %v2830 = vld [vmem:[%s2581 + $0x58] sm:$0xf]
      %v2831 = vld [vmem:[%s2581 + $0x5c] sm:$0x1]
      %v2833 = vshrl.u32 %v2808, 16
      %v2835 = vrot.slane %v2833, 4
      %v2836 = vshll.u32 %v2808, 16
      %v2838 = vrot.slane %v2836, 5
      %v2839 = vor.u32 %v2835, %v2838
      %v2840 = vrot.slane %v2839, 4
      %v2842 = vshll.u32 %v2809, 16
      %v2844 = vrot.slane %v2842, 5
      %v2845 = vsel %vm829, %v2840, %v2844
      %v2846 = vshrl.u32 %v2809, 16
      %v2848 = vrot.slane %v2846, 4
      %v2849 = vor.u32 %v2848, %v2844
      %v2850 = vrot.slane %v2849, 4
      %v2852 = vshll.u32 %v2810, 16
      %v2854 = vrot.slane %v2852, 5
      %v2855 = vsel %vm829, %v2850, %v2854
      %v2857 = vshrl.u32 %v2811, 16
      %v2859 = vrot.slane %v2857, 4
      %v2860 = vshll.u32 %v2811, 16
      %v2862 = vrot.slane %v2860, 5
      %v2863 = vor.u32 %v2859, %v2862
      %v2864 = vrot.slane %v2863, 4
      %v2866 = vshll.u32 %v2812, 16
      %v2868 = vrot.slane %v2866, 5
      %v2869 = vsel %vm829, %v2864, %v2868
      %v2870 = vshrl.u32 %v2812, 16
      %v2872 = vrot.slane %v2870, 4
      %v2873 = vor.u32 %v2872, %v2868
      %v2874 = vrot.slane %v2873, 4
      %v2876 = vshll.u32 %v2813, 16
      %v2878 = vrot.slane %v2876, 5
      %v2879 = vsel %vm829, %v2874, %v2878
      %v2881 = vshrl.u32 %v2814, 16
      %v2883 = vrot.slane %v2881, 4
      %v2884 = vshll.u32 %v2814, 16
      %v2886 = vrot.slane %v2884, 5
      %v2887 = vor.u32 %v2883, %v2886
      %v2888 = vrot.slane %v2887, 4
      %v2890 = vshll.u32 %v2815, 16
      %v2892 = vrot.slane %v2890, 5
      %v2893 = vsel %vm829, %v2888, %v2892
      %v2894 = vshrl.u32 %v2815, 16
      %v2896 = vrot.slane %v2894, 4
      %v2897 = vor.u32 %v2896, %v2892
      %v2898 = vrot.slane %v2897, 4
      %v2900 = vshll.u32 %v2816, 16
      %v2902 = vrot.slane %v2900, 5
      %v2903 = vsel %vm829, %v2898, %v2902
      %v2905 = vshrl.u32 %v2817, 16
      %v2907 = vrot.slane %v2905, 4
      %v2908 = vshll.u32 %v2817, 16
      %v2910 = vrot.slane %v2908, 5
      %v2911 = vor.u32 %v2907, %v2910
      %v2912 = vrot.slane %v2911, 4
      %v2914 = vshll.u32 %v2818, 16
      %v2916 = vrot.slane %v2914, 5
      %v2917 = vsel %vm829, %v2912, %v2916
      %v2918 = vshrl.u32 %v2818, 16
      %v2920 = vrot.slane %v2918, 4
      %v2921 = vor.u32 %v2920, %v2916
      %v2922 = vrot.slane %v2921, 4
      %v2924 = vshll.u32 %v2819, 16
      %v2926 = vrot.slane %v2924, 5
      %v2927 = vsel %vm829, %v2922, %v2926
      %v2929 = vshrl.u32 %v2820, 16
      %v2931 = vrot.slane %v2929, 4
      %v2932 = vshll.u32 %v2820, 16
      %v2934 = vrot.slane %v2932, 5
      %v2935 = vor.u32 %v2931, %v2934
      %v2936 = vrot.slane %v2935, 4
      %v2938 = vshll.u32 %v2821, 16
      %v2940 = vrot.slane %v2938, 5
      %v2941 = vsel %vm829, %v2936, %v2940
      %v2942 = vshrl.u32 %v2821, 16
      %v2944 = vrot.slane %v2942, 4
      %v2945 = vor.u32 %v2944, %v2940
      %v2946 = vrot.slane %v2945, 4
      %v2948 = vshll.u32 %v2822, 16
      %v2950 = vrot.slane %v2948, 5
      %v2951 = vsel %vm829, %v2946, %v2950
      %v2953 = vshrl.u32 %v2823, 16
      %v2955 = vrot.slane %v2953, 4
      %v2956 = vshll.u32 %v2823, 16
      %v2958 = vrot.slane %v2956, 5
      %v2959 = vor.u32 %v2955, %v2958
      %v2960 = vrot.slane %v2959, 4
      %v2962 = vshll.u32 %v2824, 16
      %v2964 = vrot.slane %v2962, 5
      %v2965 = vsel %vm829, %v2960, %v2964
      %v2966 = vshrl.u32 %v2824, 16
      %v2968 = vrot.slane %v2966, 4
      %v2969 = vor.u32 %v2968, %v2964
      %v2970 = vrot.slane %v2969, 4
      %v2972 = vshll.u32 %v2825, 16
      %v2974 = vrot.slane %v2972, 5
      %v2975 = vsel %vm829, %v2970, %v2974
      %v2977 = vshrl.u32 %v2826, 16
      %v2979 = vrot.slane %v2977, 4
      %v2980 = vshll.u32 %v2826, 16
      %v2982 = vrot.slane %v2980, 5
      %v2983 = vor.u32 %v2979, %v2982
      %v2984 = vrot.slane %v2983, 4
      %v2986 = vshll.u32 %v2827, 16
      %v2988 = vrot.slane %v2986, 5
      %v2989 = vsel %vm829, %v2984, %v2988
      %v2990 = vshrl.u32 %v2827, 16
      %v2992 = vrot.slane %v2990, 4
      %v2993 = vor.u32 %v2992, %v2988
      %v2994 = vrot.slane %v2993, 4
      %v2996 = vshll.u32 %v2828, 16
      %v2998 = vrot.slane %v2996, 5
      %v2999 = vsel %vm829, %v2994, %v2998
      %v3001 = vshrl.u32 %v2829, 16
      %v3003 = vrot.slane %v3001, 4
      %v3004 = vshll.u32 %v2829, 16
      %v3006 = vrot.slane %v3004, 5
      %v3007 = vor.u32 %v3003, %v3006
      %v3008 = vrot.slane %v3007, 4
      %v3010 = vshll.u32 %v2830, 16
      %v3012 = vrot.slane %v3010, 5
      %v3013 = vsel %vm829, %v3008, %v3012
      %v3014 = vshrl.u32 %v2830, 16
      %v3016 = vrot.slane %v3014, 4
      %v3017 = vor.u32 %v3016, %v3012
      %v3018 = vrot.slane %v3017, 4
      %v3020 = vshll.u32 %v2831, 16
      %v3022 = vrot.slane %v3020, 5
      %v3023 = vsel %vm829, %v3018, %v3022
      %s3024 = scalar_lea.vmem %s1, 224
      %v3025 = vld [vmem:[%s3024] sm:$0xf]
      %v3026 = vld [vmem:[%s3024 + $0x4] sm:$0xf]
      %v3027 = vld [vmem:[%s3024 + $0x8] sm:$0xf]
      %v3028 = vld [vmem:[%s3024 + $0xc] sm:$0xf]
      %v3029 = vld [vmem:[%s3024 + $0x10] sm:$0xf]
      %v3030 = vld [vmem:[%s3024 + $0x14] sm:$0xf]
      %v3031 = vld [vmem:[%s3024 + $0x18] sm:$0xf]
      %v3032 = vld [vmem:[%s3024 + $0x1c] sm:$0xf]
      %v3033 = vunpack.c.l.b16 %v2845
      %v3034 = vunpack.c.l.b16 %v2855
      %v3035 = vunpack.c.l.b16 %v2869
      %v3036 = vunpack.c.l.b16 %v2879
      %v3037 = vunpack.c.l.b16 %v2893
      %v3038 = vunpack.c.l.b16 %v2903
      %v3039 = vunpack.c.l.b16 %v2917
      %v3040 = vunpack.c.l.b16 %v2927
      %v3041 = vunpack.c.l.b16 %v2941
      %v3042 = vunpack.c.l.b16 %v2951
      %v3043 = vunpack.c.l.b16 %v2965
      %v3044 = vunpack.c.l.b16 %v2975
      %v3045 = vunpack.c.l.b16 %v2989
      %v3046 = vunpack.c.l.b16 %v2999
      %v3047 = vunpack.c.l.b16 %v3013
      %v3048 = vunpack.c.l.b16 %v3023
      %v3049 = vpack.c.b16 %v3034, %v3033
      %v3050 = vpack.c.b16 %v3036, %v3035
      %v3051 = vpack.c.b16 %v3038, %v3037
      %v3052 = vpack.c.b16 %v3040, %v3039
      %v3053 = vpack.c.b16 %v3042, %v3041
      %v3054 = vpack.c.b16 %v3044, %v3043
      %v3055 = vpack.c.b16 %v3046, %v3045
      %v3056 = vpack.c.b16 %v3048, %v3047
      %v3065 = vunpack.c.l.b16 %v3025
      %v3066 = vunpack.c.l.b16 %v3026
      %v3067 = vunpack.c.l.b16 %v3027
      %v3068 = vunpack.c.l.b16 %v3028
      %v3069 = vunpack.c.l.b16 %v3029
      %v3070 = vunpack.c.l.b16 %v3030
      %v3071 = vunpack.c.l.b16 %v3031
      %v3072 = vunpack.c.l.b16 %v3032
      %v3073 = vpack.c.b16 %v3066, %v3065
      %v3074 = vpack.c.b16 %v3068, %v3067
      %v3075 = vpack.c.b16 %v3070, %v3069
      %v3076 = vpack.c.b16 %v3072, %v3071
      %v3082 = vsel %vm1079, %v3049, 0
      %v3085 = vsel %vm1079, %v3050, 0
      %v3088 = vsel %vm1079, %v3051, 0
      %v3091 = vsel %vm1079, %v3052, 0
      %v3094 = vsel %vm1079, %v3053, 0
      %v3097 = vsel %vm1079, %v3054, 0
      %v3100 = vsel %vm1079, %v3055, 0
      %v3103 = vsel %vm1079, %v3056, 0
      %3105 = vmatprep.subr.bf16.mxu0 0
      %3106 = vmatpush1.bf16.msra.mxu0 0
      %3107 = vmatprep.subr.bf16.mxu0 0
      %3108 = vmatpush1.bf16.msra.mxu0 0
      %3109 = vmatprep.subr.bf16.mxu0 0
      %3110 = vmatpush1.bf16.msra.mxu0 0
      %3111 = vmatprep.subr.bf16.mxu0 0
      %3112 = vmatpush1.bf16.msra.mxu0 0
      %3113 = vmatprep.subr.bf16.mxu0 0
      %3114 = vmatpush1.bf16.msra.mxu0 %v3076
      %3115 = vmatprep.subr.bf16.mxu0 0
      %3116 = vmatpush1.bf16.msra.mxu0 %v3075
      %3117 = vmatprep.subr.bf16.mxu0 0
      %3118 = vmatpush1.bf16.msra.mxu0 %v3074
      %3119 = vmatprep.subr.bf16.mxu0 0
      %3120 = vmatpush1.bf16.msra.mxu0 %v3073
      %3121 = vmatprep.subr.bf16.mxu0 0
      %3122 = vmatpush2.bf16.msra.mxu0 0
      %3123 = vmatprep.subr.bf16.mxu0 0
      %3124 = vmatpush2.bf16.msra.mxu0 0
      %3125 = vmatprep.subr.bf16.mxu0 0
      %3126 = vmatpush2.bf16.msra.mxu0 0
      %3127 = vmatprep.subr.bf16.mxu0 0
      %3128 = vmatpush2.bf16.msra.mxu0 0
      %3129 = vmatprep.subr.bf16.mxu0 0
      %3130 = vmatpush2.bf16.msra.mxu0 0
      %3131 = vmatprep.subr.bf16.mxu0 0
      %3132 = vmatpush2.bf16.msra.mxu0 0
      %3133 = vmatprep.subr.bf16.mxu0 0
      %3134 = vmatpush2.bf16.msra.mxu0 0
      %3135 = vmatprep.subr.bf16.mxu0 0
      %3136 = vmatpush2.bf16.msra.mxu0 0
      %3137 = vmatprep.mubr.bf16.mxu0 0
      %3138 = vmatmul.mubr.bf16.gmra.mxu0 %v3082
      %v3139 = vpop.f32.mrf.mxu0
      %v3140 = vadd.f32 0.0, %v3139
      %v3141 = vpop.f32.mrf.mxu0
      %v3142 = vpop.f32.mrf.mxu0
      %v3143 = vadd.f32 0.0, %v3142
      %v3144 = vpop.f32.mrf.mxu0
      %3145 = vmatprep.mubr.bf16.mxu0 0
      %3146 = vmatmul.mubr.bf16.gmra.mxu0 %v3085
      %v3147 = vpop.f32.mrf.mxu0
      %v3148 = vadd.f32 0.0, %v3147
      %v3149 = vpop.f32.mrf.mxu0
      %v3150 = vpop.f32.mrf.mxu0
      %v3151 = vadd.f32 0.0, %v3150
      %v3152 = vpop.f32.mrf.mxu0
      %3153 = vmatprep.mubr.bf16.mxu0 0
      %3154 = vmatmul.mubr.bf16.gmra.mxu0 %v3088
      %v3155 = vpop.f32.mrf.mxu0
      %v3156 = vadd.f32 0.0, %v3155
      %v3157 = vpop.f32.mrf.mxu0
      %v3158 = vpop.f32.mrf.mxu0
      %v3159 = vadd.f32 0.0, %v3158
      %v3160 = vpop.f32.mrf.mxu0
      %3161 = vmatprep.mubr.bf16.mxu0 0
      %3162 = vmatmul.mubr.bf16.gmra.mxu0 %v3091
      %v3163 = vpop.f32.mrf.mxu0
      %v3164 = vadd.f32 0.0, %v3163
      %v3165 = vpop.f32.mrf.mxu0
      %v3166 = vpop.f32.mrf.mxu0
      %v3167 = vadd.f32 0.0, %v3166
      %v3168 = vpop.f32.mrf.mxu0
      %3169 = vmatprep.mubr.bf16.mxu0 0
      %3170 = vmatmul.mubr.bf16.gmra.mxu0 %v3094
      %v3171 = vpop.f32.mrf.mxu0
      %v3172 = vadd.f32 0.0, %v3171
      %v3173 = vpop.f32.mrf.mxu0
      %v3174 = vpop.f32.mrf.mxu0
      %v3175 = vadd.f32 0.0, %v3174
      %v3176 = vpop.f32.mrf.mxu0
      %3177 = vmatprep.mubr.bf16.mxu0 0
      %3178 = vmatmul.mubr.bf16.gmra.mxu0 %v3097
      %v3179 = vpop.f32.mrf.mxu0
      %v3180 = vadd.f32 0.0, %v3179
      %v3181 = vpop.f32.mrf.mxu0
      %v3182 = vpop.f32.mrf.mxu0
      %v3183 = vadd.f32 0.0, %v3182
      %v3184 = vpop.f32.mrf.mxu0
      %3185 = vmatprep.mubr.bf16.mxu0 0
      %3186 = vmatmul.mubr.bf16.gmra.mxu0 %v3100
      %v3187 = vpop.f32.mrf.mxu0
      %v3188 = vadd.f32 0.0, %v3187
      %v3189 = vpop.f32.mrf.mxu0
      %v3190 = vpop.f32.mrf.mxu0
      %v3191 = vadd.f32 0.0, %v3190
      %v3192 = vpop.f32.mrf.mxu0
      %3193 = vmatprep.mubr.bf16.mxu0 0
      %3194 = vmatmul.mubr.bf16.gmra.mxu0 %v3103
      %v3195 = vpop.f32.mrf.mxu0
      %v3196 = vadd.f32 0.0, %v3195
      %v3197 = vpop.f32.mrf.mxu0
      %v3198 = vpop.f32.mrf.mxu0
      %v3199 = vadd.f32 0.0, %v3198
      %v3200 = vpop.f32.mrf.mxu0
      %3201 = vdwg.mxu0
      %v3202 = vadd.f32 %v2792, %v3140
      %v3203 = vadd.f32 %v2793, %v3143
      %v3204 = vadd.f32 %v2794, %v3148
      %v3205 = vadd.f32 %v2795, %v3151
      %v3206 = vadd.f32 %v2796, %v3156
      %v3207 = vadd.f32 %v2797, %v3159
      %v3208 = vadd.f32 %v2798, %v3164
      %v3209 = vadd.f32 %v2799, %v3167
      %v3210 = vadd.f32 %v2800, %v3172
      %v3211 = vadd.f32 %v2801, %v3175
      %v3212 = vadd.f32 %v2802, %v3180
      %v3213 = vadd.f32 %v2803, %v3183
      %v3214 = vadd.f32 %v2804, %v3188
      %v3215 = vadd.f32 %v2805, %v3191
      %v3216 = vadd.f32 %v2806, %v3196
      %v3217 = vadd.f32 %v2807, %v3199
      %v3218 = vld [vmem:[%s2581] sm:$0xe]
      %v3219 = vld [vmem:[%s2581 + $0xc] sm:$0xe]
      %v3220 = vld [vmem:[%s2581 + $0x18] sm:$0xe]
      %v3221 = vld [vmem:[%s2581 + $0x24] sm:$0xe]
      %v3222 = vld [vmem:[%s2581 + $0x30] sm:$0xe]
      %v3223 = vld [vmem:[%s2581 + $0x3c] sm:$0xe]
      %v3224 = vld [vmem:[%s2581 + $0x48] sm:$0xe]
      %v3225 = vld [vmem:[%s2581 + $0x54] sm:$0xe]
      %v3250 = vrot.slane %v3218, 5
      %v3251 = vrot.slane %v3250, 4
      %v3252 = vrot.slane %v2809, 5
      %v3253 = vsel %vm1412, %v3251, %v3252
      %v3254 = vrot.slane %v3252, 4
      %v3255 = vrot.slane %v2810, 5
      %v3256 = vsel %vm1412, %v3254, %v3255
      %v3257 = vrot.slane %v3219, 5
      %v3258 = vrot.slane %v3257, 4
      %v3259 = vrot.slane %v2812, 5
      %v3260 = vsel %vm1412, %v3258, %v3259
      %v3261 = vrot.slane %v3259, 4
      %v3262 = vrot.slane %v2813, 5
      %v3263 = vsel %vm1412, %v3261, %v3262
      %v3264 = vrot.slane %v3220, 5
      %v3265 = vrot.slane %v3264, 4
      %v3266 = vrot.slane %v2815, 5
      %v3267 = vsel %vm1412, %v3265, %v3266
      %v3268 = vrot.slane %v3266, 4
      %v3269 = vrot.slane %v2816, 5
      %v3270 = vsel %vm1412, %v3268, %v3269
      %v3271 = vrot.slane %v3221, 5
      %v3272 = vrot.slane %v3271, 4
      %v3273 = vrot.slane %v2818, 5
      %v3274 = vsel %vm1412, %v3272, %v3273
      %v3275 = vrot.slane %v3273, 4
      %v3276 = vrot.slane %v2819, 5
      %v3277 = vsel %vm1412, %v3275, %v3276
      %v3278 = vrot.slane %v3222, 5
      %v3279 = vrot.slane %v3278, 4
      %v3280 = vrot.slane %v2821, 5
      %v3281 = vsel %vm1412, %v3279, %v3280
      %v3282 = vrot.slane %v3280, 4
      %v3283 = vrot.slane %v2822, 5
      %v3284 = vsel %vm1412, %v3282, %v3283
      %v3285 = vrot.slane %v3223, 5
      %v3286 = vrot.slane %v3285, 4
      %v3287 = vrot.slane %v2824, 5
      %v3288 = vsel %vm1412, %v3286, %v3287
      %v3289 = vrot.slane %v3287, 4
      %v3290 = vrot.slane %v2825, 5
      %v3291 = vsel %vm1412, %v3289, %v3290
      %v3292 = vrot.slane %v3224, 5
      %v3293 = vrot.slane %v3292, 4
      %v3294 = vrot.slane %v2827, 5
      %v3295 = vsel %vm1412, %v3293, %v3294
      %v3296 = vrot.slane %v3294, 4
      %v3297 = vrot.slane %v2828, 5
      %v3298 = vsel %vm1412, %v3296, %v3297
      %v3299 = vrot.slane %v3225, 5
      %v3300 = vrot.slane %v3299, 4
      %v3301 = vrot.slane %v2830, 5
      %v3302 = vsel %vm1412, %v3300, %v3301
      %v3303 = vrot.slane %v3301, 4
      %v3304 = vrot.slane %v2831, 5
      %v3305 = vsel %vm1412, %v3303, %v3304
      %s3306 = scalar_lea.vmem %s1, 256
      %v3307 = vld [vmem:[%s3306] sm:$0xf]
      %v3308 = vld [vmem:[%s3306 + $0x4] sm:$0xf]
      %v3309 = vld [vmem:[%s3306 + $0x8] sm:$0xf]
      %v3310 = vld [vmem:[%s3306 + $0xc] sm:$0xf]
      %v3311 = vld [vmem:[%s3306 + $0x10] sm:$0xf]
      %v3312 = vld [vmem:[%s3306 + $0x14] sm:$0xf]
      %v3313 = vld [vmem:[%s3306 + $0x18] sm:$0xf]
      %v3314 = vld [vmem:[%s3306 + $0x1c] sm:$0xf]
      %v3315 = vunpack.c.l.b16 %v3253
      %v3316 = vunpack.c.l.b16 %v3256
      %v3317 = vunpack.c.l.b16 %v3260
      %v3318 = vunpack.c.l.b16 %v3263
      %v3319 = vunpack.c.l.b16 %v3267
      %v3320 = vunpack.c.l.b16 %v3270
      %v3321 = vunpack.c.l.b16 %v3274
      %v3322 = vunpack.c.l.b16 %v3277
      %v3323 = vunpack.c.l.b16 %v3281
      %v3324 = vunpack.c.l.b16 %v3284
      %v3325 = vunpack.c.l.b16 %v3288
      %v3326 = vunpack.c.l.b16 %v3291
      %v3327 = vunpack.c.l.b16 %v3295
      %v3328 = vunpack.c.l.b16 %v3298
      %v3329 = vunpack.c.l.b16 %v3302
      %v3330 = vunpack.c.l.b16 %v3305
      %v3331 = vpack.c.b16 %v3316, %v3315
      %v3332 = vpack.c.b16 %v3318, %v3317
      %v3333 = vpack.c.b16 %v3320, %v3319
      %v3334 = vpack.c.b16 %v3322, %v3321
      %v3335 = vpack.c.b16 %v3324, %v3323
      %v3336 = vpack.c.b16 %v3326, %v3325
      %v3337 = vpack.c.b16 %v3328, %v3327
      %v3338 = vpack.c.b16 %v3330, %v3329
      %v3347 = vunpack.c.l.b16 %v3307
      %v3348 = vunpack.c.l.b16 %v3308
      %v3349 = vunpack.c.l.b16 %v3309
      %v3350 = vunpack.c.l.b16 %v3310
      %v3351 = vunpack.c.l.b16 %v3311
      %v3352 = vunpack.c.l.b16 %v3312
      %v3353 = vunpack.c.l.b16 %v3313
      %v3354 = vunpack.c.l.b16 %v3314
      %v3355 = vpack.c.b16 %v3348, %v3347
      %v3356 = vpack.c.b16 %v3350, %v3349
      %v3357 = vpack.c.b16 %v3352, %v3351
      %v3358 = vpack.c.b16 %v3354, %v3353
      %v3364 = vsel %vm1079, %v3331, 0
      %v3367 = vsel %vm1079, %v3332, 0
      %v3370 = vsel %vm1079, %v3333, 0
      %v3373 = vsel %vm1079, %v3334, 0
      %v3376 = vsel %vm1079, %v3335, 0
      %v3379 = vsel %vm1079, %v3336, 0
      %v3382 = vsel %vm1079, %v3337, 0
      %v3385 = vsel %vm1079, %v3338, 0
      %3387 = vmatprep.subr.bf16.mxu0 0
      %3388 = vmatpush1.bf16.msra.mxu0 0
      %3389 = vmatprep.subr.bf16.mxu0 0
      %3390 = vmatpush1.bf16.msra.mxu0 0
      %3391 = vmatprep.subr.bf16.mxu0 0
      %3392 = vmatpush1.bf16.msra.mxu0 0
      %3393 = vmatprep.subr.bf16.mxu0 0
      %3394 = vmatpush1.bf16.msra.mxu0 0
      %3395 = vmatprep.subr.bf16.mxu0 0
      %3396 = vmatpush1.bf16.msra.mxu0 %v3358
      %3397 = vmatprep.subr.bf16.mxu0 0
      %3398 = vmatpush1.bf16.msra.mxu0 %v3357
      %3399 = vmatprep.subr.bf16.mxu0 0
      %3400 = vmatpush1.bf16.msra.mxu0 %v3356
      %3401 = vmatprep.subr.bf16.mxu0 0
      %3402 = vmatpush1.bf16.msra.mxu0 %v3355
      %3403 = vmatprep.subr.bf16.mxu0 0
      %3404 = vmatpush2.bf16.msra.mxu0 0
      %3405 = vmatprep.subr.bf16.mxu0 0
      %3406 = vmatpush2.bf16.msra.mxu0 0
      %3407 = vmatprep.subr.bf16.mxu0 0
      %3408 = vmatpush2.bf16.msra.mxu0 0
      %3409 = vmatprep.subr.bf16.mxu0 0
      %3410 = vmatpush2.bf16.msra.mxu0 0
      %3411 = vmatprep.subr.bf16.mxu0 0
      %3412 = vmatpush2.bf16.msra.mxu0 0
      %3413 = vmatprep.subr.bf16.mxu0 0
      %3414 = vmatpush2.bf16.msra.mxu0 0
      %3415 = vmatprep.subr.bf16.mxu0 0
      %3416 = vmatpush2.bf16.msra.mxu0 0
      %3417 = vmatprep.subr.bf16.mxu0 0
      %3418 = vmatpush2.bf16.msra.mxu0 0
      %3419 = vmatprep.mubr.bf16.mxu0 0
      %3420 = vmatmul.mubr.bf16.gmra.mxu0 %v3364
      %v3421 = vpop.f32.mrf.mxu0
      %v3422 = vadd.f32 0.0, %v3421
      %v3423 = vpop.f32.mrf.mxu0
      %v3424 = vpop.f32.mrf.mxu0
      %v3425 = vadd.f32 0.0, %v3424
      %v3426 = vpop.f32.mrf.mxu0
      %3427 = vmatprep.mubr.bf16.mxu0 0
      %3428 = vmatmul.mubr.bf16.gmra.mxu0 %v3367
      %v3429 = vpop.f32.mrf.mxu0
      %v3430 = vadd.f32 0.0, %v3429
      %v3431 = vpop.f32.mrf.mxu0
      %v3432 = vpop.f32.mrf.mxu0
      %v3433 = vadd.f32 0.0, %v3432
      %v3434 = vpop.f32.mrf.mxu0
      %3435 = vmatprep.mubr.bf16.mxu0 0
      %3436 = vmatmul.mubr.bf16.gmra.mxu0 %v3370
      %v3437 = vpop.f32.mrf.mxu0
      %v3438 = vadd.f32 0.0, %v3437
      %v3439 = vpop.f32.mrf.mxu0
      %v3440 = vpop.f32.mrf.mxu0
      %v3441 = vadd.f32 0.0, %v3440
      %v3442 = vpop.f32.mrf.mxu0
      %3443 = vmatprep.mubr.bf16.mxu0 0
      %3444 = vmatmul.mubr.bf16.gmra.mxu0 %v3373
      %v3445 = vpop.f32.mrf.mxu0
      %v3446 = vadd.f32 0.0, %v3445
      %v3447 = vpop.f32.mrf.mxu0
      %v3448 = vpop.f32.mrf.mxu0
      %v3449 = vadd.f32 0.0, %v3448
      %v3450 = vpop.f32.mrf.mxu0
      %3451 = vmatprep.mubr.bf16.mxu0 0
      %3452 = vmatmul.mubr.bf16.gmra.mxu0 %v3376
      %v3453 = vpop.f32.mrf.mxu0
      %v3454 = vadd.f32 0.0, %v3453
      %v3455 = vpop.f32.mrf.mxu0
      %v3456 = vpop.f32.mrf.mxu0
      %v3457 = vadd.f32 0.0, %v3456
      %v3458 = vpop.f32.mrf.mxu0
      %3459 = vmatprep.mubr.bf16.mxu0 0
      %3460 = vmatmul.mubr.bf16.gmra.mxu0 %v3379
      %v3461 = vpop.f32.mrf.mxu0
      %v3462 = vadd.f32 0.0, %v3461
      %v3463 = vpop.f32.mrf.mxu0
      %v3464 = vpop.f32.mrf.mxu0
      %v3465 = vadd.f32 0.0, %v3464
      %v3466 = vpop.f32.mrf.mxu0
      %3467 = vmatprep.mubr.bf16.mxu0 0
      %3468 = vmatmul.mubr.bf16.gmra.mxu0 %v3382
      %v3469 = vpop.f32.mrf.mxu0
      %v3470 = vadd.f32 0.0, %v3469
      %v3471 = vpop.f32.mrf.mxu0
      %v3472 = vpop.f32.mrf.mxu0
      %v3473 = vadd.f32 0.0, %v3472
      %v3474 = vpop.f32.mrf.mxu0
      %3475 = vmatprep.mubr.bf16.mxu0 0
      %3476 = vmatmul.mubr.bf16.gmra.mxu0 %v3385
      %v3477 = vpop.f32.mrf.mxu0
      %v3478 = vadd.f32 0.0, %v3477
      %v3479 = vpop.f32.mrf.mxu0
      %v3480 = vpop.f32.mrf.mxu0
      %v3481 = vadd.f32 0.0, %v3480
      %v3482 = vpop.f32.mrf.mxu0
      %3483 = vdwg.mxu0
      %v3484 = vadd.f32 %v3202, %v3422
      %v3485 = vadd.f32 %v3203, %v3425
      %v3486 = vadd.f32 %v3204, %v3430
      %v3487 = vadd.f32 %v3205, %v3433
      %v3488 = vadd.f32 %v3206, %v3438
      %v3489 = vadd.f32 %v3207, %v3441
      %v3490 = vadd.f32 %v3208, %v3446
      %v3491 = vadd.f32 %v3209, %v3449
      %v3492 = vadd.f32 %v3210, %v3454
      %v3493 = vadd.f32 %v3211, %v3457
      %v3494 = vadd.f32 %v3212, %v3462
      %v3495 = vadd.f32 %v3213, %v3465
      %v3496 = vadd.f32 %v3214, %v3470
      %v3497 = vadd.f32 %v3215, %v3473
      %v3498 = vadd.f32 %v3216, %v3478
      %v3499 = vadd.f32 %v3217, %v3481
      %v3500 = vld [vmem:[%s4] sm:$0x1]
      %v3502 = vlaneseq
      %v3503 = vshrl.u32 %v3502, 7
      %v3504 = vsub.s32 0, %v3503
      %v3505 = vrot.slane %v3500, %v3504
      %v3507 = vadd.f32 %v3484, %v3505
      %v3508 = vadd.f32 %v3485, %v3505
      %v3509 = vadd.f32 %v3486, %v3505
      %v3510 = vadd.f32 %v3487, %v3505
      %v3511 = vadd.f32 %v3488, %v3505
      %v3512 = vadd.f32 %v3489, %v3505
      %v3513 = vadd.f32 %v3490, %v3505
      %v3514 = vadd.f32 %v3491, %v3505
      %v3515 = vadd.f32 %v3492, %v3505
      %v3516 = vadd.f32 %v3493, %v3505
      %v3517 = vadd.f32 %v3494, %v3505
      %v3518 = vadd.f32 %v3495, %v3505
      %v3519 = vadd.f32 %v3496, %v3505
      %v3520 = vadd.f32 %v3497, %v3505
      %v3521 = vadd.f32 %v3498, %v3505
      %v3522 = vadd.f32 %v3499, %v3505
      %v3523 = vxor.u32 %v3507, 2147483648
      %v3524 = vxor.u32 %v3508, 2147483648
      %v3525 = vxor.u32 %v3509, 2147483648
      %v3526 = vxor.u32 %v3510, 2147483648
      %v3527 = vxor.u32 %v3511, 2147483648
      %v3528 = vxor.u32 %v3512, 2147483648
      %v3529 = vxor.u32 %v3513, 2147483648
      %v3530 = vxor.u32 %v3514, 2147483648
      %v3531 = vxor.u32 %v3515, 2147483648
      %v3532 = vxor.u32 %v3516, 2147483648
      %v3533 = vxor.u32 %v3517, 2147483648
      %v3534 = vxor.u32 %v3518, 2147483648
      %v3535 = vxor.u32 %v3519, 2147483648
      %v3536 = vxor.u32 %v3520, 2147483648
      %v3537 = vxor.u32 %v3521, 2147483648
      %v3538 = vxor.u32 %v3522, 2147483648
      %v3539 = vmul.f32 %v3523, 1.442695
      %v3540 = vpow.pop %v3539
      %v3541 = vmul.f32 %v3524, 1.442695
      %v3542 = vpow.pop %v3541
      %v3543 = vmul.f32 %v3525, 1.442695
      %v3544 = vpow.pop %v3543
      %v3545 = vmul.f32 %v3526, 1.442695
      %v3546 = vpow.pop %v3545
      %v3547 = vmul.f32 %v3527, 1.442695
      %v3548 = vpow.pop %v3547
      %v3549 = vmul.f32 %v3528, 1.442695
      %v3550 = vpow.pop %v3549
      %v3551 = vmul.f32 %v3529, 1.442695
      %v3552 = vpow.pop %v3551
      %v3553 = vmul.f32 %v3530, 1.442695
      %v3554 = vpow.pop %v3553
      %v3555 = vmul.f32 %v3531, 1.442695
      %v3556 = vpow.pop %v3555
      %v3557 = vmul.f32 %v3532, 1.442695
      %v3558 = vpow.pop %v3557
      %v3559 = vmul.f32 %v3533, 1.442695
      %v3560 = vpow.pop %v3559
      %v3561 = vmul.f32 %v3534, 1.442695
      %v3562 = vpow.pop %v3561
      %v3563 = vmul.f32 %v3535, 1.442695
      %v3564 = vpow.pop %v3563
      %v3565 = vmul.f32 %v3536, 1.442695
      %v3566 = vpow.pop %v3565
      %v3567 = vmul.f32 %v3537, 1.442695
      %v3568 = vpow.pop %v3567
      %v3569 = vmul.f32 %v3538, 1.442695
      %v3570 = vpow.pop %v3569
      %v3571 = vadd.f32 %v3540, 1.0
      %v3572 = vadd.f32 %v3542, 1.0
      %v3573 = vadd.f32 %v3544, 1.0
      %v3574 = vadd.f32 %v3546, 1.0
      %v3575 = vadd.f32 %v3548, 1.0
      %v3576 = vadd.f32 %v3550, 1.0
      %v3577 = vadd.f32 %v3552, 1.0
      %v3578 = vadd.f32 %v3554, 1.0
      %v3579 = vadd.f32 %v3556, 1.0
      %v3580 = vadd.f32 %v3558, 1.0
      %v3581 = vadd.f32 %v3560, 1.0
      %v3582 = vadd.f32 %v3562, 1.0
      %v3583 = vadd.f32 %v3564, 1.0
      %v3584 = vadd.f32 %v3566, 1.0
      %v3585 = vadd.f32 %v3568, 1.0
      %v3586 = vadd.f32 %v3570, 1.0
      %v3587 = vrcp.pop %v3571
      %v3588 = vmul.f32 1.0, %v3587
      %v3589 = vrcp.pop %v3572
      %v3590 = vmul.f32 1.0, %v3589
      %v3591 = vrcp.pop %v3573
      %v3592 = vmul.f32 1.0, %v3591
      %v3593 = vrcp.pop %v3574
      %v3594 = vmul.f32 1.0, %v3593
      %v3595 = vrcp.pop %v3575
      %v3596 = vmul.f32 1.0, %v3595
      %v3597 = vrcp.pop %v3576
      %v3598 = vmul.f32 1.0, %v3597
      %v3599 = vrcp.pop %v3577
      %v3600 = vmul.f32 1.0, %v3599
      %v3601 = vrcp.pop %v3578
      %v3602 = vmul.f32 1.0, %v3601
      %v3603 = vrcp.pop %v3579
      %v3604 = vmul.f32 1.0, %v3603
      %v3605 = vrcp.pop %v3580
      %v3606 = vmul.f32 1.0, %v3605
      %v3607 = vrcp.pop %v3581
      %v3608 = vmul.f32 1.0, %v3607
      %v3609 = vrcp.pop %v3582
      %v3610 = vmul.f32 1.0, %v3609
      %v3611 = vrcp.pop %v3583
      %v3612 = vmul.f32 1.0, %v3611
      %v3613 = vrcp.pop %v3584
      %v3614 = vmul.f32 1.0, %v3613
      %v3615 = vrcp.pop %v3585
      %v3616 = vmul.f32 1.0, %v3615
      %v3617 = vrcp.pop %v3586
      %v3618 = vmul.f32 1.0, %v3617
      %3619 = vst [vmem:[%s248] sm:$0xff] %v3588
      %3620 = vst [vmem:[%s248 + $0x8] sm:$0xff] %v3590
      %3621 = vst [vmem:[%s248 + $0x10] sm:$0xff] %v3592
      %3622 = vst [vmem:[%s248 + $0x18] sm:$0xff] %v3594
      %3623 = vst [vmem:[%s248 + $0x20] sm:$0xff] %v3596
      %3624 = vst [vmem:[%s248 + $0x28] sm:$0xff] %v3598
      %3625 = vst [vmem:[%s248 + $0x30] sm:$0xff] %v3600
      %3626 = vst [vmem:[%s248 + $0x38] sm:$0xff] %v3602
      %3627 = vst [vmem:[%s248 + $0x40] sm:$0xff] %v3604
      %3628 = vst [vmem:[%s248 + $0x48] sm:$0xff] %v3606
      %3629 = vst [vmem:[%s248 + $0x50] sm:$0xff] %v3608
      %3630 = vst [vmem:[%s248 + $0x58] sm:$0xff] %v3610
      %3631 = vst [vmem:[%s248 + $0x60] sm:$0xff] %v3612
      %3632 = vst [vmem:[%s248 + $0x68] sm:$0xff] %v3614
      %3633 = vst [vmem:[%s248 + $0x70] sm:$0xff] %v3616
      %3634 = vst [vmem:[%s248 + $0x78] sm:$0xff] %v3618
      %s3635 = smul.u32 8, %s21
      %p3636 = scmp.lt.s32.totalorder %s20, 1
      %s3637 = scalar_select %p3636, %s20, 1
      %p3638 = scmp.lt.s32.totalorder %s3635, 15
      %s3639 = scalar_select %p3638, %s3635, 15
      %s3640 = smul.addr %s3639, 2
      %s3641 = smul.addr %s3637, 32
      %s3642 = sadd.s32 %s3640, %s3641
      %s3643 = smul.addr %s3642, 8
      %s3644 = scalar_lea.vmem %s5, %s3643
      // Predicated region
      $region41: #{autoencoder_forward.25} parent=39 // pred_check
        %p3645 = pneg %p158
      $region42: #{autoencoder_forward.25} parent=39 // pred_check_branch
        %3647 = sbr.rel (%p3645) target = $region44
      $region43: #{autoencoder_forward.25} parent=39 // pred_region
        %s3648 = smul.u32 8, %s21
      $region44: #{autoencoder_forward.25} parent=39 // pred_fallthru
        _
    $region40: #{autoencoder_forward.25} parent=5 // pred_fallthru
      _
    %p3649 = scmp.le.s32.totalorder 2, %s11
    // Predicated region
    $region45: #{autoencoder_forward.25} parent=5 // pred_check
      %p3650 = pneg %p3649
    $region46: #{autoencoder_forward.25} parent=5 // pred_check_branch
      %3652 = sbr.rel (%p3650) target = $region48
    $region47: #{autoencoder_forward.25} parent=5 // pred_region
      %s3653 = ssub.s32 %s11, 2
      // Predicated region
      $region49: #{autoencoder_forward.25} parent=47 // pred_check
        %p3654 = pneg %p164
      $region50: #{autoencoder_forward.25} parent=47 // pred_check_branch
        %3656 = sbr.rel (%p3654) target = $region52
      $region51: #{autoencoder_forward.25} parent=47 // pred_region
        %s3657 = smul.u32 8, %s23
        %p3658 = scmp.lt.s32.totalorder %s22, 1
        %s3659 = scalar_select %p3658, %s22, 1
        %p3660 = scmp.lt.s32.totalorder %s3657, 15
        %s3661 = scalar_select %p3660, %s3657, 15
        %s3662 = smul.addr %s3661, 2
        %s3663 = smul.addr %s3659, 32
        %s3664 = sadd.s32 %s3662, %s3663
        %s3665 = smul.addr %s3664, 8
        %s3666 = scalar_lea.vmem %s5, %s3665
      $region52: #{autoencoder_forward.25} parent=47 // pred_fallthru
        _
    $region48: #{autoencoder_forward.25} parent=5 // pred_fallthru
      _
  $region6: #{autoencoder_forward.25} parent=0 // loop_footer
    %s15 = sadd.s32 1, %s11
  $region7: #{autoencoder_forward.25} parent=0 // loop_footer_branch
    %10 = sbr.rel target = $region3
  $region8: #{autoencoder_forward.25} parent=0 // loop_exit
    _

// kernel: autoencoder_forward.13
$region0: #{autoencoder_forward.13}
  #allocation0 [shape = 'u32[]', space=smem, size = 0x4, offset = 0x4, fixed_abs, tag = 'smem constant byte address 0x4 - core index']
  #allocation1 [shape = 'u32[144,128]{1,0:T(1,128)}', space=vmem, size = 0x12000, scoped, tag = 'internal scratch']
  #allocation2 [shape = 'bf16[10,18,64]{2,1,0:T(8,128)(2,1)}', space=vmem, size = 0xf000, scoped, tag = 'scratch operand']
  %s0 = inlined_call_operand.vmem [shape: bf16[2,16,16,128], index: 0, kind: input, shape index: {}]
  %s1 = inlined_call_operand.vmem [shape: bf16[9,64,128], index: 1, kind: input, shape index: {}]
  %s2 = inlined_call_operand.vmem [shape: f32[1,64], index: 2, kind: input, shape index: {}]
  %s3 = inlined_call_operand.vmem [shape: f32[1,64], index: 3, kind: input, shape index: {}]
  %s4 = inlined_call_operand.vmem [shape: bf16[2,16,16,128], index: 4, kind: output, shape index: {0}]
  %s5 = inlined_call_operand.vmem [shape: f32[4,1,128], index: 5, kind: output, shape index: {1}]
  %s6 = inlined_call_operand.vmem [shape: f32[4,1,128], index: 6, kind: output, shape index: {2}]
  %7 = xla_tuple %s4, %s5, %s6
  %s8 = sld [smem:[#allocation0]]
  $region65: #{autoencoder_forward.13} parent=0
    _
  %s10 = ssub.s32 1, %s8
  %s11 = scalar_select 0, %s10, %s8
  loop: start=0, step=1, limit=6
  $region2: #{autoencoder_forward.13} parent=0 // loop_pre_header
    _
  $region3: #{autoencoder_forward.13} parent=0 // loop_header
    %s13 = sphi 0, %s17
    %p14 = scmp.ge.s32.totalorder %s13, 6
    %s20 = sphi 0, %s32
    %s21 = sphi 0, %s28
    %s22 = sphi 0, %s20
    %s23 = sphi 0, %s21
    %s24 = sphi 0, %s22
    %s25 = sphi 0, %s23
    %s35 = sphi 0, %s37
    %s38 = sphi 0, %s35
    %s39 = sphi 0, %s38
    %s55 = sphi 0, %s39
    %s59 = sphi 0, %s59
    %s61 = sphi 0, %s59
    %s62 = sphi 0, %s61
    %s76 = sphi 0, %s62
    %s80 = sphi 0, %s80
    %s82 = sphi 0, %s80
    %s83 = sphi 0, %s82
    %s97 = sphi 0, %s83
    %s101 = sphi 0, %s101
    %s103 = sphi 0, %s101
    %s104 = sphi 0, %s103
    %s118 = sphi 0, %s104
    %s126 = sphi 0, %s128
    %s129 = sphi 0, %s126
    %s130 = sphi 0, %s129
    %s146 = sphi 0, %s130
    %s156 = sphi 0, %s158
    %s159 = sphi 0, %s156
    %s160 = sphi 0, %s159
    %s176 = sphi 0, %s160
    %s186 = sphi 0, %s188
    %s189 = sphi 0, %s186
    %s190 = sphi 0, %s189
    %s206 = sphi 0, %s190
  $region4: #{autoencoder_forward.13} parent=0 // loop_header_branch
    %16 = sbr.rel (%p14) target = $region8
  $region5: #{autoencoder_forward.13} parent=0 // loop_body
    %s18 = ssub.s32 %s13, 1
    %s19 = ssub.s32 %s13, 2
    %s26 = sadd.s32 1, %s21
    %p27 = scmp.ge.s32.totalorder %s26, 2
    %s28 = scalar_select %p27, 0, %s26
    %s29 = sadd.s32 1, %s20
    %s30 = scalar_select %p27, %s29, %s20
    %p31 = scmp.ge.s32.totalorder %s30, 2
    %s32 = scalar_select %p31, 0, %s30
    %s33 = ssub.s32 %s20, %s32
    %p34 = scmp.eq.s32.totalorder %s33, 0
    %s36 = sadd.s32 %s35, 1
    %s37 = scalar_select %p34, %s35, %s36
    %p40 = pneg %p34
    %p41 = scmp.eq.s32.totalorder %s13, 3
    %p42 = por %p40, %p41
    %p43 = scmp.ne.s32.totalorder %s35, %s38
    %p44 = scmp.eq.s32.totalorder %s13, 0
    %p45 = por %p43, %p44
    %p46 = scmp.ne.s32.totalorder %s35, %s38
    %p47 = scmp.eq.s32.totalorder %s18, 3
    %p48 = por %p46, %p47
    %p49 = scmp.ne.s32.totalorder %s38, %s39
    %p50 = scmp.eq.s32.totalorder %s18, 0
    %p51 = por %p49, %p50
    %p52 = scmp.ne.s32.totalorder %s38, %s39
    %p53 = scmp.eq.s32.totalorder %s19, 3
    %p54 = por %p52, %p53
    %p56 = scmp.ne.s32.totalorder %s39, %s55
    %p57 = scmp.eq.s32.totalorder %s19, 0
    %p58 = por %p56, %p57
    %s60 = sadd.s32 %s59, 1
    %p63 = scmp.eq.s32.totalorder %s13, 3
    %p64 = scmp.ne.s32.totalorder %s59, %s61
    %p65 = scmp.eq.s32.totalorder %s13, 0
    %p66 = por %p64, %p65
    %p67 = scmp.ne.s32.totalorder %s59, %s61
    %p68 = scmp.eq.s32.totalorder %s18, 3
    %p69 = por %p67, %p68
    %p70 = scmp.ne.s32.totalorder %s61, %s62
    %p71 = scmp.eq.s32.totalorder %s18, 0
    %p72 = por %p70, %p71
    %p73 = scmp.ne.s32.totalorder %s61, %s62
    %p74 = scmp.eq.s32.totalorder %s19, 3
    %p75 = por %p73, %p74
    %p77 = scmp.ne.s32.totalorder %s62, %s76
    %p78 = scmp.eq.s32.totalorder %s19, 0
    %p79 = por %p77, %p78
    %s81 = sadd.s32 %s80, 1
    %p84 = scmp.eq.s32.totalorder %s13, 3
    %p85 = scmp.ne.s32.totalorder %s80, %s82
    %p86 = scmp.eq.s32.totalorder %s13, 0
    %p87 = por %p85, %p86
    %p88 = scmp.ne.s32.totalorder %s80, %s82
    %p89 = scmp.eq.s32.totalorder %s18, 3
    %p90 = por %p88, %p89
    %p91 = scmp.ne.s32.totalorder %s82, %s83
    %p92 = scmp.eq.s32.totalorder %s18, 0
    %p93 = por %p91, %p92
    %p94 = scmp.ne.s32.totalorder %s82, %s83
    %p95 = scmp.eq.s32.totalorder %s19, 3
    %p96 = por %p94, %p95
    %p98 = scmp.ne.s32.totalorder %s83, %s97
    %p99 = scmp.eq.s32.totalorder %s19, 0
    %p100 = por %p98, %p99
    %s102 = sadd.s32 %s101, 1
    %p105 = scmp.eq.s32.totalorder %s13, 3
    %p106 = scmp.ne.s32.totalorder %s101, %s103
    %p107 = scmp.eq.s32.totalorder %s13, 0
    %p108 = por %p106, %p107
    %p109 = scmp.ne.s32.totalorder %s101, %s103
    %p110 = scmp.eq.s32.totalorder %s18, 3
    %p111 = por %p109, %p110
    %p112 = scmp.ne.s32.totalorder %s103, %s104
    %p113 = scmp.eq.s32.totalorder %s18, 0
    %p114 = por %p112, %p113
    %p115 = scmp.ne.s32.totalorder %s103, %s104
    %p116 = scmp.eq.s32.totalorder %s19, 3
    %p117 = por %p115, %p116
    %p119 = scmp.ne.s32.totalorder %s104, %s118
    %p120 = scmp.eq.s32.totalorder %s19, 0
    %p121 = por %p119, %p120
    %s122 = ssub.s32 %s20, %s32
    %s123 = ssub.s32 %s21, %s28
    %s124 = sor.u32 %s122, %s123
    %p125 = scmp.eq.s32.totalorder %s124, 0
    %s127 = sadd.s32 %s126, 1
    %s128 = scalar_select %p125, %s126, %s127
    %p131 = pneg %p125
    %p132 = scmp.eq.s32.totalorder %s13, 3
    %p133 = por %p131, %p132
    %p134 = scmp.ne.s32.totalorder %s126, %s129
    %p135 = scmp.eq.s32.totalorder %s13, 0
    %p136 = por %p134, %p135
    %p137 = scmp.ne.s32.totalorder %s126, %s129
    %p138 = scmp.eq.s32.totalorder %s18, 3
    %p139 = por %p137, %p138
    %p140 = scmp.ne.s32.totalorder %s129, %s130
    %p141 = scmp.eq.s32.totalorder %s18, 0
    %p142 = por %p140, %p141
    %p143 = scmp.ne.s32.totalorder %s129, %s130
    %p144 = scmp.eq.s32.totalorder %s19, 3
    %p145 = por %p143, %p144
    %p147 = scmp.ne.s32.totalorder %s130, %s146
    %p148 = scmp.eq.s32.totalorder %s19, 0
    %p149 = por %p147, %p148
    %s150 = smul.u32 %s20, 2
    %s151 = sadd.s32 %s150, %s21
    %s152 = smul.u32 %s32, 2
    %s153 = sadd.s32 %s152, %s28
    %s154 = ssub.s32 %s151, %s153
    %p155 = scmp.eq.s32.totalorder %s154, 0
    %s157 = sadd.s32 %s156, 1
    %s158 = scalar_select %p155, %s156, %s157
    %p161 = pneg %p155
    %p162 = scmp.eq.s32.totalorder %s13, 3
    %p163 = por %p161, %p162
    %p164 = scmp.ne.s32.totalorder %s156, %s159
    %p165 = scmp.eq.s32.totalorder %s13, 0
    %p166 = por %p164, %p165
    %p167 = scmp.ne.s32.totalorder %s156, %s159
    %p168 = scmp.eq.s32.totalorder %s18, 3
    %p169 = por %p167, %p168
    %p170 = scmp.ne.s32.totalorder %s159, %s160
    %p171 = scmp.eq.s32.totalorder %s18, 0
    %p172 = por %p170, %p171
    %p173 = scmp.ne.s32.totalorder %s159, %s160
    %p174 = scmp.eq.s32.totalorder %s19, 3
    %p175 = por %p173, %p174
    %p177 = scmp.ne.s32.totalorder %s160, %s176
    %p178 = scmp.eq.s32.totalorder %s19, 0
    %p179 = por %p177, %p178
    %s180 = smul.u32 %s20, 2
    %s181 = sadd.s32 %s180, %s21
    %s182 = smul.u32 %s32, 2
    %s183 = sadd.s32 %s182, %s28
    %s184 = ssub.s32 %s181, %s183
    %p185 = scmp.eq.s32.totalorder %s184, 0
    %s187 = sadd.s32 %s186, 1
    %s188 = scalar_select %p185, %s186, %s187
    %p191 = pneg %p185
    %p192 = scmp.eq.s32.totalorder %s13, 3
    %p193 = por %p191, %p192
    %p194 = scmp.ne.s32.totalorder %s186, %s189
    %p195 = scmp.eq.s32.totalorder %s13, 0
    %p196 = por %p194, %p195
    %p197 = scmp.ne.s32.totalorder %s186, %s189
    %p198 = scmp.eq.s32.totalorder %s18, 3
    %p199 = por %p197, %p198
    %p200 = scmp.ne.s32.totalorder %s189, %s190
    %p201 = scmp.eq.s32.totalorder %s18, 0
    %p202 = por %p200, %p201
    %p203 = scmp.ne.s32.totalorder %s189, %s190
    %p204 = scmp.eq.s32.totalorder %s19, 3
    %p205 = por %p203, %p204
    %p207 = scmp.ne.s32.totalorder %s190, %s206
    %p208 = scmp.eq.s32.totalorder %s19, 0
    %p209 = por %p207, %p208
    %p210 = scmp.le.s32.totalorder 1, %s13
    %p211 = scmp.lt.s32.totalorder %s13, 5
    %p212 = pnand %p210, %p211
    %p213 = pneg %p212
    // Predicated region
    $region9: #{autoencoder_forward.13} parent=5 // pred_check
      _
    $region10: #{autoencoder_forward.13} parent=5 // pred_check_branch
      %215 = sbr.rel (%p212) target = $region12
    $region11: #{autoencoder_forward.13} parent=5 // pred_region
      %s216 = ssub.s32 %s13, 1
      // Predicated region
      $region13: #{autoencoder_forward.13} parent=11 // pred_check
        %p217 = pneg %p72
      $region14: #{autoencoder_forward.13} parent=11 // pred_check_branch
        %219 = sbr.rel (%p217) target = $region16
      $region15: #{autoencoder_forward.13} parent=11 // pred_region
        _
      $region16: #{autoencoder_forward.13} parent=11 // pred_fallthru
        _
      // Predicated region
      $region17: #{autoencoder_forward.13} parent=11 // pred_check
        %p220 = pneg %p93
      $region18: #{autoencoder_forward.13} parent=11 // pred_check_branch
        %222 = sbr.rel (%p220) target = $region20
      $region19: #{autoencoder_forward.13} parent=11 // pred_region
        _
      $region20: #{autoencoder_forward.13} parent=11 // pred_fallthru
        _
      // Predicated region
      $region21: #{autoencoder_forward.13} parent=11 // pred_check
        %p223 = pneg %p114
      $region22: #{autoencoder_forward.13} parent=11 // pred_check_branch
        %225 = sbr.rel (%p223) target = $region24
      $region23: #{autoencoder_forward.13} parent=11 // pred_region
        _
      $region24: #{autoencoder_forward.13} parent=11 // pred_fallthru
        _
    $region12: #{autoencoder_forward.13} parent=5 // pred_fallthru
      _
    %p226 = scmp.lt.s32.totalorder %s13, 4
    // Predicated region
    $region25: #{autoencoder_forward.13} parent=5 // pred_check
      %p227 = pneg %p226
    $region26: #{autoencoder_forward.13} parent=5 // pred_check_branch
      %229 = sbr.rel (%p227) target = $region28
    $region27: #{autoencoder_forward.13} parent=5 // pred_region
      // Predicated region
      $region29: #{autoencoder_forward.13} parent=27 // pred_check
        %p230 = pneg %p45
      $region30: #{autoencoder_forward.13} parent=27 // pred_check_branch
        %232 = sbr.rel (%p230) target = $region32
      $region31: #{autoencoder_forward.13} parent=27 // pred_region
        %p233 = scmp.lt.s32.totalorder %s20, 1
        %s234 = scalar_select %p233, %s20, 1
        %s235 = smul.addr %s234, 32
        %s236 = smul.addr %s235, 4
        %s237 = scalar_lea.vmem %s0, %s236
      $region32: #{autoencoder_forward.13} parent=27 // pred_fallthru
        _
    $region28: #{autoencoder_forward.13} parent=5 // pred_fallthru
      _
    %p238 = scmp.le.s32.totalorder 1, %s13
    %p239 = scmp.lt.s32.totalorder %s13, 5
    %p240 = pnand %p238, %p239
    %p241 = pneg %p240
    // Predicated region
    $region33: #{autoencoder_forward.13} parent=5 // pred_check
      _
    $region34: #{autoencoder_forward.13} parent=5 // pred_check_branch
      %243 = sbr.rel (%p240) target = $region36
    $region35: #{autoencoder_forward.13} parent=5 // pred_region
      %s244 = ssub.s32 %s13, 1
      %p245 = scmp.lt.s32.totalorder %s22, 1
      %s246 = scalar_select %p245, %s22, 1
      %s247 = smul.addr %s246, 32
      %s248 = smul.addr %s247, 4
      %s249 = scalar_lea.vmem %s0, %s248
      %p250 = pneg %p51
      %p251 = pneg %p48
      %p252 = pneg %p72
      %p253 = pneg %p69
      %p254 = pneg %p93
      %p255 = pneg %p90
      %p256 = pneg %p114
      %p257 = pneg %p111
      %p258 = pneg %p142
      %p259 = pneg %p139
      %s260 = smul.u32 8, %s23
      %p261 = scmp.lt.s32.totalorder %s22, 1
      %s262 = scalar_select %p261, %s22, 1
      %p263 = scmp.lt.s32.totalorder %s260, 15
      %s264 = scalar_select %p263, %s260, 15
      %s265 = smul.addr %s264, 2
      %s266 = smul.addr %s262, 32
      %s267 = sadd.s32 %s265, %s266
      %s268 = smul.addr %s267, 4
      %s269 = scalar_lea.vmem %s4, %s268
      %p270 = pneg %p172
      %p271 = pneg %p169
      %s272 = smul.u32 %s22, 2
      %s273 = sadd.s32 %s272, %s23
      %p274 = scmp.lt.s32.totalorder %s273, 3
      %s275 = scalar_select %p274, %s273, 3
      %s276 = scalar_lea.vmem %s5, %s275
      %p277 = pneg %p202
      %p278 = pneg %p199
      %s279 = smul.u32 %s22, 2
      %s280 = sadd.s32 %s279, %s23
      %p281 = scmp.lt.s32.totalorder %s280, 3
      %s282 = scalar_select %p281, %s280, 3
      %s283 = scalar_lea.vmem %s6, %s282
      %p284 = scmp.lt.s32.totalorder %s22, 1
      %s285 = scalar_select %p284, %s22, 1
      %s286 = smul.addr %s285, 32
      %s287 = smul.addr %s286, 4
      %s288 = scalar_lea.vmem %s0, %s287
      %s289 = smul.u32 8, %s23
      %p290 = scmp.lt.s32.totalorder %s22, 1
      %s291 = scalar_select %p290, %s22, 1
      %p292 = scmp.lt.s32.totalorder %s289, 15
      %s293 = scalar_select %p292, %s289, 15
      %s294 = smul.addr %s293, 2
      %s295 = smul.addr %s291, 32
      %s296 = sadd.s32 %s294, %s295
      %s297 = smul.addr %s296, 4
      %s298 = scalar_lea.vmem %s4, %s297
      %s299 = smul.u32 8, %s23
      %s300 = smul.u32 %s22, 2
      %s301 = sadd.s32 %s300, %s23
      %p302 = scmp.lt.s32.totalorder %s301, 3
      %s303 = scalar_select %p302, %s301, 3
      %s304 = scalar_lea.vmem %s5, %s303
      %s305 = smul.u32 %s22, 2
      %s306 = sadd.s32 %s305, %s23
      %s307 = smul.u32 %s22, 2
      %s308 = sadd.s32 %s307, %s23
      %p309 = scmp.lt.s32.totalorder %s308, 3
      %s310 = scalar_select %p309, %s308, 3
      %s311 = scalar_lea.vmem %s6, %s310
      %s312 = smul.u32 %s22, 2
      %s313 = sadd.s32 %s312, %s23
      %s315 = smul.u32 %s23, 8
      %v316 = vld [vmem:[%s2] sm:$0x1]
      %v317 = vld [vmem:[%s3] sm:$0x1]
      %vm318 = vcmask 516096
      %vm319 = vsmask.f32 256
      %vm320 = vmand %vm318, %vm319
      %v321 = vld [vmem:[#allocation2] sm:$0x1]
      %v322 = vsel %vm320, 0, %v321
      %323 = vst [vmem:[#allocation2] sm:$0x1] %v322
      %v324 = vld [vmem:[#allocation2 + $0xc] sm:$0x1]
      %v325 = vsel %vm320, 0, %v324
      %326 = vst [vmem:[#allocation2 + $0xc] sm:$0x1] %v325
      %v327 = vld [vmem:[#allocation2 + $0x18] sm:$0x1]
      %v328 = vsel %vm320, 0, %v327
      %329 = vst [vmem:[#allocation2 + $0x18] sm:$0x1] %v328
      %v330 = vld [vmem:[#allocation2 + $0x24] sm:$0x1]
      %v331 = vsel %vm320, 0, %v330
      %332 = vst [vmem:[#allocation2 + $0x24] sm:$0x1] %v331
      %v333 = vld [vmem:[#allocation2 + $0x30] sm:$0x1]
      %v334 = vsel %vm320, 0, %v333
      %335 = vst [vmem:[#allocation2 + $0x30] sm:$0x1] %v334
      %v336 = vld [vmem:[#allocation2 + $0x3c] sm:$0x1]
      %v337 = vsel %vm320, 0, %v336
      %338 = vst [vmem:[#allocation2 + $0x3c] sm:$0x1] %v337
      %v339 = vld [vmem:[#allocation2 + $0x48] sm:$0x1]
      %v340 = vsel %vm320, 0, %v339
      %341 = vst [vmem:[#allocation2 + $0x48] sm:$0x1] %v340
      %v342 = vld [vmem:[#allocation2 + $0x54] sm:$0x1]
      %v343 = vsel %vm320, 0, %v342
      %344 = vst [vmem:[#allocation2 + $0x54] sm:$0x1] %v343
      %v345 = vld [vmem:[#allocation2 + $0x60] sm:$0x1]
      %v346 = vsel %vm320, 0, %v345
      %347 = vst [vmem:[#allocation2 + $0x60] sm:$0x1] %v346
      %v348 = vld [vmem:[#allocation2 + $0x6c] sm:$0x1]
      %v349 = vsel %vm320, 0, %v348
      %350 = vst [vmem:[#allocation2 + $0x6c] sm:$0x1] %v349
      %vm351 = vsmask.f32 7938
      %vm352 = vmand %vm318, %vm351
      %v353 = vld [vmem:[#allocation2 + $0x8] sm:$0x1]
      %v354 = vsel %vm352, 0, %v353
      %355 = vst [vmem:[#allocation2 + $0x8] sm:$0x1] %v354
      %v356 = vld [vmem:[#allocation2 + $0x14] sm:$0x1]
      %v357 = vsel %vm352, 0, %v356
      %358 = vst [vmem:[#allocation2 + $0x14] sm:$0x1] %v357
      %v359 = vld [vmem:[#allocation2 + $0x20] sm:$0x1]
      %v360 = vsel %vm352, 0, %v359
      %361 = vst [vmem:[#allocation2 + $0x20] sm:$0x1] %v360
      %v362 = vld [vmem:[#allocation2 + $0x2c] sm:$0x1]
      %v363 = vsel %vm352, 0, %v362
      %364 = vst [vmem:[#allocation2 + $0x2c] sm:$0x1] %v363
      %v365 = vld [vmem:[#allocation2 + $0x38] sm:$0x1]
      %v366 = vsel %vm352, 0, %v365
      %367 = vst [vmem:[#allocation2 + $0x38] sm:$0x1] %v366
      %v368 = vld [vmem:[#allocation2 + $0x44] sm:$0x1]
      %v369 = vsel %vm352, 0, %v368
      %370 = vst [vmem:[#allocation2 + $0x44] sm:$0x1] %v369
      %v371 = vld [vmem:[#allocation2 + $0x50] sm:$0x1]
      %v372 = vsel %vm352, 0, %v371
      %373 = vst [vmem:[#allocation2 + $0x50] sm:$0x1] %v372
      %v374 = vld [vmem:[#allocation2 + $0x5c] sm:$0x1]
      %v375 = vsel %vm352, 0, %v374
      %376 = vst [vmem:[#allocation2 + $0x5c] sm:$0x1] %v375
      %v377 = vld [vmem:[#allocation2 + $0x68] sm:$0x1]
      %v378 = vsel %vm352, 0, %v377
      %379 = vst [vmem:[#allocation2 + $0x68] sm:$0x1] %v378
      %v380 = vld [vmem:[#allocation2 + $0x74] sm:$0x1]
      %v381 = vsel %vm352, 0, %v380
      %382 = vst [vmem:[#allocation2 + $0x74] sm:$0x1] %v381
      %p383 = scmp.gt.s32.totalorder %s23, 0
      %s384 = scalar_select %p383, 1, 0
      %s385 = scvt.s32.f32 %s384
      %p386 = scmp.lt.s32.totalorder %s23, 1
      %s387 = scalar_select %p386, 1, 0
      %s388 = scvt.s32.f32 %s387
      %s389 = ssub.s32 %s315, 1
      %p390 = scmp.gt.s32.totalorder %s389, 0
      %s391 = scalar_select %p390, %s389, 0
      %s392 = smul.u32 %s391, 2
      %s393 = smul.addr %s392, 4
      %s394 = scalar_lea.vmem %s288, %s393
      %v395 = vld [vmem:[%s394] sm:$0xf]
      %v396 = vld [vmem:[%s394 + $0x4] sm:$0xf]
      %v397 = vunpack.c.l.bf16 %v395
      %v398 = vunpack.c.l.bf16 %v396
      %v400 = vlaneseq
      %v401 = vshrl.u32 %v400, 7
      %v402 = vsub.s32 0, %v401
      %v403 = vrot.slane %v316, %v402
      %v405 = vmul.f32 %v397, %v403
      %v406 = vmul.f32 %v398, %v403
      %v408 = vlaneseq
      %v409 = vshrl.u32 %v408, 7
      %v410 = vsub.s32 0, %v409
      %v411 = vrot.slane %v317, %v410
      %v413 = vadd.f32 %v405, %v411
      %v414 = vadd.f32 %v406, %v411
      %v415 = vstv %s385
      %v416 = vmul.f32 %v413, %v415
      %v417 = vmul.f32 %v414, %v415
      %s418 = sadd.s32 %s315, 8
      %p419 = scmp.lt.s32.totalorder %s418, 15
      %s420 = scalar_select %p419, %s418, 15
      %s421 = smul.u32 %s420, 2
      %s422 = smul.addr %s421, 4
      %s423 = scalar_lea.vmem %s288, %s422
      %v424 = vld [vmem:[%s423] sm:$0xf]
      %v425 = vld [vmem:[%s423 + $0x4] sm:$0xf]
      %v426 = vunpack.c.l.bf16 %v424
      %v427 = vunpack.c.l.bf16 %v425
      %v428 = vmul.f32 %v426, %v403
      %v429 = vmul.f32 %v427, %v403
      %v430 = vadd.f32 %v428, %v411
      %v431 = vadd.f32 %v429, %v411
      %v432 = vstv %s388
      %v433 = vmul.f32 %v430, %v432
      %v434 = vmul.f32 %v431, %v432
      %v435 = vpack.c.bf16 %v417, %v416
      %v437 = vunpack.c.l.b16 %v435
      %v438 = vunpack.c.h.b16 %v435
      %v439 = vpack.c.b16 %v437, %v437
      %v440 = vpack.c.b16 %v438, %v438
      %vm441 = vsmask.f32 4368
      %vm442 = vmor %vm319, %vm441
      %v444 = vshrl.u32 %v439, 16
      %v446 = vrot.slane %v444, 7
      %v447 = vshll.u32 %v439, 16
      %v449 = vor.u32 %v446, %v447
      %v450 = vrot.slane %v446, 4
      %v452 = vshrl.u32 %v440, 16
      %v454 = vrot.slane %v452, 7
      %v455 = vshll.u32 %v440, 16
      %v457 = vor.u32 %v454, %v455
      %v458 = vsel %vm442, %v450, %v457
      %v459 = vrot.slane %v454, 4
      %vm463 = vcmask 519168
      %vm464 = vmand %vm463, %vm351
      %v465 = vld [vmem:[#allocation2] sm:$0xf]
      %v466 = vsel %vm464, %v449, %v465
      %467 = vst [vmem:[#allocation2] sm:$0xf] %v466
      %vm468 = vcmask 519168
      %469 = vst.msk [vmem:[#allocation2 + $0x4] sm:$0xf] %vm468, %v458
      %v470 = vld [vmem:[#allocation2 + $0x8] sm:$0x1]
      %v471 = vsel %vm320, %v459, %v470
      %472 = vst [vmem:[#allocation2 + $0x8] sm:$0x1] %v471
      %v473 = vpack.c.bf16 %v434, %v433
      %v475 = vunpack.c.l.b16 %v473
      %v476 = vunpack.c.h.b16 %v473
      %v477 = vpack.c.b16 %v475, %v475
      %v478 = vpack.c.b16 %v476, %v476
      %v480 = vshrl.u32 %v477, 16
      %v482 = vrot.slane %v480, 7
      %v483 = vshll.u32 %v477, 16
      %v485 = vor.u32 %v482, %v483
      %v486 = vrot.slane %v482, 4
      %v488 = vshrl.u32 %v478, 16
      %v490 = vrot.slane %v488, 7
      %v491 = vshll.u32 %v478, 16
      %v493 = vor.u32 %v490, %v491
      %v494 = vsel %vm442, %v486, %v493
      %v495 = vrot.slane %v490, 4
      %s499 = scalar_lea.vmem [#allocation2], 108
      %v500 = vld [vmem:[%s499] sm:$0xf]
      %v501 = vsel %vm464, %v485, %v500
      %502 = vst [vmem:[%s499] sm:$0xf] %v501
      %503 = vst.msk [vmem:[%s499 + $0x4] sm:$0xf] %vm468, %v494
      %v504 = vld [vmem:[%s499 + $0x8] sm:$0x1]
      %v505 = vsel %vm320, %v495, %v504
      %506 = vst [vmem:[%s499 + $0x8] sm:$0x1] %v505
      %s507 = smul.u32 %s315, 2
      %s508 = smul.addr %s507, 4
      %s509 = scalar_lea.vmem %s288, %s508
      %v510 = vld [vmem:[%s509] sm:$0xf]
      %v511 = vld [vmem:[%s509 + $0x4] sm:$0xf]
      %v512 = vld [vmem:[%s509 + $0x8] sm:$0xf]
      %v513 = vld [vmem:[%s509 + $0xc] sm:$0xf]
      %v514 = vld [vmem:[%s509 + $0x10] sm:$0xf]
      %v515 = vld [vmem:[%s509 + $0x14] sm:$0xf]
      %v516 = vld [vmem:[%s509 + $0x18] sm:$0xf]
      %v517 = vld [vmem:[%s509 + $0x1c] sm:$0xf]
      %v518 = vld [vmem:[%s509 + $0x20] sm:$0xf]
      %v519 = vld [vmem:[%s509 + $0x24] sm:$0xf]
      %v520 = vld [vmem:[%s509 + $0x28] sm:$0xf]
      %v521 = vld [vmem:[%s509 + $0x2c] sm:$0xf]
      %v522 = vld [vmem:[%s509 + $0x30] sm:$0xf]
      %v523 = vld [vmem:[%s509 + $0x34] sm:$0xf]
      %v524 = vld [vmem:[%s509 + $0x38] sm:$0xf]
      %v525 = vld [vmem:[%s509 + $0x3c] sm:$0xf]
      %v526 = vunpack.c.l.bf16 %v510
      %v527 = vunpack.c.l.bf16 %v511
      %v528 = vunpack.c.l.bf16 %v512
      %v529 = vunpack.c.l.bf16 %v513
      %v530 = vunpack.c.l.bf16 %v514
      %v531 = vunpack.c.l.bf16 %v515
      %v532 = vunpack.c.l.bf16 %v516
      %v533 = vunpack.c.l.bf16 %v517
      %v534 = vunpack.c.l.bf16 %v518
      %v535 = vunpack.c.l.bf16 %v519
      %v536 = vunpack.c.l.bf16 %v520
      %v537 = vunpack.c.l.bf16 %v521
      %v538 = vunpack.c.l.bf16 %v522
      %v539 = vunpack.c.l.bf16 %v523
      %v540 = vunpack.c.l.bf16 %v524
      %v541 = vunpack.c.l.bf16 %v525
      %v542 = vmul.f32 %v526, %v403
      %v543 = vmul.f32 %v527, %v403
      %v544 = vmul.f32 %v528, %v403
      %v545 = vmul.f32 %v529, %v403
      %v546 = vmul.f32 %v530, %v403
      %v547 = vmul.f32 %v531, %v403
      %v548 = vmul.f32 %v532, %v403
      %v549 = vmul.f32 %v533, %v403
      %v550 = vmul.f32 %v534, %v403
      %v551 = vmul.f32 %v535, %v403
      %v552 = vmul.f32 %v536, %v403
      %v553 = vmul.f32 %v537, %v403
      %v554 = vmul.f32 %v538, %v403
      %v555 = vmul.f32 %v539, %v403
      %v556 = vmul.f32 %v540, %v403
      %v557 = vmul.f32 %v541, %v403
      %v558 = vadd.f32 %v542, %v411
      %v559 = vadd.f32 %v543, %v411
      %v560 = vadd.f32 %v544, %v411
      %v561 = vadd.f32 %v545, %v411
      %v562 = vadd.f32 %v546, %v411
      %v563 = vadd.f32 %v547, %v411
      %v564 = vadd.f32 %v548, %v411
      %v565 = vadd.f32 %v549, %v411
      %v566 = vadd.f32 %v550, %v411
      %v567 = vadd.f32 %v551, %v411
      %v568 = vadd.f32 %v552, %v411
      %v569 = vadd.f32 %v553, %v411
      %v570 = vadd.f32 %v554, %v411
      %v571 = vadd.f32 %v555, %v411
      %v572 = vadd.f32 %v556, %v411
      %v573 = vadd.f32 %v557, %v411
      %v574 = vpack.c.bf16 %v559, %v558
      %v575 = vpack.c.bf16 %v561, %v560
      %v576 = vpack.c.bf16 %v563, %v562
      %v577 = vpack.c.bf16 %v565, %v564
      %v578 = vpack.c.bf16 %v567, %v566
      %v579 = vpack.c.bf16 %v569, %v568
      %v580 = vpack.c.bf16 %v571, %v570
      %v581 = vpack.c.bf16 %v573, %v572
      %v590 = vunpack.c.l.b16 %v574
      %v591 = vunpack.c.h.b16 %v574
      %v592 = vunpack.c.l.b16 %v575
      %v593 = vunpack.c.h.b16 %v575
      %v594 = vunpack.c.l.b16 %v576
      %v595 = vunpack.c.h.b16 %v576
      %v596 = vunpack.c.l.b16 %v577
      %v597 = vunpack.c.h.b16 %v577
      %v598 = vunpack.c.l.b16 %v578
      %v599 = vunpack.c.h.b16 %v578
      %v600 = vunpack.c.l.b16 %v579
      %v601 = vunpack.c.h.b16 %v579
      %v602 = vunpack.c.l.b16 %v580
      %v603 = vunpack.c.h.b16 %v580
      %v604 = vunpack.c.l.b16 %v581
      %v605 = vunpack.c.h.b16 %v581
      %v606 = vpack.c.b16 %v590, %v590
      %v607 = vpack.c.b16 %v591, %v591
      %v608 = vpack.c.b16 %v592, %v592
      %v609 = vpack.c.b16 %v593, %v593
      %v610 = vpack.c.b16 %v594, %v594
      %v611 = vpack.c.b16 %v595, %v595
      %v612 = vpack.c.b16 %v596, %v596
      %v613 = vpack.c.b16 %v597, %v597
      %v614 = vpack.c.b16 %v598, %v598
      %v615 = vpack.c.b16 %v599, %v599
      %v616 = vpack.c.b16 %v600, %v600
      %v617 = vpack.c.b16 %v601, %v601
      %v618 = vpack.c.b16 %v602, %v602
      %v619 = vpack.c.b16 %v603, %v603
      %v620 = vpack.c.b16 %v604, %v604
      %v621 = vpack.c.b16 %v605, %v605
      %v623 = vshrl.u32 %v606, 16
      %v625 = vrot.slane %v623, 7
      %v626 = vshll.u32 %v606, 16
      %v628 = vor.u32 %v625, %v626
      %v629 = vrot.slane %v625, 4
      %v631 = vshrl.u32 %v607, 16
      %v633 = vrot.slane %v631, 7
      %v634 = vshll.u32 %v607, 16
      %v636 = vor.u32 %v633, %v634
      %v637 = vsel %vm442, %v629, %v636
      %v638 = vrot.slane %v633, 4
      %v640 = vshrl.u32 %v608, 16
      %v642 = vrot.slane %v640, 7
      %v643 = vshll.u32 %v608, 16
      %v645 = vor.u32 %v642, %v643
      %v646 = vrot.slane %v642, 4
      %v648 = vshrl.u32 %v609, 16
      %v650 = vrot.slane %v648, 7
      %v651 = vshll.u32 %v609, 16
      %v653 = vor.u32 %v650, %v651
      %v654 = vsel %vm442, %v646, %v653
      %v655 = vrot.slane %v650, 4
      %v657 = vshrl.u32 %v610, 16
      %v659 = vrot.slane %v657, 7
      %v660 = vshll.u32 %v610, 16
      %v662 = vor.u32 %v659, %v660
      %v663 = vrot.slane %v659, 4
      %v665 = vshrl.u32 %v611, 16
      %v667 = vrot.slane %v665, 7
      %v668 = vshll.u32 %v611, 16
      %v670 = vor.u32 %v667, %v668
      %v671 = vsel %vm442, %v663, %v670
      %v672 = vrot.slane %v667, 4
      %v674 = vshrl.u32 %v612, 16
      %v676 = vrot.slane %v674, 7
      %v677 = vshll.u32 %v612, 16
      %v679 = vor.u32 %v676, %v677
      %v680 = vrot.slane %v676, 4
      %v682 = vshrl.u32 %v613, 16
      %v684 = vrot.slane %v682, 7
      %v685 = vshll.u32 %v613, 16
      %v687 = vor.u32 %v684, %v685
      %v688 = vsel %vm442, %v680, %v687
      %v689 = vrot.slane %v684, 4
      %v691 = vshrl.u32 %v614, 16
      %v693 = vrot.slane %v691, 7
      %v694 = vshll.u32 %v614, 16
      %v696 = vor.u32 %v693, %v694
      %v697 = vrot.slane %v693, 4
      %v699 = vshrl.u32 %v615, 16
      %v701 = vrot.slane %v699, 7
      %v702 = vshll.u32 %v615, 16
      %v704 = vor.u32 %v701, %v702
      %v705 = vsel %vm442, %v697, %v704
      %v706 = vrot.slane %v701, 4
      %v708 = vshrl.u32 %v616, 16
      %v710 = vrot.slane %v708, 7
      %v711 = vshll.u32 %v616, 16
      %v713 = vor.u32 %v710, %v711
      %v714 = vrot.slane %v710, 4
      %v716 = vshrl.u32 %v617, 16
      %v718 = vrot.slane %v716, 7
      %v719 = vshll.u32 %v617, 16
      %v721 = vor.u32 %v718, %v719
      %v722 = vsel %vm442, %v714, %v721
      %v723 = vrot.slane %v718, 4
      %v725 = vshrl.u32 %v618, 16
      %v727 = vrot.slane %v725, 7
      %v728 = vshll.u32 %v618, 16
      %v730 = vor.u32 %v727, %v728
      %v731 = vrot.slane %v727, 4
      %v733 = vshrl.u32 %v619, 16
      %v735 = vrot.slane %v733, 7
      %v736 = vshll.u32 %v619, 16
      %v738 = vor.u32 %v735, %v736
      %v739 = vsel %vm442, %v731, %v738
      %v740 = vrot.slane %v735, 4
      %v742 = vshrl.u32 %v620, 16
      %v744 = vrot.slane %v742, 7
      %v745 = vshll.u32 %v620, 16
      %v747 = vor.u32 %v744, %v745
      %v748 = vrot.slane %v744, 4
      %v750 = vshrl.u32 %v621, 16
      %v752 = vrot.slane %v750, 7
      %v753 = vshll.u32 %v621, 16
      %v755 = vor.u32 %v752, %v753
      %v756 = vsel %vm442, %v748, %v755
      %v757 = vrot.slane %v752, 4
      %s782 = scalar_lea.vmem [#allocation2], 12
      %v783 = vld [vmem:[%s782] sm:$0xf]
      %v784 = vsel %vm464, %v628, %v783
      %785 = vst [vmem:[%s782] sm:$0xf] %v784
      %786 = vst.msk [vmem:[%s782 + $0x4] sm:$0xf] %vm468, %v637
      %v787 = vld [vmem:[%s782 + $0x8] sm:$0x1]
      %v788 = vsel %vm320, %v638, %v787
      %789 = vst [vmem:[%s782 + $0x8] sm:$0x1] %v788
      %v790 = vld [vmem:[%s782 + $0xc] sm:$0xf]
      %v791 = vsel %vm464, %v645, %v790
      %792 = vst [vmem:[%s782 + $0xc] sm:$0xf] %v791
      %793 = vst.msk [vmem:[%s782 + $0x10] sm:$0xf] %vm468, %v654
      %v794 = vld [vmem:[%s782 + $0x14] sm:$0x1]
      %v795 = vsel %vm320, %v655, %v794
      %796 = vst [vmem:[%s782 + $0x14] sm:$0x1] %v795
      %v797 = vld [vmem:[%s782 + $0x18] sm:$0xf]
      %v798 = vsel %vm464, %v662, %v797
      %799 = vst [vmem:[%s782 + $0x18] sm:$0xf] %v798
      %800 = vst.msk [vmem:[%s782 + $0x1c] sm:$0xf] %vm468, %v671
      %v801 = vld [vmem:[%s782 + $0x20] sm:$0x1]
      %v802 = vsel %vm320, %v672, %v801
      %803 = vst [vmem:[%s782 + $0x20] sm:$0x1] %v802
      %v804 = vld [vmem:[%s782 + $0x24] sm:$0xf]
      %v805 = vsel %vm464, %v679, %v804
      %806 = vst [vmem:[%s782 + $0x24] sm:$0xf] %v805
      %807 = vst.msk [vmem:[%s782 + $0x28] sm:$0xf] %vm468, %v688
      %v808 = vld [vmem:[%s782 + $0x2c] sm:$0x1]
      %v809 = vsel %vm320, %v689, %v808
      %810 = vst [vmem:[%s782 + $0x2c] sm:$0x1] %v809
      %v811 = vld [vmem:[%s782 + $0x30] sm:$0xf]
      %v812 = vsel %vm464, %v696, %v811
      %813 = vst [vmem:[%s782 + $0x30] sm:$0xf] %v812
      %814 = vst.msk [vmem:[%s782 + $0x34] sm:$0xf] %vm468, %v705
      %v815 = vld [vmem:[%s782 + $0x38] sm:$0x1]
      %v816 = vsel %vm320, %v706, %v815
      %817 = vst [vmem:[%s782 + $0x38] sm:$0x1] %v816
      %v818 = vld [vmem:[%s782 + $0x3c] sm:$0xf]
      %v819 = vsel %vm464, %v713, %v818
      %820 = vst [vmem:[%s782 + $0x3c] sm:$0xf] %v819
      %821 = vst.msk [vmem:[%s782 + $0x40] sm:$0xf] %vm468, %v722
      %v822 = vld [vmem:[%s782 + $0x44] sm:$0x1]
      %v823 = vsel %vm320, %v723, %v822
      %824 = vst [vmem:[%s782 + $0x44] sm:$0x1] %v823
      %v825 = vld [vmem:[%s782 + $0x48] sm:$0xf]
      %v826 = vsel %vm464, %v730, %v825
      %827 = vst [vmem:[%s782 + $0x48] sm:$0xf] %v826
      %828 = vst.msk [vmem:[%s782 + $0x4c] sm:$0xf] %vm468, %v739
      %v829 = vld [vmem:[%s782 + $0x50] sm:$0x1]
      %v830 = vsel %vm320, %v740, %v829
      %831 = vst [vmem:[%s782 + $0x50] sm:$0x1] %v830
      %v832 = vld [vmem:[%s782 + $0x54] sm:$0xf]
      %v833 = vsel %vm464, %v747, %v832
      %834 = vst [vmem:[%s782 + $0x54] sm:$0xf] %v833
      %835 = vst.msk [vmem:[%s782 + $0x58] sm:$0xf] %vm468, %v756
      %v836 = vld [vmem:[%s782 + $0x5c] sm:$0x1]
      %v837 = vsel %vm320, %v757, %v836
      %838 = vst [vmem:[%s782 + $0x5c] sm:$0x1] %v837
      %v839 = vld [vmem:[#allocation2] sm:$0xf]
      %v840 = vld [vmem:[#allocation2 + $0x4] sm:$0xf]
      %v841 = vld [vmem:[#allocation2 + $0xc] sm:$0xf]
      %v842 = vld [vmem:[#allocation2 + $0x10] sm:$0xf]
      %v843 = vld [vmem:[#allocation2 + $0x18] sm:$0xf]
      %v844 = vld [vmem:[#allocation2 + $0x1c] sm:$0xf]
      %v845 = vld [vmem:[#allocation2 + $0x24] sm:$0xf]
      %v846 = vld [vmem:[#allocation2 + $0x28] sm:$0xf]
      %v847 = vld [vmem:[#allocation2 + $0x30] sm:$0xf]
      %v848 = vld [vmem:[#allocation2 + $0x34] sm:$0xf]
      %v849 = vld [vmem:[#allocation2 + $0x3c] sm:$0xf]
      %v850 = vld [vmem:[#allocation2 + $0x40] sm:$0xf]
      %v851 = vld [vmem:[#allocation2 + $0x48] sm:$0xf]
      %v852 = vld [vmem:[#allocation2 + $0x4c] sm:$0xf]
      %v853 = vld [vmem:[#allocation2 + $0x54] sm:$0xf]
      %v854 = vld [vmem:[#allocation2 + $0x58] sm:$0xf]
      %v855 = vld [vmem:[%s1] sm:$0xf]
      %v856 = vld [vmem:[%s1 + $0x4] sm:$0xf]
      %v857 = vld [vmem:[%s1 + $0x8] sm:$0xf]
      %v858 = vld [vmem:[%s1 + $0xc] sm:$0xf]
      %v859 = vld [vmem:[%s1 + $0x10] sm:$0xf]
      %v860 = vld [vmem:[%s1 + $0x14] sm:$0xf]
      %v861 = vld [vmem:[%s1 + $0x18] sm:$0xf]
      %v862 = vld [vmem:[%s1 + $0x1c] sm:$0xf]
      %v863 = vld [vmem:[#allocation2 + $0x8] sm:$0x1]
      %v864 = vld [vmem:[#allocation2 + $0x14] sm:$0x1]
      %v865 = vld [vmem:[#allocation2 + $0x20] sm:$0x1]
      %v866 = vld [vmem:[#allocation2 + $0x2c] sm:$0x1]
      %v867 = vld [vmem:[#allocation2 + $0x38] sm:$0x1]
      %v868 = vld [vmem:[#allocation2 + $0x44] sm:$0x1]
      %v869 = vld [vmem:[#allocation2 + $0x50] sm:$0x1]
      %v870 = vld [vmem:[#allocation2 + $0x5c] sm:$0x1]
      %vm871 = vsmask.f32 3328
      %vm872 = vsmask.f32 7440
      %vm873 = vmor %vm871, %vm872
      %v875 = vshrl.u32 %v839, 16
      %v877 = vrot.slane %v875, 4
      %v878 = vshll.u32 %v839, 16
      %v880 = vrot.slane %v878, 5
      %v881 = vor.u32 %v877, %v880
      %v882 = vrot.slane %v881, 4
      %v884 = vshll.u32 %v840, 16
      %v886 = vrot.slane %v884, 5
      %v887 = vsel %vm873, %v882, %v886
      %v888 = vshrl.u32 %v840, 16
      %v890 = vrot.slane %v888, 4
      %v891 = vor.u32 %v890, %v886
      %v892 = vrot.slane %v891, 4
      %v894 = vshll.u32 %v863, 16
      %v896 = vrot.slane %v894, 5
      %v897 = vsel %vm873, %v892, %v896
      %v899 = vshrl.u32 %v841, 16
      %v901 = vrot.slane %v899, 4
      %v902 = vshll.u32 %v841, 16
      %v904 = vrot.slane %v902, 5
      %v905 = vor.u32 %v901, %v904
      %v906 = vrot.slane %v905, 4
      %v908 = vshll.u32 %v842, 16
      %v910 = vrot.slane %v908, 5
      %v911 = vsel %vm873, %v906, %v910
      %v912 = vshrl.u32 %v842, 16
      %v914 = vrot.slane %v912, 4
      %v915 = vor.u32 %v914, %v910
      %v916 = vrot.slane %v915, 4
      %v918 = vshll.u32 %v864, 16
      %v920 = vrot.slane %v918, 5
      %v921 = vsel %vm873, %v916, %v920
      %v923 = vshrl.u32 %v843, 16
      %v925 = vrot.slane %v923, 4
      %v926 = vshll.u32 %v843, 16
      %v928 = vrot.slane %v926, 5
      %v929 = vor.u32 %v925, %v928
      %v930 = vrot.slane %v929, 4
      %v932 = vshll.u32 %v844, 16
      %v934 = vrot.slane %v932, 5
      %v935 = vsel %vm873, %v930, %v934
      %v936 = vshrl.u32 %v844, 16
      %v938 = vrot.slane %v936, 4
      %v939 = vor.u32 %v938, %v934
      %v940 = vrot.slane %v939, 4
      %v942 = vshll.u32 %v865, 16
      %v944 = vrot.slane %v942, 5
      %v945 = vsel %vm873, %v940, %v944
      %v947 = vshrl.u32 %v845, 16
      %v949 = vrot.slane %v947, 4
      %v950 = vshll.u32 %v845, 16
      %v952 = vrot.slane %v950, 5
      %v953 = vor.u32 %v949, %v952
      %v954 = vrot.slane %v953, 4
      %v956 = vshll.u32 %v846, 16
      %v958 = vrot.slane %v956, 5
      %v959 = vsel %vm873, %v954, %v958
      %v960 = vshrl.u32 %v846, 16
      %v962 = vrot.slane %v960, 4
      %v963 = vor.u32 %v962, %v958
      %v964 = vrot.slane %v963, 4
      %v966 = vshll.u32 %v866, 16
      %v968 = vrot.slane %v966, 5
      %v969 = vsel %vm873, %v964, %v968
      %v971 = vshrl.u32 %v847, 16
      %v973 = vrot.slane %v971, 4
      %v974 = vshll.u32 %v847, 16
      %v976 = vrot.slane %v974, 5
      %v977 = vor.u32 %v973, %v976
      %v978 = vrot.slane %v977, 4
      %v980 = vshll.u32 %v848, 16
      %v982 = vrot.slane %v980, 5
      %v983 = vsel %vm873, %v978, %v982
      %v984 = vshrl.u32 %v848, 16
      %v986 = vrot.slane %v984, 4
      %v987 = vor.u32 %v986, %v982
      %v988 = vrot.slane %v987, 4
      %v990 = vshll.u32 %v867, 16
      %v992 = vrot.slane %v990, 5
      %v993 = vsel %vm873, %v988, %v992
      %v995 = vshrl.u32 %v849, 16
      %v997 = vrot.slane %v995, 4
      %v998 = vshll.u32 %v849, 16
      %v1000 = vrot.slane %v998, 5
      %v1001 = vor.u32 %v997, %v1000
      %v1002 = vrot.slane %v1001, 4
      %v1004 = vshll.u32 %v850, 16
      %v1006 = vrot.slane %v1004, 5
      %v1007 = vsel %vm873, %v1002, %v1006
      %v1008 = vshrl.u32 %v850, 16
      %v1010 = vrot.slane %v1008, 4
      %v1011 = vor.u32 %v1010, %v1006
      %v1012 = vrot.slane %v1011, 4
      %v1014 = vshll.u32 %v868, 16
      %v1016 = vrot.slane %v1014, 5
      %v1017 = vsel %vm873, %v1012, %v1016
      %v1019 = vshrl.u32 %v851, 16
      %v1021 = vrot.slane %v1019, 4
      %v1022 = vshll.u32 %v851, 16
      %v1024 = vrot.slane %v1022, 5
      %v1025 = vor.u32 %v1021, %v1024
      %v1026 = vrot.slane %v1025, 4
      %v1028 = vshll.u32 %v852, 16
      %v1030 = vrot.slane %v1028, 5
      %v1031 = vsel %vm873, %v1026, %v1030
      %v1032 = vshrl.u32 %v852, 16
      %v1034 = vrot.slane %v1032, 4
      %v1035 = vor.u32 %v1034, %v1030
      %v1036 = vrot.slane %v1035, 4
      %v1038 = vshll.u32 %v869, 16
      %v1040 = vrot.slane %v1038, 5
      %v1041 = vsel %vm873, %v1036, %v1040
      %v1043 = vshrl.u32 %v853, 16
      %v1045 = vrot.slane %v1043, 4
      %v1046 = vshll.u32 %v853, 16
      %v1048 = vrot.slane %v1046, 5
      %v1049 = vor.u32 %v1045, %v1048
      %v1050 = vrot.slane %v1049, 4
      %v1052 = vshll.u32 %v854, 16
      %v1054 = vrot.slane %v1052, 5
      %v1055 = vsel %vm873, %v1050, %v1054
      %v1056 = vshrl.u32 %v854, 16
      %v1058 = vrot.slane %v1056, 4
      %v1059 = vor.u32 %v1058, %v1054
      %v1060 = vrot.slane %v1059, 4
      %v1062 = vshll.u32 %v870, 16
      %v1064 = vrot.slane %v1062, 5
      %v1065 = vsel %vm873, %v1060, %v1064
      %s1066 = scalar_lea.vmem %s1, 32
      %v1067 = vld [vmem:[%s1066] sm:$0xf]
      %v1068 = vld [vmem:[%s1066 + $0x4] sm:$0xf]
      %v1069 = vld [vmem:[%s1066 + $0x8] sm:$0xf]
      %v1070 = vld [vmem:[%s1066 + $0xc] sm:$0xf]
      %v1071 = vld [vmem:[%s1066 + $0x10] sm:$0xf]
      %v1072 = vld [vmem:[%s1066 + $0x14] sm:$0xf]
      %v1073 = vld [vmem:[%s1066 + $0x18] sm:$0xf]
      %v1074 = vld [vmem:[%s1066 + $0x1c] sm:$0xf]
      %v1075 = vunpack.c.l.b16 %v887
      %v1076 = vunpack.c.l.b16 %v897
      %v1077 = vunpack.c.l.b16 %v911
      %v1078 = vunpack.c.l.b16 %v921
      %v1079 = vunpack.c.l.b16 %v935
      %v1080 = vunpack.c.l.b16 %v945
      %v1081 = vunpack.c.l.b16 %v959
      %v1082 = vunpack.c.l.b16 %v969
      %v1083 = vunpack.c.l.b16 %v983
      %v1084 = vunpack.c.l.b16 %v993
      %v1085 = vunpack.c.l.b16 %v1007
      %v1086 = vunpack.c.l.b16 %v1017
      %v1087 = vunpack.c.l.b16 %v1031
      %v1088 = vunpack.c.l.b16 %v1041
      %v1089 = vunpack.c.l.b16 %v1055
      %v1090 = vunpack.c.l.b16 %v1065
      %v1091 = vpack.c.b16 %v1076, %v1075
      %v1092 = vpack.c.b16 %v1078, %v1077
      %v1093 = vpack.c.b16 %v1080, %v1079
      %v1094 = vpack.c.b16 %v1082, %v1081
      %v1095 = vpack.c.b16 %v1084, %v1083
      %v1096 = vpack.c.b16 %v1086, %v1085
      %v1097 = vpack.c.b16 %v1088, %v1087
      %v1098 = vpack.c.b16 %v1090, %v1089
      %v1107 = vunpack.c.l.b16 %v1067
      %v1108 = vunpack.c.l.b16 %v1068
      %v1109 = vunpack.c.l.b16 %v1069
      %v1110 = vunpack.c.l.b16 %v1070
      %v1111 = vunpack.c.l.b16 %v1071
      %v1112 = vunpack.c.l.b16 %v1072
      %v1113 = vunpack.c.l.b16 %v1073
      %v1114 = vunpack.c.l.b16 %v1074
      %v1115 = vpack.c.b16 %v1108, %v1107
      %v1116 = vpack.c.b16 %v1110, %v1109
      %v1117 = vpack.c.b16 %v1112, %v1111
      %v1118 = vpack.c.b16 %v1114, %v1113
      %vm1123 = vcmask 523264
      %v1125 = vsel %vm1123, %v1091, 0
      %v1128 = vsel %vm1123, %v1092, 0
      %v1131 = vsel %vm1123, %v1093, 0
      %v1134 = vsel %vm1123, %v1094, 0
      %v1137 = vsel %vm1123, %v1095, 0
      %v1140 = vsel %vm1123, %v1096, 0
      %v1143 = vsel %vm1123, %v1097, 0
      %v1146 = vsel %vm1123, %v1098, 0
      %1148 = vmatprep.subr.bf16.mxu0 0
      %1149 = vmatpush1.bf16.msra.mxu0 0
      %1150 = vmatprep.subr.bf16.mxu0 0
      %1151 = vmatpush1.bf16.msra.mxu0 0
      %1152 = vmatprep.subr.bf16.mxu0 0
      %1153 = vmatpush1.bf16.msra.mxu0 0
      %1154 = vmatprep.subr.bf16.mxu0 0
      %1155 = vmatpush1.bf16.msra.mxu0 0
      %1156 = vmatprep.subr.bf16.mxu0 0
      %1157 = vmatpush1.bf16.msra.mxu0 %v1118
      %1158 = vmatprep.subr.bf16.mxu0 0
      %1159 = vmatpush1.bf16.msra.mxu0 %v1117
      %1160 = vmatprep.subr.bf16.mxu0 0
      %1161 = vmatpush1.bf16.msra.mxu0 %v1116
      %1162 = vmatprep.subr.bf16.mxu0 0
      %1163 = vmatpush1.bf16.msra.mxu0 %v1115
      %1164 = vmatprep.subr.bf16.mxu0 0
      %1165 = vmatpush2.bf16.msra.mxu0 0
      %1166 = vmatprep.subr.bf16.mxu0 0
      %1167 = vmatpush2.bf16.msra.mxu0 0
      %1168 = vmatprep.subr.bf16.mxu0 0
      %1169 = vmatpush2.bf16.msra.mxu0 0
      %1170 = vmatprep.subr.bf16.mxu0 0
      %1171 = vmatpush2.bf16.msra.mxu0 0
      %1172 = vmatprep.subr.bf16.mxu0 0
      %1173 = vmatpush2.bf16.msra.mxu0 0
      %1174 = vmatprep.subr.bf16.mxu0 0
      %1175 = vmatpush2.bf16.msra.mxu0 0
      %1176 = vmatprep.subr.bf16.mxu0 0
      %1177 = vmatpush2.bf16.msra.mxu0 0
      %1178 = vmatprep.subr.bf16.mxu0 0
      %1179 = vmatpush2.bf16.msra.mxu0 0
      %1180 = vmatprep.mubr.bf16.mxu0 0
      %1181 = vmatmul.mubr.bf16.gmra.mxu0 %v1125
      %v1182 = vpop.f32.mrf.mxu0
      %v1183 = vadd.f32 0.0, %v1182
      %v1184 = vpop.f32.mrf.mxu0
      %v1185 = vpop.f32.mrf.mxu0
      %v1186 = vadd.f32 0.0, %v1185
      %v1187 = vpop.f32.mrf.mxu0
      %1188 = vmatprep.mubr.bf16.mxu0 0
      %1189 = vmatmul.mubr.bf16.gmra.mxu0 %v1128
      %v1190 = vpop.f32.mrf.mxu0
      %v1191 = vadd.f32 0.0, %v1190
      %v1192 = vpop.f32.mrf.mxu0
      %v1193 = vpop.f32.mrf.mxu0
      %v1194 = vadd.f32 0.0, %v1193
      %v1195 = vpop.f32.mrf.mxu0
      %1196 = vmatprep.mubr.bf16.mxu0 0
      %1197 = vmatmul.mubr.bf16.gmra.mxu0 %v1131
      %v1198 = vpop.f32.mrf.mxu0
      %v1199 = vadd.f32 0.0, %v1198
      %v1200 = vpop.f32.mrf.mxu0
      %v1201 = vpop.f32.mrf.mxu0
      %v1202 = vadd.f32 0.0, %v1201
      %v1203 = vpop.f32.mrf.mxu0
      %1204 = vmatprep.mubr.bf16.mxu0 0
      %1205 = vmatmul.mubr.bf16.gmra.mxu0 %v1134
      %v1206 = vpop.f32.mrf.mxu0
      %v1207 = vadd.f32 0.0, %v1206
      %v1208 = vpop.f32.mrf.mxu0
      %v1209 = vpop.f32.mrf.mxu0
      %v1210 = vadd.f32 0.0, %v1209
      %v1211 = vpop.f32.mrf.mxu0
      %1212 = vmatprep.mubr.bf16.mxu0 0
      %1213 = vmatmul.mubr.bf16.gmra.mxu0 %v1137
      %v1214 = vpop.f32.mrf.mxu0
      %v1215 = vadd.f32 0.0, %v1214
      %v1216 = vpop.f32.mrf.mxu0
      %v1217 = vpop.f32.mrf.mxu0
      %v1218 = vadd.f32 0.0, %v1217
      %v1219 = vpop.f32.mrf.mxu0
      %1220 = vmatprep.mubr.bf16.mxu0 0
      %1221 = vmatmul.mubr.bf16.gmra.mxu0 %v1140
      %v1222 = vpop.f32.mrf.mxu0
      %v1223 = vadd.f32 0.0, %v1222
      %v1224 = vpop.f32.mrf.mxu0
      %v1225 = vpop.f32.mrf.mxu0
      %v1226 = vadd.f32 0.0, %v1225
      %v1227 = vpop.f32.mrf.mxu0
      %1228 = vmatprep.mubr.bf16.mxu0 0
      %1229 = vmatmul.mubr.bf16.gmra.mxu0 %v1143
      %v1230 = vpop.f32.mrf.mxu0
      %v1231 = vadd.f32 0.0, %v1230
      %v1232 = vpop.f32.mrf.mxu0
      %v1233 = vpop.f32.mrf.mxu0
      %v1234 = vadd.f32 0.0, %v1233
      %v1235 = vpop.f32.mrf.mxu0
      %1236 = vmatprep.mubr.bf16.mxu0 0
      %1237 = vmatmul.mubr.bf16.gmra.mxu0 %v1146
      %v1238 = vpop.f32.mrf.mxu0
      %v1239 = vadd.f32 0.0, %v1238
      %v1240 = vpop.f32.mrf.mxu0
      %v1241 = vpop.f32.mrf.mxu0
      %v1242 = vadd.f32 0.0, %v1241
      %v1243 = vpop.f32.mrf.mxu0
      %1244 = vdwg.mxu0
      %v1261 = vunpack.c.l.b16 %v839
      %v1262 = vunpack.c.l.b16 %v840
      %v1263 = vunpack.c.l.b16 %v841
      %v1264 = vunpack.c.l.b16 %v842
      %v1265 = vunpack.c.l.b16 %v843
      %v1266 = vunpack.c.l.b16 %v844
      %v1267 = vunpack.c.l.b16 %v845
      %v1268 = vunpack.c.l.b16 %v846
      %v1269 = vunpack.c.l.b16 %v847
      %v1270 = vunpack.c.l.b16 %v848
      %v1271 = vunpack.c.l.b16 %v849
      %v1272 = vunpack.c.l.b16 %v850
      %v1273 = vunpack.c.l.b16 %v851
      %v1274 = vunpack.c.l.b16 %v852
      %v1275 = vunpack.c.l.b16 %v853
      %v1276 = vunpack.c.l.b16 %v854
      %v1277 = vpack.c.b16 %v1262, %v1261
      %v1278 = vpack.c.b16 %v1264, %v1263
      %v1279 = vpack.c.b16 %v1266, %v1265
      %v1280 = vpack.c.b16 %v1268, %v1267
      %v1281 = vpack.c.b16 %v1270, %v1269
      %v1282 = vpack.c.b16 %v1272, %v1271
      %v1283 = vpack.c.b16 %v1274, %v1273
      %v1284 = vpack.c.b16 %v1276, %v1275
      %v1293 = vunpack.c.l.b16 %v855
      %v1294 = vunpack.c.l.b16 %v856
      %v1295 = vunpack.c.l.b16 %v857
      %v1296 = vunpack.c.l.b16 %v858
      %v1297 = vunpack.c.l.b16 %v859
      %v1298 = vunpack.c.l.b16 %v860
      %v1299 = vunpack.c.l.b16 %v861
      %v1300 = vunpack.c.l.b16 %v862
      %v1301 = vpack.c.b16 %v1294, %v1293
      %v1302 = vpack.c.b16 %v1296, %v1295
      %v1303 = vpack.c.b16 %v1298, %v1297
      %v1304 = vpack.c.b16 %v1300, %v1299
      %v1310 = vsel %vm1123, %v1277, 0
      %v1313 = vsel %vm1123, %v1278, 0
      %v1316 = vsel %vm1123, %v1279, 0
      %v1319 = vsel %vm1123, %v1280, 0
      %v1322 = vsel %vm1123, %v1281, 0
      %v1325 = vsel %vm1123, %v1282, 0
      %v1328 = vsel %vm1123, %v1283, 0
      %v1331 = vsel %vm1123, %v1284, 0
      %1333 = vmatprep.subr.bf16.mxu0 0
      %1334 = vmatpush1.bf16.msra.mxu0 0
      %1335 = vmatprep.subr.bf16.mxu0 0
      %1336 = vmatpush1.bf16.msra.mxu0 0
      %1337 = vmatprep.subr.bf16.mxu0 0
      %1338 = vmatpush1.bf16.msra.mxu0 0
      %1339 = vmatprep.subr.bf16.mxu0 0
      %1340 = vmatpush1.bf16.msra.mxu0 0
      %1341 = vmatprep.subr.bf16.mxu0 0
      %1342 = vmatpush1.bf16.msra.mxu0 %v1304
      %1343 = vmatprep.subr.bf16.mxu0 0
      %1344 = vmatpush1.bf16.msra.mxu0 %v1303
      %1345 = vmatprep.subr.bf16.mxu0 0
      %1346 = vmatpush1.bf16.msra.mxu0 %v1302
      %1347 = vmatprep.subr.bf16.mxu0 0
      %1348 = vmatpush1.bf16.msra.mxu0 %v1301
      %1349 = vmatprep.subr.bf16.mxu0 0
      %1350 = vmatpush2.bf16.msra.mxu0 0
      %1351 = vmatprep.subr.bf16.mxu0 0
      %1352 = vmatpush2.bf16.msra.mxu0 0
      %1353 = vmatprep.subr.bf16.mxu0 0
      %1354 = vmatpush2.bf16.msra.mxu0 0
      %1355 = vmatprep.subr.bf16.mxu0 0
      %1356 = vmatpush2.bf16.msra.mxu0 0
      %1357 = vmatprep.subr.bf16.mxu0 0
      %1358 = vmatpush2.bf16.msra.mxu0 0
      %1359 = vmatprep.subr.bf16.mxu0 0
      %1360 = vmatpush2.bf16.msra.mxu0 0
      %1361 = vmatprep.subr.bf16.mxu0 0
      %1362 = vmatpush2.bf16.msra.mxu0 0
      %1363 = vmatprep.subr.bf16.mxu0 0
      %1364 = vmatpush2.bf16.msra.mxu0 0
      %1365 = vmatprep.mubr.bf16.mxu0 0
      %1366 = vmatmul.mubr.bf16.gmra.mxu0 %v1310
      %v1367 = vpop.f32.mrf.mxu0
      %v1368 = vadd.f32 %v1183, %v1367
      %v1369 = vpop.f32.mrf.mxu0
      %v1370 = vpop.f32.mrf.mxu0
      %v1371 = vadd.f32 %v1186, %v1370
      %v1372 = vpop.f32.mrf.mxu0
      %1373 = vmatprep.mubr.bf16.mxu0 0
      %1374 = vmatmul.mubr.bf16.gmra.mxu0 %v1313
      %v1375 = vpop.f32.mrf.mxu0
      %v1376 = vadd.f32 %v1191, %v1375
      %v1377 = vpop.f32.mrf.mxu0
      %v1378 = vpop.f32.mrf.mxu0
      %v1379 = vadd.f32 %v1194, %v1378
      %v1380 = vpop.f32.mrf.mxu0
      %1381 = vmatprep.mubr.bf16.mxu0 0
      %1382 = vmatmul.mubr.bf16.gmra.mxu0 %v1316
      %v1383 = vpop.f32.mrf.mxu0
      %v1384 = vadd.f32 %v1199, %v1383
      %v1385 = vpop.f32.mrf.mxu0
      %v1386 = vpop.f32.mrf.mxu0
      %v1387 = vadd.f32 %v1202, %v1386
      %v1388 = vpop.f32.mrf.mxu0
      %1389 = vmatprep.mubr.bf16.mxu0 0
      %1390 = vmatmul.mubr.bf16.gmra.mxu0 %v1319
      %v1391 = vpop.f32.mrf.mxu0
      %v1392 = vadd.f32 %v1207, %v1391
      %v1393 = vpop.f32.mrf.mxu0
      %v1394 = vpop.f32.mrf.mxu0
      %v1395 = vadd.f32 %v1210, %v1394
      %v1396 = vpop.f32.mrf.mxu0
      %1397 = vmatprep.mubr.bf16.mxu0 0
      %1398 = vmatmul.mubr.bf16.gmra.mxu0 %v1322
      %v1399 = vpop.f32.mrf.mxu0
      %v1400 = vadd.f32 %v1215, %v1399
      %v1401 = vpop.f32.mrf.mxu0
      %v1402 = vpop.f32.mrf.mxu0
      %v1403 = vadd.f32 %v1218, %v1402
      %v1404 = vpop.f32.mrf.mxu0
      %1405 = vmatprep.mubr.bf16.mxu0 0
      %1406 = vmatmul.mubr.bf16.gmra.mxu0 %v1325
      %v1407 = vpop.f32.mrf.mxu0
      %v1408 = vadd.f32 %v1223, %v1407
      %v1409 = vpop.f32.mrf.mxu0
      %v1410 = vpop.f32.mrf.mxu0
      %v1411 = vadd.f32 %v1226, %v1410
      %v1412 = vpop.f32.mrf.mxu0
      %1413 = vmatprep.mubr.bf16.mxu0 0
      %1414 = vmatmul.mubr.bf16.gmra.mxu0 %v1328
      %v1415 = vpop.f32.mrf.mxu0
      %v1416 = vadd.f32 %v1231, %v1415
      %v1417 = vpop.f32.mrf.mxu0
      %v1418 = vpop.f32.mrf.mxu0
      %v1419 = vadd.f32 %v1234, %v1418
      %v1420 = vpop.f32.mrf.mxu0
      %1421 = vmatprep.mubr.bf16.mxu0 0
      %1422 = vmatmul.mubr.bf16.gmra.mxu0 %v1331
      %v1423 = vpop.f32.mrf.mxu0
      %v1424 = vadd.f32 %v1239, %v1423
      %v1425 = vpop.f32.mrf.mxu0
      %v1426 = vpop.f32.mrf.mxu0
      %v1427 = vadd.f32 %v1242, %v1426
      %v1428 = vpop.f32.mrf.mxu0
      %1429 = vdwg.mxu0
      %v1430 = vld [vmem:[#allocation2] sm:$0xe]
      %v1431 = vld [vmem:[#allocation2 + $0xc] sm:$0xe]
      %v1432 = vld [vmem:[#allocation2 + $0x18] sm:$0xe]
      %v1433 = vld [vmem:[#allocation2 + $0x24] sm:$0xe]
      %v1434 = vld [vmem:[#allocation2 + $0x30] sm:$0xe]
      %v1435 = vld [vmem:[#allocation2 + $0x3c] sm:$0xe]
      %v1436 = vld [vmem:[#allocation2 + $0x48] sm:$0xe]
      %v1437 = vld [vmem:[#allocation2 + $0x54] sm:$0xe]
      %vm1454 = vcmask 1042432
      %vm1455 = vcmask 1046532
      %vm1456 = vmor %vm1454, %vm1455
      %v1457 = vrot.slane %v1430, 5
      %v1458 = vrot.slane %v1457, 4
      %v1459 = vrot.slane %v840, 5
      %v1460 = vsel %vm1456, %v1458, %v1459
      %v1461 = vrot.slane %v1459, 4
      %v1462 = vrot.slane %v863, 5
      %v1463 = vsel %vm1456, %v1461, %v1462
      %v1464 = vrot.slane %v1431, 5
      %v1465 = vrot.slane %v1464, 4
      %v1466 = vrot.slane %v842, 5
      %v1467 = vsel %vm1456, %v1465, %v1466
      %v1468 = vrot.slane %v1466, 4
      %v1469 = vrot.slane %v864, 5
      %v1470 = vsel %vm1456, %v1468, %v1469
      %v1471 = vrot.slane %v1432, 5
      %v1472 = vrot.slane %v1471, 4
      %v1473 = vrot.slane %v844, 5
      %v1474 = vsel %vm1456, %v1472, %v1473
      %v1475 = vrot.slane %v1473, 4
      %v1476 = vrot.slane %v865, 5
      %v1477 = vsel %vm1456, %v1475, %v1476
      %v1478 = vrot.slane %v1433, 5
      %v1479 = vrot.slane %v1478, 4
      %v1480 = vrot.slane %v846, 5
      %v1481 = vsel %vm1456, %v1479, %v1480
      %v1482 = vrot.slane %v1480, 4
      %v1483 = vrot.slane %v866, 5
      %v1484 = vsel %vm1456, %v1482, %v1483
      %v1485 = vrot.slane %v1434, 5
      %v1486 = vrot.slane %v1485, 4
      %v1487 = vrot.slane %v848, 5
      %v1488 = vsel %vm1456, %v1486, %v1487
      %v1489 = vrot.slane %v1487, 4
      %v1490 = vrot.slane %v867, 5
      %v1491 = vsel %vm1456, %v1489, %v1490
      %v1492 = vrot.slane %v1435, 5
      %v1493 = vrot.slane %v1492, 4
      %v1494 = vrot.slane %v850, 5
      %v1495 = vsel %vm1456, %v1493, %v1494
      %v1496 = vrot.slane %v1494, 4
      %v1497 = vrot.slane %v868, 5
      %v1498 = vsel %vm1456, %v1496, %v1497
      %v1499 = vrot.slane %v1436, 5
      %v1500 = vrot.slane %v1499, 4
      %v1501 = vrot.slane %v852, 5
      %v1502 = vsel %vm1456, %v1500, %v1501
      %v1503 = vrot.slane %v1501, 4
      %v1504 = vrot.slane %v869, 5
      %v1505 = vsel %vm1456, %v1503, %v1504
      %v1506 = vrot.slane %v1437, 5
      %v1507 = vrot.slane %v1506, 4
      %v1508 = vrot.slane %v854, 5
      %v1509 = vsel %vm1456, %v1507, %v1508
      %v1510 = vrot.slane %v1508, 4
      %v1511 = vrot.slane %v870, 5
      %v1512 = vsel %vm1456, %v1510, %v1511
      %s1513 = scalar_lea.vmem %s1, 64
      %v1514 = vld [vmem:[%s1513] sm:$0xf]
      %v1515 = vld [vmem:[%s1513 + $0x4] sm:$0xf]
      %v1516 = vld [vmem:[%s1513 + $0x8] sm:$0xf]
      %v1517 = vld [vmem:[%s1513 + $0xc] sm:$0xf]
      %v1518 = vld [vmem:[%s1513 + $0x10] sm:$0xf]
      %v1519 = vld [vmem:[%s1513 + $0x14] sm:$0xf]
      %v1520 = vld [vmem:[%s1513 + $0x18] sm:$0xf]
      %v1521 = vld [vmem:[%s1513 + $0x1c] sm:$0xf]
      %v1522 = vunpack.c.l.b16 %v1460
      %v1523 = vunpack.c.l.b16 %v1463
      %v1524 = vunpack.c.l.b16 %v1467
      %v1525 = vunpack.c.l.b16 %v1470
      %v1526 = vunpack.c.l.b16 %v1474
      %v1527 = vunpack.c.l.b16 %v1477
      %v1528 = vunpack.c.l.b16 %v1481
      %v1529 = vunpack.c.l.b16 %v1484
      %v1530 = vunpack.c.l.b16 %v1488
      %v1531 = vunpack.c.l.b16 %v1491
      %v1532 = vunpack.c.l.b16 %v1495
      %v1533 = vunpack.c.l.b16 %v1498
      %v1534 = vunpack.c.l.b16 %v1502
      %v1535 = vunpack.c.l.b16 %v1505
      %v1536 = vunpack.c.l.b16 %v1509
      %v1537 = vunpack.c.l.b16 %v1512
      %v1538 = vpack.c.b16 %v1523, %v1522
      %v1539 = vpack.c.b16 %v1525, %v1524
      %v1540 = vpack.c.b16 %v1527, %v1526
      %v1541 = vpack.c.b16 %v1529, %v1528
      %v1542 = vpack.c.b16 %v1531, %v1530
      %v1543 = vpack.c.b16 %v1533, %v1532
      %v1544 = vpack.c.b16 %v1535, %v1534
      %v1545 = vpack.c.b16 %v1537, %v1536
      %v1554 = vunpack.c.l.b16 %v1514
      %v1555 = vunpack.c.l.b16 %v1515
      %v1556 = vunpack.c.l.b16 %v1516
      %v1557 = vunpack.c.l.b16 %v1517
      %v1558 = vunpack.c.l.b16 %v1518
      %v1559 = vunpack.c.l.b16 %v1519
      %v1560 = vunpack.c.l.b16 %v1520
      %v1561 = vunpack.c.l.b16 %v1521
      %v1562 = vpack.c.b16 %v1555, %v1554
      %v1563 = vpack.c.b16 %v1557, %v1556
      %v1564 = vpack.c.b16 %v1559, %v1558
      %v1565 = vpack.c.b16 %v1561, %v1560
      %v1571 = vsel %vm1123, %v1538, 0
      %v1574 = vsel %vm1123, %v1539, 0
      %v1577 = vsel %vm1123, %v1540, 0
      %v1580 = vsel %vm1123, %v1541, 0
      %v1583 = vsel %vm1123, %v1542, 0
      %v1586 = vsel %vm1123, %v1543, 0
      %v1589 = vsel %vm1123, %v1544, 0
      %v1592 = vsel %vm1123, %v1545, 0
      %1594 = vmatprep.subr.bf16.mxu0 0
      %1595 = vmatpush1.bf16.msra.mxu0 0
      %1596 = vmatprep.subr.bf16.mxu0 0
      %1597 = vmatpush1.bf16.msra.mxu0 0
      %1598 = vmatprep.subr.bf16.mxu0 0
      %1599 = vmatpush1.bf16.msra.mxu0 0
      %1600 = vmatprep.subr.bf16.mxu0 0
      %1601 = vmatpush1.bf16.msra.mxu0 0
      %1602 = vmatprep.subr.bf16.mxu0 0
      %1603 = vmatpush1.bf16.msra.mxu0 %v1565
      %1604 = vmatprep.subr.bf16.mxu0 0
      %1605 = vmatpush1.bf16.msra.mxu0 %v1564
      %1606 = vmatprep.subr.bf16.mxu0 0
      %1607 = vmatpush1.bf16.msra.mxu0 %v1563
      %1608 = vmatprep.subr.bf16.mxu0 0
      %1609 = vmatpush1.bf16.msra.mxu0 %v1562
      %1610 = vmatprep.subr.bf16.mxu0 0
      %1611 = vmatpush2.bf16.msra.mxu0 0
      %1612 = vmatprep.subr.bf16.mxu0 0
      %1613 = vmatpush2.bf16.msra.mxu0 0
      %1614 = vmatprep.subr.bf16.mxu0 0
      %1615 = vmatpush2.bf16.msra.mxu0 0
      %1616 = vmatprep.subr.bf16.mxu0 0
      %1617 = vmatpush2.bf16.msra.mxu0 0
      %1618 = vmatprep.subr.bf16.mxu0 0
      %1619 = vmatpush2.bf16.msra.mxu0 0
      %1620 = vmatprep.subr.bf16.mxu0 0
      %1621 = vmatpush2.bf16.msra.mxu0 0
      %1622 = vmatprep.subr.bf16.mxu0 0
      %1623 = vmatpush2.bf16.msra.mxu0 0
      %1624 = vmatprep.subr.bf16.mxu0 0
      %1625 = vmatpush2.bf16.msra.mxu0 0
      %1626 = vmatprep.mubr.bf16.mxu0 0
      %1627 = vmatmul.mubr.bf16.gmra.mxu0 %v1571
      %v1628 = vpop.f32.mrf.mxu0
      %v1629 = vadd.f32 0.0, %v1628
      %v1630 = vpop.f32.mrf.mxu0
      %v1631 = vpop.f32.mrf.mxu0
      %v1632 = vadd.f32 0.0, %v1631
      %v1633 = vpop.f32.mrf.mxu0
      %1634 = vmatprep.mubr.bf16.mxu0 0
      %1635 = vmatmul.mubr.bf16.gmra.mxu0 %v1574
      %v1636 = vpop.f32.mrf.mxu0
      %v1637 = vadd.f32 0.0, %v1636
      %v1638 = vpop.f32.mrf.mxu0
      %v1639 = vpop.f32.mrf.mxu0
      %v1640 = vadd.f32 0.0, %v1639
      %v1641 = vpop.f32.mrf.mxu0
      %1642 = vmatprep.mubr.bf16.mxu0 0
      %1643 = vmatmul.mubr.bf16.gmra.mxu0 %v1577
      %v1644 = vpop.f32.mrf.mxu0
      %v1645 = vadd.f32 0.0, %v1644
      %v1646 = vpop.f32.mrf.mxu0
      %v1647 = vpop.f32.mrf.mxu0
      %v1648 = vadd.f32 0.0, %v1647
      %v1649 = vpop.f32.mrf.mxu0
      %1650 = vmatprep.mubr.bf16.mxu0 0
      %1651 = vmatmul.mubr.bf16.gmra.mxu0 %v1580
      %v1652 = vpop.f32.mrf.mxu0
      %v1653 = vadd.f32 0.0, %v1652
      %v1654 = vpop.f32.mrf.mxu0
      %v1655 = vpop.f32.mrf.mxu0
      %v1656 = vadd.f32 0.0, %v1655
      %v1657 = vpop.f32.mrf.mxu0
      %1658 = vmatprep.mubr.bf16.mxu0 0
      %1659 = vmatmul.mubr.bf16.gmra.mxu0 %v1583
      %v1660 = vpop.f32.mrf.mxu0
      %v1661 = vadd.f32 0.0, %v1660
      %v1662 = vpop.f32.mrf.mxu0
      %v1663 = vpop.f32.mrf.mxu0
      %v1664 = vadd.f32 0.0, %v1663
      %v1665 = vpop.f32.mrf.mxu0
      %1666 = vmatprep.mubr.bf16.mxu0 0
      %1667 = vmatmul.mubr.bf16.gmra.mxu0 %v1586
      %v1668 = vpop.f32.mrf.mxu0
      %v1669 = vadd.f32 0.0, %v1668
      %v1670 = vpop.f32.mrf.mxu0
      %v1671 = vpop.f32.mrf.mxu0
      %v1672 = vadd.f32 0.0, %v1671
      %v1673 = vpop.f32.mrf.mxu0
      %1674 = vmatprep.mubr.bf16.mxu0 0
      %1675 = vmatmul.mubr.bf16.gmra.mxu0 %v1589
      %v1676 = vpop.f32.mrf.mxu0
      %v1677 = vadd.f32 0.0, %v1676
      %v1678 = vpop.f32.mrf.mxu0
      %v1679 = vpop.f32.mrf.mxu0
      %v1680 = vadd.f32 0.0, %v1679
      %v1681 = vpop.f32.mrf.mxu0
      %1682 = vmatprep.mubr.bf16.mxu0 0
      %1683 = vmatmul.mubr.bf16.gmra.mxu0 %v1592
      %v1684 = vpop.f32.mrf.mxu0
      %v1685 = vadd.f32 0.0, %v1684
      %v1686 = vpop.f32.mrf.mxu0
      %v1687 = vpop.f32.mrf.mxu0
      %v1688 = vadd.f32 0.0, %v1687
      %v1689 = vpop.f32.mrf.mxu0
      %1690 = vdwg.mxu0
      %v1691 = vadd.f32 %v1368, %v1629
      %v1692 = vadd.f32 %v1371, %v1632
      %v1693 = vadd.f32 %v1376, %v1637
      %v1694 = vadd.f32 %v1379, %v1640
      %v1695 = vadd.f32 %v1384, %v1645
      %v1696 = vadd.f32 %v1387, %v1648
      %v1697 = vadd.f32 %v1392, %v1653
      %v1698 = vadd.f32 %v1395, %v1656
      %v1699 = vadd.f32 %v1400, %v1661
      %v1700 = vadd.f32 %v1403, %v1664
      %v1701 = vadd.f32 %v1408, %v1669
      %v1702 = vadd.f32 %v1411, %v1672
      %v1703 = vadd.f32 %v1416, %v1677
      %v1704 = vadd.f32 %v1419, %v1680
      %v1705 = vadd.f32 %v1424, %v1685
      %v1706 = vadd.f32 %v1427, %v1688
      %v1707 = vld [vmem:[%s782] sm:$0xf]
      %v1708 = vld [vmem:[%s782 + $0x4] sm:$0xf]
      %v1709 = vld [vmem:[%s782 + $0xc] sm:$0xf]
      %v1710 = vld [vmem:[%s782 + $0x10] sm:$0xf]
      %v1711 = vld [vmem:[%s782 + $0x18] sm:$0xf]
      %v1712 = vld [vmem:[%s782 + $0x1c] sm:$0xf]
      %v1713 = vld [vmem:[%s782 + $0x24] sm:$0xf]
      %v1714 = vld [vmem:[%s782 + $0x28] sm:$0xf]
      %v1715 = vld [vmem:[%s782 + $0x30] sm:$0xf]
      %v1716 = vld [vmem:[%s782 + $0x34] sm:$0xf]
      %v1717 = vld [vmem:[%s782 + $0x3c] sm:$0xf]
      %v1718 = vld [vmem:[%s782 + $0x40] sm:$0xf]
      %v1719 = vld [vmem:[%s782 + $0x48] sm:$0xf]
      %v1720 = vld [vmem:[%s782 + $0x4c] sm:$0xf]
      %v1721 = vld [vmem:[%s782 + $0x54] sm:$0xf]
      %v1722 = vld [vmem:[%s782 + $0x58] sm:$0xf]
      %s1723 = scalar_lea.vmem %s1, 96
      %v1724 = vld [vmem:[%s1723] sm:$0xf]
      %v1725 = vld [vmem:[%s1723 + $0x4] sm:$0xf]
      %v1726 = vld [vmem:[%s1723 + $0x8] sm:$0xf]
      %v1727 = vld [vmem:[%s1723 + $0xc] sm:$0xf]
      %v1728 = vld [vmem:[%s1723 + $0x10] sm:$0xf]
      %v1729 = vld [vmem:[%s1723 + $0x14] sm:$0xf]
      %v1730 = vld [vmem:[%s1723 + $0x18] sm:$0xf]
      %v1731 = vld [vmem:[%s1723 + $0x1c] sm:$0xf]
      %v1748 = vunpack.c.l.b16 %v1707
      %v1749 = vunpack.c.l.b16 %v1708
      %v1750 = vunpack.c.l.b16 %v1709
      %v1751 = vunpack.c.l.b16 %v1710
      %v1752 = vunpack.c.l.b16 %v1711
      %v1753 = vunpack.c.l.b16 %v1712
      %v1754 = vunpack.c.l.b16 %v1713
      %v1755 = vunpack.c.l.b16 %v1714
      %v1756 = vunpack.c.l.b16 %v1715
      %v1757 = vunpack.c.l.b16 %v1716
      %v1758 = vunpack.c.l.b16 %v1717
      %v1759 = vunpack.c.l.b16 %v1718
      %v1760 = vunpack.c.l.b16 %v1719
      %v1761 = vunpack.c.l.b16 %v1720
      %v1762 = vunpack.c.l.b16 %v1721
      %v1763 = vunpack.c.l.b16 %v1722
      %v1764 = vpack.c.b16 %v1749, %v1748
      %v1765 = vpack.c.b16 %v1751, %v1750
      %v1766 = vpack.c.b16 %v1753, %v1752
      %v1767 = vpack.c.b16 %v1755, %v1754
      %v1768 = vpack.c.b16 %v1757, %v1756
      %v1769 = vpack.c.b16 %v1759, %v1758
      %v1770 = vpack.c.b16 %v1761, %v1760
      %v1771 = vpack.c.b16 %v1763, %v1762
      %v1780 = vunpack.c.l.b16 %v1724
      %v1781 = vunpack.c.l.b16 %v1725
      %v1782 = vunpack.c.l.b16 %v1726
      %v1783 = vunpack.c.l.b16 %v1727
      %v1784 = vunpack.c.l.b16 %v1728
      %v1785 = vunpack.c.l.b16 %v1729
      %v1786 = vunpack.c.l.b16 %v1730
      %v1787 = vunpack.c.l.b16 %v1731
      %v1788 = vpack.c.b16 %v1781, %v1780
      %v1789 = vpack.c.b16 %v1783, %v1782
      %v1790 = vpack.c.b16 %v1785, %v1784
      %v1791 = vpack.c.b16 %v1787, %v1786
      %v1797 = vsel %vm1123, %v1764, 0
      %v1800 = vsel %vm1123, %v1765, 0
      %v1803 = vsel %vm1123, %v1766, 0
      %v1806 = vsel %vm1123, %v1767, 0
      %v1809 = vsel %vm1123, %v1768, 0
      %v1812 = vsel %vm1123, %v1769, 0
      %v1815 = vsel %vm1123, %v1770, 0
      %v1818 = vsel %vm1123, %v1771, 0
      %1820 = vmatprep.subr.bf16.mxu0 0
      %1821 = vmatpush1.bf16.msra.mxu0 0
      %1822 = vmatprep.subr.bf16.mxu0 0
      %1823 = vmatpush1.bf16.msra.mxu0 0
      %1824 = vmatprep.subr.bf16.mxu0 0
      %1825 = vmatpush1.bf16.msra.mxu0 0
      %1826 = vmatprep.subr.bf16.mxu0 0
      %1827 = vmatpush1.bf16.msra.mxu0 0
      %1828 = vmatprep.subr.bf16.mxu0 0
      %1829 = vmatpush1.bf16.msra.mxu0 %v1791
      %1830 = vmatprep.subr.bf16.mxu0 0
      %1831 = vmatpush1.bf16.msra.mxu0 %v1790
      %1832 = vmatprep.subr.bf16.mxu0 0
      %1833 = vmatpush1.bf16.msra.mxu0 %v1789
      %1834 = vmatprep.subr.bf16.mxu0 0
      %1835 = vmatpush1.bf16.msra.mxu0 %v1788
      %1836 = vmatprep.subr.bf16.mxu0 0
      %1837 = vmatpush2.bf16.msra.mxu0 0
      %1838 = vmatprep.subr.bf16.mxu0 0
      %1839 = vmatpush2.bf16.msra.mxu0 0
      %1840 = vmatprep.subr.bf16.mxu0 0
      %1841 = vmatpush2.bf16.msra.mxu0 0
      %1842 = vmatprep.subr.bf16.mxu0 0
      %1843 = vmatpush2.bf16.msra.mxu0 0
      %1844 = vmatprep.subr.bf16.mxu0 0
      %1845 = vmatpush2.bf16.msra.mxu0 0
      %1846 = vmatprep.subr.bf16.mxu0 0
      %1847 = vmatpush2.bf16.msra.mxu0 0
      %1848 = vmatprep.subr.bf16.mxu0 0
      %1849 = vmatpush2.bf16.msra.mxu0 0
      %1850 = vmatprep.subr.bf16.mxu0 0
      %1851 = vmatpush2.bf16.msra.mxu0 0
      %1852 = vmatprep.mubr.bf16.mxu0 0
      %1853 = vmatmul.mubr.bf16.gmra.mxu0 %v1797
      %v1854 = vpop.f32.mrf.mxu0
      %v1855 = vadd.f32 0.0, %v1854
      %v1856 = vpop.f32.mrf.mxu0
      %v1857 = vpop.f32.mrf.mxu0
      %v1858 = vadd.f32 0.0, %v1857
      %v1859 = vpop.f32.mrf.mxu0
      %1860 = vmatprep.mubr.bf16.mxu0 0
      %1861 = vmatmul.mubr.bf16.gmra.mxu0 %v1800
      %v1862 = vpop.f32.mrf.mxu0
      %v1863 = vadd.f32 0.0, %v1862
      %v1864 = vpop.f32.mrf.mxu0
      %v1865 = vpop.f32.mrf.mxu0
      %v1866 = vadd.f32 0.0, %v1865
      %v1867 = vpop.f32.mrf.mxu0
      %1868 = vmatprep.mubr.bf16.mxu0 0
      %1869 = vmatmul.mubr.bf16.gmra.mxu0 %v1803
      %v1870 = vpop.f32.mrf.mxu0
      %v1871 = vadd.f32 0.0, %v1870
      %v1872 = vpop.f32.mrf.mxu0
      %v1873 = vpop.f32.mrf.mxu0
      %v1874 = vadd.f32 0.0, %v1873
      %v1875 = vpop.f32.mrf.mxu0
      %1876 = vmatprep.mubr.bf16.mxu0 0
      %1877 = vmatmul.mubr.bf16.gmra.mxu0 %v1806
      %v1878 = vpop.f32.mrf.mxu0
      %v1879 = vadd.f32 0.0, %v1878
      %v1880 = vpop.f32.mrf.mxu0
      %v1881 = vpop.f32.mrf.mxu0
      %v1882 = vadd.f32 0.0, %v1881
      %v1883 = vpop.f32.mrf.mxu0
      %1884 = vmatprep.mubr.bf16.mxu0 0
      %1885 = vmatmul.mubr.bf16.gmra.mxu0 %v1809
      %v1886 = vpop.f32.mrf.mxu0
      %v1887 = vadd.f32 0.0, %v1886
      %v1888 = vpop.f32.mrf.mxu0
      %v1889 = vpop.f32.mrf.mxu0
      %v1890 = vadd.f32 0.0, %v1889
      %v1891 = vpop.f32.mrf.mxu0
      %1892 = vmatprep.mubr.bf16.mxu0 0
      %1893 = vmatmul.mubr.bf16.gmra.mxu0 %v1812
      %v1894 = vpop.f32.mrf.mxu0
      %v1895 = vadd.f32 0.0, %v1894
      %v1896 = vpop.f32.mrf.mxu0
      %v1897 = vpop.f32.mrf.mxu0
      %v1898 = vadd.f32 0.0, %v1897
      %v1899 = vpop.f32.mrf.mxu0
      %1900 = vmatprep.mubr.bf16.mxu0 0
      %1901 = vmatmul.mubr.bf16.gmra.mxu0 %v1815
      %v1902 = vpop.f32.mrf.mxu0
      %v1903 = vadd.f32 0.0, %v1902
      %v1904 = vpop.f32.mrf.mxu0
      %v1905 = vpop.f32.mrf.mxu0
      %v1906 = vadd.f32 0.0, %v1905
      %v1907 = vpop.f32.mrf.mxu0
      %1908 = vmatprep.mubr.bf16.mxu0 0
      %1909 = vmatmul.mubr.bf16.gmra.mxu0 %v1818
      %v1910 = vpop.f32.mrf.mxu0
      %v1911 = vadd.f32 0.0, %v1910
      %v1912 = vpop.f32.mrf.mxu0
      %v1913 = vpop.f32.mrf.mxu0
      %v1914 = vadd.f32 0.0, %v1913
      %v1915 = vpop.f32.mrf.mxu0
      %1916 = vdwg.mxu0
      %v1917 = vadd.f32 %v1691, %v1855
      %v1918 = vadd.f32 %v1692, %v1858
      %v1919 = vadd.f32 %v1693, %v1863
      %v1920 = vadd.f32 %v1694, %v1866
      %v1921 = vadd.f32 %v1695, %v1871
      %v1922 = vadd.f32 %v1696, %v1874
      %v1923 = vadd.f32 %v1697, %v1879
      %v1924 = vadd.f32 %v1698, %v1882
      %v1925 = vadd.f32 %v1699, %v1887
      %v1926 = vadd.f32 %v1700, %v1890
      %v1927 = vadd.f32 %v1701, %v1895
      %v1928 = vadd.f32 %v1702, %v1898
      %v1929 = vadd.f32 %v1703, %v1903
      %v1930 = vadd.f32 %v1704, %v1906
      %v1931 = vadd.f32 %v1705, %v1911
      %v1932 = vadd.f32 %v1706, %v1914
      %v1933 = vld [vmem:[%s782] sm:$0xf]
      %v1934 = vld [vmem:[%s782 + $0x4] sm:$0xf]
      %v1935 = vld [vmem:[%s782 + $0x8] sm:$0x1]
      %v1936 = vld [vmem:[%s782 + $0xc] sm:$0xf]
      %v1937 = vld [vmem:[%s782 + $0x10] sm:$0xf]
      %v1938 = vld [vmem:[%s782 + $0x14] sm:$0x1]
      %v1939 = vld [vmem:[%s782 + $0x18] sm:$0xf]
      %v1940 = vld [vmem:[%s782 + $0x1c] sm:$0xf]
      %v1941 = vld [vmem:[%s782 + $0x20] sm:$0x1]
      %v1942 = vld [vmem:[%s782 + $0x24] sm:$0xf]
      %v1943 = vld [vmem:[%s782 + $0x28] sm:$0xf]
      %v1944 = vld [vmem:[%s782 + $0x2c] sm:$0x1]
      %v1945 = vld [vmem:[%s782 + $0x30] sm:$0xf]
      %v1946 = vld [vmem:[%s782 + $0x34] sm:$0xf]
      %v1947 = vld [vmem:[%s782 + $0x38] sm:$0x1]
      %v1948 = vld [vmem:[%s782 + $0x3c] sm:$0xf]
      %v1949 = vld [vmem:[%s782 + $0x40] sm:$0xf]
      %v1950 = vld [vmem:[%s782 + $0x44] sm:$0x1]
      %v1951 = vld [vmem:[%s782 + $0x48] sm:$0xf]
      %v1952 = vld [vmem:[%s782 + $0x4c] sm:$0xf]
      %v1953 = vld [vmem:[%s782 + $0x50] sm:$0x1]
      %v1954 = vld [vmem:[%s782 + $0x54] sm:$0xf]
      %v1955 = vld [vmem:[%s782 + $0x58] sm:$0xf]
      %v1956 = vld [vmem:[%s782 + $0x5c] sm:$0x1]
      %v1958 = vshrl.u32 %v1933, 16
      %v1960 = vrot.slane %v1958, 4
      %v1961 = vshll.u32 %v1933, 16
      %v1963 = vrot.slane %v1961, 5
      %v1964 = vor.u32 %v1960, %v1963
      %v1965 = vrot.slane %v1964, 4
      %v1967 = vshll.u32 %v1934, 16
      %v1969 = vrot.slane %v1967, 5
      %v1970 = vsel %vm873, %v1965, %v1969
      %v1971 = vshrl.u32 %v1934, 16
      %v1973 = vrot.slane %v1971, 4
      %v1974 = vor.u32 %v1973, %v1969
      %v1975 = vrot.slane %v1974, 4
      %v1977 = vshll.u32 %v1935, 16
      %v1979 = vrot.slane %v1977, 5
      %v1980 = vsel %vm873, %v1975, %v1979
      %v1982 = vshrl.u32 %v1936, 16
      %v1984 = vrot.slane %v1982, 4
      %v1985 = vshll.u32 %v1936, 16
      %v1987 = vrot.slane %v1985, 5
      %v1988 = vor.u32 %v1984, %v1987
      %v1989 = vrot.slane %v1988, 4
      %v1991 = vshll.u32 %v1937, 16
      %v1993 = vrot.slane %v1991, 5
      %v1994 = vsel %vm873, %v1989, %v1993
      %v1995 = vshrl.u32 %v1937, 16
      %v1997 = vrot.slane %v1995, 4
      %v1998 = vor.u32 %v1997, %v1993
      %v1999 = vrot.slane %v1998, 4
      %v2001 = vshll.u32 %v1938, 16
      %v2003 = vrot.slane %v2001, 5
      %v2004 = vsel %vm873, %v1999, %v2003
      %v2006 = vshrl.u32 %v1939, 16
      %v2008 = vrot.slane %v2006, 4
      %v2009 = vshll.u32 %v1939, 16
      %v2011 = vrot.slane %v2009, 5
      %v2012 = vor.u32 %v2008, %v2011
      %v2013 = vrot.slane %v2012, 4
      %v2015 = vshll.u32 %v1940, 16
      %v2017 = vrot.slane %v2015, 5
      %v2018 = vsel %vm873, %v2013, %v2017
      %v2019 = vshrl.u32 %v1940, 16
      %v2021 = vrot.slane %v2019, 4
      %v2022 = vor.u32 %v2021, %v2017
      %v2023 = vrot.slane %v2022, 4
      %v2025 = vshll.u32 %v1941, 16
      %v2027 = vrot.slane %v2025, 5
      %v2028 = vsel %vm873, %v2023, %v2027
      %v2030 = vshrl.u32 %v1942, 16
      %v2032 = vrot.slane %v2030, 4
      %v2033 = vshll.u32 %v1942, 16
      %v2035 = vrot.slane %v2033, 5
      %v2036 = vor.u32 %v2032, %v2035
      %v2037 = vrot.slane %v2036, 4
      %v2039 = vshll.u32 %v1943, 16
      %v2041 = vrot.slane %v2039, 5
      %v2042 = vsel %vm873, %v2037, %v2041
      %v2043 = vshrl.u32 %v1943, 16
      %v2045 = vrot.slane %v2043, 4
      %v2046 = vor.u32 %v2045, %v2041
      %v2047 = vrot.slane %v2046, 4
      %v2049 = vshll.u32 %v1944, 16
      %v2051 = vrot.slane %v2049, 5
      %v2052 = vsel %vm873, %v2047, %v2051
      %v2054 = vshrl.u32 %v1945, 16
      %v2056 = vrot.slane %v2054, 4
      %v2057 = vshll.u32 %v1945, 16
      %v2059 = vrot.slane %v2057, 5
      %v2060 = vor.u32 %v2056, %v2059
      %v2061 = vrot.slane %v2060, 4
      %v2063 = vshll.u32 %v1946, 16
      %v2065 = vrot.slane %v2063, 5
      %v2066 = vsel %vm873, %v2061, %v2065
      %v2067 = vshrl.u32 %v1946, 16
      %v2069 = vrot.slane %v2067, 4
      %v2070 = vor.u32 %v2069, %v2065
      %v2071 = vrot.slane %v2070, 4
      %v2073 = vshll.u32 %v1947, 16
      %v2075 = vrot.slane %v2073, 5
      %v2076 = vsel %vm873, %v2071, %v2075
      %v2078 = vshrl.u32 %v1948, 16
      %v2080 = vrot.slane %v2078, 4
      %v2081 = vshll.u32 %v1948, 16
      %v2083 = vrot.slane %v2081, 5
      %v2084 = vor.u32 %v2080, %v2083
      %v2085 = vrot.slane %v2084, 4
      %v2087 = vshll.u32 %v1949, 16
      %v2089 = vrot.slane %v2087, 5
      %v2090 = vsel %vm873, %v2085, %v2089
      %v2091 = vshrl.u32 %v1949, 16
      %v2093 = vrot.slane %v2091, 4
      %v2094 = vor.u32 %v2093, %v2089
      %v2095 = vrot.slane %v2094, 4
      %v2097 = vshll.u32 %v1950, 16
      %v2099 = vrot.slane %v2097, 5
      %v2100 = vsel %vm873, %v2095, %v2099
      %v2102 = vshrl.u32 %v1951, 16
      %v2104 = vrot.slane %v2102, 4
      %v2105 = vshll.u32 %v1951, 16
      %v2107 = vrot.slane %v2105, 5
      %v2108 = vor.u32 %v2104, %v2107
      %v2109 = vrot.slane %v2108, 4
      %v2111 = vshll.u32 %v1952, 16
      %v2113 = vrot.slane %v2111, 5
      %v2114 = vsel %vm873, %v2109, %v2113
      %v2115 = vshrl.u32 %v1952, 16
      %v2117 = vrot.slane %v2115, 4
      %v2118 = vor.u32 %v2117, %v2113
      %v2119 = vrot.slane %v2118, 4
      %v2121 = vshll.u32 %v1953, 16
      %v2123 = vrot.slane %v2121, 5
      %v2124 = vsel %vm873, %v2119, %v2123
      %v2126 = vshrl.u32 %v1954, 16
      %v2128 = vrot.slane %v2126, 4
      %v2129 = vshll.u32 %v1954, 16
      %v2131 = vrot.slane %v2129, 5
      %v2132 = vor.u32 %v2128, %v2131
      %v2133 = vrot.slane %v2132, 4
      %v2135 = vshll.u32 %v1955, 16
      %v2137 = vrot.slane %v2135, 5
      %v2138 = vsel %vm873, %v2133, %v2137
      %v2139 = vshrl.u32 %v1955, 16
      %v2141 = vrot.slane %v2139, 4
      %v2142 = vor.u32 %v2141, %v2137
      %v2143 = vrot.slane %v2142, 4
      %v2145 = vshll.u32 %v1956, 16
      %v2147 = vrot.slane %v2145, 5
      %v2148 = vsel %vm873, %v2143, %v2147
      %s2149 = scalar_lea.vmem %s1, 128
      %v2150 = vld [vmem:[%s2149] sm:$0xf]
      %v2151 = vld [vmem:[%s2149 + $0x4] sm:$0xf]
      %v2152 = vld [vmem:[%s2149 + $0x8] sm:$0xf]
      %v2153 = vld [vmem:[%s2149 + $0xc] sm:$0xf]
      %v2154 = vld [vmem:[%s2149 + $0x10] sm:$0xf]
      %v2155 = vld [vmem:[%s2149 + $0x14] sm:$0xf]
      %v2156 = vld [vmem:[%s2149 + $0x18] sm:$0xf]
      %v2157 = vld [vmem:[%s2149 + $0x1c] sm:$0xf]
      %v2158 = vunpack.c.l.b16 %v1970
      %v2159 = vunpack.c.l.b16 %v1980
      %v2160 = vunpack.c.l.b16 %v1994
      %v2161 = vunpack.c.l.b16 %v2004
      %v2162 = vunpack.c.l.b16 %v2018
      %v2163 = vunpack.c.l.b16 %v2028
      %v2164 = vunpack.c.l.b16 %v2042
      %v2165 = vunpack.c.l.b16 %v2052
      %v2166 = vunpack.c.l.b16 %v2066
      %v2167 = vunpack.c.l.b16 %v2076
      %v2168 = vunpack.c.l.b16 %v2090
      %v2169 = vunpack.c.l.b16 %v2100
      %v2170 = vunpack.c.l.b16 %v2114
      %v2171 = vunpack.c.l.b16 %v2124
      %v2172 = vunpack.c.l.b16 %v2138
      %v2173 = vunpack.c.l.b16 %v2148
      %v2174 = vpack.c.b16 %v2159, %v2158
      %v2175 = vpack.c.b16 %v2161, %v2160
      %v2176 = vpack.c.b16 %v2163, %v2162
      %v2177 = vpack.c.b16 %v2165, %v2164
      %v2178 = vpack.c.b16 %v2167, %v2166
      %v2179 = vpack.c.b16 %v2169, %v2168
      %v2180 = vpack.c.b16 %v2171, %v2170
      %v2181 = vpack.c.b16 %v2173, %v2172
      %v2190 = vunpack.c.l.b16 %v2150
      %v2191 = vunpack.c.l.b16 %v2151
      %v2192 = vunpack.c.l.b16 %v2152
      %v2193 = vunpack.c.l.b16 %v2153
      %v2194 = vunpack.c.l.b16 %v2154
      %v2195 = vunpack.c.l.b16 %v2155
      %v2196 = vunpack.c.l.b16 %v2156
      %v2197 = vunpack.c.l.b16 %v2157
      %v2198 = vpack.c.b16 %v2191, %v2190
      %v2199 = vpack.c.b16 %v2193, %v2192
      %v2200 = vpack.c.b16 %v2195, %v2194
      %v2201 = vpack.c.b16 %v2197, %v2196
      %v2207 = vsel %vm1123, %v2174, 0
      %v2210 = vsel %vm1123, %v2175, 0
      %v2213 = vsel %vm1123, %v2176, 0
      %v2216 = vsel %vm1123, %v2177, 0
      %v2219 = vsel %vm1123, %v2178, 0
      %v2222 = vsel %vm1123, %v2179, 0
      %v2225 = vsel %vm1123, %v2180, 0
      %v2228 = vsel %vm1123, %v2181, 0
      %2230 = vmatprep.subr.bf16.mxu0 0
      %2231 = vmatpush1.bf16.msra.mxu0 0
      %2232 = vmatprep.subr.bf16.mxu0 0
      %2233 = vmatpush1.bf16.msra.mxu0 0
      %2234 = vmatprep.subr.bf16.mxu0 0
      %2235 = vmatpush1.bf16.msra.mxu0 0
      %2236 = vmatprep.subr.bf16.mxu0 0
      %2237 = vmatpush1.bf16.msra.mxu0 0
      %2238 = vmatprep.subr.bf16.mxu0 0
      %2239 = vmatpush1.bf16.msra.mxu0 %v2201
      %2240 = vmatprep.subr.bf16.mxu0 0
      %2241 = vmatpush1.bf16.msra.mxu0 %v2200
      %2242 = vmatprep.subr.bf16.mxu0 0
      %2243 = vmatpush1.bf16.msra.mxu0 %v2199
      %2244 = vmatprep.subr.bf16.mxu0 0
      %2245 = vmatpush1.bf16.msra.mxu0 %v2198
      %2246 = vmatprep.subr.bf16.mxu0 0
      %2247 = vmatpush2.bf16.msra.mxu0 0
      %2248 = vmatprep.subr.bf16.mxu0 0
      %2249 = vmatpush2.bf16.msra.mxu0 0
      %2250 = vmatprep.subr.bf16.mxu0 0
      %2251 = vmatpush2.bf16.msra.mxu0 0
      %2252 = vmatprep.subr.bf16.mxu0 0
      %2253 = vmatpush2.bf16.msra.mxu0 0
      %2254 = vmatprep.subr.bf16.mxu0 0
      %2255 = vmatpush2.bf16.msra.mxu0 0
      %2256 = vmatprep.subr.bf16.mxu0 0
      %2257 = vmatpush2.bf16.msra.mxu0 0
      %2258 = vmatprep.subr.bf16.mxu0 0
      %2259 = vmatpush2.bf16.msra.mxu0 0
      %2260 = vmatprep.subr.bf16.mxu0 0
      %2261 = vmatpush2.bf16.msra.mxu0 0
      %2262 = vmatprep.mubr.bf16.mxu0 0
      %2263 = vmatmul.mubr.bf16.gmra.mxu0 %v2207
      %v2264 = vpop.f32.mrf.mxu0
      %v2265 = vadd.f32 0.0, %v2264
      %v2266 = vpop.f32.mrf.mxu0
      %v2267 = vpop.f32.mrf.mxu0
      %v2268 = vadd.f32 0.0, %v2267
      %v2269 = vpop.f32.mrf.mxu0
      %2270 = vmatprep.mubr.bf16.mxu0 0
      %2271 = vmatmul.mubr.bf16.gmra.mxu0 %v2210
      %v2272 = vpop.f32.mrf.mxu0
      %v2273 = vadd.f32 0.0, %v2272
      %v2274 = vpop.f32.mrf.mxu0
      %v2275 = vpop.f32.mrf.mxu0
      %v2276 = vadd.f32 0.0, %v2275
      %v2277 = vpop.f32.mrf.mxu0
      %2278 = vmatprep.mubr.bf16.mxu0 0
      %2279 = vmatmul.mubr.bf16.gmra.mxu0 %v2213
      %v2280 = vpop.f32.mrf.mxu0
      %v2281 = vadd.f32 0.0, %v2280
      %v2282 = vpop.f32.mrf.mxu0
      %v2283 = vpop.f32.mrf.mxu0
      %v2284 = vadd.f32 0.0, %v2283
      %v2285 = vpop.f32.mrf.mxu0
      %2286 = vmatprep.mubr.bf16.mxu0 0
      %2287 = vmatmul.mubr.bf16.gmra.mxu0 %v2216
      %v2288 = vpop.f32.mrf.mxu0
      %v2289 = vadd.f32 0.0, %v2288
      %v2290 = vpop.f32.mrf.mxu0
      %v2291 = vpop.f32.mrf.mxu0
      %v2292 = vadd.f32 0.0, %v2291
      %v2293 = vpop.f32.mrf.mxu0
      %2294 = vmatprep.mubr.bf16.mxu0 0
      %2295 = vmatmul.mubr.bf16.gmra.mxu0 %v2219
      %v2296 = vpop.f32.mrf.mxu0
      %v2297 = vadd.f32 0.0, %v2296
      %v2298 = vpop.f32.mrf.mxu0
      %v2299 = vpop.f32.mrf.mxu0
      %v2300 = vadd.f32 0.0, %v2299
      %v2301 = vpop.f32.mrf.mxu0
      %2302 = vmatprep.mubr.bf16.mxu0 0
      %2303 = vmatmul.mubr.bf16.gmra.mxu0 %v2222
      %v2304 = vpop.f32.mrf.mxu0
      %v2305 = vadd.f32 0.0, %v2304
      %v2306 = vpop.f32.mrf.mxu0
      %v2307 = vpop.f32.mrf.mxu0
      %v2308 = vadd.f32 0.0, %v2307
      %v2309 = vpop.f32.mrf.mxu0
      %2310 = vmatprep.mubr.bf16.mxu0 0
      %2311 = vmatmul.mubr.bf16.gmra.mxu0 %v2225
      %v2312 = vpop.f32.mrf.mxu0
      %v2313 = vadd.f32 0.0, %v2312
      %v2314 = vpop.f32.mrf.mxu0
      %v2315 = vpop.f32.mrf.mxu0
      %v2316 = vadd.f32 0.0, %v2315
      %v2317 = vpop.f32.mrf.mxu0
      %2318 = vmatprep.mubr.bf16.mxu0 0
      %2319 = vmatmul.mubr.bf16.gmra.mxu0 %v2228
      %v2320 = vpop.f32.mrf.mxu0
      %v2321 = vadd.f32 0.0, %v2320
      %v2322 = vpop.f32.mrf.mxu0
      %v2323 = vpop.f32.mrf.mxu0
      %v2324 = vadd.f32 0.0, %v2323
      %v2325 = vpop.f32.mrf.mxu0
      %2326 = vdwg.mxu0
      %v2327 = vadd.f32 %v1917, %v2265
      %v2328 = vadd.f32 %v1918, %v2268
      %v2329 = vadd.f32 %v1919, %v2273
      %v2330 = vadd.f32 %v1920, %v2276
      %v2331 = vadd.f32 %v1921, %v2281
      %v2332 = vadd.f32 %v1922, %v2284
      %v2333 = vadd.f32 %v1923, %v2289
      %v2334 = vadd.f32 %v1924, %v2292
      %v2335 = vadd.f32 %v1925, %v2297
      %v2336 = vadd.f32 %v1926, %v2300
      %v2337 = vadd.f32 %v1927, %v2305
      %v2338 = vadd.f32 %v1928, %v2308
      %v2339 = vadd.f32 %v1929, %v2313
      %v2340 = vadd.f32 %v1930, %v2316
      %v2341 = vadd.f32 %v1931, %v2321
      %v2342 = vadd.f32 %v1932, %v2324
      %v2343 = vld [vmem:[%s782] sm:$0xe]
      %v2344 = vld [vmem:[%s782 + $0xc] sm:$0xe]
      %v2345 = vld [vmem:[%s782 + $0x18] sm:$0xe]
      %v2346 = vld [vmem:[%s782 + $0x24] sm:$0xe]
      %v2347 = vld [vmem:[%s782 + $0x30] sm:$0xe]
      %v2348 = vld [vmem:[%s782 + $0x3c] sm:$0xe]
      %v2349 = vld [vmem:[%s782 + $0x48] sm:$0xe]
      %v2350 = vld [vmem:[%s782 + $0x54] sm:$0xe]
      %v2375 = vrot.slane %v2343, 5
      %v2376 = vrot.slane %v2375, 4
      %v2377 = vrot.slane %v1934, 5
      %v2378 = vsel %vm1456, %v2376, %v2377
      %v2379 = vrot.slane %v2377, 4
      %v2380 = vrot.slane %v1935, 5
      %v2381 = vsel %vm1456, %v2379, %v2380
      %v2382 = vrot.slane %v2344, 5
      %v2383 = vrot.slane %v2382, 4
      %v2384 = vrot.slane %v1937, 5
      %v2385 = vsel %vm1456, %v2383, %v2384
      %v2386 = vrot.slane %v2384, 4
      %v2387 = vrot.slane %v1938, 5
      %v2388 = vsel %vm1456, %v2386, %v2387
      %v2389 = vrot.slane %v2345, 5
      %v2390 = vrot.slane %v2389, 4
      %v2391 = vrot.slane %v1940, 5
      %v2392 = vsel %vm1456, %v2390, %v2391
      %v2393 = vrot.slane %v2391, 4
      %v2394 = vrot.slane %v1941, 5
      %v2395 = vsel %vm1456, %v2393, %v2394
      %v2396 = vrot.slane %v2346, 5
      %v2397 = vrot.slane %v2396, 4
      %v2398 = vrot.slane %v1943, 5
      %v2399 = vsel %vm1456, %v2397, %v2398
      %v2400 = vrot.slane %v2398, 4
      %v2401 = vrot.slane %v1944, 5
      %v2402 = vsel %vm1456, %v2400, %v2401
      %v2403 = vrot.slane %v2347, 5
      %v2404 = vrot.slane %v2403, 4
      %v2405 = vrot.slane %v1946, 5
      %v2406 = vsel %vm1456, %v2404, %v2405
      %v2407 = vrot.slane %v2405, 4
      %v2408 = vrot.slane %v1947, 5
      %v2409 = vsel %vm1456, %v2407, %v2408
      %v2410 = vrot.slane %v2348, 5
      %v2411 = vrot.slane %v2410, 4
      %v2412 = vrot.slane %v1949, 5
      %v2413 = vsel %vm1456, %v2411, %v2412
      %v2414 = vrot.slane %v2412, 4
      %v2415 = vrot.slane %v1950, 5
      %v2416 = vsel %vm1456, %v2414, %v2415
      %v2417 = vrot.slane %v2349, 5
      %v2418 = vrot.slane %v2417, 4
      %v2419 = vrot.slane %v1952, 5
      %v2420 = vsel %vm1456, %v2418, %v2419
      %v2421 = vrot.slane %v2419, 4
      %v2422 = vrot.slane %v1953, 5
      %v2423 = vsel %vm1456, %v2421, %v2422
      %v2424 = vrot.slane %v2350, 5
      %v2425 = vrot.slane %v2424, 4
      %v2426 = vrot.slane %v1955, 5
      %v2427 = vsel %vm1456, %v2425, %v2426
      %v2428 = vrot.slane %v2426, 4
      %v2429 = vrot.slane %v1956, 5
      %v2430 = vsel %vm1456, %v2428, %v2429
      %s2431 = scalar_lea.vmem %s1, 160
      %v2432 = vld [vmem:[%s2431] sm:$0xf]
      %v2433 = vld [vmem:[%s2431 + $0x4] sm:$0xf]
      %v2434 = vld [vmem:[%s2431 + $0x8] sm:$0xf]
      %v2435 = vld [vmem:[%s2431 + $0xc] sm:$0xf]
      %v2436 = vld [vmem:[%s2431 + $0x10] sm:$0xf]
      %v2437 = vld [vmem:[%s2431 + $0x14] sm:$0xf]
      %v2438 = vld [vmem:[%s2431 + $0x18] sm:$0xf]
      %v2439 = vld [vmem:[%s2431 + $0x1c] sm:$0xf]
      %v2440 = vunpack.c.l.b16 %v2378
      %v2441 = vunpack.c.l.b16 %v2381
      %v2442 = vunpack.c.l.b16 %v2385
      %v2443 = vunpack.c.l.b16 %v2388
      %v2444 = vunpack.c.l.b16 %v2392
      %v2445 = vunpack.c.l.b16 %v2395
      %v2446 = vunpack.c.l.b16 %v2399
      %v2447 = vunpack.c.l.b16 %v2402
      %v2448 = vunpack.c.l.b16 %v2406
      %v2449 = vunpack.c.l.b16 %v2409
      %v2450 = vunpack.c.l.b16 %v2413
      %v2451 = vunpack.c.l.b16 %v2416
      %v2452 = vunpack.c.l.b16 %v2420
      %v2453 = vunpack.c.l.b16 %v2423
      %v2454 = vunpack.c.l.b16 %v2427
      %v2455 = vunpack.c.l.b16 %v2430
      %v2456 = vpack.c.b16 %v2441, %v2440
      %v2457 = vpack.c.b16 %v2443, %v2442
      %v2458 = vpack.c.b16 %v2445, %v2444
      %v2459 = vpack.c.b16 %v2447, %v2446
      %v2460 = vpack.c.b16 %v2449, %v2448
      %v2461 = vpack.c.b16 %v2451, %v2450
      %v2462 = vpack.c.b16 %v2453, %v2452
      %v2463 = vpack.c.b16 %v2455, %v2454
      %v2472 = vunpack.c.l.b16 %v2432
      %v2473 = vunpack.c.l.b16 %v2433
      %v2474 = vunpack.c.l.b16 %v2434
      %v2475 = vunpack.c.l.b16 %v2435
      %v2476 = vunpack.c.l.b16 %v2436
      %v2477 = vunpack.c.l.b16 %v2437
      %v2478 = vunpack.c.l.b16 %v2438
      %v2479 = vunpack.c.l.b16 %v2439
      %v2480 = vpack.c.b16 %v2473, %v2472
      %v2481 = vpack.c.b16 %v2475, %v2474
      %v2482 = vpack.c.b16 %v2477, %v2476
      %v2483 = vpack.c.b16 %v2479, %v2478
      %v2489 = vsel %vm1123, %v2456, 0
      %v2492 = vsel %vm1123, %v2457, 0
      %v2495 = vsel %vm1123, %v2458, 0
      %v2498 = vsel %vm1123, %v2459, 0
      %v2501 = vsel %vm1123, %v2460, 0
      %v2504 = vsel %vm1123, %v2461, 0
      %v2507 = vsel %vm1123, %v2462, 0
      %v2510 = vsel %vm1123, %v2463, 0
      %2512 = vmatprep.subr.bf16.mxu0 0
      %2513 = vmatpush1.bf16.msra.mxu0 0
      %2514 = vmatprep.subr.bf16.mxu0 0
      %2515 = vmatpush1.bf16.msra.mxu0 0
      %2516 = vmatprep.subr.bf16.mxu0 0
      %2517 = vmatpush1.bf16.msra.mxu0 0
      %2518 = vmatprep.subr.bf16.mxu0 0
      %2519 = vmatpush1.bf16.msra.mxu0 0
      %2520 = vmatprep.subr.bf16.mxu0 0
      %2521 = vmatpush1.bf16.msra.mxu0 %v2483
      %2522 = vmatprep.subr.bf16.mxu0 0
      %2523 = vmatpush1.bf16.msra.mxu0 %v2482
      %2524 = vmatprep.subr.bf16.mxu0 0
      %2525 = vmatpush1.bf16.msra.mxu0 %v2481
      %2526 = vmatprep.subr.bf16.mxu0 0
      %2527 = vmatpush1.bf16.msra.mxu0 %v2480
      %2528 = vmatprep.subr.bf16.mxu0 0
      %2529 = vmatpush2.bf16.msra.mxu0 0
      %2530 = vmatprep.subr.bf16.mxu0 0
      %2531 = vmatpush2.bf16.msra.mxu0 0
      %2532 = vmatprep.subr.bf16.mxu0 0
      %2533 = vmatpush2.bf16.msra.mxu0 0
      %2534 = vmatprep.subr.bf16.mxu0 0
      %2535 = vmatpush2.bf16.msra.mxu0 0
      %2536 = vmatprep.subr.bf16.mxu0 0
      %2537 = vmatpush2.bf16.msra.mxu0 0
      %2538 = vmatprep.subr.bf16.mxu0 0
      %2539 = vmatpush2.bf16.msra.mxu0 0
      %2540 = vmatprep.subr.bf16.mxu0 0
      %2541 = vmatpush2.bf16.msra.mxu0 0
      %2542 = vmatprep.subr.bf16.mxu0 0
      %2543 = vmatpush2.bf16.msra.mxu0 0
      %2544 = vmatprep.mubr.bf16.mxu0 0
      %2545 = vmatmul.mubr.bf16.gmra.mxu0 %v2489
      %v2546 = vpop.f32.mrf.mxu0
      %v2547 = vadd.f32 0.0, %v2546
      %v2548 = vpop.f32.mrf.mxu0
      %v2549 = vpop.f32.mrf.mxu0
      %v2550 = vadd.f32 0.0, %v2549
      %v2551 = vpop.f32.mrf.mxu0
      %2552 = vmatprep.mubr.bf16.mxu0 0
      %2553 = vmatmul.mubr.bf16.gmra.mxu0 %v2492
      %v2554 = vpop.f32.mrf.mxu0
      %v2555 = vadd.f32 0.0, %v2554
      %v2556 = vpop.f32.mrf.mxu0
      %v2557 = vpop.f32.mrf.mxu0
      %v2558 = vadd.f32 0.0, %v2557
      %v2559 = vpop.f32.mrf.mxu0
      %2560 = vmatprep.mubr.bf16.mxu0 0
      %2561 = vmatmul.mubr.bf16.gmra.mxu0 %v2495
      %v2562 = vpop.f32.mrf.mxu0
      %v2563 = vadd.f32 0.0, %v2562
      %v2564 = vpop.f32.mrf.mxu0
      %v2565 = vpop.f32.mrf.mxu0
      %v2566 = vadd.f32 0.0, %v2565
      %v2567 = vpop.f32.mrf.mxu0
      %2568 = vmatprep.mubr.bf16.mxu0 0
      %2569 = vmatmul.mubr.bf16.gmra.mxu0 %v2498
      %v2570 = vpop.f32.mrf.mxu0
      %v2571 = vadd.f32 0.0, %v2570
      %v2572 = vpop.f32.mrf.mxu0
      %v2573 = vpop.f32.mrf.mxu0
      %v2574 = vadd.f32 0.0, %v2573
      %v2575 = vpop.f32.mrf.mxu0
      %2576 = vmatprep.mubr.bf16.mxu0 0
      %2577 = vmatmul.mubr.bf16.gmra.mxu0 %v2501
      %v2578 = vpop.f32.mrf.mxu0
      %v2579 = vadd.f32 0.0, %v2578
      %v2580 = vpop.f32.mrf.mxu0
      %v2581 = vpop.f32.mrf.mxu0
      %v2582 = vadd.f32 0.0, %v2581
      %v2583 = vpop.f32.mrf.mxu0
      %2584 = vmatprep.mubr.bf16.mxu0 0
      %2585 = vmatmul.mubr.bf16.gmra.mxu0 %v2504
      %v2586 = vpop.f32.mrf.mxu0
      %v2587 = vadd.f32 0.0, %v2586
      %v2588 = vpop.f32.mrf.mxu0
      %v2589 = vpop.f32.mrf.mxu0
      %v2590 = vadd.f32 0.0, %v2589
      %v2591 = vpop.f32.mrf.mxu0
      %2592 = vmatprep.mubr.bf16.mxu0 0
      %2593 = vmatmul.mubr.bf16.gmra.mxu0 %v2507
      %v2594 = vpop.f32.mrf.mxu0
      %v2595 = vadd.f32 0.0, %v2594
      %v2596 = vpop.f32.mrf.mxu0
      %v2597 = vpop.f32.mrf.mxu0
      %v2598 = vadd.f32 0.0, %v2597
      %v2599 = vpop.f32.mrf.mxu0
      %2600 = vmatprep.mubr.bf16.mxu0 0
      %2601 = vmatmul.mubr.bf16.gmra.mxu0 %v2510
      %v2602 = vpop.f32.mrf.mxu0
      %v2603 = vadd.f32 0.0, %v2602
      %v2604 = vpop.f32.mrf.mxu0
      %v2605 = vpop.f32.mrf.mxu0
      %v2606 = vadd.f32 0.0, %v2605
      %v2607 = vpop.f32.mrf.mxu0
      %2608 = vdwg.mxu0
      %v2609 = vadd.f32 %v2327, %v2547
      %v2610 = vadd.f32 %v2328, %v2550
      %v2611 = vadd.f32 %v2329, %v2555
      %v2612 = vadd.f32 %v2330, %v2558
      %v2613 = vadd.f32 %v2331, %v2563
      %v2614 = vadd.f32 %v2332, %v2566
      %v2615 = vadd.f32 %v2333, %v2571
      %v2616 = vadd.f32 %v2334, %v2574
      %v2617 = vadd.f32 %v2335, %v2579
      %v2618 = vadd.f32 %v2336, %v2582
      %v2619 = vadd.f32 %v2337, %v2587
      %v2620 = vadd.f32 %v2338, %v2590
      %v2621 = vadd.f32 %v2339, %v2595
      %v2622 = vadd.f32 %v2340, %v2598
      %v2623 = vadd.f32 %v2341, %v2603
      %v2624 = vadd.f32 %v2342, %v2606
      %s2625 = scalar_lea.vmem [#allocation2], 24
      %v2626 = vld [vmem:[%s2625] sm:$0xf]
      %v2627 = vld [vmem:[%s2625 + $0x4] sm:$0xf]
      %v2628 = vld [vmem:[%s2625 + $0xc] sm:$0xf]
      %v2629 = vld [vmem:[%s2625 + $0x10] sm:$0xf]
      %v2630 = vld [vmem:[%s2625 + $0x18] sm:$0xf]
      %v2631 = vld [vmem:[%s2625 + $0x1c] sm:$0xf]
      %v2632 = vld [vmem:[%s2625 + $0x24] sm:$0xf]
      %v2633 = vld [vmem:[%s2625 + $0x28] sm:$0xf]
      %v2634 = vld [vmem:[%s2625 + $0x30] sm:$0xf]
      %v2635 = vld [vmem:[%s2625 + $0x34] sm:$0xf]
      %v2636 = vld [vmem:[%s2625 + $0x3c] sm:$0xf]
      %v2637 = vld [vmem:[%s2625 + $0x40] sm:$0xf]
      %v2638 = vld [vmem:[%s2625 + $0x48] sm:$0xf]
      %v2639 = vld [vmem:[%s2625 + $0x4c] sm:$0xf]
      %v2640 = vld [vmem:[%s2625 + $0x54] sm:$0xf]
      %v2641 = vld [vmem:[%s2625 + $0x58] sm:$0xf]
      %s2642 = scalar_lea.vmem %s1, 192
      %v2643 = vld [vmem:[%s2642] sm:$0xf]
      %v2644 = vld [vmem:[%s2642 + $0x4] sm:$0xf]
      %v2645 = vld [vmem:[%s2642 + $0x8] sm:$0xf]
      %v2646 = vld [vmem:[%s2642 + $0xc] sm:$0xf]
      %v2647 = vld [vmem:[%s2642 + $0x10] sm:$0xf]
      %v2648 = vld [vmem:[%s2642 + $0x14] sm:$0xf]
      %v2649 = vld [vmem:[%s2642 + $0x18] sm:$0xf]
      %v2650 = vld [vmem:[%s2642 + $0x1c] sm:$0xf]
      %v2667 = vunpack.c.l.b16 %v2626
      %v2668 = vunpack.c.l.b16 %v2627
      %v2669 = vunpack.c.l.b16 %v2628
      %v2670 = vunpack.c.l.b16 %v2629
      %v2671 = vunpack.c.l.b16 %v2630
      %v2672 = vunpack.c.l.b16 %v2631
      %v2673 = vunpack.c.l.b16 %v2632
      %v2674 = vunpack.c.l.b16 %v2633
      %v2675 = vunpack.c.l.b16 %v2634
      %v2676 = vunpack.c.l.b16 %v2635
      %v2677 = vunpack.c.l.b16 %v2636
      %v2678 = vunpack.c.l.b16 %v2637
      %v2679 = vunpack.c.l.b16 %v2638
      %v2680 = vunpack.c.l.b16 %v2639
      %v2681 = vunpack.c.l.b16 %v2640
      %v2682 = vunpack.c.l.b16 %v2641
      %v2683 = vpack.c.b16 %v2668, %v2667
      %v2684 = vpack.c.b16 %v2670, %v2669
      %v2685 = vpack.c.b16 %v2672, %v2671
      %v2686 = vpack.c.b16 %v2674, %v2673
      %v2687 = vpack.c.b16 %v2676, %v2675
      %v2688 = vpack.c.b16 %v2678, %v2677
      %v2689 = vpack.c.b16 %v2680, %v2679
      %v2690 = vpack.c.b16 %v2682, %v2681
      %v2699 = vunpack.c.l.b16 %v2643
      %v2700 = vunpack.c.l.b16 %v2644
      %v2701 = vunpack.c.l.b16 %v2645
      %v2702 = vunpack.c.l.b16 %v2646
      %v2703 = vunpack.c.l.b16 %v2647
      %v2704 = vunpack.c.l.b16 %v2648
      %v2705 = vunpack.c.l.b16 %v2649
      %v2706 = vunpack.c.l.b16 %v2650
      %v2707 = vpack.c.b16 %v2700, %v2699
      %v2708 = vpack.c.b16 %v2702, %v2701
      %v2709 = vpack.c.b16 %v2704, %v2703
      %v2710 = vpack.c.b16 %v2706, %v2705
      %v2716 = vsel %vm1123, %v2683, 0
      %v2719 = vsel %vm1123, %v2684, 0
      %v2722 = vsel %vm1123, %v2685, 0
      %v2725 = vsel %vm1123, %v2686, 0
      %v2728 = vsel %vm1123, %v2687, 0
      %v2731 = vsel %vm1123, %v2688, 0
      %v2734 = vsel %vm1123, %v2689, 0
      %v2737 = vsel %vm1123, %v2690, 0
      %2739 = vmatprep.subr.bf16.mxu0 0
      %2740 = vmatpush1.bf16.msra.mxu0 0
      %2741 = vmatprep.subr.bf16.mxu0 0
      %2742 = vmatpush1.bf16.msra.mxu0 0
      %2743 = vmatprep.subr.bf16.mxu0 0
      %2744 = vmatpush1.bf16.msra.mxu0 0
      %2745 = vmatprep.subr.bf16.mxu0 0
      %2746 = vmatpush1.bf16.msra.mxu0 0
      %2747 = vmatprep.subr.bf16.mxu0 0
      %2748 = vmatpush1.bf16.msra.mxu0 %v2710
      %2749 = vmatprep.subr.bf16.mxu0 0
      %2750 = vmatpush1.bf16.msra.mxu0 %v2709
      %2751 = vmatprep.subr.bf16.mxu0 0
      %2752 = vmatpush1.bf16.msra.mxu0 %v2708
      %2753 = vmatprep.subr.bf16.mxu0 0
      %2754 = vmatpush1.bf16.msra.mxu0 %v2707
      %2755 = vmatprep.subr.bf16.mxu0 0
      %2756 = vmatpush2.bf16.msra.mxu0 0
      %2757 = vmatprep.subr.bf16.mxu0 0
      %2758 = vmatpush2.bf16.msra.mxu0 0
      %2759 = vmatprep.subr.bf16.mxu0 0
      %2760 = vmatpush2.bf16.msra.mxu0 0
      %2761 = vmatprep.subr.bf16.mxu0 0
      %2762 = vmatpush2.bf16.msra.mxu0 0
      %2763 = vmatprep.subr.bf16.mxu0 0
      %2764 = vmatpush2.bf16.msra.mxu0 0
      %2765 = vmatprep.subr.bf16.mxu0 0
      %2766 = vmatpush2.bf16.msra.mxu0 0
      %2767 = vmatprep.subr.bf16.mxu0 0
      %2768 = vmatpush2.bf16.msra.mxu0 0
      %2769 = vmatprep.subr.bf16.mxu0 0
      %2770 = vmatpush2.bf16.msra.mxu0 0
      %2771 = vmatprep.mubr.bf16.mxu0 0
      %2772 = vmatmul.mubr.bf16.gmra.mxu0 %v2716
      %v2773 = vpop.f32.mrf.mxu0
      %v2774 = vadd.f32 0.0, %v2773
      %v2775 = vpop.f32.mrf.mxu0
      %v2776 = vpop.f32.mrf.mxu0
      %v2777 = vadd.f32 0.0, %v2776
      %v2778 = vpop.f32.mrf.mxu0
      %2779 = vmatprep.mubr.bf16.mxu0 0
      %2780 = vmatmul.mubr.bf16.gmra.mxu0 %v2719
      %v2781 = vpop.f32.mrf.mxu0
      %v2782 = vadd.f32 0.0, %v2781
      %v2783 = vpop.f32.mrf.mxu0
      %v2784 = vpop.f32.mrf.mxu0
      %v2785 = vadd.f32 0.0, %v2784
      %v2786 = vpop.f32.mrf.mxu0
      %2787 = vmatprep.mubr.bf16.mxu0 0
      %2788 = vmatmul.mubr.bf16.gmra.mxu0 %v2722
      %v2789 = vpop.f32.mrf.mxu0
      %v2790 = vadd.f32 0.0, %v2789
      %v2791 = vpop.f32.mrf.mxu0
      %v2792 = vpop.f32.mrf.mxu0
      %v2793 = vadd.f32 0.0, %v2792
      %v2794 = vpop.f32.mrf.mxu0
      %2795 = vmatprep.mubr.bf16.mxu0 0
      %2796 = vmatmul.mubr.bf16.gmra.mxu0 %v2725
      %v2797 = vpop.f32.mrf.mxu0
      %v2798 = vadd.f32 0.0, %v2797
      %v2799 = vpop.f32.mrf.mxu0
      %v2800 = vpop.f32.mrf.mxu0
      %v2801 = vadd.f32 0.0, %v2800
      %v2802 = vpop.f32.mrf.mxu0
      %2803 = vmatprep.mubr.bf16.mxu0 0
      %2804 = vmatmul.mubr.bf16.gmra.mxu0 %v2728
      %v2805 = vpop.f32.mrf.mxu0
      %v2806 = vadd.f32 0.0, %v2805
      %v2807 = vpop.f32.mrf.mxu0
      %v2808 = vpop.f32.mrf.mxu0
      %v2809 = vadd.f32 0.0, %v2808
      %v2810 = vpop.f32.mrf.mxu0
      %2811 = vmatprep.mubr.bf16.mxu0 0
      %2812 = vmatmul.mubr.bf16.gmra.mxu0 %v2731
      %v2813 = vpop.f32.mrf.mxu0
      %v2814 = vadd.f32 0.0, %v2813
      %v2815 = vpop.f32.mrf.mxu0
      %v2816 = vpop.f32.mrf.mxu0
      %v2817 = vadd.f32 0.0, %v2816
      %v2818 = vpop.f32.mrf.mxu0
      %2819 = vmatprep.mubr.bf16.mxu0 0
      %2820 = vmatmul.mubr.bf16.gmra.mxu0 %v2734
      %v2821 = vpop.f32.mrf.mxu0
      %v2822 = vadd.f32 0.0, %v2821
      %v2823 = vpop.f32.mrf.mxu0
      %v2824 = vpop.f32.mrf.mxu0
      %v2825 = vadd.f32 0.0, %v2824
      %v2826 = vpop.f32.mrf.mxu0
      %2827 = vmatprep.mubr.bf16.mxu0 0
      %2828 = vmatmul.mubr.bf16.gmra.mxu0 %v2737
      %v2829 = vpop.f32.mrf.mxu0
      %v2830 = vadd.f32 0.0, %v2829
      %v2831 = vpop.f32.mrf.mxu0
      %v2832 = vpop.f32.mrf.mxu0
      %v2833 = vadd.f32 0.0, %v2832
      %v2834 = vpop.f32.mrf.mxu0
      %2835 = vdwg.mxu0
      %v2836 = vadd.f32 %v2609, %v2774
      %v2837 = vadd.f32 %v2610, %v2777
      %v2838 = vadd.f32 %v2611, %v2782
      %v2839 = vadd.f32 %v2612, %v2785
      %v2840 = vadd.f32 %v2613, %v2790
      %v2841 = vadd.f32 %v2614, %v2793
      %v2842 = vadd.f32 %v2615, %v2798
      %v2843 = vadd.f32 %v2616, %v2801
      %v2844 = vadd.f32 %v2617, %v2806
      %v2845 = vadd.f32 %v2618, %v2809
      %v2846 = vadd.f32 %v2619, %v2814
      %v2847 = vadd.f32 %v2620, %v2817
      %v2848 = vadd.f32 %v2621, %v2822
      %v2849 = vadd.f32 %v2622, %v2825
      %v2850 = vadd.f32 %v2623, %v2830
      %v2851 = vadd.f32 %v2624, %v2833
      %v2852 = vld [vmem:[%s2625] sm:$0xf]
      %v2853 = vld [vmem:[%s2625 + $0x4] sm:$0xf]
      %v2854 = vld [vmem:[%s2625 + $0x8] sm:$0x1]
      %v2855 = vld [vmem:[%s2625 + $0xc] sm:$0xf]
      %v2856 = vld [vmem:[%s2625 + $0x10] sm:$0xf]
      %v2857 = vld [vmem:[%s2625 + $0x14] sm:$0x1]
      %v2858 = vld [vmem:[%s2625 + $0x18] sm:$0xf]
      %v2859 = vld [vmem:[%s2625 + $0x1c] sm:$0xf]
      %v2860 = vld [vmem:[%s2625 + $0x20] sm:$0x1]
      %v2861 = vld [vmem:[%s2625 + $0x24] sm:$0xf]
      %v2862 = vld [vmem:[%s2625 + $0x28] sm:$0xf]
      %v2863 = vld [vmem:[%s2625 + $0x2c] sm:$0x1]
      %v2864 = vld [vmem:[%s2625 + $0x30] sm:$0xf]
      %v2865 = vld [vmem:[%s2625 + $0x34] sm:$0xf]
      %v2866 = vld [vmem:[%s2625 + $0x38] sm:$0x1]
      %v2867 = vld [vmem:[%s2625 + $0x3c] sm:$0xf]
      %v2868 = vld [vmem:[%s2625 + $0x40] sm:$0xf]
      %v2869 = vld [vmem:[%s2625 + $0x44] sm:$0x1]
      %v2870 = vld [vmem:[%s2625 + $0x48] sm:$0xf]
      %v2871 = vld [vmem:[%s2625 + $0x4c] sm:$0xf]
      %v2872 = vld [vmem:[%s2625 + $0x50] sm:$0x1]
      %v2873 = vld [vmem:[%s2625 + $0x54] sm:$0xf]
      %v2874 = vld [vmem:[%s2625 + $0x58] sm:$0xf]
      %v2875 = vld [vmem:[%s2625 + $0x5c] sm:$0x1]
      %v2877 = vshrl.u32 %v2852, 16
      %v2879 = vrot.slane %v2877, 4
      %v2880 = vshll.u32 %v2852, 16
      %v2882 = vrot.slane %v2880, 5
      %v2883 = vor.u32 %v2879, %v2882
      %v2884 = vrot.slane %v2883, 4
      %v2886 = vshll.u32 %v2853, 16
      %v2888 = vrot.slane %v2886, 5
      %v2889 = vsel %vm873, %v2884, %v2888
      %v2890 = vshrl.u32 %v2853, 16
      %v2892 = vrot.slane %v2890, 4
      %v2893 = vor.u32 %v2892, %v2888
      %v2894 = vrot.slane %v2893, 4
      %v2896 = vshll.u32 %v2854, 16
      %v2898 = vrot.slane %v2896, 5
      %v2899 = vsel %vm873, %v2894, %v2898
      %v2901 = vshrl.u32 %v2855, 16
      %v2903 = vrot.slane %v2901, 4
      %v2904 = vshll.u32 %v2855, 16
      %v2906 = vrot.slane %v2904, 5
      %v2907 = vor.u32 %v2903, %v2906
      %v2908 = vrot.slane %v2907, 4
      %v2910 = vshll.u32 %v2856, 16
      %v2912 = vrot.slane %v2910, 5
      %v2913 = vsel %vm873, %v2908, %v2912
      %v2914 = vshrl.u32 %v2856, 16
      %v2916 = vrot.slane %v2914, 4
      %v2917 = vor.u32 %v2916, %v2912
      %v2918 = vrot.slane %v2917, 4
      %v2920 = vshll.u32 %v2857, 16
      %v2922 = vrot.slane %v2920, 5
      %v2923 = vsel %vm873, %v2918, %v2922
      %v2925 = vshrl.u32 %v2858, 16
      %v2927 = vrot.slane %v2925, 4
      %v2928 = vshll.u32 %v2858, 16
      %v2930 = vrot.slane %v2928, 5
      %v2931 = vor.u32 %v2927, %v2930
      %v2932 = vrot.slane %v2931, 4
      %v2934 = vshll.u32 %v2859, 16
      %v2936 = vrot.slane %v2934, 5
      %v2937 = vsel %vm873, %v2932, %v2936
      %v2938 = vshrl.u32 %v2859, 16
      %v2940 = vrot.slane %v2938, 4
      %v2941 = vor.u32 %v2940, %v2936
      %v2942 = vrot.slane %v2941, 4
      %v2944 = vshll.u32 %v2860, 16
      %v2946 = vrot.slane %v2944, 5
      %v2947 = vsel %vm873, %v2942, %v2946
      %v2949 = vshrl.u32 %v2861, 16
      %v2951 = vrot.slane %v2949, 4
      %v2952 = vshll.u32 %v2861, 16
      %v2954 = vrot.slane %v2952, 5
      %v2955 = vor.u32 %v2951, %v2954
      %v2956 = vrot.slane %v2955, 4
      %v2958 = vshll.u32 %v2862, 16
      %v2960 = vrot.slane %v2958, 5
      %v2961 = vsel %vm873, %v2956, %v2960
      %v2962 = vshrl.u32 %v2862, 16
      %v2964 = vrot.slane %v2962, 4
      %v2965 = vor.u32 %v2964, %v2960
      %v2966 = vrot.slane %v2965, 4
      %v2968 = vshll.u32 %v2863, 16
      %v2970 = vrot.slane %v2968, 5
      %v2971 = vsel %vm873, %v2966, %v2970
      %v2973 = vshrl.u32 %v2864, 16
      %v2975 = vrot.slane %v2973, 4
      %v2976 = vshll.u32 %v2864, 16
      %v2978 = vrot.slane %v2976, 5
      %v2979 = vor.u32 %v2975, %v2978
      %v2980 = vrot.slane %v2979, 4
      %v2982 = vshll.u32 %v2865, 16
      %v2984 = vrot.slane %v2982, 5
      %v2985 = vsel %vm873, %v2980, %v2984
      %v2986 = vshrl.u32 %v2865, 16
      %v2988 = vrot.slane %v2986, 4
      %v2989 = vor.u32 %v2988, %v2984
      %v2990 = vrot.slane %v2989, 4
      %v2992 = vshll.u32 %v2866, 16
      %v2994 = vrot.slane %v2992, 5
      %v2995 = vsel %vm873, %v2990, %v2994
      %v2997 = vshrl.u32 %v2867, 16
      %v2999 = vrot.slane %v2997, 4
      %v3000 = vshll.u32 %v2867, 16
      %v3002 = vrot.slane %v3000, 5
      %v3003 = vor.u32 %v2999, %v3002
      %v3004 = vrot.slane %v3003, 4
      %v3006 = vshll.u32 %v2868, 16
      %v3008 = vrot.slane %v3006, 5
      %v3009 = vsel %vm873, %v3004, %v3008
      %v3010 = vshrl.u32 %v2868, 16
      %v3012 = vrot.slane %v3010, 4
      %v3013 = vor.u32 %v3012, %v3008
      %v3014 = vrot.slane %v3013, 4
      %v3016 = vshll.u32 %v2869, 16
      %v3018 = vrot.slane %v3016, 5
      %v3019 = vsel %vm873, %v3014, %v3018
      %v3021 = vshrl.u32 %v2870, 16
      %v3023 = vrot.slane %v3021, 4
      %v3024 = vshll.u32 %v2870, 16
      %v3026 = vrot.slane %v3024, 5
      %v3027 = vor.u32 %v3023, %v3026
      %v3028 = vrot.slane %v3027, 4
      %v3030 = vshll.u32 %v2871, 16
      %v3032 = vrot.slane %v3030, 5
      %v3033 = vsel %vm873, %v3028, %v3032
      %v3034 = vshrl.u32 %v2871, 16
      %v3036 = vrot.slane %v3034, 4
      %v3037 = vor.u32 %v3036, %v3032
      %v3038 = vrot.slane %v3037, 4
      %v3040 = vshll.u32 %v2872, 16
      %v3042 = vrot.slane %v3040, 5
      %v3043 = vsel %vm873, %v3038, %v3042
      %v3045 = vshrl.u32 %v2873, 16
      %v3047 = vrot.slane %v3045, 4
      %v3048 = vshll.u32 %v2873, 16
      %v3050 = vrot.slane %v3048, 5
      %v3051 = vor.u32 %v3047, %v3050
      %v3052 = vrot.slane %v3051, 4
      %v3054 = vshll.u32 %v2874, 16
      %v3056 = vrot.slane %v3054, 5
      %v3057 = vsel %vm873, %v3052, %v3056
      %v3058 = vshrl.u32 %v2874, 16
      %v3060 = vrot.slane %v3058, 4
      %v3061 = vor.u32 %v3060, %v3056
      %v3062 = vrot.slane %v3061, 4
      %v3064 = vshll.u32 %v2875, 16
      %v3066 = vrot.slane %v3064, 5
      %v3067 = vsel %vm873, %v3062, %v3066
      %s3068 = scalar_lea.vmem %s1, 224
      %v3069 = vld [vmem:[%s3068] sm:$0xf]
      %v3070 = vld [vmem:[%s3068 + $0x4] sm:$0xf]
      %v3071 = vld [vmem:[%s3068 + $0x8] sm:$0xf]
      %v3072 = vld [vmem:[%s3068 + $0xc] sm:$0xf]
      %v3073 = vld [vmem:[%s3068 + $0x10] sm:$0xf]
      %v3074 = vld [vmem:[%s3068 + $0x14] sm:$0xf]
      %v3075 = vld [vmem:[%s3068 + $0x18] sm:$0xf]
      %v3076 = vld [vmem:[%s3068 + $0x1c] sm:$0xf]
      %v3077 = vunpack.c.l.b16 %v2889
      %v3078 = vunpack.c.l.b16 %v2899
      %v3079 = vunpack.c.l.b16 %v2913
      %v3080 = vunpack.c.l.b16 %v2923
      %v3081 = vunpack.c.l.b16 %v2937
      %v3082 = vunpack.c.l.b16 %v2947
      %v3083 = vunpack.c.l.b16 %v2961
      %v3084 = vunpack.c.l.b16 %v2971
      %v3085 = vunpack.c.l.b16 %v2985
      %v3086 = vunpack.c.l.b16 %v2995
      %v3087 = vunpack.c.l.b16 %v3009
      %v3088 = vunpack.c.l.b16 %v3019
      %v3089 = vunpack.c.l.b16 %v3033
      %v3090 = vunpack.c.l.b16 %v3043
      %v3091 = vunpack.c.l.b16 %v3057
      %v3092 = vunpack.c.l.b16 %v3067
      %v3093 = vpack.c.b16 %v3078, %v3077
      %v3094 = vpack.c.b16 %v3080, %v3079
      %v3095 = vpack.c.b16 %v3082, %v3081
      %v3096 = vpack.c.b16 %v3084, %v3083
      %v3097 = vpack.c.b16 %v3086, %v3085
      %v3098 = vpack.c.b16 %v3088, %v3087
      %v3099 = vpack.c.b16 %v3090, %v3089
      %v3100 = vpack.c.b16 %v3092, %v3091
      %v3109 = vunpack.c.l.b16 %v3069
      %v3110 = vunpack.c.l.b16 %v3070
      %v3111 = vunpack.c.l.b16 %v3071
      %v3112 = vunpack.c.l.b16 %v3072
      %v3113 = vunpack.c.l.b16 %v3073
      %v3114 = vunpack.c.l.b16 %v3074
      %v3115 = vunpack.c.l.b16 %v3075
      %v3116 = vunpack.c.l.b16 %v3076
      %v3117 = vpack.c.b16 %v3110, %v3109
      %v3118 = vpack.c.b16 %v3112, %v3111
      %v3119 = vpack.c.b16 %v3114, %v3113
      %v3120 = vpack.c.b16 %v3116, %v3115
      %v3126 = vsel %vm1123, %v3093, 0
      %v3129 = vsel %vm1123, %v3094, 0
      %v3132 = vsel %vm1123, %v3095, 0
      %v3135 = vsel %vm1123, %v3096, 0
      %v3138 = vsel %vm1123, %v3097, 0
      %v3141 = vsel %vm1123, %v3098, 0
      %v3144 = vsel %vm1123, %v3099, 0
      %v3147 = vsel %vm1123, %v3100, 0
      %3149 = vmatprep.subr.bf16.mxu0 0
      %3150 = vmatpush1.bf16.msra.mxu0 0
      %3151 = vmatprep.subr.bf16.mxu0 0
      %3152 = vmatpush1.bf16.msra.mxu0 0
      %3153 = vmatprep.subr.bf16.mxu0 0
      %3154 = vmatpush1.bf16.msra.mxu0 0
      %3155 = vmatprep.subr.bf16.mxu0 0
      %3156 = vmatpush1.bf16.msra.mxu0 0
      %3157 = vmatprep.subr.bf16.mxu0 0
      %3158 = vmatpush1.bf16.msra.mxu0 %v3120
      %3159 = vmatprep.subr.bf16.mxu0 0
      %3160 = vmatpush1.bf16.msra.mxu0 %v3119
      %3161 = vmatprep.subr.bf16.mxu0 0
      %3162 = vmatpush1.bf16.msra.mxu0 %v3118
      %3163 = vmatprep.subr.bf16.mxu0 0
      %3164 = vmatpush1.bf16.msra.mxu0 %v3117
      %3165 = vmatprep.subr.bf16.mxu0 0
      %3166 = vmatpush2.bf16.msra.mxu0 0
      %3167 = vmatprep.subr.bf16.mxu0 0
      %3168 = vmatpush2.bf16.msra.mxu0 0
      %3169 = vmatprep.subr.bf16.mxu0 0
      %3170 = vmatpush2.bf16.msra.mxu0 0
      %3171 = vmatprep.subr.bf16.mxu0 0
      %3172 = vmatpush2.bf16.msra.mxu0 0
      %3173 = vmatprep.subr.bf16.mxu0 0
      %3174 = vmatpush2.bf16.msra.mxu0 0
      %3175 = vmatprep.subr.bf16.mxu0 0
      %3176 = vmatpush2.bf16.msra.mxu0 0
      %3177 = vmatprep.subr.bf16.mxu0 0
      %3178 = vmatpush2.bf16.msra.mxu0 0
      %3179 = vmatprep.subr.bf16.mxu0 0
      %3180 = vmatpush2.bf16.msra.mxu0 0
      %3181 = vmatprep.mubr.bf16.mxu0 0
      %3182 = vmatmul.mubr.bf16.gmra.mxu0 %v3126
      %v3183 = vpop.f32.mrf.mxu0
      %v3184 = vadd.f32 0.0, %v3183
      %v3185 = vpop.f32.mrf.mxu0
      %v3186 = vpop.f32.mrf.mxu0
      %v3187 = vadd.f32 0.0, %v3186
      %v3188 = vpop.f32.mrf.mxu0
      %3189 = vmatprep.mubr.bf16.mxu0 0
      %3190 = vmatmul.mubr.bf16.gmra.mxu0 %v3129
      %v3191 = vpop.f32.mrf.mxu0
      %v3192 = vadd.f32 0.0, %v3191
      %v3193 = vpop.f32.mrf.mxu0
      %v3194 = vpop.f32.mrf.mxu0
      %v3195 = vadd.f32 0.0, %v3194
      %v3196 = vpop.f32.mrf.mxu0
      %3197 = vmatprep.mubr.bf16.mxu0 0
      %3198 = vmatmul.mubr.bf16.gmra.mxu0 %v3132
      %v3199 = vpop.f32.mrf.mxu0
      %v3200 = vadd.f32 0.0, %v3199
      %v3201 = vpop.f32.mrf.mxu0
      %v3202 = vpop.f32.mrf.mxu0
      %v3203 = vadd.f32 0.0, %v3202
      %v3204 = vpop.f32.mrf.mxu0
      %3205 = vmatprep.mubr.bf16.mxu0 0
      %3206 = vmatmul.mubr.bf16.gmra.mxu0 %v3135
      %v3207 = vpop.f32.mrf.mxu0
      %v3208 = vadd.f32 0.0, %v3207
      %v3209 = vpop.f32.mrf.mxu0
      %v3210 = vpop.f32.mrf.mxu0
      %v3211 = vadd.f32 0.0, %v3210
      %v3212 = vpop.f32.mrf.mxu0
      %3213 = vmatprep.mubr.bf16.mxu0 0
      %3214 = vmatmul.mubr.bf16.gmra.mxu0 %v3138
      %v3215 = vpop.f32.mrf.mxu0
      %v3216 = vadd.f32 0.0, %v3215
      %v3217 = vpop.f32.mrf.mxu0
      %v3218 = vpop.f32.mrf.mxu0
      %v3219 = vadd.f32 0.0, %v3218
      %v3220 = vpop.f32.mrf.mxu0
      %3221 = vmatprep.mubr.bf16.mxu0 0
      %3222 = vmatmul.mubr.bf16.gmra.mxu0 %v3141
      %v3223 = vpop.f32.mrf.mxu0
      %v3224 = vadd.f32 0.0, %v3223
      %v3225 = vpop.f32.mrf.mxu0
      %v3226 = vpop.f32.mrf.mxu0
      %v3227 = vadd.f32 0.0, %v3226
      %v3228 = vpop.f32.mrf.mxu0
      %3229 = vmatprep.mubr.bf16.mxu0 0
      %3230 = vmatmul.mubr.bf16.gmra.mxu0 %v3144
      %v3231 = vpop.f32.mrf.mxu0
      %v3232 = vadd.f32 0.0, %v3231
      %v3233 = vpop.f32.mrf.mxu0
      %v3234 = vpop.f32.mrf.mxu0
      %v3235 = vadd.f32 0.0, %v3234
      %v3236 = vpop.f32.mrf.mxu0
      %3237 = vmatprep.mubr.bf16.mxu0 0
      %3238 = vmatmul.mubr.bf16.gmra.mxu0 %v3147
      %v3239 = vpop.f32.mrf.mxu0
      %v3240 = vadd.f32 0.0, %v3239
      %v3241 = vpop.f32.mrf.mxu0
      %v3242 = vpop.f32.mrf.mxu0
      %v3243 = vadd.f32 0.0, %v3242
      %v3244 = vpop.f32.mrf.mxu0
      %3245 = vdwg.mxu0
      %v3246 = vadd.f32 %v2836, %v3184
      %v3247 = vadd.f32 %v2837, %v3187
      %v3248 = vadd.f32 %v2838, %v3192
      %v3249 = vadd.f32 %v2839, %v3195
      %v3250 = vadd.f32 %v2840, %v3200
      %v3251 = vadd.f32 %v2841, %v3203
      %v3252 = vadd.f32 %v2842, %v3208
      %v3253 = vadd.f32 %v2843, %v3211
      %v3254 = vadd.f32 %v2844, %v3216
      %v3255 = vadd.f32 %v2845, %v3219
      %v3256 = vadd.f32 %v2846, %v3224
      %v3257 = vadd.f32 %v2847, %v3227
      %v3258 = vadd.f32 %v2848, %v3232
      %v3259 = vadd.f32 %v2849, %v3235
      %v3260 = vadd.f32 %v2850, %v3240
      %v3261 = vadd.f32 %v2851, %v3243
      %v3262 = vld [vmem:[%s2625] sm:$0xe]
      %v3263 = vld [vmem:[%s2625 + $0xc] sm:$0xe]
      %v3264 = vld [vmem:[%s2625 + $0x18] sm:$0xe]
      %v3265 = vld [vmem:[%s2625 + $0x24] sm:$0xe]
      %v3266 = vld [vmem:[%s2625 + $0x30] sm:$0xe]
      %v3267 = vld [vmem:[%s2625 + $0x3c] sm:$0xe]
      %v3268 = vld [vmem:[%s2625 + $0x48] sm:$0xe]
      %v3269 = vld [vmem:[%s2625 + $0x54] sm:$0xe]
      %v3294 = vrot.slane %v3262, 5
      %v3295 = vrot.slane %v3294, 4
      %v3296 = vrot.slane %v2853, 5
      %v3297 = vsel %vm1456, %v3295, %v3296
      %v3298 = vrot.slane %v3296, 4
      %v3299 = vrot.slane %v2854, 5
      %v3300 = vsel %vm1456, %v3298, %v3299
      %v3301 = vrot.slane %v3263, 5
      %v3302 = vrot.slane %v3301, 4
      %v3303 = vrot.slane %v2856, 5
      %v3304 = vsel %vm1456, %v3302, %v3303
      %v3305 = vrot.slane %v3303, 4
      %v3306 = vrot.slane %v2857, 5
      %v3307 = vsel %vm1456, %v3305, %v3306
      %v3308 = vrot.slane %v3264, 5
      %v3309 = vrot.slane %v3308, 4
      %v3310 = vrot.slane %v2859, 5
      %v3311 = vsel %vm1456, %v3309, %v3310
      %v3312 = vrot.slane %v3310, 4
      %v3313 = vrot.slane %v2860, 5
      %v3314 = vsel %vm1456, %v3312, %v3313
      %v3315 = vrot.slane %v3265, 5
      %v3316 = vrot.slane %v3315, 4
      %v3317 = vrot.slane %v2862, 5
      %v3318 = vsel %vm1456, %v3316, %v3317
      %v3319 = vrot.slane %v3317, 4
      %v3320 = vrot.slane %v2863, 5
      %v3321 = vsel %vm1456, %v3319, %v3320
      %v3322 = vrot.slane %v3266, 5
      %v3323 = vrot.slane %v3322, 4
      %v3324 = vrot.slane %v2865, 5
      %v3325 = vsel %vm1456, %v3323, %v3324
      %v3326 = vrot.slane %v3324, 4
      %v3327 = vrot.slane %v2866, 5
      %v3328 = vsel %vm1456, %v3326, %v3327
      %v3329 = vrot.slane %v3267, 5
      %v3330 = vrot.slane %v3329, 4
      %v3331 = vrot.slane %v2868, 5
      %v3332 = vsel %vm1456, %v3330, %v3331
      %v3333 = vrot.slane %v3331, 4
      %v3334 = vrot.slane %v2869, 5
      %v3335 = vsel %vm1456, %v3333, %v3334
      %v3336 = vrot.slane %v3268, 5
      %v3337 = vrot.slane %v3336, 4
      %v3338 = vrot.slane %v2871, 5
      %v3339 = vsel %vm1456, %v3337, %v3338
      %v3340 = vrot.slane %v3338, 4
      %v3341 = vrot.slane %v2872, 5
      %v3342 = vsel %vm1456, %v3340, %v3341
      %v3343 = vrot.slane %v3269, 5
      %v3344 = vrot.slane %v3343, 4
      %v3345 = vrot.slane %v2874, 5
      %v3346 = vsel %vm1456, %v3344, %v3345
      %v3347 = vrot.slane %v3345, 4
      %v3348 = vrot.slane %v2875, 5
      %v3349 = vsel %vm1456, %v3347, %v3348
      %s3350 = scalar_lea.vmem %s1, 256
      %v3351 = vld [vmem:[%s3350] sm:$0xf]
      %v3352 = vld [vmem:[%s3350 + $0x4] sm:$0xf]
      %v3353 = vld [vmem:[%s3350 + $0x8] sm:$0xf]
      %v3354 = vld [vmem:[%s3350 + $0xc] sm:$0xf]
      %v3355 = vld [vmem:[%s3350 + $0x10] sm:$0xf]
      %v3356 = vld [vmem:[%s3350 + $0x14] sm:$0xf]
      %v3357 = vld [vmem:[%s3350 + $0x18] sm:$0xf]
      %v3358 = vld [vmem:[%s3350 + $0x1c] sm:$0xf]
      %v3359 = vunpack.c.l.b16 %v3297
      %v3360 = vunpack.c.l.b16 %v3300
      %v3361 = vunpack.c.l.b16 %v3304
      %v3362 = vunpack.c.l.b16 %v3307
      %v3363 = vunpack.c.l.b16 %v3311
      %v3364 = vunpack.c.l.b16 %v3314
      %v3365 = vunpack.c.l.b16 %v3318
      %v3366 = vunpack.c.l.b16 %v3321
      %v3367 = vunpack.c.l.b16 %v3325
      %v3368 = vunpack.c.l.b16 %v3328
      %v3369 = vunpack.c.l.b16 %v3332
      %v3370 = vunpack.c.l.b16 %v3335
      %v3371 = vunpack.c.l.b16 %v3339
      %v3372 = vunpack.c.l.b16 %v3342
      %v3373 = vunpack.c.l.b16 %v3346
      %v3374 = vunpack.c.l.b16 %v3349
      %v3375 = vpack.c.b16 %v3360, %v3359
      %v3376 = vpack.c.b16 %v3362, %v3361
      %v3377 = vpack.c.b16 %v3364, %v3363
      %v3378 = vpack.c.b16 %v3366, %v3365
      %v3379 = vpack.c.b16 %v3368, %v3367
      %v3380 = vpack.c.b16 %v3370, %v3369
      %v3381 = vpack.c.b16 %v3372, %v3371
      %v3382 = vpack.c.b16 %v3374, %v3373
      %v3391 = vunpack.c.l.b16 %v3351
      %v3392 = vunpack.c.l.b16 %v3352
      %v3393 = vunpack.c.l.b16 %v3353
      %v3394 = vunpack.c.l.b16 %v3354
      %v3395 = vunpack.c.l.b16 %v3355
      %v3396 = vunpack.c.l.b16 %v3356
      %v3397 = vunpack.c.l.b16 %v3357
      %v3398 = vunpack.c.l.b16 %v3358
      %v3399 = vpack.c.b16 %v3392, %v3391
      %v3400 = vpack.c.b16 %v3394, %v3393
      %v3401 = vpack.c.b16 %v3396, %v3395
      %v3402 = vpack.c.b16 %v3398, %v3397
      %v3408 = vsel %vm1123, %v3375, 0
      %v3411 = vsel %vm1123, %v3376, 0
      %v3414 = vsel %vm1123, %v3377, 0
      %v3417 = vsel %vm1123, %v3378, 0
      %v3420 = vsel %vm1123, %v3379, 0
      %v3423 = vsel %vm1123, %v3380, 0
      %v3426 = vsel %vm1123, %v3381, 0
      %v3429 = vsel %vm1123, %v3382, 0
      %3431 = vmatprep.subr.bf16.mxu0 0
      %3432 = vmatpush1.bf16.msra.mxu0 0
      %3433 = vmatprep.subr.bf16.mxu0 0
      %3434 = vmatpush1.bf16.msra.mxu0 0
      %3435 = vmatprep.subr.bf16.mxu0 0
      %3436 = vmatpush1.bf16.msra.mxu0 0
      %3437 = vmatprep.subr.bf16.mxu0 0
      %3438 = vmatpush1.bf16.msra.mxu0 0
      %3439 = vmatprep.subr.bf16.mxu0 0
      %3440 = vmatpush1.bf16.msra.mxu0 %v3402
      %3441 = vmatprep.subr.bf16.mxu0 0
      %3442 = vmatpush1.bf16.msra.mxu0 %v3401
      %3443 = vmatprep.subr.bf16.mxu0 0
      %3444 = vmatpush1.bf16.msra.mxu0 %v3400
      %3445 = vmatprep.subr.bf16.mxu0 0
      %3446 = vmatpush1.bf16.msra.mxu0 %v3399
      %3447 = vmatprep.subr.bf16.mxu0 0
      %3448 = vmatpush2.bf16.msra.mxu0 0
      %3449 = vmatprep.subr.bf16.mxu0 0
      %3450 = vmatpush2.bf16.msra.mxu0 0
      %3451 = vmatprep.subr.bf16.mxu0 0
      %3452 = vmatpush2.bf16.msra.mxu0 0
      %3453 = vmatprep.subr.bf16.mxu0 0
      %3454 = vmatpush2.bf16.msra.mxu0 0
      %3455 = vmatprep.subr.bf16.mxu0 0
      %3456 = vmatpush2.bf16.msra.mxu0 0
      %3457 = vmatprep.subr.bf16.mxu0 0
      %3458 = vmatpush2.bf16.msra.mxu0 0
      %3459 = vmatprep.subr.bf16.mxu0 0
      %3460 = vmatpush2.bf16.msra.mxu0 0
      %3461 = vmatprep.subr.bf16.mxu0 0
      %3462 = vmatpush2.bf16.msra.mxu0 0
      %3463 = vmatprep.mubr.bf16.mxu0 0
      %3464 = vmatmul.mubr.bf16.gmra.mxu0 %v3408
      %v3465 = vpop.f32.mrf.mxu0
      %v3466 = vadd.f32 0.0, %v3465
      %v3467 = vpop.f32.mrf.mxu0
      %v3468 = vpop.f32.mrf.mxu0
      %v3469 = vadd.f32 0.0, %v3468
      %v3470 = vpop.f32.mrf.mxu0
      %3471 = vmatprep.mubr.bf16.mxu0 0
      %3472 = vmatmul.mubr.bf16.gmra.mxu0 %v3411
      %v3473 = vpop.f32.mrf.mxu0
      %v3474 = vadd.f32 0.0, %v3473
      %v3475 = vpop.f32.mrf.mxu0
      %v3476 = vpop.f32.mrf.mxu0
      %v3477 = vadd.f32 0.0, %v3476
      %v3478 = vpop.f32.mrf.mxu0
      %3479 = vmatprep.mubr.bf16.mxu0 0
      %3480 = vmatmul.mubr.bf16.gmra.mxu0 %v3414
      %v3481 = vpop.f32.mrf.mxu0
      %v3482 = vadd.f32 0.0, %v3481
      %v3483 = vpop.f32.mrf.mxu0
      %v3484 = vpop.f32.mrf.mxu0
      %v3485 = vadd.f32 0.0, %v3484
      %v3486 = vpop.f32.mrf.mxu0
      %3487 = vmatprep.mubr.bf16.mxu0 0
      %3488 = vmatmul.mubr.bf16.gmra.mxu0 %v3417
      %v3489 = vpop.f32.mrf.mxu0
      %v3490 = vadd.f32 0.0, %v3489
      %v3491 = vpop.f32.mrf.mxu0
      %v3492 = vpop.f32.mrf.mxu0
      %v3493 = vadd.f32 0.0, %v3492
      %v3494 = vpop.f32.mrf.mxu0
      %3495 = vmatprep.mubr.bf16.mxu0 0
      %3496 = vmatmul.mubr.bf16.gmra.mxu0 %v3420
      %v3497 = vpop.f32.mrf.mxu0
      %v3498 = vadd.f32 0.0, %v3497
      %v3499 = vpop.f32.mrf.mxu0
      %v3500 = vpop.f32.mrf.mxu0
      %v3501 = vadd.f32 0.0, %v3500
      %v3502 = vpop.f32.mrf.mxu0
      %3503 = vmatprep.mubr.bf16.mxu0 0
      %3504 = vmatmul.mubr.bf16.gmra.mxu0 %v3423
      %v3505 = vpop.f32.mrf.mxu0
      %v3506 = vadd.f32 0.0, %v3505
      %v3507 = vpop.f32.mrf.mxu0
      %v3508 = vpop.f32.mrf.mxu0
      %v3509 = vadd.f32 0.0, %v3508
      %v3510 = vpop.f32.mrf.mxu0
      %3511 = vmatprep.mubr.bf16.mxu0 0
      %3512 = vmatmul.mubr.bf16.gmra.mxu0 %v3426
      %v3513 = vpop.f32.mrf.mxu0
      %v3514 = vadd.f32 0.0, %v3513
      %v3515 = vpop.f32.mrf.mxu0
      %v3516 = vpop.f32.mrf.mxu0
      %v3517 = vadd.f32 0.0, %v3516
      %v3518 = vpop.f32.mrf.mxu0
      %3519 = vmatprep.mubr.bf16.mxu0 0
      %3520 = vmatmul.mubr.bf16.gmra.mxu0 %v3429
      %v3521 = vpop.f32.mrf.mxu0
      %v3522 = vadd.f32 0.0, %v3521
      %v3523 = vpop.f32.mrf.mxu0
      %v3524 = vpop.f32.mrf.mxu0
      %v3525 = vadd.f32 0.0, %v3524
      %v3526 = vpop.f32.mrf.mxu0
      %3527 = vdwg.mxu0
      %v3528 = vadd.f32 %v3246, %v3466
      %v3529 = vadd.f32 %v3247, %v3469
      %v3530 = vadd.f32 %v3248, %v3474
      %v3531 = vadd.f32 %v3249, %v3477
      %v3532 = vadd.f32 %v3250, %v3482
      %v3533 = vadd.f32 %v3251, %v3485
      %v3534 = vadd.f32 %v3252, %v3490
      %v3535 = vadd.f32 %v3253, %v3493
      %v3536 = vadd.f32 %v3254, %v3498
      %v3537 = vadd.f32 %v3255, %v3501
      %v3538 = vadd.f32 %v3256, %v3506
      %v3539 = vadd.f32 %v3257, %v3509
      %v3540 = vadd.f32 %v3258, %v3514
      %v3541 = vadd.f32 %v3259, %v3517
      %v3542 = vadd.f32 %v3260, %v3522
      %v3543 = vadd.f32 %v3261, %v3525
      %v3544 = vadd.f32 %v3528, %v3529
      %v3545 = vadd.f32 %v3544, %v3530
      %v3546 = vadd.f32 %v3545, %v3531
      %v3547 = vadd.f32 %v3546, %v3532
      %v3548 = vadd.f32 %v3547, %v3533
      %v3549 = vadd.f32 %v3548, %v3534
      %v3550 = vadd.f32 %v3549, %v3535
      %v3551 = vadd.f32 %v3550, %v3536
      %v3552 = vadd.f32 %v3551, %v3537
      %v3553 = vadd.f32 %v3552, %v3538
      %v3554 = vadd.f32 %v3553, %v3539
      %v3555 = vadd.f32 %v3554, %v3540
      %v3556 = vadd.f32 %v3555, %v3541
      %v3557 = vadd.f32 %v3556, %v3542
      %v3558 = vadd.f32 %v3557, %v3543
      %v3559 = vrot.slane %v3558, 4
      %v3560 = vadd.f32 %v3558, %v3559
      %v3561 = vrot.slane %v3560, 2
      %v3562 = vadd.f32 %v3560, %v3561
      %v3563 = vrot.slane %v3562, 1
      %v3564 = vadd.f32 %v3562, %v3563
      %v3565 = vmul.f32 %v3564, 0.0078125
      %v3566 = vsub.f32 %v3528, %v3565
      %v3567 = vsub.f32 %v3529, %v3565
      %v3568 = vsub.f32 %v3530, %v3565
      %v3569 = vsub.f32 %v3531, %v3565
      %v3570 = vsub.f32 %v3532, %v3565
      %v3571 = vsub.f32 %v3533, %v3565
      %v3572 = vsub.f32 %v3534, %v3565
      %v3573 = vsub.f32 %v3535, %v3565
      %v3574 = vsub.f32 %v3536, %v3565
      %v3575 = vsub.f32 %v3537, %v3565
      %v3576 = vsub.f32 %v3538, %v3565
      %v3577 = vsub.f32 %v3539, %v3565
      %v3578 = vsub.f32 %v3540, %v3565
      %v3579 = vsub.f32 %v3541, %v3565
      %v3580 = vsub.f32 %v3542, %v3565
      %v3581 = vsub.f32 %v3543, %v3565
      %3582 = vst [vmem:[%s304] sm:$0x1] %v3564
      %v3583 = vmul.f32 %v3566, %v3566
      %v3584 = vmul.f32 %v3567, %v3567
      %v3585 = vmul.f32 %v3568, %v3568
      %v3586 = vmul.f32 %v3569, %v3569
      %v3587 = vmul.f32 %v3570, %v3570
      %v3588 = vmul.f32 %v3571, %v3571
      %v3589 = vmul.f32 %v3572, %v3572
      %v3590 = vmul.f32 %v3573, %v3573
      %v3591 = vmul.f32 %v3574, %v3574
      %v3592 = vmul.f32 %v3575, %v3575
      %v3593 = vmul.f32 %v3576, %v3576
      %v3594 = vmul.f32 %v3577, %v3577
      %v3595 = vmul.f32 %v3578, %v3578
      %v3596 = vmul.f32 %v3579, %v3579
      %v3597 = vmul.f32 %v3580, %v3580
      %v3598 = vmul.f32 %v3581, %v3581
      %v3599 = vadd.f32 %v3583, %v3584
      %v3600 = vadd.f32 %v3599, %v3585
      %v3601 = vadd.f32 %v3600, %v3586
      %v3602 = vadd.f32 %v3601, %v3587
      %v3603 = vadd.f32 %v3602, %v3588
      %v3604 = vadd.f32 %v3603, %v3589
      %v3605 = vadd.f32 %v3604, %v3590
      %v3606 = vadd.f32 %v3605, %v3591
      %v3607 = vadd.f32 %v3606, %v3592
      %v3608 = vadd.f32 %v3607, %v3593
      %v3609 = vadd.f32 %v3608, %v3594
      %v3610 = vadd.f32 %v3609, %v3595
      %v3611 = vadd.f32 %v3610, %v3596
      %v3612 = vadd.f32 %v3611, %v3597
      %v3613 = vadd.f32 %v3612, %v3598
      %v3614 = vrot.slane %v3613, 4
      %v3615 = vadd.f32 %v3613, %v3614
      %v3616 = vrot.slane %v3615, 2
      %v3617 = vadd.f32 %v3615, %v3616
      %v3618 = vrot.slane %v3617, 1
      %v3619 = vadd.f32 %v3617, %v3618
      %3620 = vst [vmem:[%s311] sm:$0x1] %v3619
      %v3621 = vpack.c.bf16 %v3529, %v3528
      %v3622 = vpack.c.bf16 %v3531, %v3530
      %v3623 = vpack.c.bf16 %v3533, %v3532
      %v3624 = vpack.c.bf16 %v3535, %v3534
      %v3625 = vpack.c.bf16 %v3537, %v3536
      %v3626 = vpack.c.bf16 %v3539, %v3538
      %v3627 = vpack.c.bf16 %v3541, %v3540
      %v3628 = vpack.c.bf16 %v3543, %v3542
      %v3637 = vunpack.c.l.b16 %v3621
      %v3638 = vunpack.c.h.b16 %v3621
      %v3639 = vunpack.c.l.b16 %v3622
      %v3640 = vunpack.c.h.b16 %v3622
      %v3641 = vunpack.c.l.b16 %v3623
      %v3642 = vunpack.c.h.b16 %v3623
      %v3643 = vunpack.c.l.b16 %v3624
      %v3644 = vunpack.c.h.b16 %v3624
      %v3645 = vunpack.c.l.b16 %v3625
      %v3646 = vunpack.c.h.b16 %v3625
      %v3647 = vunpack.c.l.b16 %v3626
      %v3648 = vunpack.c.h.b16 %v3626
      %v3649 = vunpack.c.l.b16 %v3627
      %v3650 = vunpack.c.h.b16 %v3627
      %v3651 = vunpack.c.l.b16 %v3628
      %v3652 = vunpack.c.h.b16 %v3628
      %v3653 = vpack.c.b16 %v3637, %v3637
      %v3654 = vpack.c.b16 %v3638, %v3638
      %v3655 = vpack.c.b16 %v3639, %v3639
      %v3656 = vpack.c.b16 %v3640, %v3640
      %v3657 = vpack.c.b16 %v3641, %v3641
      %v3658 = vpack.c.b16 %v3642, %v3642
      %v3659 = vpack.c.b16 %v3643, %v3643
      %v3660 = vpack.c.b16 %v3644, %v3644
      %v3661 = vpack.c.b16 %v3645, %v3645
      %v3662 = vpack.c.b16 %v3646, %v3646
      %v3663 = vpack.c.b16 %v3647, %v3647
      %v3664 = vpack.c.b16 %v3648, %v3648
      %v3665 = vpack.c.b16 %v3649, %v3649
      %v3666 = vpack.c.b16 %v3650, %v3650
      %v3667 = vpack.c.b16 %v3651, %v3651
      %v3668 = vpack.c.b16 %v3652, %v3652
      %3685 = vst [vmem:[%s298] sm:$0xf] %v3653
      %3686 = vst [vmem:[%s298 + $0x4] sm:$0xf] %v3654
      %3687 = vst [vmem:[%s298 + $0x8] sm:$0xf] %v3655
      %3688 = vst [vmem:[%s298 + $0xc] sm:$0xf] %v3656
      %3689 = vst [vmem:[%s298 + $0x10] sm:$0xf] %v3657
      %3690 = vst [vmem:[%s298 + $0x14] sm:$0xf] %v3658
      %3691 = vst [vmem:[%s298 + $0x18] sm:$0xf] %v3659
      %3692 = vst [vmem:[%s298 + $0x1c] sm:$0xf] %v3660
      %3693 = vst [vmem:[%s298 + $0x20] sm:$0xf] %v3661
      %3694 = vst [vmem:[%s298 + $0x24] sm:$0xf] %v3662
      %3695 = vst [vmem:[%s298 + $0x28] sm:$0xf] %v3663
      %3696 = vst [vmem:[%s298 + $0x2c] sm:$0xf] %v3664
      %3697 = vst [vmem:[%s298 + $0x30] sm:$0xf] %v3665
      %3698 = vst [vmem:[%s298 + $0x34] sm:$0xf] %v3666
      %3699 = vst [vmem:[%s298 + $0x38] sm:$0xf] %v3667
      %3700 = vst [vmem:[%s298 + $0x3c] sm:$0xf] %v3668
      %s3701 = smul.u32 8, %s23
      %p3702 = scmp.lt.s32.totalorder %s22, 1
      %s3703 = scalar_select %p3702, %s22, 1
      %p3704 = scmp.lt.s32.totalorder %s3701, 15
      %s3705 = scalar_select %p3704, %s3701, 15
      %s3706 = smul.addr %s3705, 2
      %s3707 = smul.addr %s3703, 32
      %s3708 = sadd.s32 %s3706, %s3707
      %s3709 = smul.addr %s3708, 4
      %s3710 = scalar_lea.vmem %s4, %s3709
      %s3711 = smul.u32 %s22, 2
      %s3712 = sadd.s32 %s3711, %s23
      %p3713 = scmp.lt.s32.totalorder %s3712, 3
      %s3714 = scalar_select %p3713, %s3712, 3
      %s3715 = scalar_lea.vmem %s5, %s3714
      %s3716 = smul.u32 %s22, 2
      %s3717 = sadd.s32 %s3716, %s23
      %p3718 = scmp.lt.s32.totalorder %s3717, 3
      %s3719 = scalar_select %p3718, %s3717, 3
      %s3720 = scalar_lea.vmem %s6, %s3719
      // Predicated region
      $region37: #{autoencoder_forward.13} parent=35 // pred_check
        %p3721 = pneg %p139
      $region38: #{autoencoder_forward.13} parent=35 // pred_check_branch
        %3723 = sbr.rel (%p3721) target = $region40
      $region39: #{autoencoder_forward.13} parent=35 // pred_region
        %s3724 = smul.u32 8, %s23
      $region40: #{autoencoder_forward.13} parent=35 // pred_fallthru
        _
      // Predicated region
      $region41: #{autoencoder_forward.13} parent=35 // pred_check
        %p3725 = pneg %p169
      $region42: #{autoencoder_forward.13} parent=35 // pred_check_branch
        %3727 = sbr.rel (%p3725) target = $region44
      $region43: #{autoencoder_forward.13} parent=35 // pred_region
        %s3728 = smul.u32 %s22, 2
        %s3729 = sadd.s32 %s3728, %s23
      $region44: #{autoencoder_forward.13} parent=35 // pred_fallthru
        _
      // Predicated region
      $region45: #{autoencoder_forward.13} parent=35 // pred_check
        %p3730 = pneg %p199
      $region46: #{autoencoder_forward.13} parent=35 // pred_check_branch
        %3732 = sbr.rel (%p3730) target = $region48
      $region47: #{autoencoder_forward.13} parent=35 // pred_region
        %s3733 = smul.u32 %s22, 2
        %s3734 = sadd.s32 %s3733, %s23
      $region48: #{autoencoder_forward.13} parent=35 // pred_fallthru
        _
    $region36: #{autoencoder_forward.13} parent=5 // pred_fallthru
      _
    %p3735 = scmp.le.s32.totalorder 2, %s13
    // Predicated region
    $region49: #{autoencoder_forward.13} parent=5 // pred_check
      %p3736 = pneg %p3735
    $region50: #{autoencoder_forward.13} parent=5 // pred_check_branch
      %3738 = sbr.rel (%p3736) target = $region52
    $region51: #{autoencoder_forward.13} parent=5 // pred_region
      %s3739 = ssub.s32 %s13, 2
      // Predicated region
      $region53: #{autoencoder_forward.13} parent=51 // pred_check
        %p3740 = pneg %p145
      $region54: #{autoencoder_forward.13} parent=51 // pred_check_branch
        %3742 = sbr.rel (%p3740) target = $region56
      $region55: #{autoencoder_forward.13} parent=51 // pred_region
        %s3743 = smul.u32 8, %s25
        %p3744 = scmp.lt.s32.totalorder %s24, 1
        %s3745 = scalar_select %p3744, %s24, 1
        %p3746 = scmp.lt.s32.totalorder %s3743, 15
        %s3747 = scalar_select %p3746, %s3743, 15
        %s3748 = smul.addr %s3747, 2
        %s3749 = smul.addr %s3745, 32
        %s3750 = sadd.s32 %s3748, %s3749
        %s3751 = smul.addr %s3750, 4
        %s3752 = scalar_lea.vmem %s4, %s3751
      $region56: #{autoencoder_forward.13} parent=51 // pred_fallthru
        _
      // Predicated region
      $region57: #{autoencoder_forward.13} parent=51 // pred_check
        %p3753 = pneg %p175
      $region58: #{autoencoder_forward.13} parent=51 // pred_check_branch
        %3755 = sbr.rel (%p3753) target = $region60
      $region59: #{autoencoder_forward.13} parent=51 // pred_region
        %s3756 = smul.u32 %s24, 2
        %s3757 = sadd.s32 %s3756, %s25
        %p3758 = scmp.lt.s32.totalorder %s3757, 3
        %s3759 = scalar_select %p3758, %s3757, 3
        %s3760 = scalar_lea.vmem %s5, %s3759
      $region60: #{autoencoder_forward.13} parent=51 // pred_fallthru
        _
      // Predicated region
      $region61: #{autoencoder_forward.13} parent=51 // pred_check
        %p3761 = pneg %p205
      $region62: #{autoencoder_forward.13} parent=51 // pred_check_branch
        %3763 = sbr.rel (%p3761) target = $region64
      $region63: #{autoencoder_forward.13} parent=51 // pred_region
        %s3764 = smul.u32 %s24, 2
        %s3765 = sadd.s32 %s3764, %s25
        %p3766 = scmp.lt.s32.totalorder %s3765, 3
        %s3767 = scalar_select %p3766, %s3765, 3
        %s3768 = scalar_lea.vmem %s6, %s3767
      $region64: #{autoencoder_forward.13} parent=51 // pred_fallthru
        _
    $region52: #{autoencoder_forward.13} parent=5 // pred_fallthru
      _
  $region6: #{autoencoder_forward.13} parent=0 // loop_footer
    %s17 = sadd.s32 1, %s13
  $region7: #{autoencoder_forward.13} parent=0 // loop_footer_branch
    %12 = sbr.rel target = $region3
  $region8: #{autoencoder_forward.13} parent=0 // loop_exit
    _

// kernel: autoencoder_forward.14
$region0: #{autoencoder_forward.14}
  #allocation0 [shape = 'u32[]', space=smem, size = 0x4, offset = 0x4, fixed_abs, tag = 'smem constant byte address 0x4 - core index']
  #allocation1 [shape = 'u32[144,128]{1,0:T(1,128)}', space=vmem, size = 0x12000, scoped, tag = 'internal scratch']
  #allocation2 [shape = 'bf16[10,18,64]{2,1,0:T(8,128)(2,1)}', space=vmem, size = 0xf000, scoped, tag = 'scratch operand']
  %s0 = inlined_call_operand.vmem [shape: bf16[2,16,16,128], index: 0, kind: input, shape index: {}]
  %s1 = inlined_call_operand.vmem [shape: bf16[9,64,128], index: 1, kind: input, shape index: {}]
  %s2 = inlined_call_operand.vmem [shape: f32[1,64], index: 2, kind: input, shape index: {}]
  %s3 = inlined_call_operand.vmem [shape: f32[1,64], index: 3, kind: input, shape index: {}]
  %s4 = inlined_call_operand.vmem [shape: bf16[2,16,16,128], index: 4, kind: output, shape index: {0}]
  %s5 = inlined_call_operand.vmem [shape: f32[4,1,128], index: 5, kind: output, shape index: {1}]
  %s6 = inlined_call_operand.vmem [shape: f32[4,1,128], index: 6, kind: output, shape index: {2}]
  %7 = xla_tuple %s4, %s5, %s6
  %s8 = sld [smem:[#allocation0]]
  $region65: #{autoencoder_forward.14} parent=0
    _
  %s10 = ssub.s32 1, %s8
  %s11 = scalar_select 0, %s10, %s8
  loop: start=0, step=1, limit=6
  $region2: #{autoencoder_forward.14} parent=0 // loop_pre_header
    _
  $region3: #{autoencoder_forward.14} parent=0 // loop_header
    %s13 = sphi 0, %s17
    %p14 = scmp.ge.s32.totalorder %s13, 6
    %s20 = sphi 0, %s32
    %s21 = sphi 0, %s28
    %s22 = sphi 0, %s20
    %s23 = sphi 0, %s21
    %s24 = sphi 0, %s22
    %s25 = sphi 0, %s23
    %s35 = sphi 0, %s37
    %s38 = sphi 0, %s35
    %s39 = sphi 0, %s38
    %s55 = sphi 0, %s39
    %s59 = sphi 0, %s59
    %s61 = sphi 0, %s59
    %s62 = sphi 0, %s61
    %s76 = sphi 0, %s62
    %s80 = sphi 0, %s80
    %s82 = sphi 0, %s80
    %s83 = sphi 0, %s82
    %s97 = sphi 0, %s83
    %s101 = sphi 0, %s101
    %s103 = sphi 0, %s101
    %s104 = sphi 0, %s103
    %s118 = sphi 0, %s104
    %s126 = sphi 0, %s128
    %s129 = sphi 0, %s126
    %s130 = sphi 0, %s129
    %s146 = sphi 0, %s130
    %s156 = sphi 0, %s158
    %s159 = sphi 0, %s156
    %s160 = sphi 0, %s159
    %s176 = sphi 0, %s160
    %s186 = sphi 0, %s188
    %s189 = sphi 0, %s186
    %s190 = sphi 0, %s189
    %s206 = sphi 0, %s190
  $region4: #{autoencoder_forward.14} parent=0 // loop_header_branch
    %16 = sbr.rel (%p14) target = $region8
  $region5: #{autoencoder_forward.14} parent=0 // loop_body
    %s18 = ssub.s32 %s13, 1
    %s19 = ssub.s32 %s13, 2
    %s26 = sadd.s32 1, %s21
    %p27 = scmp.ge.s32.totalorder %s26, 2
    %s28 = scalar_select %p27, 0, %s26
    %s29 = sadd.s32 1, %s20
    %s30 = scalar_select %p27, %s29, %s20
    %p31 = scmp.ge.s32.totalorder %s30, 2
    %s32 = scalar_select %p31, 0, %s30
    %s33 = ssub.s32 %s20, %s32
    %p34 = scmp.eq.s32.totalorder %s33, 0
    %s36 = sadd.s32 %s35, 1
    %s37 = scalar_select %p34, %s35, %s36
    %p40 = pneg %p34
    %p41 = scmp.eq.s32.totalorder %s13, 3
    %p42 = por %p40, %p41
    %p43 = scmp.ne.s32.totalorder %s35, %s38
    %p44 = scmp.eq.s32.totalorder %s13, 0
    %p45 = por %p43, %p44
    %p46 = scmp.ne.s32.totalorder %s35, %s38
    %p47 = scmp.eq.s32.totalorder %s18, 3
    %p48 = por %p46, %p47
    %p49 = scmp.ne.s32.totalorder %s38, %s39
    %p50 = scmp.eq.s32.totalorder %s18, 0
    %p51 = por %p49, %p50
    %p52 = scmp.ne.s32.totalorder %s38, %s39
    %p53 = scmp.eq.s32.totalorder %s19, 3
    %p54 = por %p52, %p53
    %p56 = scmp.ne.s32.totalorder %s39, %s55
    %p57 = scmp.eq.s32.totalorder %s19, 0
    %p58 = por %p56, %p57
    %s60 = sadd.s32 %s59, 1
    %p63 = scmp.eq.s32.totalorder %s13, 3
    %p64 = scmp.ne.s32.totalorder %s59, %s61
    %p65 = scmp.eq.s32.totalorder %s13, 0
    %p66 = por %p64, %p65
    %p67 = scmp.ne.s32.totalorder %s59, %s61
    %p68 = scmp.eq.s32.totalorder %s18, 3
    %p69 = por %p67, %p68
    %p70 = scmp.ne.s32.totalorder %s61, %s62
    %p71 = scmp.eq.s32.totalorder %s18, 0
    %p72 = por %p70, %p71
    %p73 = scmp.ne.s32.totalorder %s61, %s62
    %p74 = scmp.eq.s32.totalorder %s19, 3
    %p75 = por %p73, %p74
    %p77 = scmp.ne.s32.totalorder %s62, %s76
    %p78 = scmp.eq.s32.totalorder %s19, 0
    %p79 = por %p77, %p78
    %s81 = sadd.s32 %s80, 1
    %p84 = scmp.eq.s32.totalorder %s13, 3
    %p85 = scmp.ne.s32.totalorder %s80, %s82
    %p86 = scmp.eq.s32.totalorder %s13, 0
    %p87 = por %p85, %p86
    %p88 = scmp.ne.s32.totalorder %s80, %s82
    %p89 = scmp.eq.s32.totalorder %s18, 3
    %p90 = por %p88, %p89
    %p91 = scmp.ne.s32.totalorder %s82, %s83
    %p92 = scmp.eq.s32.totalorder %s18, 0
    %p93 = por %p91, %p92
    %p94 = scmp.ne.s32.totalorder %s82, %s83
    %p95 = scmp.eq.s32.totalorder %s19, 3
    %p96 = por %p94, %p95
    %p98 = scmp.ne.s32.totalorder %s83, %s97
    %p99 = scmp.eq.s32.totalorder %s19, 0
    %p100 = por %p98, %p99
    %s102 = sadd.s32 %s101, 1
    %p105 = scmp.eq.s32.totalorder %s13, 3
    %p106 = scmp.ne.s32.totalorder %s101, %s103
    %p107 = scmp.eq.s32.totalorder %s13, 0
    %p108 = por %p106, %p107
    %p109 = scmp.ne.s32.totalorder %s101, %s103
    %p110 = scmp.eq.s32.totalorder %s18, 3
    %p111 = por %p109, %p110
    %p112 = scmp.ne.s32.totalorder %s103, %s104
    %p113 = scmp.eq.s32.totalorder %s18, 0
    %p114 = por %p112, %p113
    %p115 = scmp.ne.s32.totalorder %s103, %s104
    %p116 = scmp.eq.s32.totalorder %s19, 3
    %p117 = por %p115, %p116
    %p119 = scmp.ne.s32.totalorder %s104, %s118
    %p120 = scmp.eq.s32.totalorder %s19, 0
    %p121 = por %p119, %p120
    %s122 = ssub.s32 %s20, %s32
    %s123 = ssub.s32 %s21, %s28
    %s124 = sor.u32 %s122, %s123
    %p125 = scmp.eq.s32.totalorder %s124, 0
    %s127 = sadd.s32 %s126, 1
    %s128 = scalar_select %p125, %s126, %s127
    %p131 = pneg %p125
    %p132 = scmp.eq.s32.totalorder %s13, 3
    %p133 = por %p131, %p132
    %p134 = scmp.ne.s32.totalorder %s126, %s129
    %p135 = scmp.eq.s32.totalorder %s13, 0
    %p136 = por %p134, %p135
    %p137 = scmp.ne.s32.totalorder %s126, %s129
    %p138 = scmp.eq.s32.totalorder %s18, 3
    %p139 = por %p137, %p138
    %p140 = scmp.ne.s32.totalorder %s129, %s130
    %p141 = scmp.eq.s32.totalorder %s18, 0
    %p142 = por %p140, %p141
    %p143 = scmp.ne.s32.totalorder %s129, %s130
    %p144 = scmp.eq.s32.totalorder %s19, 3
    %p145 = por %p143, %p144
    %p147 = scmp.ne.s32.totalorder %s130, %s146
    %p148 = scmp.eq.s32.totalorder %s19, 0
    %p149 = por %p147, %p148
    %s150 = smul.u32 %s20, 2
    %s151 = sadd.s32 %s150, %s21
    %s152 = smul.u32 %s32, 2
    %s153 = sadd.s32 %s152, %s28
    %s154 = ssub.s32 %s151, %s153
    %p155 = scmp.eq.s32.totalorder %s154, 0
    %s157 = sadd.s32 %s156, 1
    %s158 = scalar_select %p155, %s156, %s157
    %p161 = pneg %p155
    %p162 = scmp.eq.s32.totalorder %s13, 3
    %p163 = por %p161, %p162
    %p164 = scmp.ne.s32.totalorder %s156, %s159
    %p165 = scmp.eq.s32.totalorder %s13, 0
    %p166 = por %p164, %p165
    %p167 = scmp.ne.s32.totalorder %s156, %s159
    %p168 = scmp.eq.s32.totalorder %s18, 3
    %p169 = por %p167, %p168
    %p170 = scmp.ne.s32.totalorder %s159, %s160
    %p171 = scmp.eq.s32.totalorder %s18, 0
    %p172 = por %p170, %p171
    %p173 = scmp.ne.s32.totalorder %s159, %s160
    %p174 = scmp.eq.s32.totalorder %s19, 3
    %p175 = por %p173, %p174
    %p177 = scmp.ne.s32.totalorder %s160, %s176
    %p178 = scmp.eq.s32.totalorder %s19, 0
    %p179 = por %p177, %p178
    %s180 = smul.u32 %s20, 2
    %s181 = sadd.s32 %s180, %s21
    %s182 = smul.u32 %s32, 2
    %s183 = sadd.s32 %s182, %s28
    %s184 = ssub.s32 %s181, %s183
    %p185 = scmp.eq.s32.totalorder %s184, 0
    %s187 = sadd.s32 %s186, 1
    %s188 = scalar_select %p185, %s186, %s187
    %p191 = pneg %p185
    %p192 = scmp.eq.s32.totalorder %s13, 3
    %p193 = por %p191, %p192
    %p194 = scmp.ne.s32.totalorder %s186, %s189
    %p195 = scmp.eq.s32.totalorder %s13, 0
    %p196 = por %p194, %p195
    %p197 = scmp.ne.s32.totalorder %s186, %s189
    %p198 = scmp.eq.s32.totalorder %s18, 3
    %p199 = por %p197, %p198
    %p200 = scmp.ne.s32.totalorder %s189, %s190
    %p201 = scmp.eq.s32.totalorder %s18, 0
    %p202 = por %p200, %p201
    %p203 = scmp.ne.s32.totalorder %s189, %s190
    %p204 = scmp.eq.s32.totalorder %s19, 3
    %p205 = por %p203, %p204
    %p207 = scmp.ne.s32.totalorder %s190, %s206
    %p208 = scmp.eq.s32.totalorder %s19, 0
    %p209 = por %p207, %p208
    %p210 = scmp.le.s32.totalorder 1, %s13
    %p211 = scmp.lt.s32.totalorder %s13, 5
    %p212 = pnand %p210, %p211
    %p213 = pneg %p212
    // Predicated region
    $region9: #{autoencoder_forward.14} parent=5 // pred_check
      _
    $region10: #{autoencoder_forward.14} parent=5 // pred_check_branch
      %215 = sbr.rel (%p212) target = $region12
    $region11: #{autoencoder_forward.14} parent=5 // pred_region
      %s216 = ssub.s32 %s13, 1
      // Predicated region
      $region13: #{autoencoder_forward.14} parent=11 // pred_check
        %p217 = pneg %p72
      $region14: #{autoencoder_forward.14} parent=11 // pred_check_branch
        %219 = sbr.rel (%p217) target = $region16
      $region15: #{autoencoder_forward.14} parent=11 // pred_region
        _
      $region16: #{autoencoder_forward.14} parent=11 // pred_fallthru
        _
      // Predicated region
      $region17: #{autoencoder_forward.14} parent=11 // pred_check
        %p220 = pneg %p93
      $region18: #{autoencoder_forward.14} parent=11 // pred_check_branch
        %222 = sbr.rel (%p220) target = $region20
      $region19: #{autoencoder_forward.14} parent=11 // pred_region
        _
      $region20: #{autoencoder_forward.14} parent=11 // pred_fallthru
        _
      // Predicated region
      $region21: #{autoencoder_forward.14} parent=11 // pred_check
        %p223 = pneg %p114
      $region22: #{autoencoder_forward.14} parent=11 // pred_check_branch
        %225 = sbr.rel (%p223) target = $region24
      $region23: #{autoencoder_forward.14} parent=11 // pred_region
        _
      $region24: #{autoencoder_forward.14} parent=11 // pred_fallthru
        _
    $region12: #{autoencoder_forward.14} parent=5 // pred_fallthru
      _
    %p226 = scmp.lt.s32.totalorder %s13, 4
    // Predicated region
    $region25: #{autoencoder_forward.14} parent=5 // pred_check
      %p227 = pneg %p226
    $region26: #{autoencoder_forward.14} parent=5 // pred_check_branch
      %229 = sbr.rel (%p227) target = $region28
    $region27: #{autoencoder_forward.14} parent=5 // pred_region
      // Predicated region
      $region29: #{autoencoder_forward.14} parent=27 // pred_check
        %p230 = pneg %p45
      $region30: #{autoencoder_forward.14} parent=27 // pred_check_branch
        %232 = sbr.rel (%p230) target = $region32
      $region31: #{autoencoder_forward.14} parent=27 // pred_region
        %p233 = scmp.lt.s32.totalorder %s20, 1
        %s234 = scalar_select %p233, %s20, 1
        %s235 = smul.addr %s234, 32
        %s236 = smul.addr %s235, 4
        %s237 = scalar_lea.vmem %s0, %s236
      $region32: #{autoencoder_forward.14} parent=27 // pred_fallthru
        _
    $region28: #{autoencoder_forward.14} parent=5 // pred_fallthru
      _
    %p238 = scmp.le.s32.totalorder 1, %s13
    %p239 = scmp.lt.s32.totalorder %s13, 5
    %p240 = pnand %p238, %p239
    %p241 = pneg %p240
    // Predicated region
    $region33: #{autoencoder_forward.14} parent=5 // pred_check
      _
    $region34: #{autoencoder_forward.14} parent=5 // pred_check_branch
      %243 = sbr.rel (%p240) target = $region36
    $region35: #{autoencoder_forward.14} parent=5 // pred_region
      %s244 = ssub.s32 %s13, 1
      %p245 = scmp.lt.s32.totalorder %s22, 1
      %s246 = scalar_select %p245, %s22, 1
      %s247 = smul.addr %s246, 32
      %s248 = smul.addr %s247, 4
      %s249 = scalar_lea.vmem %s0, %s248
      %p250 = pneg %p51
      %p251 = pneg %p48
      %p252 = pneg %p72
      %p253 = pneg %p69
      %p254 = pneg %p93
      %p255 = pneg %p90
      %p256 = pneg %p114
      %p257 = pneg %p111
      %p258 = pneg %p142
      %p259 = pneg %p139
      %s260 = smul.u32 8, %s23
      %p261 = scmp.lt.s32.totalorder %s22, 1
      %s262 = scalar_select %p261, %s22, 1
      %p263 = scmp.lt.s32.totalorder %s260, 15
      %s264 = scalar_select %p263, %s260, 15
      %s265 = smul.addr %s264, 2
      %s266 = smul.addr %s262, 32
      %s267 = sadd.s32 %s265, %s266
      %s268 = smul.addr %s267, 4
      %s269 = scalar_lea.vmem %s4, %s268
      %p270 = pneg %p172
      %p271 = pneg %p169
      %s272 = smul.u32 %s22, 2
      %s273 = sadd.s32 %s272, %s23
      %p274 = scmp.lt.s32.totalorder %s273, 3
      %s275 = scalar_select %p274, %s273, 3
      %s276 = scalar_lea.vmem %s5, %s275
      %p277 = pneg %p202
      %p278 = pneg %p199
      %s279 = smul.u32 %s22, 2
      %s280 = sadd.s32 %s279, %s23
      %p281 = scmp.lt.s32.totalorder %s280, 3
      %s282 = scalar_select %p281, %s280, 3
      %s283 = scalar_lea.vmem %s6, %s282
      %p284 = scmp.lt.s32.totalorder %s22, 1
      %s285 = scalar_select %p284, %s22, 1
      %s286 = smul.addr %s285, 32
      %s287 = smul.addr %s286, 4
      %s288 = scalar_lea.vmem %s0, %s287
      %s289 = smul.u32 8, %s23
      %p290 = scmp.lt.s32.totalorder %s22, 1
      %s291 = scalar_select %p290, %s22, 1
      %p292 = scmp.lt.s32.totalorder %s289, 15
      %s293 = scalar_select %p292, %s289, 15
      %s294 = smul.addr %s293, 2
      %s295 = smul.addr %s291, 32
      %s296 = sadd.s32 %s294, %s295
      %s297 = smul.addr %s296, 4
      %s298 = scalar_lea.vmem %s4, %s297
      %s299 = smul.u32 8, %s23
      %s300 = smul.u32 %s22, 2
      %s301 = sadd.s32 %s300, %s23
      %p302 = scmp.lt.s32.totalorder %s301, 3
      %s303 = scalar_select %p302, %s301, 3
      %s304 = scalar_lea.vmem %s5, %s303
      %s305 = smul.u32 %s22, 2
      %s306 = sadd.s32 %s305, %s23
      %s307 = smul.u32 %s22, 2
      %s308 = sadd.s32 %s307, %s23
      %p309 = scmp.lt.s32.totalorder %s308, 3
      %s310 = scalar_select %p309, %s308, 3
      %s311 = scalar_lea.vmem %s6, %s310
      %s312 = smul.u32 %s22, 2
      %s313 = sadd.s32 %s312, %s23
      %s315 = smul.u32 %s23, 8
      %v316 = vld [vmem:[%s2] sm:$0x1]
      %v317 = vld [vmem:[%s3] sm:$0x1]
      %vm318 = vcmask 516096
      %vm319 = vsmask.f32 256
      %vm320 = vmand %vm318, %vm319
      %v321 = vld [vmem:[#allocation2] sm:$0x1]
      %v322 = vsel %vm320, 0, %v321
      %323 = vst [vmem:[#allocation2] sm:$0x1] %v322
      %v324 = vld [vmem:[#allocation2 + $0xc] sm:$0x1]
      %v325 = vsel %vm320, 0, %v324
      %326 = vst [vmem:[#allocation2 + $0xc] sm:$0x1] %v325
      %v327 = vld [vmem:[#allocation2 + $0x18] sm:$0x1]
      %v328 = vsel %vm320, 0, %v327
      %329 = vst [vmem:[#allocation2 + $0x18] sm:$0x1] %v328
      %v330 = vld [vmem:[#allocation2 + $0x24] sm:$0x1]
      %v331 = vsel %vm320, 0, %v330
      %332 = vst [vmem:[#allocation2 + $0x24] sm:$0x1] %v331
      %v333 = vld [vmem:[#allocation2 + $0x30] sm:$0x1]
      %v334 = vsel %vm320, 0, %v333
      %335 = vst [vmem:[#allocation2 + $0x30] sm:$0x1] %v334
      %v336 = vld [vmem:[#allocation2 + $0x3c] sm:$0x1]
      %v337 = vsel %vm320, 0, %v336
      %338 = vst [vmem:[#allocation2 + $0x3c] sm:$0x1] %v337
      %v339 = vld [vmem:[#allocation2 + $0x48] sm:$0x1]
      %v340 = vsel %vm320, 0, %v339
      %341 = vst [vmem:[#allocation2 + $0x48] sm:$0x1] %v340
      %v342 = vld [vmem:[#allocation2 + $0x54] sm:$0x1]
      %v343 = vsel %vm320, 0, %v342
      %344 = vst [vmem:[#allocation2 + $0x54] sm:$0x1] %v343
      %v345 = vld [vmem:[#allocation2 + $0x60] sm:$0x1]
      %v346 = vsel %vm320, 0, %v345
      %347 = vst [vmem:[#allocation2 + $0x60] sm:$0x1] %v346
      %v348 = vld [vmem:[#allocation2 + $0x6c] sm:$0x1]
      %v349 = vsel %vm320, 0, %v348
      %350 = vst [vmem:[#allocation2 + $0x6c] sm:$0x1] %v349
      %vm351 = vsmask.f32 7938
      %vm352 = vmand %vm318, %vm351
      %v353 = vld [vmem:[#allocation2 + $0x8] sm:$0x1]
      %v354 = vsel %vm352, 0, %v353
      %355 = vst [vmem:[#allocation2 + $0x8] sm:$0x1] %v354
      %v356 = vld [vmem:[#allocation2 + $0x14] sm:$0x1]
      %v357 = vsel %vm352, 0, %v356
      %358 = vst [vmem:[#allocation2 + $0x14] sm:$0x1] %v357
      %v359 = vld [vmem:[#allocation2 + $0x20] sm:$0x1]
      %v360 = vsel %vm352, 0, %v359
      %361 = vst [vmem:[#allocation2 + $0x20] sm:$0x1] %v360
      %v362 = vld [vmem:[#allocation2 + $0x2c] sm:$0x1]
      %v363 = vsel %vm352, 0, %v362
      %364 = vst [vmem:[#allocation2 + $0x2c] sm:$0x1] %v363
      %v365 = vld [vmem:[#allocation2 + $0x38] sm:$0x1]
      %v366 = vsel %vm352, 0, %v365
      %367 = vst [vmem:[#allocation2 + $0x38] sm:$0x1] %v366
      %v368 = vld [vmem:[#allocation2 + $0x44] sm:$0x1]
      %v369 = vsel %vm352, 0, %v368
      %370 = vst [vmem:[#allocation2 + $0x44] sm:$0x1] %v369
      %v371 = vld [vmem:[#allocation2 + $0x50] sm:$0x1]
      %v372 = vsel %vm352, 0, %v371
      %373 = vst [vmem:[#allocation2 + $0x50] sm:$0x1] %v372
      %v374 = vld [vmem:[#allocation2 + $0x5c] sm:$0x1]
      %v375 = vsel %vm352, 0, %v374
      %376 = vst [vmem:[#allocation2 + $0x5c] sm:$0x1] %v375
      %v377 = vld [vmem:[#allocation2 + $0x68] sm:$0x1]
      %v378 = vsel %vm352, 0, %v377
      %379 = vst [vmem:[#allocation2 + $0x68] sm:$0x1] %v378
      %v380 = vld [vmem:[#allocation2 + $0x74] sm:$0x1]
      %v381 = vsel %vm352, 0, %v380
      %382 = vst [vmem:[#allocation2 + $0x74] sm:$0x1] %v381
      %p383 = scmp.gt.s32.totalorder %s23, 0
      %s384 = scalar_select %p383, 1, 0
      %s385 = scvt.s32.f32 %s384
      %p386 = scmp.lt.s32.totalorder %s23, 1
      %s387 = scalar_select %p386, 1, 0
      %s388 = scvt.s32.f32 %s387
      %s389 = ssub.s32 %s315, 1
      %p390 = scmp.gt.s32.totalorder %s389, 0
      %s391 = scalar_select %p390, %s389, 0
      %s392 = smul.u32 %s391, 2
      %s393 = smul.addr %s392, 4
      %s394 = scalar_lea.vmem %s288, %s393
      %v395 = vld [vmem:[%s394] sm:$0xf]
      %v396 = vld [vmem:[%s394 + $0x4] sm:$0xf]
      %v397 = vunpack.c.l.bf16 %v395
      %v398 = vunpack.c.l.bf16 %v396
      %v400 = vlaneseq
      %v401 = vshrl.u32 %v400, 7
      %v402 = vsub.s32 0, %v401
      %v403 = vrot.slane %v316, %v402
      %v405 = vmul.f32 %v397, %v403
      %v406 = vmul.f32 %v398, %v403
      %v408 = vlaneseq
      %v409 = vshrl.u32 %v408, 7
      %v410 = vsub.s32 0, %v409
      %v411 = vrot.slane %v317, %v410
      %v413 = vadd.f32 %v405, %v411
      %v414 = vadd.f32 %v406, %v411
      %v415 = vmax.f32 %v413, 0.0
      %v416 = vmax.f32 %v414, 0.0
      %v417 = vstv %s385
      %v418 = vmul.f32 %v415, %v417
      %v419 = vmul.f32 %v416, %v417
      %s420 = sadd.s32 %s315, 8
      %p421 = scmp.lt.s32.totalorder %s420, 15
      %s422 = scalar_select %p421, %s420, 15
      %s423 = smul.u32 %s422, 2
      %s424 = smul.addr %s423, 4
      %s425 = scalar_lea.vmem %s288, %s424
      %v426 = vld [vmem:[%s425] sm:$0xf]
      %v427 = vld [vmem:[%s425 + $0x4] sm:$0xf]
      %v428 = vunpack.c.l.bf16 %v426
      %v429 = vunpack.c.l.bf16 %v427
      %v430 = vmul.f32 %v428, %v403
      %v431 = vmul.f32 %v429, %v403
      %v432 = vadd.f32 %v430, %v411
      %v433 = vadd.f32 %v431, %v411
      %v434 = vmax.f32 %v432, 0.0
      %v435 = vmax.f32 %v433, 0.0
      %v436 = vstv %s388
      %v437 = vmul.f32 %v434, %v436
      %v438 = vmul.f32 %v435, %v436
      %v439 = vpack.c.bf16 %v419, %v418
      %v441 = vunpack.c.l.b16 %v439
      %v442 = vunpack.c.h.b16 %v439
      %v443 = vpack.c.b16 %v441, %v441
      %v444 = vpack.c.b16 %v442, %v442
      %vm445 = vsmask.f32 4368
      %vm446 = vmor %vm319, %vm445
      %v448 = vshrl.u32 %v443, 16
      %v450 = vrot.slane %v448, 7
      %v451 = vshll.u32 %v443, 16
      %v453 = vor.u32 %v450, %v451
      %v454 = vrot.slane %v450, 4
      %v456 = vshrl.u32 %v444, 16
      %v458 = vrot.slane %v456, 7
      %v459 = vshll.u32 %v444, 16
      %v461 = vor.u32 %v458, %v459
      %v462 = vsel %vm446, %v454, %v461
      %v463 = vrot.slane %v458, 4
      %vm467 = vcmask 519168
      %vm468 = vmand %vm467, %vm351
      %v469 = vld [vmem:[#allocation2] sm:$0xf]
      %v470 = vsel %vm468, %v453, %v469
      %471 = vst [vmem:[#allocation2] sm:$0xf] %v470
      %vm472 = vcmask 519168
      %473 = vst.msk [vmem:[#allocation2 + $0x4] sm:$0xf] %vm472, %v462
      %v474 = vld [vmem:[#allocation2 + $0x8] sm:$0x1]
      %v475 = vsel %vm320, %v463, %v474
      %476 = vst [vmem:[#allocation2 + $0x8] sm:$0x1] %v475
      %v477 = vpack.c.bf16 %v438, %v437
      %v479 = vunpack.c.l.b16 %v477
      %v480 = vunpack.c.h.b16 %v477
      %v481 = vpack.c.b16 %v479, %v479
      %v482 = vpack.c.b16 %v480, %v480
      %v484 = vshrl.u32 %v481, 16
      %v486 = vrot.slane %v484, 7
      %v487 = vshll.u32 %v481, 16
      %v489 = vor.u32 %v486, %v487
      %v490 = vrot.slane %v486, 4
      %v492 = vshrl.u32 %v482, 16
      %v494 = vrot.slane %v492, 7
      %v495 = vshll.u32 %v482, 16
      %v497 = vor.u32 %v494, %v495
      %v498 = vsel %vm446, %v490, %v497
      %v499 = vrot.slane %v494, 4
      %s503 = scalar_lea.vmem [#allocation2], 108
      %v504 = vld [vmem:[%s503] sm:$0xf]
      %v505 = vsel %vm468, %v489, %v504
      %506 = vst [vmem:[%s503] sm:$0xf] %v505
      %507 = vst.msk [vmem:[%s503 + $0x4] sm:$0xf] %vm472, %v498
      %v508 = vld [vmem:[%s503 + $0x8] sm:$0x1]
      %v509 = vsel %vm320, %v499, %v508
      %510 = vst [vmem:[%s503 + $0x8] sm:$0x1] %v509
      %s511 = smul.u32 %s315, 2
      %s512 = smul.addr %s511, 4
      %s513 = scalar_lea.vmem %s288, %s512
      %v514 = vld [vmem:[%s513] sm:$0xf]
      %v515 = vld [vmem:[%s513 + $0x4] sm:$0xf]
      %v516 = vld [vmem:[%s513 + $0x8] sm:$0xf]
      %v517 = vld [vmem:[%s513 + $0xc] sm:$0xf]
      %v518 = vld [vmem:[%s513 + $0x10] sm:$0xf]
      %v519 = vld [vmem:[%s513 + $0x14] sm:$0xf]
      %v520 = vld [vmem:[%s513 + $0x18] sm:$0xf]
      %v521 = vld [vmem:[%s513 + $0x1c] sm:$0xf]
      %v522 = vld [vmem:[%s513 + $0x20] sm:$0xf]
      %v523 = vld [vmem:[%s513 + $0x24] sm:$0xf]
      %v524 = vld [vmem:[%s513 + $0x28] sm:$0xf]
      %v525 = vld [vmem:[%s513 + $0x2c] sm:$0xf]
      %v526 = vld [vmem:[%s513 + $0x30] sm:$0xf]
      %v527 = vld [vmem:[%s513 + $0x34] sm:$0xf]
      %v528 = vld [vmem:[%s513 + $0x38] sm:$0xf]
      %v529 = vld [vmem:[%s513 + $0x3c] sm:$0xf]
      %v530 = vunpack.c.l.bf16 %v514
      %v531 = vunpack.c.l.bf16 %v515
      %v532 = vunpack.c.l.bf16 %v516
      %v533 = vunpack.c.l.bf16 %v517
      %v534 = vunpack.c.l.bf16 %v518
      %v535 = vunpack.c.l.bf16 %v519
      %v536 = vunpack.c.l.bf16 %v520
      %v537 = vunpack.c.l.bf16 %v521
      %v538 = vunpack.c.l.bf16 %v522
      %v539 = vunpack.c.l.bf16 %v523
      %v540 = vunpack.c.l.bf16 %v524
      %v541 = vunpack.c.l.bf16 %v525
      %v542 = vunpack.c.l.bf16 %v526
      %v543 = vunpack.c.l.bf16 %v527
      %v544 = vunpack.c.l.bf16 %v528
      %v545 = vunpack.c.l.bf16 %v529
      %v546 = vmul.f32 %v530, %v403
      %v547 = vmul.f32 %v531, %v403
      %v548 = vmul.f32 %v532, %v403
      %v549 = vmul.f32 %v533, %v403
      %v550 = vmul.f32 %v534, %v403
      %v551 = vmul.f32 %v535, %v403
      %v552 = vmul.f32 %v536, %v403
      %v553 = vmul.f32 %v537, %v403
      %v554 = vmul.f32 %v538, %v403
      %v555 = vmul.f32 %v539, %v403
      %v556 = vmul.f32 %v540, %v403
      %v557 = vmul.f32 %v541, %v403
      %v558 = vmul.f32 %v542, %v403
      %v559 = vmul.f32 %v543, %v403
      %v560 = vmul.f32 %v544, %v403
      %v561 = vmul.f32 %v545, %v403
      %v562 = vadd.f32 %v546, %v411
      %v563 = vadd.f32 %v547, %v411
      %v564 = vadd.f32 %v548, %v411
      %v565 = vadd.f32 %v549, %v411
      %v566 = vadd.f32 %v550, %v411
      %v567 = vadd.f32 %v551, %v411
      %v568 = vadd.f32 %v552, %v411
      %v569 = vadd.f32 %v553, %v411
      %v570 = vadd.f32 %v554, %v411
      %v571 = vadd.f32 %v555, %v411
      %v572 = vadd.f32 %v556, %v411
      %v573 = vadd.f32 %v557, %v411
      %v574 = vadd.f32 %v558, %v411
      %v575 = vadd.f32 %v559, %v411
      %v576 = vadd.f32 %v560, %v411
      %v577 = vadd.f32 %v561, %v411
      %v578 = vmax.f32 %v562, 0.0
      %v579 = vmax.f32 %v563, 0.0
      %v580 = vmax.f32 %v564, 0.0
      %v581 = vmax.f32 %v565, 0.0
      %v582 = vmax.f32 %v566, 0.0
      %v583 = vmax.f32 %v567, 0.0
      %v584 = vmax.f32 %v568, 0.0
      %v585 = vmax.f32 %v569, 0.0
      %v586 = vmax.f32 %v570, 0.0
      %v587 = vmax.f32 %v571, 0.0
      %v588 = vmax.f32 %v572, 0.0
      %v589 = vmax.f32 %v573, 0.0
      %v590 = vmax.f32 %v574, 0.0
      %v591 = vmax.f32 %v575, 0.0
      %v592 = vmax.f32 %v576, 0.0
      %v593 = vmax.f32 %v577, 0.0
      %v594 = vpack.c.bf16 %v579, %v578
      %v595 = vpack.c.bf16 %v581, %v580
      %v596 = vpack.c.bf16 %v583, %v582
      %v597 = vpack.c.bf16 %v585, %v584
      %v598 = vpack.c.bf16 %v587, %v586
      %v599 = vpack.c.bf16 %v589, %v588
      %v600 = vpack.c.bf16 %v591, %v590
      %v601 = vpack.c.bf16 %v593, %v592
      %v610 = vunpack.c.l.b16 %v594
      %v611 = vunpack.c.h.b16 %v594
      %v612 = vunpack.c.l.b16 %v595
      %v613 = vunpack.c.h.b16 %v595
      %v614 = vunpack.c.l.b16 %v596
      %v615 = vunpack.c.h.b16 %v596
      %v616 = vunpack.c.l.b16 %v597
      %v617 = vunpack.c.h.b16 %v597
      %v618 = vunpack.c.l.b16 %v598
      %v619 = vunpack.c.h.b16 %v598
      %v620 = vunpack.c.l.b16 %v599
      %v621 = vunpack.c.h.b16 %v599
      %v622 = vunpack.c.l.b16 %v600
      %v623 = vunpack.c.h.b16 %v600
      %v624 = vunpack.c.l.b16 %v601
      %v625 = vunpack.c.h.b16 %v601
      %v626 = vpack.c.b16 %v610, %v610
      %v627 = vpack.c.b16 %v611, %v611
      %v628 = vpack.c.b16 %v612, %v612
      %v629 = vpack.c.b16 %v613, %v613
      %v630 = vpack.c.b16 %v614, %v614
      %v631 = vpack.c.b16 %v615, %v615
      %v632 = vpack.c.b16 %v616, %v616
      %v633 = vpack.c.b16 %v617, %v617
      %v634 = vpack.c.b16 %v618, %v618
      %v635 = vpack.c.b16 %v619, %v619
      %v636 = vpack.c.b16 %v620, %v620
      %v637 = vpack.c.b16 %v621, %v621
      %v638 = vpack.c.b16 %v622, %v622
      %v639 = vpack.c.b16 %v623, %v623
      %v640 = vpack.c.b16 %v624, %v624
      %v641 = vpack.c.b16 %v625, %v625
      %v643 = vshrl.u32 %v626, 16
      %v645 = vrot.slane %v643, 7
      %v646 = vshll.u32 %v626, 16
      %v648 = vor.u32 %v645, %v646
      %v649 = vrot.slane %v645, 4
      %v651 = vshrl.u32 %v627, 16
      %v653 = vrot.slane %v651, 7
      %v654 = vshll.u32 %v627, 16
      %v656 = vor.u32 %v653, %v654
      %v657 = vsel %vm446, %v649, %v656
      %v658 = vrot.slane %v653, 4
      %v660 = vshrl.u32 %v628, 16
      %v662 = vrot.slane %v660, 7
      %v663 = vshll.u32 %v628, 16
      %v665 = vor.u32 %v662, %v663
      %v666 = vrot.slane %v662, 4
      %v668 = vshrl.u32 %v629, 16
      %v670 = vrot.slane %v668, 7
      %v671 = vshll.u32 %v629, 16
      %v673 = vor.u32 %v670, %v671
      %v674 = vsel %vm446, %v666, %v673
      %v675 = vrot.slane %v670, 4
      %v677 = vshrl.u32 %v630, 16
      %v679 = vrot.slane %v677, 7
      %v680 = vshll.u32 %v630, 16
      %v682 = vor.u32 %v679, %v680
      %v683 = vrot.slane %v679, 4
      %v685 = vshrl.u32 %v631, 16
      %v687 = vrot.slane %v685, 7
      %v688 = vshll.u32 %v631, 16
      %v690 = vor.u32 %v687, %v688
      %v691 = vsel %vm446, %v683, %v690
      %v692 = vrot.slane %v687, 4
      %v694 = vshrl.u32 %v632, 16
      %v696 = vrot.slane %v694, 7
      %v697 = vshll.u32 %v632, 16
      %v699 = vor.u32 %v696, %v697
      %v700 = vrot.slane %v696, 4
      %v702 = vshrl.u32 %v633, 16
      %v704 = vrot.slane %v702, 7
      %v705 = vshll.u32 %v633, 16
      %v707 = vor.u32 %v704, %v705
      %v708 = vsel %vm446, %v700, %v707
      %v709 = vrot.slane %v704, 4
      %v711 = vshrl.u32 %v634, 16
      %v713 = vrot.slane %v711, 7
      %v714 = vshll.u32 %v634, 16
      %v716 = vor.u32 %v713, %v714
      %v717 = vrot.slane %v713, 4
      %v719 = vshrl.u32 %v635, 16
      %v721 = vrot.slane %v719, 7
      %v722 = vshll.u32 %v635, 16
      %v724 = vor.u32 %v721, %v722
      %v725 = vsel %vm446, %v717, %v724
      %v726 = vrot.slane %v721, 4
      %v728 = vshrl.u32 %v636, 16
      %v730 = vrot.slane %v728, 7
      %v731 = vshll.u32 %v636, 16
      %v733 = vor.u32 %v730, %v731
      %v734 = vrot.slane %v730, 4
      %v736 = vshrl.u32 %v637, 16
      %v738 = vrot.slane %v736, 7
      %v739 = vshll.u32 %v637, 16
      %v741 = vor.u32 %v738, %v739
      %v742 = vsel %vm446, %v734, %v741
      %v743 = vrot.slane %v738, 4
      %v745 = vshrl.u32 %v638, 16
      %v747 = vrot.slane %v745, 7
      %v748 = vshll.u32 %v638, 16
      %v750 = vor.u32 %v747, %v748
      %v751 = vrot.slane %v747, 4
      %v753 = vshrl.u32 %v639, 16
      %v755 = vrot.slane %v753, 7
      %v756 = vshll.u32 %v639, 16
      %v758 = vor.u32 %v755, %v756
      %v759 = vsel %vm446, %v751, %v758
      %v760 = vrot.slane %v755, 4
      %v762 = vshrl.u32 %v640, 16
      %v764 = vrot.slane %v762, 7
      %v765 = vshll.u32 %v640, 16
      %v767 = vor.u32 %v764, %v765
      %v768 = vrot.slane %v764, 4
      %v770 = vshrl.u32 %v641, 16
      %v772 = vrot.slane %v770, 7
      %v773 = vshll.u32 %v641, 16
      %v775 = vor.u32 %v772, %v773
      %v776 = vsel %vm446, %v768, %v775
      %v777 = vrot.slane %v772, 4
      %s802 = scalar_lea.vmem [#allocation2], 12
      %v803 = vld [vmem:[%s802] sm:$0xf]
      %v804 = vsel %vm468, %v648, %v803
      %805 = vst [vmem:[%s802] sm:$0xf] %v804
      %806 = vst.msk [vmem:[%s802 + $0x4] sm:$0xf] %vm472, %v657
      %v807 = vld [vmem:[%s802 + $0x8] sm:$0x1]
      %v808 = vsel %vm320, %v658, %v807
      %809 = vst [vmem:[%s802 + $0x8] sm:$0x1] %v808
      %v810 = vld [vmem:[%s802 + $0xc] sm:$0xf]
      %v811 = vsel %vm468, %v665, %v810
      %812 = vst [vmem:[%s802 + $0xc] sm:$0xf] %v811
      %813 = vst.msk [vmem:[%s802 + $0x10] sm:$0xf] %vm472, %v674
      %v814 = vld [vmem:[%s802 + $0x14] sm:$0x1]
      %v815 = vsel %vm320, %v675, %v814
      %816 = vst [vmem:[%s802 + $0x14] sm:$0x1] %v815
      %v817 = vld [vmem:[%s802 + $0x18] sm:$0xf]
      %v818 = vsel %vm468, %v682, %v817
      %819 = vst [vmem:[%s802 + $0x18] sm:$0xf] %v818
      %820 = vst.msk [vmem:[%s802 + $0x1c] sm:$0xf] %vm472, %v691
      %v821 = vld [vmem:[%s802 + $0x20] sm:$0x1]
      %v822 = vsel %vm320, %v692, %v821
      %823 = vst [vmem:[%s802 + $0x20] sm:$0x1] %v822
      %v824 = vld [vmem:[%s802 + $0x24] sm:$0xf]
      %v825 = vsel %vm468, %v699, %v824
      %826 = vst [vmem:[%s802 + $0x24] sm:$0xf] %v825
      %827 = vst.msk [vmem:[%s802 + $0x28] sm:$0xf] %vm472, %v708
      %v828 = vld [vmem:[%s802 + $0x2c] sm:$0x1]
      %v829 = vsel %vm320, %v709, %v828
      %830 = vst [vmem:[%s802 + $0x2c] sm:$0x1] %v829
      %v831 = vld [vmem:[%s802 + $0x30] sm:$0xf]
      %v832 = vsel %vm468, %v716, %v831
      %833 = vst [vmem:[%s802 + $0x30] sm:$0xf] %v832
      %834 = vst.msk [vmem:[%s802 + $0x34] sm:$0xf] %vm472, %v725
      %v835 = vld [vmem:[%s802 + $0x38] sm:$0x1]
      %v836 = vsel %vm320, %v726, %v835
      %837 = vst [vmem:[%s802 + $0x38] sm:$0x1] %v836
      %v838 = vld [vmem:[%s802 + $0x3c] sm:$0xf]
      %v839 = vsel %vm468, %v733, %v838
      %840 = vst [vmem:[%s802 + $0x3c] sm:$0xf] %v839
      %841 = vst.msk [vmem:[%s802 + $0x40] sm:$0xf] %vm472, %v742
      %v842 = vld [vmem:[%s802 + $0x44] sm:$0x1]
      %v843 = vsel %vm320, %v743, %v842
      %844 = vst [vmem:[%s802 + $0x44] sm:$0x1] %v843
      %v845 = vld [vmem:[%s802 + $0x48] sm:$0xf]
      %v846 = vsel %vm468, %v750, %v845
      %847 = vst [vmem:[%s802 + $0x48] sm:$0xf] %v846
      %848 = vst.msk [vmem:[%s802 + $0x4c] sm:$0xf] %vm472, %v759
      %v849 = vld [vmem:[%s802 + $0x50] sm:$0x1]
      %v850 = vsel %vm320, %v760, %v849
      %851 = vst [vmem:[%s802 + $0x50] sm:$0x1] %v850
      %v852 = vld [vmem:[%s802 + $0x54] sm:$0xf]
      %v853 = vsel %vm468, %v767, %v852
      %854 = vst [vmem:[%s802 + $0x54] sm:$0xf] %v853
      %855 = vst.msk [vmem:[%s802 + $0x58] sm:$0xf] %vm472, %v776
      %v856 = vld [vmem:[%s802 + $0x5c] sm:$0x1]
      %v857 = vsel %vm320, %v777, %v856
      %858 = vst [vmem:[%s802 + $0x5c] sm:$0x1] %v857
      %v859 = vld [vmem:[#allocation2] sm:$0xf]
      %v860 = vld [vmem:[#allocation2 + $0x4] sm:$0xf]
      %v861 = vld [vmem:[#allocation2 + $0xc] sm:$0xf]
      %v862 = vld [vmem:[#allocation2 + $0x10] sm:$0xf]
      %v863 = vld [vmem:[#allocation2 + $0x18] sm:$0xf]
      %v864 = vld [vmem:[#allocation2 + $0x1c] sm:$0xf]
      %v865 = vld [vmem:[#allocation2 + $0x24] sm:$0xf]
      %v866 = vld [vmem:[#allocation2 + $0x28] sm:$0xf]
      %v867 = vld [vmem:[#allocation2 + $0x30] sm:$0xf]
      %v868 = vld [vmem:[#allocation2 + $0x34] sm:$0xf]
      %v869 = vld [vmem:[#allocation2 + $0x3c] sm:$0xf]
      %v870 = vld [vmem:[#allocation2 + $0x40] sm:$0xf]
      %v871 = vld [vmem:[#allocation2 + $0x48] sm:$0xf]
      %v872 = vld [vmem:[#allocation2 + $0x4c] sm:$0xf]
      %v873 = vld [vmem:[#allocation2 + $0x54] sm:$0xf]
      %v874 = vld [vmem:[#allocation2 + $0x58] sm:$0xf]
      %v875 = vld [vmem:[%s1] sm:$0xf]
      %v876 = vld [vmem:[%s1 + $0x4] sm:$0xf]
      %v877 = vld [vmem:[%s1 + $0x8] sm:$0xf]
      %v878 = vld [vmem:[%s1 + $0xc] sm:$0xf]
      %v879 = vld [vmem:[%s1 + $0x10] sm:$0xf]
      %v880 = vld [vmem:[%s1 + $0x14] sm:$0xf]
      %v881 = vld [vmem:[%s1 + $0x18] sm:$0xf]
      %v882 = vld [vmem:[%s1 + $0x1c] sm:$0xf]
      %v883 = vld [vmem:[#allocation2 + $0x8] sm:$0x1]
      %v884 = vld [vmem:[#allocation2 + $0x14] sm:$0x1]
      %v885 = vld [vmem:[#allocation2 + $0x20] sm:$0x1]
      %v886 = vld [vmem:[#allocation2 + $0x2c] sm:$0x1]
      %v887 = vld [vmem:[#allocation2 + $0x38] sm:$0x1]
      %v888 = vld [vmem:[#allocation2 + $0x44] sm:$0x1]
      %v889 = vld [vmem:[#allocation2 + $0x50] sm:$0x1]
      %v890 = vld [vmem:[#allocation2 + $0x5c] sm:$0x1]
      %vm891 = vsmask.f32 3328
      %vm892 = vsmask.f32 7440
      %vm893 = vmor %vm891, %vm892
      %v895 = vshrl.u32 %v859, 16
      %v897 = vrot.slane %v895, 4
      %v898 = vshll.u32 %v859, 16
      %v900 = vrot.slane %v898, 5
      %v901 = vor.u32 %v897, %v900
      %v902 = vrot.slane %v901, 4
      %v904 = vshll.u32 %v860, 16
      %v906 = vrot.slane %v904, 5
      %v907 = vsel %vm893, %v902, %v906
      %v908 = vshrl.u32 %v860, 16
      %v910 = vrot.slane %v908, 4
      %v911 = vor.u32 %v910, %v906
      %v912 = vrot.slane %v911, 4
      %v914 = vshll.u32 %v883, 16
      %v916 = vrot.slane %v914, 5
      %v917 = vsel %vm893, %v912, %v916
      %v919 = vshrl.u32 %v861, 16
      %v921 = vrot.slane %v919, 4
      %v922 = vshll.u32 %v861, 16
      %v924 = vrot.slane %v922, 5
      %v925 = vor.u32 %v921, %v924
      %v926 = vrot.slane %v925, 4
      %v928 = vshll.u32 %v862, 16
      %v930 = vrot.slane %v928, 5
      %v931 = vsel %vm893, %v926, %v930
      %v932 = vshrl.u32 %v862, 16
      %v934 = vrot.slane %v932, 4
      %v935 = vor.u32 %v934, %v930
      %v936 = vrot.slane %v935, 4
      %v938 = vshll.u32 %v884, 16
      %v940 = vrot.slane %v938, 5
      %v941 = vsel %vm893, %v936, %v940
      %v943 = vshrl.u32 %v863, 16
      %v945 = vrot.slane %v943, 4
      %v946 = vshll.u32 %v863, 16
      %v948 = vrot.slane %v946, 5
      %v949 = vor.u32 %v945, %v948
      %v950 = vrot.slane %v949, 4
      %v952 = vshll.u32 %v864, 16
      %v954 = vrot.slane %v952, 5
      %v955 = vsel %vm893, %v950, %v954
      %v956 = vshrl.u32 %v864, 16
      %v958 = vrot.slane %v956, 4
      %v959 = vor.u32 %v958, %v954
      %v960 = vrot.slane %v959, 4
      %v962 = vshll.u32 %v885, 16
      %v964 = vrot.slane %v962, 5
      %v965 = vsel %vm893, %v960, %v964
      %v967 = vshrl.u32 %v865, 16
      %v969 = vrot.slane %v967, 4
      %v970 = vshll.u32 %v865, 16
      %v972 = vrot.slane %v970, 5
      %v973 = vor.u32 %v969, %v972
      %v974 = vrot.slane %v973, 4
      %v976 = vshll.u32 %v866, 16
      %v978 = vrot.slane %v976, 5
      %v979 = vsel %vm893, %v974, %v978
      %v980 = vshrl.u32 %v866, 16
      %v982 = vrot.slane %v980, 4
      %v983 = vor.u32 %v982, %v978
      %v984 = vrot.slane %v983, 4
      %v986 = vshll.u32 %v886, 16
      %v988 = vrot.slane %v986, 5
      %v989 = vsel %vm893, %v984, %v988
      %v991 = vshrl.u32 %v867, 16
      %v993 = vrot.slane %v991, 4
      %v994 = vshll.u32 %v867, 16
      %v996 = vrot.slane %v994, 5
      %v997 = vor.u32 %v993, %v996
      %v998 = vrot.slane %v997, 4
      %v1000 = vshll.u32 %v868, 16
      %v1002 = vrot.slane %v1000, 5
      %v1003 = vsel %vm893, %v998, %v1002
      %v1004 = vshrl.u32 %v868, 16
      %v1006 = vrot.slane %v1004, 4
      %v1007 = vor.u32 %v1006, %v1002
      %v1008 = vrot.slane %v1007, 4
      %v1010 = vshll.u32 %v887, 16
      %v1012 = vrot.slane %v1010, 5
      %v1013 = vsel %vm893, %v1008, %v1012
      %v1015 = vshrl.u32 %v869, 16
      %v1017 = vrot.slane %v1015, 4
      %v1018 = vshll.u32 %v869, 16
      %v1020 = vrot.slane %v1018, 5
      %v1021 = vor.u32 %v1017, %v1020
      %v1022 = vrot.slane %v1021, 4
      %v1024 = vshll.u32 %v870, 16
      %v1026 = vrot.slane %v1024, 5
      %v1027 = vsel %vm893, %v1022, %v1026
      %v1028 = vshrl.u32 %v870, 16
      %v1030 = vrot.slane %v1028, 4
      %v1031 = vor.u32 %v1030, %v1026
      %v1032 = vrot.slane %v1031, 4
      %v1034 = vshll.u32 %v888, 16
      %v1036 = vrot.slane %v1034, 5
      %v1037 = vsel %vm893, %v1032, %v1036
      %v1039 = vshrl.u32 %v871, 16
      %v1041 = vrot.slane %v1039, 4
      %v1042 = vshll.u32 %v871, 16
      %v1044 = vrot.slane %v1042, 5
      %v1045 = vor.u32 %v1041, %v1044
      %v1046 = vrot.slane %v1045, 4
      %v1048 = vshll.u32 %v872, 16
      %v1050 = vrot.slane %v1048, 5
      %v1051 = vsel %vm893, %v1046, %v1050
      %v1052 = vshrl.u32 %v872, 16
      %v1054 = vrot.slane %v1052, 4
      %v1055 = vor.u32 %v1054, %v1050
      %v1056 = vrot.slane %v1055, 4
      %v1058 = vshll.u32 %v889, 16
      %v1060 = vrot.slane %v1058, 5
      %v1061 = vsel %vm893, %v1056, %v1060
      %v1063 = vshrl.u32 %v873, 16
      %v1065 = vrot.slane %v1063, 4
      %v1066 = vshll.u32 %v873, 16
      %v1068 = vrot.slane %v1066, 5
      %v1069 = vor.u32 %v1065, %v1068
      %v1070 = vrot.slane %v1069, 4
      %v1072 = vshll.u32 %v874, 16
      %v1074 = vrot.slane %v1072, 5
      %v1075 = vsel %vm893, %v1070, %v1074
      %v1076 = vshrl.u32 %v874, 16
      %v1078 = vrot.slane %v1076, 4
      %v1079 = vor.u32 %v1078, %v1074
      %v1080 = vrot.slane %v1079, 4
      %v1082 = vshll.u32 %v890, 16
      %v1084 = vrot.slane %v1082, 5
      %v1085 = vsel %vm893, %v1080, %v1084
      %s1086 = scalar_lea.vmem %s1, 32
      %v1087 = vld [vmem:[%s1086] sm:$0xf]
      %v1088 = vld [vmem:[%s1086 + $0x4] sm:$0xf]
      %v1089 = vld [vmem:[%s1086 + $0x8] sm:$0xf]
      %v1090 = vld [vmem:[%s1086 + $0xc] sm:$0xf]
      %v1091 = vld [vmem:[%s1086 + $0x10] sm:$0xf]
      %v1092 = vld [vmem:[%s1086 + $0x14] sm:$0xf]
      %v1093 = vld [vmem:[%s1086 + $0x18] sm:$0xf]
      %v1094 = vld [vmem:[%s1086 + $0x1c] sm:$0xf]
      %v1095 = vunpack.c.l.b16 %v907
      %v1096 = vunpack.c.l.b16 %v917
      %v1097 = vunpack.c.l.b16 %v931
      %v1098 = vunpack.c.l.b16 %v941
      %v1099 = vunpack.c.l.b16 %v955
      %v1100 = vunpack.c.l.b16 %v965
      %v1101 = vunpack.c.l.b16 %v979
      %v1102 = vunpack.c.l.b16 %v989
      %v1103 = vunpack.c.l.b16 %v1003
      %v1104 = vunpack.c.l.b16 %v1013
      %v1105 = vunpack.c.l.b16 %v1027
      %v1106 = vunpack.c.l.b16 %v1037
      %v1107 = vunpack.c.l.b16 %v1051
      %v1108 = vunpack.c.l.b16 %v1061
      %v1109 = vunpack.c.l.b16 %v1075
      %v1110 = vunpack.c.l.b16 %v1085
      %v1111 = vpack.c.b16 %v1096, %v1095
      %v1112 = vpack.c.b16 %v1098, %v1097
      %v1113 = vpack.c.b16 %v1100, %v1099
      %v1114 = vpack.c.b16 %v1102, %v1101
      %v1115 = vpack.c.b16 %v1104, %v1103
      %v1116 = vpack.c.b16 %v1106, %v1105
      %v1117 = vpack.c.b16 %v1108, %v1107
      %v1118 = vpack.c.b16 %v1110, %v1109
      %v1127 = vunpack.c.l.b16 %v1087
      %v1128 = vunpack.c.l.b16 %v1088
      %v1129 = vunpack.c.l.b16 %v1089
      %v1130 = vunpack.c.l.b16 %v1090
      %v1131 = vunpack.c.l.b16 %v1091
      %v1132 = vunpack.c.l.b16 %v1092
      %v1133 = vunpack.c.l.b16 %v1093
      %v1134 = vunpack.c.l.b16 %v1094
      %v1135 = vpack.c.b16 %v1128, %v1127
      %v1136 = vpack.c.b16 %v1130, %v1129
      %v1137 = vpack.c.b16 %v1132, %v1131
      %v1138 = vpack.c.b16 %v1134, %v1133
      %vm1143 = vcmask 523264
      %v1145 = vsel %vm1143, %v1111, 0
      %v1148 = vsel %vm1143, %v1112, 0
      %v1151 = vsel %vm1143, %v1113, 0
      %v1154 = vsel %vm1143, %v1114, 0
      %v1157 = vsel %vm1143, %v1115, 0
      %v1160 = vsel %vm1143, %v1116, 0
      %v1163 = vsel %vm1143, %v1117, 0
      %v1166 = vsel %vm1143, %v1118, 0
      %1168 = vmatprep.subr.bf16.mxu0 0
      %1169 = vmatpush1.bf16.msra.mxu0 0
      %1170 = vmatprep.subr.bf16.mxu0 0
      %1171 = vmatpush1.bf16.msra.mxu0 0
      %1172 = vmatprep.subr.bf16.mxu0 0
      %1173 = vmatpush1.bf16.msra.mxu0 0
      %1174 = vmatprep.subr.bf16.mxu0 0
      %1175 = vmatpush1.bf16.msra.mxu0 0
      %1176 = vmatprep.subr.bf16.mxu0 0
      %1177 = vmatpush1.bf16.msra.mxu0 %v1138
      %1178 = vmatprep.subr.bf16.mxu0 0
      %1179 = vmatpush1.bf16.msra.mxu0 %v1137
      %1180 = vmatprep.subr.bf16.mxu0 0
      %1181 = vmatpush1.bf16.msra.mxu0 %v1136
      %1182 = vmatprep.subr.bf16.mxu0 0
      %1183 = vmatpush1.bf16.msra.mxu0 %v1135
      %1184 = vmatprep.subr.bf16.mxu0 0
      %1185 = vmatpush2.bf16.msra.mxu0 0
      %1186 = vmatprep.subr.bf16.mxu0 0
      %1187 = vmatpush2.bf16.msra.mxu0 0
      %1188 = vmatprep.subr.bf16.mxu0 0
      %1189 = vmatpush2.bf16.msra.mxu0 0
      %1190 = vmatprep.subr.bf16.mxu0 0
      %1191 = vmatpush2.bf16.msra.mxu0 0
      %1192 = vmatprep.subr.bf16.mxu0 0
      %1193 = vmatpush2.bf16.msra.mxu0 0
      %1194 = vmatprep.subr.bf16.mxu0 0
      %1195 = vmatpush2.bf16.msra.mxu0 0
      %1196 = vmatprep.subr.bf16.mxu0 0
      %1197 = vmatpush2.bf16.msra.mxu0 0
      %1198 = vmatprep.subr.bf16.mxu0 0
      %1199 = vmatpush2.bf16.msra.mxu0 0
      %1200 = vmatprep.mubr.bf16.mxu0 0
      %1201 = vmatmul.mubr.bf16.gmra.mxu0 %v1145
      %v1202 = vpop.f32.mrf.mxu0
      %v1203 = vadd.f32 0.0, %v1202
      %v1204 = vpop.f32.mrf.mxu0
      %v1205 = vpop.f32.mrf.mxu0
      %v1206 = vadd.f32 0.0, %v1205
      %v1207 = vpop.f32.mrf.mxu0
      %1208 = vmatprep.mubr.bf16.mxu0 0
      %1209 = vmatmul.mubr.bf16.gmra.mxu0 %v1148
      %v1210 = vpop.f32.mrf.mxu0
      %v1211 = vadd.f32 0.0, %v1210
      %v1212 = vpop.f32.mrf.mxu0
      %v1213 = vpop.f32.mrf.mxu0
      %v1214 = vadd.f32 0.0, %v1213
      %v1215 = vpop.f32.mrf.mxu0
      %1216 = vmatprep.mubr.bf16.mxu0 0
      %1217 = vmatmul.mubr.bf16.gmra.mxu0 %v1151
      %v1218 = vpop.f32.mrf.mxu0
      %v1219 = vadd.f32 0.0, %v1218
      %v1220 = vpop.f32.mrf.mxu0
      %v1221 = vpop.f32.mrf.mxu0
      %v1222 = vadd.f32 0.0, %v1221
      %v1223 = vpop.f32.mrf.mxu0
      %1224 = vmatprep.mubr.bf16.mxu0 0
      %1225 = vmatmul.mubr.bf16.gmra.mxu0 %v1154
      %v1226 = vpop.f32.mrf.mxu0
      %v1227 = vadd.f32 0.0, %v1226
      %v1228 = vpop.f32.mrf.mxu0
      %v1229 = vpop.f32.mrf.mxu0
      %v1230 = vadd.f32 0.0, %v1229
      %v1231 = vpop.f32.mrf.mxu0
      %1232 = vmatprep.mubr.bf16.mxu0 0
      %1233 = vmatmul.mubr.bf16.gmra.mxu0 %v1157
      %v1234 = vpop.f32.mrf.mxu0
      %v1235 = vadd.f32 0.0, %v1234
      %v1236 = vpop.f32.mrf.mxu0
      %v1237 = vpop.f32.mrf.mxu0
      %v1238 = vadd.f32 0.0, %v1237
      %v1239 = vpop.f32.mrf.mxu0
      %1240 = vmatprep.mubr.bf16.mxu0 0
      %1241 = vmatmul.mubr.bf16.gmra.mxu0 %v1160
      %v1242 = vpop.f32.mrf.mxu0
      %v1243 = vadd.f32 0.0, %v1242
      %v1244 = vpop.f32.mrf.mxu0
      %v1245 = vpop.f32.mrf.mxu0
      %v1246 = vadd.f32 0.0, %v1245
      %v1247 = vpop.f32.mrf.mxu0
      %1248 = vmatprep.mubr.bf16.mxu0 0
      %1249 = vmatmul.mubr.bf16.gmra.mxu0 %v1163
      %v1250 = vpop.f32.mrf.mxu0
      %v1251 = vadd.f32 0.0, %v1250
      %v1252 = vpop.f32.mrf.mxu0
      %v1253 = vpop.f32.mrf.mxu0
      %v1254 = vadd.f32 0.0, %v1253
      %v1255 = vpop.f32.mrf.mxu0
      %1256 = vmatprep.mubr.bf16.mxu0 0
      %1257 = vmatmul.mubr.bf16.gmra.mxu0 %v1166
      %v1258 = vpop.f32.mrf.mxu0
      %v1259 = vadd.f32 0.0, %v1258
      %v1260 = vpop.f32.mrf.mxu0
      %v1261 = vpop.f32.mrf.mxu0
      %v1262 = vadd.f32 0.0, %v1261
      %v1263 = vpop.f32.mrf.mxu0
      %1264 = vdwg.mxu0
      %v1281 = vunpack.c.l.b16 %v859
      %v1282 = vunpack.c.l.b16 %v860
      %v1283 = vunpack.c.l.b16 %v861
      %v1284 = vunpack.c.l.b16 %v862
      %v1285 = vunpack.c.l.b16 %v863
      %v1286 = vunpack.c.l.b16 %v864
      %v1287 = vunpack.c.l.b16 %v865
      %v1288 = vunpack.c.l.b16 %v866
      %v1289 = vunpack.c.l.b16 %v867
      %v1290 = vunpack.c.l.b16 %v868
      %v1291 = vunpack.c.l.b16 %v869
      %v1292 = vunpack.c.l.b16 %v870
      %v1293 = vunpack.c.l.b16 %v871
      %v1294 = vunpack.c.l.b16 %v872
      %v1295 = vunpack.c.l.b16 %v873
      %v1296 = vunpack.c.l.b16 %v874
      %v1297 = vpack.c.b16 %v1282, %v1281
      %v1298 = vpack.c.b16 %v1284, %v1283
      %v1299 = vpack.c.b16 %v1286, %v1285
      %v1300 = vpack.c.b16 %v1288, %v1287
      %v1301 = vpack.c.b16 %v1290, %v1289
      %v1302 = vpack.c.b16 %v1292, %v1291
      %v1303 = vpack.c.b16 %v1294, %v1293
      %v1304 = vpack.c.b16 %v1296, %v1295
      %v1313 = vunpack.c.l.b16 %v875
      %v1314 = vunpack.c.l.b16 %v876
      %v1315 = vunpack.c.l.b16 %v877
      %v1316 = vunpack.c.l.b16 %v878
      %v1317 = vunpack.c.l.b16 %v879
      %v1318 = vunpack.c.l.b16 %v880
      %v1319 = vunpack.c.l.b16 %v881
      %v1320 = vunpack.c.l.b16 %v882
      %v1321 = vpack.c.b16 %v1314, %v1313
      %v1322 = vpack.c.b16 %v1316, %v1315
      %v1323 = vpack.c.b16 %v1318, %v1317
      %v1324 = vpack.c.b16 %v1320, %v1319
      %v1330 = vsel %vm1143, %v1297, 0
      %v1333 = vsel %vm1143, %v1298, 0
      %v1336 = vsel %vm1143, %v1299, 0
      %v1339 = vsel %vm1143, %v1300, 0
      %v1342 = vsel %vm1143, %v1301, 0
      %v1345 = vsel %vm1143, %v1302, 0
      %v1348 = vsel %vm1143, %v1303, 0
      %v1351 = vsel %vm1143, %v1304, 0
      %1353 = vmatprep.subr.bf16.mxu0 0
      %1354 = vmatpush1.bf16.msra.mxu0 0
      %1355 = vmatprep.subr.bf16.mxu0 0
      %1356 = vmatpush1.bf16.msra.mxu0 0
      %1357 = vmatprep.subr.bf16.mxu0 0
      %1358 = vmatpush1.bf16.msra.mxu0 0
      %1359 = vmatprep.subr.bf16.mxu0 0
      %1360 = vmatpush1.bf16.msra.mxu0 0
      %1361 = vmatprep.subr.bf16.mxu0 0
      %1362 = vmatpush1.bf16.msra.mxu0 %v1324
      %1363 = vmatprep.subr.bf16.mxu0 0
      %1364 = vmatpush1.bf16.msra.mxu0 %v1323
      %1365 = vmatprep.subr.bf16.mxu0 0
      %1366 = vmatpush1.bf16.msra.mxu0 %v1322
      %1367 = vmatprep.subr.bf16.mxu0 0
      %1368 = vmatpush1.bf16.msra.mxu0 %v1321
      %1369 = vmatprep.subr.bf16.mxu0 0
      %1370 = vmatpush2.bf16.msra.mxu0 0
      %1371 = vmatprep.subr.bf16.mxu0 0
      %1372 = vmatpush2.bf16.msra.mxu0 0
      %1373 = vmatprep.subr.bf16.mxu0 0
      %1374 = vmatpush2.bf16.msra.mxu0 0
      %1375 = vmatprep.subr.bf16.mxu0 0
      %1376 = vmatpush2.bf16.msra.mxu0 0
      %1377 = vmatprep.subr.bf16.mxu0 0
      %1378 = vmatpush2.bf16.msra.mxu0 0
      %1379 = vmatprep.subr.bf16.mxu0 0
      %1380 = vmatpush2.bf16.msra.mxu0 0
      %1381 = vmatprep.subr.bf16.mxu0 0
      %1382 = vmatpush2.bf16.msra.mxu0 0
      %1383 = vmatprep.subr.bf16.mxu0 0
      %1384 = vmatpush2.bf16.msra.mxu0 0
      %1385 = vmatprep.mubr.bf16.mxu0 0
      %1386 = vmatmul.mubr.bf16.gmra.mxu0 %v1330
      %v1387 = vpop.f32.mrf.mxu0
      %v1388 = vadd.f32 %v1203, %v1387
      %v1389 = vpop.f32.mrf.mxu0
      %v1390 = vpop.f32.mrf.mxu0
      %v1391 = vadd.f32 %v1206, %v1390
      %v1392 = vpop.f32.mrf.mxu0
      %1393 = vmatprep.mubr.bf16.mxu0 0
      %1394 = vmatmul.mubr.bf16.gmra.mxu0 %v1333
      %v1395 = vpop.f32.mrf.mxu0
      %v1396 = vadd.f32 %v1211, %v1395
      %v1397 = vpop.f32.mrf.mxu0
      %v1398 = vpop.f32.mrf.mxu0
      %v1399 = vadd.f32 %v1214, %v1398
      %v1400 = vpop.f32.mrf.mxu0
      %1401 = vmatprep.mubr.bf16.mxu0 0
      %1402 = vmatmul.mubr.bf16.gmra.mxu0 %v1336
      %v1403 = vpop.f32.mrf.mxu0
      %v1404 = vadd.f32 %v1219, %v1403
      %v1405 = vpop.f32.mrf.mxu0
      %v1406 = vpop.f32.mrf.mxu0
      %v1407 = vadd.f32 %v1222, %v1406
      %v1408 = vpop.f32.mrf.mxu0
      %1409 = vmatprep.mubr.bf16.mxu0 0
      %1410 = vmatmul.mubr.bf16.gmra.mxu0 %v1339
      %v1411 = vpop.f32.mrf.mxu0
      %v1412 = vadd.f32 %v1227, %v1411
      %v1413 = vpop.f32.mrf.mxu0
      %v1414 = vpop.f32.mrf.mxu0
      %v1415 = vadd.f32 %v1230, %v1414
      %v1416 = vpop.f32.mrf.mxu0
      %1417 = vmatprep.mubr.bf16.mxu0 0
      %1418 = vmatmul.mubr.bf16.gmra.mxu0 %v1342
      %v1419 = vpop.f32.mrf.mxu0
      %v1420 = vadd.f32 %v1235, %v1419
      %v1421 = vpop.f32.mrf.mxu0
      %v1422 = vpop.f32.mrf.mxu0
      %v1423 = vadd.f32 %v1238, %v1422
      %v1424 = vpop.f32.mrf.mxu0
      %1425 = vmatprep.mubr.bf16.mxu0 0
      %1426 = vmatmul.mubr.bf16.gmra.mxu0 %v1345
      %v1427 = vpop.f32.mrf.mxu0
      %v1428 = vadd.f32 %v1243, %v1427
      %v1429 = vpop.f32.mrf.mxu0
      %v1430 = vpop.f32.mrf.mxu0
      %v1431 = vadd.f32 %v1246, %v1430
      %v1432 = vpop.f32.mrf.mxu0
      %1433 = vmatprep.mubr.bf16.mxu0 0
      %1434 = vmatmul.mubr.bf16.gmra.mxu0 %v1348
      %v1435 = vpop.f32.mrf.mxu0
      %v1436 = vadd.f32 %v1251, %v1435
      %v1437 = vpop.f32.mrf.mxu0
      %v1438 = vpop.f32.mrf.mxu0
      %v1439 = vadd.f32 %v1254, %v1438
      %v1440 = vpop.f32.mrf.mxu0
      %1441 = vmatprep.mubr.bf16.mxu0 0
      %1442 = vmatmul.mubr.bf16.gmra.mxu0 %v1351
      %v1443 = vpop.f32.mrf.mxu0
      %v1444 = vadd.f32 %v1259, %v1443
      %v1445 = vpop.f32.mrf.mxu0
      %v1446 = vpop.f32.mrf.mxu0
      %v1447 = vadd.f32 %v1262, %v1446
      %v1448 = vpop.f32.mrf.mxu0
      %1449 = vdwg.mxu0
      %v1450 = vld [vmem:[#allocation2] sm:$0xe]
      %v1451 = vld [vmem:[#allocation2 + $0xc] sm:$0xe]
      %v1452 = vld [vmem:[#allocation2 + $0x18] sm:$0xe]
      %v1453 = vld [vmem:[#allocation2 + $0x24] sm:$0xe]
      %v1454 = vld [vmem:[#allocation2 + $0x30] sm:$0xe]
      %v1455 = vld [vmem:[#allocation2 + $0x3c] sm:$0xe]
      %v1456 = vld [vmem:[#allocation2 + $0x48] sm:$0xe]
      %v1457 = vld [vmem:[#allocation2 + $0x54] sm:$0xe]
      %vm1474 = vcmask 1042432
      %vm1475 = vcmask 1046532
      %vm1476 = vmor %vm1474, %vm1475
      %v1477 = vrot.slane %v1450, 5
      %v1478 = vrot.slane %v1477, 4
      %v1479 = vrot.slane %v860, 5
      %v1480 = vsel %vm1476, %v1478, %v1479
      %v1481 = vrot.slane %v1479, 4
      %v1482 = vrot.slane %v883, 5
      %v1483 = vsel %vm1476, %v1481, %v1482
      %v1484 = vrot.slane %v1451, 5
      %v1485 = vrot.slane %v1484, 4
      %v1486 = vrot.slane %v862, 5
      %v1487 = vsel %vm1476, %v1485, %v1486
      %v1488 = vrot.slane %v1486, 4
      %v1489 = vrot.slane %v884, 5
      %v1490 = vsel %vm1476, %v1488, %v1489
      %v1491 = vrot.slane %v1452, 5
      %v1492 = vrot.slane %v1491, 4
      %v1493 = vrot.slane %v864, 5
      %v1494 = vsel %vm1476, %v1492, %v1493
      %v1495 = vrot.slane %v1493, 4
      %v1496 = vrot.slane %v885, 5
      %v1497 = vsel %vm1476, %v1495, %v1496
      %v1498 = vrot.slane %v1453, 5
      %v1499 = vrot.slane %v1498, 4
      %v1500 = vrot.slane %v866, 5
      %v1501 = vsel %vm1476, %v1499, %v1500
      %v1502 = vrot.slane %v1500, 4
      %v1503 = vrot.slane %v886, 5
      %v1504 = vsel %vm1476, %v1502, %v1503
      %v1505 = vrot.slane %v1454, 5
      %v1506 = vrot.slane %v1505, 4
      %v1507 = vrot.slane %v868, 5
      %v1508 = vsel %vm1476, %v1506, %v1507
      %v1509 = vrot.slane %v1507, 4
      %v1510 = vrot.slane %v887, 5
      %v1511 = vsel %vm1476, %v1509, %v1510
      %v1512 = vrot.slane %v1455, 5
      %v1513 = vrot.slane %v1512, 4
      %v1514 = vrot.slane %v870, 5
      %v1515 = vsel %vm1476, %v1513, %v1514
      %v1516 = vrot.slane %v1514, 4
      %v1517 = vrot.slane %v888, 5
      %v1518 = vsel %vm1476, %v1516, %v1517
      %v1519 = vrot.slane %v1456, 5
      %v1520 = vrot.slane %v1519, 4
      %v1521 = vrot.slane %v872, 5
      %v1522 = vsel %vm1476, %v1520, %v1521
      %v1523 = vrot.slane %v1521, 4
      %v1524 = vrot.slane %v889, 5
      %v1525 = vsel %vm1476, %v1523, %v1524
      %v1526 = vrot.slane %v1457, 5
      %v1527 = vrot.slane %v1526, 4
      %v1528 = vrot.slane %v874, 5
      %v1529 = vsel %vm1476, %v1527, %v1528
      %v1530 = vrot.slane %v1528, 4
      %v1531 = vrot.slane %v890, 5
      %v1532 = vsel %vm1476, %v1530, %v1531
      %s1533 = scalar_lea.vmem %s1, 64
      %v1534 = vld [vmem:[%s1533] sm:$0xf]
      %v1535 = vld [vmem:[%s1533 + $0x4] sm:$0xf]
      %v1536 = vld [vmem:[%s1533 + $0x8] sm:$0xf]
      %v1537 = vld [vmem:[%s1533 + $0xc] sm:$0xf]
      %v1538 = vld [vmem:[%s1533 + $0x10] sm:$0xf]
      %v1539 = vld [vmem:[%s1533 + $0x14] sm:$0xf]
      %v1540 = vld [vmem:[%s1533 + $0x18] sm:$0xf]
      %v1541 = vld [vmem:[%s1533 + $0x1c] sm:$0xf]
      %v1542 = vunpack.c.l.b16 %v1480
      %v1543 = vunpack.c.l.b16 %v1483
      %v1544 = vunpack.c.l.b16 %v1487
      %v1545 = vunpack.c.l.b16 %v1490
      %v1546 = vunpack.c.l.b16 %v1494
      %v1547 = vunpack.c.l.b16 %v1497
      %v1548 = vunpack.c.l.b16 %v1501
      %v1549 = vunpack.c.l.b16 %v1504
      %v1550 = vunpack.c.l.b16 %v1508
      %v1551 = vunpack.c.l.b16 %v1511
      %v1552 = vunpack.c.l.b16 %v1515
      %v1553 = vunpack.c.l.b16 %v1518
      %v1554 = vunpack.c.l.b16 %v1522
      %v1555 = vunpack.c.l.b16 %v1525
      %v1556 = vunpack.c.l.b16 %v1529
      %v1557 = vunpack.c.l.b16 %v1532
      %v1558 = vpack.c.b16 %v1543, %v1542
      %v1559 = vpack.c.b16 %v1545, %v1544
      %v1560 = vpack.c.b16 %v1547, %v1546
      %v1561 = vpack.c.b16 %v1549, %v1548
      %v1562 = vpack.c.b16 %v1551, %v1550
      %v1563 = vpack.c.b16 %v1553, %v1552
      %v1564 = vpack.c.b16 %v1555, %v1554
      %v1565 = vpack.c.b16 %v1557, %v1556
      %v1574 = vunpack.c.l.b16 %v1534
      %v1575 = vunpack.c.l.b16 %v1535
      %v1576 = vunpack.c.l.b16 %v1536
      %v1577 = vunpack.c.l.b16 %v1537
      %v1578 = vunpack.c.l.b16 %v1538
      %v1579 = vunpack.c.l.b16 %v1539
      %v1580 = vunpack.c.l.b16 %v1540
      %v1581 = vunpack.c.l.b16 %v1541
      %v1582 = vpack.c.b16 %v1575, %v1574
      %v1583 = vpack.c.b16 %v1577, %v1576
      %v1584 = vpack.c.b16 %v1579, %v1578
      %v1585 = vpack.c.b16 %v1581, %v1580
      %v1591 = vsel %vm1143, %v1558, 0
      %v1594 = vsel %vm1143, %v1559, 0
      %v1597 = vsel %vm1143, %v1560, 0
      %v1600 = vsel %vm1143, %v1561, 0
      %v1603 = vsel %vm1143, %v1562, 0
      %v1606 = vsel %vm1143, %v1563, 0
      %v1609 = vsel %vm1143, %v1564, 0
      %v1612 = vsel %vm1143, %v1565, 0
      %1614 = vmatprep.subr.bf16.mxu0 0
      %1615 = vmatpush1.bf16.msra.mxu0 0
      %1616 = vmatprep.subr.bf16.mxu0 0
      %1617 = vmatpush1.bf16.msra.mxu0 0
      %1618 = vmatprep.subr.bf16.mxu0 0
      %1619 = vmatpush1.bf16.msra.mxu0 0
      %1620 = vmatprep.subr.bf16.mxu0 0
      %1621 = vmatpush1.bf16.msra.mxu0 0
      %1622 = vmatprep.subr.bf16.mxu0 0
      %1623 = vmatpush1.bf16.msra.mxu0 %v1585
      %1624 = vmatprep.subr.bf16.mxu0 0
      %1625 = vmatpush1.bf16.msra.mxu0 %v1584
      %1626 = vmatprep.subr.bf16.mxu0 0
      %1627 = vmatpush1.bf16.msra.mxu0 %v1583
      %1628 = vmatprep.subr.bf16.mxu0 0
      %1629 = vmatpush1.bf16.msra.mxu0 %v1582
      %1630 = vmatprep.subr.bf16.mxu0 0
      %1631 = vmatpush2.bf16.msra.mxu0 0
      %1632 = vmatprep.subr.bf16.mxu0 0
      %1633 = vmatpush2.bf16.msra.mxu0 0
      %1634 = vmatprep.subr.bf16.mxu0 0
      %1635 = vmatpush2.bf16.msra.mxu0 0
      %1636 = vmatprep.subr.bf16.mxu0 0
      %1637 = vmatpush2.bf16.msra.mxu0 0
      %1638 = vmatprep.subr.bf16.mxu0 0
      %1639 = vmatpush2.bf16.msra.mxu0 0
      %1640 = vmatprep.subr.bf16.mxu0 0
      %1641 = vmatpush2.bf16.msra.mxu0 0
      %1642 = vmatprep.subr.bf16.mxu0 0
      %1643 = vmatpush2.bf16.msra.mxu0 0
      %1644 = vmatprep.subr.bf16.mxu0 0
      %1645 = vmatpush2.bf16.msra.mxu0 0
      %1646 = vmatprep.mubr.bf16.mxu0 0
      %1647 = vmatmul.mubr.bf16.gmra.mxu0 %v1591
      %v1648 = vpop.f32.mrf.mxu0
      %v1649 = vadd.f32 0.0, %v1648
      %v1650 = vpop.f32.mrf.mxu0
      %v1651 = vpop.f32.mrf.mxu0
      %v1652 = vadd.f32 0.0, %v1651
      %v1653 = vpop.f32.mrf.mxu0
      %1654 = vmatprep.mubr.bf16.mxu0 0
      %1655 = vmatmul.mubr.bf16.gmra.mxu0 %v1594
      %v1656 = vpop.f32.mrf.mxu0
      %v1657 = vadd.f32 0.0, %v1656
      %v1658 = vpop.f32.mrf.mxu0
      %v1659 = vpop.f32.mrf.mxu0
      %v1660 = vadd.f32 0.0, %v1659
      %v1661 = vpop.f32.mrf.mxu0
      %1662 = vmatprep.mubr.bf16.mxu0 0
      %1663 = vmatmul.mubr.bf16.gmra.mxu0 %v1597
      %v1664 = vpop.f32.mrf.mxu0
      %v1665 = vadd.f32 0.0, %v1664
      %v1666 = vpop.f32.mrf.mxu0
      %v1667 = vpop.f32.mrf.mxu0
      %v1668 = vadd.f32 0.0, %v1667
      %v1669 = vpop.f32.mrf.mxu0
      %1670 = vmatprep.mubr.bf16.mxu0 0
      %1671 = vmatmul.mubr.bf16.gmra.mxu0 %v1600
      %v1672 = vpop.f32.mrf.mxu0
      %v1673 = vadd.f32 0.0, %v1672
      %v1674 = vpop.f32.mrf.mxu0
      %v1675 = vpop.f32.mrf.mxu0
      %v1676 = vadd.f32 0.0, %v1675
      %v1677 = vpop.f32.mrf.mxu0
      %1678 = vmatprep.mubr.bf16.mxu0 0
      %1679 = vmatmul.mubr.bf16.gmra.mxu0 %v1603
      %v1680 = vpop.f32.mrf.mxu0
      %v1681 = vadd.f32 0.0, %v1680
      %v1682 = vpop.f32.mrf.mxu0
      %v1683 = vpop.f32.mrf.mxu0
      %v1684 = vadd.f32 0.0, %v1683
      %v1685 = vpop.f32.mrf.mxu0
      %1686 = vmatprep.mubr.bf16.mxu0 0
      %1687 = vmatmul.mubr.bf16.gmra.mxu0 %v1606
      %v1688 = vpop.f32.mrf.mxu0
      %v1689 = vadd.f32 0.0, %v1688
      %v1690 = vpop.f32.mrf.mxu0
      %v1691 = vpop.f32.mrf.mxu0
      %v1692 = vadd.f32 0.0, %v1691
      %v1693 = vpop.f32.mrf.mxu0
      %1694 = vmatprep.mubr.bf16.mxu0 0
      %1695 = vmatmul.mubr.bf16.gmra.mxu0 %v1609
      %v1696 = vpop.f32.mrf.mxu0
      %v1697 = vadd.f32 0.0, %v1696
      %v1698 = vpop.f32.mrf.mxu0
      %v1699 = vpop.f32.mrf.mxu0
      %v1700 = vadd.f32 0.0, %v1699
      %v1701 = vpop.f32.mrf.mxu0
      %1702 = vmatprep.mubr.bf16.mxu0 0
      %1703 = vmatmul.mubr.bf16.gmra.mxu0 %v1612
      %v1704 = vpop.f32.mrf.mxu0
      %v1705 = vadd.f32 0.0, %v1704
      %v1706 = vpop.f32.mrf.mxu0
      %v1707 = vpop.f32.mrf.mxu0
      %v1708 = vadd.f32 0.0, %v1707
      %v1709 = vpop.f32.mrf.mxu0
      %1710 = vdwg.mxu0
      %v1711 = vadd.f32 %v1388, %v1649
      %v1712 = vadd.f32 %v1391, %v1652
      %v1713 = vadd.f32 %v1396, %v1657
      %v1714 = vadd.f32 %v1399, %v1660
      %v1715 = vadd.f32 %v1404, %v1665
      %v1716 = vadd.f32 %v1407, %v1668
      %v1717 = vadd.f32 %v1412, %v1673
      %v1718 = vadd.f32 %v1415, %v1676
      %v1719 = vadd.f32 %v1420, %v1681
      %v1720 = vadd.f32 %v1423, %v1684
      %v1721 = vadd.f32 %v1428, %v1689
      %v1722 = vadd.f32 %v1431, %v1692
      %v1723 = vadd.f32 %v1436, %v1697
      %v1724 = vadd.f32 %v1439, %v1700
      %v1725 = vadd.f32 %v1444, %v1705
      %v1726 = vadd.f32 %v1447, %v1708
      %v1727 = vld [vmem:[%s802] sm:$0xf]
      %v1728 = vld [vmem:[%s802 + $0x4] sm:$0xf]
      %v1729 = vld [vmem:[%s802 + $0xc] sm:$0xf]
      %v1730 = vld [vmem:[%s802 + $0x10] sm:$0xf]
      %v1731 = vld [vmem:[%s802 + $0x18] sm:$0xf]
      %v1732 = vld [vmem:[%s802 + $0x1c] sm:$0xf]
      %v1733 = vld [vmem:[%s802 + $0x24] sm:$0xf]
      %v1734 = vld [vmem:[%s802 + $0x28] sm:$0xf]
      %v1735 = vld [vmem:[%s802 + $0x30] sm:$0xf]
      %v1736 = vld [vmem:[%s802 + $0x34] sm:$0xf]
      %v1737 = vld [vmem:[%s802 + $0x3c] sm:$0xf]
      %v1738 = vld [vmem:[%s802 + $0x40] sm:$0xf]
      %v1739 = vld [vmem:[%s802 + $0x48] sm:$0xf]
      %v1740 = vld [vmem:[%s802 + $0x4c] sm:$0xf]
      %v1741 = vld [vmem:[%s802 + $0x54] sm:$0xf]
      %v1742 = vld [vmem:[%s802 + $0x58] sm:$0xf]
      %s1743 = scalar_lea.vmem %s1, 96
      %v1744 = vld [vmem:[%s1743] sm:$0xf]
      %v1745 = vld [vmem:[%s1743 + $0x4] sm:$0xf]
      %v1746 = vld [vmem:[%s1743 + $0x8] sm:$0xf]
      %v1747 = vld [vmem:[%s1743 + $0xc] sm:$0xf]
      %v1748 = vld [vmem:[%s1743 + $0x10] sm:$0xf]
      %v1749 = vld [vmem:[%s1743 + $0x14] sm:$0xf]
      %v1750 = vld [vmem:[%s1743 + $0x18] sm:$0xf]
      %v1751 = vld [vmem:[%s1743 + $0x1c] sm:$0xf]
      %v1768 = vunpack.c.l.b16 %v1727
      %v1769 = vunpack.c.l.b16 %v1728
      %v1770 = vunpack.c.l.b16 %v1729
      %v1771 = vunpack.c.l.b16 %v1730
      %v1772 = vunpack.c.l.b16 %v1731
      %v1773 = vunpack.c.l.b16 %v1732
      %v1774 = vunpack.c.l.b16 %v1733
      %v1775 = vunpack.c.l.b16 %v1734
      %v1776 = vunpack.c.l.b16 %v1735
      %v1777 = vunpack.c.l.b16 %v1736
      %v1778 = vunpack.c.l.b16 %v1737
      %v1779 = vunpack.c.l.b16 %v1738
      %v1780 = vunpack.c.l.b16 %v1739
      %v1781 = vunpack.c.l.b16 %v1740
      %v1782 = vunpack.c.l.b16 %v1741
      %v1783 = vunpack.c.l.b16 %v1742
      %v1784 = vpack.c.b16 %v1769, %v1768
      %v1785 = vpack.c.b16 %v1771, %v1770
      %v1786 = vpack.c.b16 %v1773, %v1772
      %v1787 = vpack.c.b16 %v1775, %v1774
      %v1788 = vpack.c.b16 %v1777, %v1776
      %v1789 = vpack.c.b16 %v1779, %v1778
      %v1790 = vpack.c.b16 %v1781, %v1780
      %v1791 = vpack.c.b16 %v1783, %v1782
      %v1800 = vunpack.c.l.b16 %v1744
      %v1801 = vunpack.c.l.b16 %v1745
      %v1802 = vunpack.c.l.b16 %v1746
      %v1803 = vunpack.c.l.b16 %v1747
      %v1804 = vunpack.c.l.b16 %v1748
      %v1805 = vunpack.c.l.b16 %v1749
      %v1806 = vunpack.c.l.b16 %v1750
      %v1807 = vunpack.c.l.b16 %v1751
      %v1808 = vpack.c.b16 %v1801, %v1800
      %v1809 = vpack.c.b16 %v1803, %v1802
      %v1810 = vpack.c.b16 %v1805, %v1804
      %v1811 = vpack.c.b16 %v1807, %v1806
      %v1817 = vsel %vm1143, %v1784, 0
      %v1820 = vsel %vm1143, %v1785, 0
      %v1823 = vsel %vm1143, %v1786, 0
      %v1826 = vsel %vm1143, %v1787, 0
      %v1829 = vsel %vm1143, %v1788, 0
      %v1832 = vsel %vm1143, %v1789, 0
      %v1835 = vsel %vm1143, %v1790, 0
      %v1838 = vsel %vm1143, %v1791, 0
      %1840 = vmatprep.subr.bf16.mxu0 0
      %1841 = vmatpush1.bf16.msra.mxu0 0
      %1842 = vmatprep.subr.bf16.mxu0 0
      %1843 = vmatpush1.bf16.msra.mxu0 0
      %1844 = vmatprep.subr.bf16.mxu0 0
      %1845 = vmatpush1.bf16.msra.mxu0 0
      %1846 = vmatprep.subr.bf16.mxu0 0
      %1847 = vmatpush1.bf16.msra.mxu0 0
      %1848 = vmatprep.subr.bf16.mxu0 0
      %1849 = vmatpush1.bf16.msra.mxu0 %v1811
      %1850 = vmatprep.subr.bf16.mxu0 0
      %1851 = vmatpush1.bf16.msra.mxu0 %v1810
      %1852 = vmatprep.subr.bf16.mxu0 0
      %1853 = vmatpush1.bf16.msra.mxu0 %v1809
      %1854 = vmatprep.subr.bf16.mxu0 0
      %1855 = vmatpush1.bf16.msra.mxu0 %v1808
      %1856 = vmatprep.subr.bf16.mxu0 0
      %1857 = vmatpush2.bf16.msra.mxu0 0
      %1858 = vmatprep.subr.bf16.mxu0 0
      %1859 = vmatpush2.bf16.msra.mxu0 0
      %1860 = vmatprep.subr.bf16.mxu0 0
      %1861 = vmatpush2.bf16.msra.mxu0 0
      %1862 = vmatprep.subr.bf16.mxu0 0
      %1863 = vmatpush2.bf16.msra.mxu0 0
      %1864 = vmatprep.subr.bf16.mxu0 0
      %1865 = vmatpush2.bf16.msra.mxu0 0
      %1866 = vmatprep.subr.bf16.mxu0 0
      %1867 = vmatpush2.bf16.msra.mxu0 0
      %1868 = vmatprep.subr.bf16.mxu0 0
      %1869 = vmatpush2.bf16.msra.mxu0 0
      %1870 = vmatprep.subr.bf16.mxu0 0
      %1871 = vmatpush2.bf16.msra.mxu0 0
      %1872 = vmatprep.mubr.bf16.mxu0 0
      %1873 = vmatmul.mubr.bf16.gmra.mxu0 %v1817
      %v1874 = vpop.f32.mrf.mxu0
      %v1875 = vadd.f32 0.0, %v1874
      %v1876 = vpop.f32.mrf.mxu0
      %v1877 = vpop.f32.mrf.mxu0
      %v1878 = vadd.f32 0.0, %v1877
      %v1879 = vpop.f32.mrf.mxu0
      %1880 = vmatprep.mubr.bf16.mxu0 0
      %1881 = vmatmul.mubr.bf16.gmra.mxu0 %v1820
      %v1882 = vpop.f32.mrf.mxu0
      %v1883 = vadd.f32 0.0, %v1882
      %v1884 = vpop.f32.mrf.mxu0
      %v1885 = vpop.f32.mrf.mxu0
      %v1886 = vadd.f32 0.0, %v1885
      %v1887 = vpop.f32.mrf.mxu0
      %1888 = vmatprep.mubr.bf16.mxu0 0
      %1889 = vmatmul.mubr.bf16.gmra.mxu0 %v1823
      %v1890 = vpop.f32.mrf.mxu0
      %v1891 = vadd.f32 0.0, %v1890
      %v1892 = vpop.f32.mrf.mxu0
      %v1893 = vpop.f32.mrf.mxu0
      %v1894 = vadd.f32 0.0, %v1893
      %v1895 = vpop.f32.mrf.mxu0
      %1896 = vmatprep.mubr.bf16.mxu0 0
      %1897 = vmatmul.mubr.bf16.gmra.mxu0 %v1826
      %v1898 = vpop.f32.mrf.mxu0
      %v1899 = vadd.f32 0.0, %v1898
      %v1900 = vpop.f32.mrf.mxu0
      %v1901 = vpop.f32.mrf.mxu0
      %v1902 = vadd.f32 0.0, %v1901
      %v1903 = vpop.f32.mrf.mxu0
      %1904 = vmatprep.mubr.bf16.mxu0 0
      %1905 = vmatmul.mubr.bf16.gmra.mxu0 %v1829
      %v1906 = vpop.f32.mrf.mxu0
      %v1907 = vadd.f32 0.0, %v1906
      %v1908 = vpop.f32.mrf.mxu0
      %v1909 = vpop.f32.mrf.mxu0
      %v1910 = vadd.f32 0.0, %v1909
      %v1911 = vpop.f32.mrf.mxu0
      %1912 = vmatprep.mubr.bf16.mxu0 0
      %1913 = vmatmul.mubr.bf16.gmra.mxu0 %v1832
      %v1914 = vpop.f32.mrf.mxu0
      %v1915 = vadd.f32 0.0, %v1914
      %v1916 = vpop.f32.mrf.mxu0
      %v1917 = vpop.f32.mrf.mxu0
      %v1918 = vadd.f32 0.0, %v1917
      %v1919 = vpop.f32.mrf.mxu0
      %1920 = vmatprep.mubr.bf16.mxu0 0
      %1921 = vmatmul.mubr.bf16.gmra.mxu0 %v1835
      %v1922 = vpop.f32.mrf.mxu0
      %v1923 = vadd.f32 0.0, %v1922
      %v1924 = vpop.f32.mrf.mxu0
      %v1925 = vpop.f32.mrf.mxu0
      %v1926 = vadd.f32 0.0, %v1925
      %v1927 = vpop.f32.mrf.mxu0
      %1928 = vmatprep.mubr.bf16.mxu0 0
      %1929 = vmatmul.mubr.bf16.gmra.mxu0 %v1838
      %v1930 = vpop.f32.mrf.mxu0
      %v1931 = vadd.f32 0.0, %v1930
      %v1932 = vpop.f32.mrf.mxu0
      %v1933 = vpop.f32.mrf.mxu0
      %v1934 = vadd.f32 0.0, %v1933
      %v1935 = vpop.f32.mrf.mxu0
      %1936 = vdwg.mxu0
      %v1937 = vadd.f32 %v1711, %v1875
      %v1938 = vadd.f32 %v1712, %v1878
      %v1939 = vadd.f32 %v1713, %v1883
      %v1940 = vadd.f32 %v1714, %v1886
      %v1941 = vadd.f32 %v1715, %v1891
      %v1942 = vadd.f32 %v1716, %v1894
      %v1943 = vadd.f32 %v1717, %v1899
      %v1944 = vadd.f32 %v1718, %v1902
      %v1945 = vadd.f32 %v1719, %v1907
      %v1946 = vadd.f32 %v1720, %v1910
      %v1947 = vadd.f32 %v1721, %v1915
      %v1948 = vadd.f32 %v1722, %v1918
      %v1949 = vadd.f32 %v1723, %v1923
      %v1950 = vadd.f32 %v1724, %v1926
      %v1951 = vadd.f32 %v1725, %v1931
      %v1952 = vadd.f32 %v1726, %v1934
      %v1953 = vld [vmem:[%s802] sm:$0xf]
      %v1954 = vld [vmem:[%s802 + $0x4] sm:$0xf]
      %v1955 = vld [vmem:[%s802 + $0x8] sm:$0x1]
      %v1956 = vld [vmem:[%s802 + $0xc] sm:$0xf]
      %v1957 = vld [vmem:[%s802 + $0x10] sm:$0xf]
      %v1958 = vld [vmem:[%s802 + $0x14] sm:$0x1]
      %v1959 = vld [vmem:[%s802 + $0x18] sm:$0xf]
      %v1960 = vld [vmem:[%s802 + $0x1c] sm:$0xf]
      %v1961 = vld [vmem:[%s802 + $0x20] sm:$0x1]
      %v1962 = vld [vmem:[%s802 + $0x24] sm:$0xf]
      %v1963 = vld [vmem:[%s802 + $0x28] sm:$0xf]
      %v1964 = vld [vmem:[%s802 + $0x2c] sm:$0x1]
      %v1965 = vld [vmem:[%s802 + $0x30] sm:$0xf]
      %v1966 = vld [vmem:[%s802 + $0x34] sm:$0xf]
      %v1967 = vld [vmem:[%s802 + $0x38] sm:$0x1]
      %v1968 = vld [vmem:[%s802 + $0x3c] sm:$0xf]
      %v1969 = vld [vmem:[%s802 + $0x40] sm:$0xf]
      %v1970 = vld [vmem:[%s802 + $0x44] sm:$0x1]
      %v1971 = vld [vmem:[%s802 + $0x48] sm:$0xf]
      %v1972 = vld [vmem:[%s802 + $0x4c] sm:$0xf]
      %v1973 = vld [vmem:[%s802 + $0x50] sm:$0x1]
      %v1974 = vld [vmem:[%s802 + $0x54] sm:$0xf]
      %v1975 = vld [vmem:[%s802 + $0x58] sm:$0xf]
      %v1976 = vld [vmem:[%s802 + $0x5c] sm:$0x1]
      %v1978 = vshrl.u32 %v1953, 16
      %v1980 = vrot.slane %v1978, 4
      %v1981 = vshll.u32 %v1953, 16
      %v1983 = vrot.slane %v1981, 5
      %v1984 = vor.u32 %v1980, %v1983
      %v1985 = vrot.slane %v1984, 4
      %v1987 = vshll.u32 %v1954, 16
      %v1989 = vrot.slane %v1987, 5
      %v1990 = vsel %vm893, %v1985, %v1989
      %v1991 = vshrl.u32 %v1954, 16
      %v1993 = vrot.slane %v1991, 4
      %v1994 = vor.u32 %v1993, %v1989
      %v1995 = vrot.slane %v1994, 4
      %v1997 = vshll.u32 %v1955, 16
      %v1999 = vrot.slane %v1997, 5
      %v2000 = vsel %vm893, %v1995, %v1999
      %v2002 = vshrl.u32 %v1956, 16
      %v2004 = vrot.slane %v2002, 4
      %v2005 = vshll.u32 %v1956, 16
      %v2007 = vrot.slane %v2005, 5
      %v2008 = vor.u32 %v2004, %v2007
      %v2009 = vrot.slane %v2008, 4
      %v2011 = vshll.u32 %v1957, 16
      %v2013 = vrot.slane %v2011, 5
      %v2014 = vsel %vm893, %v2009, %v2013
      %v2015 = vshrl.u32 %v1957, 16
      %v2017 = vrot.slane %v2015, 4
      %v2018 = vor.u32 %v2017, %v2013
      %v2019 = vrot.slane %v2018, 4
      %v2021 = vshll.u32 %v1958, 16
      %v2023 = vrot.slane %v2021, 5
      %v2024 = vsel %vm893, %v2019, %v2023
      %v2026 = vshrl.u32 %v1959, 16
      %v2028 = vrot.slane %v2026, 4
      %v2029 = vshll.u32 %v1959, 16
      %v2031 = vrot.slane %v2029, 5
      %v2032 = vor.u32 %v2028, %v2031
      %v2033 = vrot.slane %v2032, 4
      %v2035 = vshll.u32 %v1960, 16
      %v2037 = vrot.slane %v2035, 5
      %v2038 = vsel %vm893, %v2033, %v2037
      %v2039 = vshrl.u32 %v1960, 16
      %v2041 = vrot.slane %v2039, 4
      %v2042 = vor.u32 %v2041, %v2037
      %v2043 = vrot.slane %v2042, 4
      %v2045 = vshll.u32 %v1961, 16
      %v2047 = vrot.slane %v2045, 5
      %v2048 = vsel %vm893, %v2043, %v2047
      %v2050 = vshrl.u32 %v1962, 16
      %v2052 = vrot.slane %v2050, 4
      %v2053 = vshll.u32 %v1962, 16
      %v2055 = vrot.slane %v2053, 5
      %v2056 = vor.u32 %v2052, %v2055
      %v2057 = vrot.slane %v2056, 4
      %v2059 = vshll.u32 %v1963, 16
      %v2061 = vrot.slane %v2059, 5
      %v2062 = vsel %vm893, %v2057, %v2061
      %v2063 = vshrl.u32 %v1963, 16
      %v2065 = vrot.slane %v2063, 4
      %v2066 = vor.u32 %v2065, %v2061
      %v2067 = vrot.slane %v2066, 4
      %v2069 = vshll.u32 %v1964, 16
      %v2071 = vrot.slane %v2069, 5
      %v2072 = vsel %vm893, %v2067, %v2071
      %v2074 = vshrl.u32 %v1965, 16
      %v2076 = vrot.slane %v2074, 4
      %v2077 = vshll.u32 %v1965, 16
      %v2079 = vrot.slane %v2077, 5
      %v2080 = vor.u32 %v2076, %v2079
      %v2081 = vrot.slane %v2080, 4
      %v2083 = vshll.u32 %v1966, 16
      %v2085 = vrot.slane %v2083, 5
      %v2086 = vsel %vm893, %v2081, %v2085
      %v2087 = vshrl.u32 %v1966, 16
      %v2089 = vrot.slane %v2087, 4
      %v2090 = vor.u32 %v2089, %v2085
      %v2091 = vrot.slane %v2090, 4
      %v2093 = vshll.u32 %v1967, 16
      %v2095 = vrot.slane %v2093, 5
      %v2096 = vsel %vm893, %v2091, %v2095
      %v2098 = vshrl.u32 %v1968, 16
      %v2100 = vrot.slane %v2098, 4
      %v2101 = vshll.u32 %v1968, 16
      %v2103 = vrot.slane %v2101, 5
      %v2104 = vor.u32 %v2100, %v2103
      %v2105 = vrot.slane %v2104, 4
      %v2107 = vshll.u32 %v1969, 16
      %v2109 = vrot.slane %v2107, 5
      %v2110 = vsel %vm893, %v2105, %v2109
      %v2111 = vshrl.u32 %v1969, 16
      %v2113 = vrot.slane %v2111, 4
      %v2114 = vor.u32 %v2113, %v2109
      %v2115 = vrot.slane %v2114, 4
      %v2117 = vshll.u32 %v1970, 16
      %v2119 = vrot.slane %v2117, 5
      %v2120 = vsel %vm893, %v2115, %v2119
      %v2122 = vshrl.u32 %v1971, 16
      %v2124 = vrot.slane %v2122, 4
      %v2125 = vshll.u32 %v1971, 16
      %v2127 = vrot.slane %v2125, 5
      %v2128 = vor.u32 %v2124, %v2127
      %v2129 = vrot.slane %v2128, 4
      %v2131 = vshll.u32 %v1972, 16
      %v2133 = vrot.slane %v2131, 5
      %v2134 = vsel %vm893, %v2129, %v2133
      %v2135 = vshrl.u32 %v1972, 16
      %v2137 = vrot.slane %v2135, 4
      %v2138 = vor.u32 %v2137, %v2133
      %v2139 = vrot.slane %v2138, 4
      %v2141 = vshll.u32 %v1973, 16
      %v2143 = vrot.slane %v2141, 5
      %v2144 = vsel %vm893, %v2139, %v2143
      %v2146 = vshrl.u32 %v1974, 16
      %v2148 = vrot.slane %v2146, 4
      %v2149 = vshll.u32 %v1974, 16
      %v2151 = vrot.slane %v2149, 5
      %v2152 = vor.u32 %v2148, %v2151
      %v2153 = vrot.slane %v2152, 4
      %v2155 = vshll.u32 %v1975, 16
      %v2157 = vrot.slane %v2155, 5
      %v2158 = vsel %vm893, %v2153, %v2157
      %v2159 = vshrl.u32 %v1975, 16
      %v2161 = vrot.slane %v2159, 4
      %v2162 = vor.u32 %v2161, %v2157
      %v2163 = vrot.slane %v2162, 4
      %v2165 = vshll.u32 %v1976, 16
      %v2167 = vrot.slane %v2165, 5
      %v2168 = vsel %vm893, %v2163, %v2167
      %s2169 = scalar_lea.vmem %s1, 128
      %v2170 = vld [vmem:[%s2169] sm:$0xf]
      %v2171 = vld [vmem:[%s2169 + $0x4] sm:$0xf]
      %v2172 = vld [vmem:[%s2169 + $0x8] sm:$0xf]
      %v2173 = vld [vmem:[%s2169 + $0xc] sm:$0xf]
      %v2174 = vld [vmem:[%s2169 + $0x10] sm:$0xf]
      %v2175 = vld [vmem:[%s2169 + $0x14] sm:$0xf]
      %v2176 = vld [vmem:[%s2169 + $0x18] sm:$0xf]
      %v2177 = vld [vmem:[%s2169 + $0x1c] sm:$0xf]
      %v2178 = vunpack.c.l.b16 %v1990
      %v2179 = vunpack.c.l.b16 %v2000
      %v2180 = vunpack.c.l.b16 %v2014
      %v2181 = vunpack.c.l.b16 %v2024
      %v2182 = vunpack.c.l.b16 %v2038
      %v2183 = vunpack.c.l.b16 %v2048
      %v2184 = vunpack.c.l.b16 %v2062
      %v2185 = vunpack.c.l.b16 %v2072
      %v2186 = vunpack.c.l.b16 %v2086
      %v2187 = vunpack.c.l.b16 %v2096
      %v2188 = vunpack.c.l.b16 %v2110
      %v2189 = vunpack.c.l.b16 %v2120
      %v2190 = vunpack.c.l.b16 %v2134
      %v2191 = vunpack.c.l.b16 %v2144
      %v2192 = vunpack.c.l.b16 %v2158
      %v2193 = vunpack.c.l.b16 %v2168
      %v2194 = vpack.c.b16 %v2179, %v2178
      %v2195 = vpack.c.b16 %v2181, %v2180
      %v2196 = vpack.c.b16 %v2183, %v2182
      %v2197 = vpack.c.b16 %v2185, %v2184
      %v2198 = vpack.c.b16 %v2187, %v2186
      %v2199 = vpack.c.b16 %v2189, %v2188
      %v2200 = vpack.c.b16 %v2191, %v2190
      %v2201 = vpack.c.b16 %v2193, %v2192
      %v2210 = vunpack.c.l.b16 %v2170
      %v2211 = vunpack.c.l.b16 %v2171
      %v2212 = vunpack.c.l.b16 %v2172
      %v2213 = vunpack.c.l.b16 %v2173
      %v2214 = vunpack.c.l.b16 %v2174
      %v2215 = vunpack.c.l.b16 %v2175
      %v2216 = vunpack.c.l.b16 %v2176
      %v2217 = vunpack.c.l.b16 %v2177
      %v2218 = vpack.c.b16 %v2211, %v2210
      %v2219 = vpack.c.b16 %v2213, %v2212
      %v2220 = vpack.c.b16 %v2215, %v2214
      %v2221 = vpack.c.b16 %v2217, %v2216
      %v2227 = vsel %vm1143, %v2194, 0
      %v2230 = vsel %vm1143, %v2195, 0
      %v2233 = vsel %vm1143, %v2196, 0
      %v2236 = vsel %vm1143, %v2197, 0
      %v2239 = vsel %vm1143, %v2198, 0
      %v2242 = vsel %vm1143, %v2199, 0
      %v2245 = vsel %vm1143, %v2200, 0
      %v2248 = vsel %vm1143, %v2201, 0
      %2250 = vmatprep.subr.bf16.mxu0 0
      %2251 = vmatpush1.bf16.msra.mxu0 0
      %2252 = vmatprep.subr.bf16.mxu0 0
      %2253 = vmatpush1.bf16.msra.mxu0 0
      %2254 = vmatprep.subr.bf16.mxu0 0
      %2255 = vmatpush1.bf16.msra.mxu0 0
      %2256 = vmatprep.subr.bf16.mxu0 0
      %2257 = vmatpush1.bf16.msra.mxu0 0
      %2258 = vmatprep.subr.bf16.mxu0 0
      %2259 = vmatpush1.bf16.msra.mxu0 %v2221
      %2260 = vmatprep.subr.bf16.mxu0 0
      %2261 = vmatpush1.bf16.msra.mxu0 %v2220
      %2262 = vmatprep.subr.bf16.mxu0 0
      %2263 = vmatpush1.bf16.msra.mxu0 %v2219
      %2264 = vmatprep.subr.bf16.mxu0 0
      %2265 = vmatpush1.bf16.msra.mxu0 %v2218
      %2266 = vmatprep.subr.bf16.mxu0 0
      %2267 = vmatpush2.bf16.msra.mxu0 0
      %2268 = vmatprep.subr.bf16.mxu0 0
      %2269 = vmatpush2.bf16.msra.mxu0 0
      %2270 = vmatprep.subr.bf16.mxu0 0
      %2271 = vmatpush2.bf16.msra.mxu0 0
      %2272 = vmatprep.subr.bf16.mxu0 0
      %2273 = vmatpush2.bf16.msra.mxu0 0
      %2274 = vmatprep.subr.bf16.mxu0 0
      %2275 = vmatpush2.bf16.msra.mxu0 0
      %2276 = vmatprep.subr.bf16.mxu0 0
      %2277 = vmatpush2.bf16.msra.mxu0 0
      %2278 = vmatprep.subr.bf16.mxu0 0
      %2279 = vmatpush2.bf16.msra.mxu0 0
      %2280 = vmatprep.subr.bf16.mxu0 0
      %2281 = vmatpush2.bf16.msra.mxu0 0
      %2282 = vmatprep.mubr.bf16.mxu0 0
      %2283 = vmatmul.mubr.bf16.gmra.mxu0 %v2227
      %v2284 = vpop.f32.mrf.mxu0
      %v2285 = vadd.f32 0.0, %v2284
      %v2286 = vpop.f32.mrf.mxu0
      %v2287 = vpop.f32.mrf.mxu0
      %v2288 = vadd.f32 0.0, %v2287
      %v2289 = vpop.f32.mrf.mxu0
      %2290 = vmatprep.mubr.bf16.mxu0 0
      %2291 = vmatmul.mubr.bf16.gmra.mxu0 %v2230
      %v2292 = vpop.f32.mrf.mxu0
      %v2293 = vadd.f32 0.0, %v2292
      %v2294 = vpop.f32.mrf.mxu0
      %v2295 = vpop.f32.mrf.mxu0
      %v2296 = vadd.f32 0.0, %v2295
      %v2297 = vpop.f32.mrf.mxu0
      %2298 = vmatprep.mubr.bf16.mxu0 0
      %2299 = vmatmul.mubr.bf16.gmra.mxu0 %v2233
      %v2300 = vpop.f32.mrf.mxu0
      %v2301 = vadd.f32 0.0, %v2300
      %v2302 = vpop.f32.mrf.mxu0
      %v2303 = vpop.f32.mrf.mxu0
      %v2304 = vadd.f32 0.0, %v2303
      %v2305 = vpop.f32.mrf.mxu0
      %2306 = vmatprep.mubr.bf16.mxu0 0
      %2307 = vmatmul.mubr.bf16.gmra.mxu0 %v2236
      %v2308 = vpop.f32.mrf.mxu0
      %v2309 = vadd.f32 0.0, %v2308
      %v2310 = vpop.f32.mrf.mxu0
      %v2311 = vpop.f32.mrf.mxu0
      %v2312 = vadd.f32 0.0, %v2311
      %v2313 = vpop.f32.mrf.mxu0
      %2314 = vmatprep.mubr.bf16.mxu0 0
      %2315 = vmatmul.mubr.bf16.gmra.mxu0 %v2239
      %v2316 = vpop.f32.mrf.mxu0
      %v2317 = vadd.f32 0.0, %v2316
      %v2318 = vpop.f32.mrf.mxu0
      %v2319 = vpop.f32.mrf.mxu0
      %v2320 = vadd.f32 0.0, %v2319
      %v2321 = vpop.f32.mrf.mxu0
      %2322 = vmatprep.mubr.bf16.mxu0 0
      %2323 = vmatmul.mubr.bf16.gmra.mxu0 %v2242
      %v2324 = vpop.f32.mrf.mxu0
      %v2325 = vadd.f32 0.0, %v2324
      %v2326 = vpop.f32.mrf.mxu0
      %v2327 = vpop.f32.mrf.mxu0
      %v2328 = vadd.f32 0.0, %v2327
      %v2329 = vpop.f32.mrf.mxu0
      %2330 = vmatprep.mubr.bf16.mxu0 0
      %2331 = vmatmul.mubr.bf16.gmra.mxu0 %v2245
      %v2332 = vpop.f32.mrf.mxu0
      %v2333 = vadd.f32 0.0, %v2332
      %v2334 = vpop.f32.mrf.mxu0
      %v2335 = vpop.f32.mrf.mxu0
      %v2336 = vadd.f32 0.0, %v2335
      %v2337 = vpop.f32.mrf.mxu0
      %2338 = vmatprep.mubr.bf16.mxu0 0
      %2339 = vmatmul.mubr.bf16.gmra.mxu0 %v2248
      %v2340 = vpop.f32.mrf.mxu0
      %v2341 = vadd.f32 0.0, %v2340
      %v2342 = vpop.f32.mrf.mxu0
      %v2343 = vpop.f32.mrf.mxu0
      %v2344 = vadd.f32 0.0, %v2343
      %v2345 = vpop.f32.mrf.mxu0
      %2346 = vdwg.mxu0
      %v2347 = vadd.f32 %v1937, %v2285
      %v2348 = vadd.f32 %v1938, %v2288
      %v2349 = vadd.f32 %v1939, %v2293
      %v2350 = vadd.f32 %v1940, %v2296
      %v2351 = vadd.f32 %v1941, %v2301
      %v2352 = vadd.f32 %v1942, %v2304
      %v2353 = vadd.f32 %v1943, %v2309
      %v2354 = vadd.f32 %v1944, %v2312
      %v2355 = vadd.f32 %v1945, %v2317
      %v2356 = vadd.f32 %v1946, %v2320
      %v2357 = vadd.f32 %v1947, %v2325
      %v2358 = vadd.f32 %v1948, %v2328
      %v2359 = vadd.f32 %v1949, %v2333
      %v2360 = vadd.f32 %v1950, %v2336
      %v2361 = vadd.f32 %v1951, %v2341
      %v2362 = vadd.f32 %v1952, %v2344
      %v2363 = vld [vmem:[%s802] sm:$0xe]
      %v2364 = vld [vmem:[%s802 + $0xc] sm:$0xe]
      %v2365 = vld [vmem:[%s802 + $0x18] sm:$0xe]
      %v2366 = vld [vmem:[%s802 + $0x24] sm:$0xe]
      %v2367 = vld [vmem:[%s802 + $0x30] sm:$0xe]
      %v2368 = vld [vmem:[%s802 + $0x3c] sm:$0xe]
      %v2369 = vld [vmem:[%s802 + $0x48] sm:$0xe]
      %v2370 = vld [vmem:[%s802 + $0x54] sm:$0xe]
      %v2395 = vrot.slane %v2363, 5
      %v2396 = vrot.slane %v2395, 4
      %v2397 = vrot.slane %v1954, 5
      %v2398 = vsel %vm1476, %v2396, %v2397
      %v2399 = vrot.slane %v2397, 4
      %v2400 = vrot.slane %v1955, 5
      %v2401 = vsel %vm1476, %v2399, %v2400
      %v2402 = vrot.slane %v2364, 5
      %v2403 = vrot.slane %v2402, 4
      %v2404 = vrot.slane %v1957, 5
      %v2405 = vsel %vm1476, %v2403, %v2404
      %v2406 = vrot.slane %v2404, 4
      %v2407 = vrot.slane %v1958, 5
      %v2408 = vsel %vm1476, %v2406, %v2407
      %v2409 = vrot.slane %v2365, 5
      %v2410 = vrot.slane %v2409, 4
      %v2411 = vrot.slane %v1960, 5
      %v2412 = vsel %vm1476, %v2410, %v2411
      %v2413 = vrot.slane %v2411, 4
      %v2414 = vrot.slane %v1961, 5
      %v2415 = vsel %vm1476, %v2413, %v2414
      %v2416 = vrot.slane %v2366, 5
      %v2417 = vrot.slane %v2416, 4
      %v2418 = vrot.slane %v1963, 5
      %v2419 = vsel %vm1476, %v2417, %v2418
      %v2420 = vrot.slane %v2418, 4
      %v2421 = vrot.slane %v1964, 5
      %v2422 = vsel %vm1476, %v2420, %v2421
      %v2423 = vrot.slane %v2367, 5
      %v2424 = vrot.slane %v2423, 4
      %v2425 = vrot.slane %v1966, 5
      %v2426 = vsel %vm1476, %v2424, %v2425
      %v2427 = vrot.slane %v2425, 4
      %v2428 = vrot.slane %v1967, 5
      %v2429 = vsel %vm1476, %v2427, %v2428
      %v2430 = vrot.slane %v2368, 5
      %v2431 = vrot.slane %v2430, 4
      %v2432 = vrot.slane %v1969, 5
      %v2433 = vsel %vm1476, %v2431, %v2432
      %v2434 = vrot.slane %v2432, 4
      %v2435 = vrot.slane %v1970, 5
      %v2436 = vsel %vm1476, %v2434, %v2435
      %v2437 = vrot.slane %v2369, 5
      %v2438 = vrot.slane %v2437, 4
      %v2439 = vrot.slane %v1972, 5
      %v2440 = vsel %vm1476, %v2438, %v2439
      %v2441 = vrot.slane %v2439, 4
      %v2442 = vrot.slane %v1973, 5
      %v2443 = vsel %vm1476, %v2441, %v2442
      %v2444 = vrot.slane %v2370, 5
      %v2445 = vrot.slane %v2444, 4
      %v2446 = vrot.slane %v1975, 5
      %v2447 = vsel %vm1476, %v2445, %v2446
      %v2448 = vrot.slane %v2446, 4
      %v2449 = vrot.slane %v1976, 5
      %v2450 = vsel %vm1476, %v2448, %v2449
      %s2451 = scalar_lea.vmem %s1, 160
      %v2452 = vld [vmem:[%s2451] sm:$0xf]
      %v2453 = vld [vmem:[%s2451 + $0x4] sm:$0xf]
      %v2454 = vld [vmem:[%s2451 + $0x8] sm:$0xf]
      %v2455 = vld [vmem:[%s2451 + $0xc] sm:$0xf]
      %v2456 = vld [vmem:[%s2451 + $0x10] sm:$0xf]
      %v2457 = vld [vmem:[%s2451 + $0x14] sm:$0xf]
      %v2458 = vld [vmem:[%s2451 + $0x18] sm:$0xf]
      %v2459 = vld [vmem:[%s2451 + $0x1c] sm:$0xf]
      %v2460 = vunpack.c.l.b16 %v2398
      %v2461 = vunpack.c.l.b16 %v2401
      %v2462 = vunpack.c.l.b16 %v2405
      %v2463 = vunpack.c.l.b16 %v2408
      %v2464 = vunpack.c.l.b16 %v2412
      %v2465 = vunpack.c.l.b16 %v2415
      %v2466 = vunpack.c.l.b16 %v2419
      %v2467 = vunpack.c.l.b16 %v2422
      %v2468 = vunpack.c.l.b16 %v2426
      %v2469 = vunpack.c.l.b16 %v2429
      %v2470 = vunpack.c.l.b16 %v2433
      %v2471 = vunpack.c.l.b16 %v2436
      %v2472 = vunpack.c.l.b16 %v2440
      %v2473 = vunpack.c.l.b16 %v2443
      %v2474 = vunpack.c.l.b16 %v2447
      %v2475 = vunpack.c.l.b16 %v2450
      %v2476 = vpack.c.b16 %v2461, %v2460
      %v2477 = vpack.c.b16 %v2463, %v2462
      %v2478 = vpack.c.b16 %v2465, %v2464
      %v2479 = vpack.c.b16 %v2467, %v2466
      %v2480 = vpack.c.b16 %v2469, %v2468
      %v2481 = vpack.c.b16 %v2471, %v2470
      %v2482 = vpack.c.b16 %v2473, %v2472
      %v2483 = vpack.c.b16 %v2475, %v2474
      %v2492 = vunpack.c.l.b16 %v2452
      %v2493 = vunpack.c.l.b16 %v2453
      %v2494 = vunpack.c.l.b16 %v2454
      %v2495 = vunpack.c.l.b16 %v2455
      %v2496 = vunpack.c.l.b16 %v2456
      %v2497 = vunpack.c.l.b16 %v2457
      %v2498 = vunpack.c.l.b16 %v2458
      %v2499 = vunpack.c.l.b16 %v2459
      %v2500 = vpack.c.b16 %v2493, %v2492
      %v2501 = vpack.c.b16 %v2495, %v2494
      %v2502 = vpack.c.b16 %v2497, %v2496
      %v2503 = vpack.c.b16 %v2499, %v2498
      %v2509 = vsel %vm1143, %v2476, 0
      %v2512 = vsel %vm1143, %v2477, 0
      %v2515 = vsel %vm1143, %v2478, 0
      %v2518 = vsel %vm1143, %v2479, 0
      %v2521 = vsel %vm1143, %v2480, 0
      %v2524 = vsel %vm1143, %v2481, 0
      %v2527 = vsel %vm1143, %v2482, 0
      %v2530 = vsel %vm1143, %v2483, 0
      %2532 = vmatprep.subr.bf16.mxu0 0
      %2533 = vmatpush1.bf16.msra.mxu0 0
      %2534 = vmatprep.subr.bf16.mxu0 0
      %2535 = vmatpush1.bf16.msra.mxu0 0
      %2536 = vmatprep.subr.bf16.mxu0 0
      %2537 = vmatpush1.bf16.msra.mxu0 0
      %2538 = vmatprep.subr.bf16.mxu0 0
      %2539 = vmatpush1.bf16.msra.mxu0 0
      %2540 = vmatprep.subr.bf16.mxu0 0
      %2541 = vmatpush1.bf16.msra.mxu0 %v2503
      %2542 = vmatprep.subr.bf16.mxu0 0
      %2543 = vmatpush1.bf16.msra.mxu0 %v2502
      %2544 = vmatprep.subr.bf16.mxu0 0
      %2545 = vmatpush1.bf16.msra.mxu0 %v2501
      %2546 = vmatprep.subr.bf16.mxu0 0
      %2547 = vmatpush1.bf16.msra.mxu0 %v2500
      %2548 = vmatprep.subr.bf16.mxu0 0
      %2549 = vmatpush2.bf16.msra.mxu0 0
      %2550 = vmatprep.subr.bf16.mxu0 0
      %2551 = vmatpush2.bf16.msra.mxu0 0
      %2552 = vmatprep.subr.bf16.mxu0 0
      %2553 = vmatpush2.bf16.msra.mxu0 0
      %2554 = vmatprep.subr.bf16.mxu0 0
      %2555 = vmatpush2.bf16.msra.mxu0 0
      %2556 = vmatprep.subr.bf16.mxu0 0
      %2557 = vmatpush2.bf16.msra.mxu0 0
      %2558 = vmatprep.subr.bf16.mxu0 0
      %2559 = vmatpush2.bf16.msra.mxu0 0
      %2560 = vmatprep.subr.bf16.mxu0 0
      %2561 = vmatpush2.bf16.msra.mxu0 0
      %2562 = vmatprep.subr.bf16.mxu0 0
      %2563 = vmatpush2.bf16.msra.mxu0 0
      %2564 = vmatprep.mubr.bf16.mxu0 0
      %2565 = vmatmul.mubr.bf16.gmra.mxu0 %v2509
      %v2566 = vpop.f32.mrf.mxu0
      %v2567 = vadd.f32 0.0, %v2566
      %v2568 = vpop.f32.mrf.mxu0
      %v2569 = vpop.f32.mrf.mxu0
      %v2570 = vadd.f32 0.0, %v2569
      %v2571 = vpop.f32.mrf.mxu0
      %2572 = vmatprep.mubr.bf16.mxu0 0
      %2573 = vmatmul.mubr.bf16.gmra.mxu0 %v2512
      %v2574 = vpop.f32.mrf.mxu0
      %v2575 = vadd.f32 0.0, %v2574
      %v2576 = vpop.f32.mrf.mxu0
      %v2577 = vpop.f32.mrf.mxu0
      %v2578 = vadd.f32 0.0, %v2577
      %v2579 = vpop.f32.mrf.mxu0
      %2580 = vmatprep.mubr.bf16.mxu0 0
      %2581 = vmatmul.mubr.bf16.gmra.mxu0 %v2515
      %v2582 = vpop.f32.mrf.mxu0
      %v2583 = vadd.f32 0.0, %v2582
      %v2584 = vpop.f32.mrf.mxu0
      %v2585 = vpop.f32.mrf.mxu0
      %v2586 = vadd.f32 0.0, %v2585
      %v2587 = vpop.f32.mrf.mxu0
      %2588 = vmatprep.mubr.bf16.mxu0 0
      %2589 = vmatmul.mubr.bf16.gmra.mxu0 %v2518
      %v2590 = vpop.f32.mrf.mxu0
      %v2591 = vadd.f32 0.0, %v2590
      %v2592 = vpop.f32.mrf.mxu0
      %v2593 = vpop.f32.mrf.mxu0
      %v2594 = vadd.f32 0.0, %v2593
      %v2595 = vpop.f32.mrf.mxu0
      %2596 = vmatprep.mubr.bf16.mxu0 0
      %2597 = vmatmul.mubr.bf16.gmra.mxu0 %v2521
      %v2598 = vpop.f32.mrf.mxu0
      %v2599 = vadd.f32 0.0, %v2598
      %v2600 = vpop.f32.mrf.mxu0
      %v2601 = vpop.f32.mrf.mxu0
      %v2602 = vadd.f32 0.0, %v2601
      %v2603 = vpop.f32.mrf.mxu0
      %2604 = vmatprep.mubr.bf16.mxu0 0
      %2605 = vmatmul.mubr.bf16.gmra.mxu0 %v2524
      %v2606 = vpop.f32.mrf.mxu0
      %v2607 = vadd.f32 0.0, %v2606
      %v2608 = vpop.f32.mrf.mxu0
      %v2609 = vpop.f32.mrf.mxu0
      %v2610 = vadd.f32 0.0, %v2609
      %v2611 = vpop.f32.mrf.mxu0
      %2612 = vmatprep.mubr.bf16.mxu0 0
      %2613 = vmatmul.mubr.bf16.gmra.mxu0 %v2527
      %v2614 = vpop.f32.mrf.mxu0
      %v2615 = vadd.f32 0.0, %v2614
      %v2616 = vpop.f32.mrf.mxu0
      %v2617 = vpop.f32.mrf.mxu0
      %v2618 = vadd.f32 0.0, %v2617
      %v2619 = vpop.f32.mrf.mxu0
      %2620 = vmatprep.mubr.bf16.mxu0 0
      %2621 = vmatmul.mubr.bf16.gmra.mxu0 %v2530
      %v2622 = vpop.f32.mrf.mxu0
      %v2623 = vadd.f32 0.0, %v2622
      %v2624 = vpop.f32.mrf.mxu0
      %v2625 = vpop.f32.mrf.mxu0
      %v2626 = vadd.f32 0.0, %v2625
      %v2627 = vpop.f32.mrf.mxu0
      %2628 = vdwg.mxu0
      %v2629 = vadd.f32 %v2347, %v2567
      %v2630 = vadd.f32 %v2348, %v2570
      %v2631 = vadd.f32 %v2349, %v2575
      %v2632 = vadd.f32 %v2350, %v2578
      %v2633 = vadd.f32 %v2351, %v2583
      %v2634 = vadd.f32 %v2352, %v2586
      %v2635 = vadd.f32 %v2353, %v2591
      %v2636 = vadd.f32 %v2354, %v2594
      %v2637 = vadd.f32 %v2355, %v2599
      %v2638 = vadd.f32 %v2356, %v2602
      %v2639 = vadd.f32 %v2357, %v2607
      %v2640 = vadd.f32 %v2358, %v2610
      %v2641 = vadd.f32 %v2359, %v2615
      %v2642 = vadd.f32 %v2360, %v2618
      %v2643 = vadd.f32 %v2361, %v2623
      %v2644 = vadd.f32 %v2362, %v2626
      %s2645 = scalar_lea.vmem [#allocation2], 24
      %v2646 = vld [vmem:[%s2645] sm:$0xf]
      %v2647 = vld [vmem:[%s2645 + $0x4] sm:$0xf]
      %v2648 = vld [vmem:[%s2645 + $0xc] sm:$0xf]
      %v2649 = vld [vmem:[%s2645 + $0x10] sm:$0xf]
      %v2650 = vld [vmem:[%s2645 + $0x18] sm:$0xf]
      %v2651 = vld [vmem:[%s2645 + $0x1c] sm:$0xf]
      %v2652 = vld [vmem:[%s2645 + $0x24] sm:$0xf]
      %v2653 = vld [vmem:[%s2645 + $0x28] sm:$0xf]
      %v2654 = vld [vmem:[%s2645 + $0x30] sm:$0xf]
      %v2655 = vld [vmem:[%s2645 + $0x34] sm:$0xf]
      %v2656 = vld [vmem:[%s2645 + $0x3c] sm:$0xf]
      %v2657 = vld [vmem:[%s2645 + $0x40] sm:$0xf]
      %v2658 = vld [vmem:[%s2645 + $0x48] sm:$0xf]
      %v2659 = vld [vmem:[%s2645 + $0x4c] sm:$0xf]
      %v2660 = vld [vmem:[%s2645 + $0x54] sm:$0xf]
      %v2661 = vld [vmem:[%s2645 + $0x58] sm:$0xf]
      %s2662 = scalar_lea.vmem %s1, 192
      %v2663 = vld [vmem:[%s2662] sm:$0xf]
      %v2664 = vld [vmem:[%s2662 + $0x4] sm:$0xf]
      %v2665 = vld [vmem:[%s2662 + $0x8] sm:$0xf]
      %v2666 = vld [vmem:[%s2662 + $0xc] sm:$0xf]
      %v2667 = vld [vmem:[%s2662 + $0x10] sm:$0xf]
      %v2668 = vld [vmem:[%s2662 + $0x14] sm:$0xf]
      %v2669 = vld [vmem:[%s2662 + $0x18] sm:$0xf]
      %v2670 = vld [vmem:[%s2662 + $0x1c] sm:$0xf]
      %v2687 = vunpack.c.l.b16 %v2646
      %v2688 = vunpack.c.l.b16 %v2647
      %v2689 = vunpack.c.l.b16 %v2648
      %v2690 = vunpack.c.l.b16 %v2649
      %v2691 = vunpack.c.l.b16 %v2650
      %v2692 = vunpack.c.l.b16 %v2651
      %v2693 = vunpack.c.l.b16 %v2652
      %v2694 = vunpack.c.l.b16 %v2653
      %v2695 = vunpack.c.l.b16 %v2654
      %v2696 = vunpack.c.l.b16 %v2655
      %v2697 = vunpack.c.l.b16 %v2656
      %v2698 = vunpack.c.l.b16 %v2657
      %v2699 = vunpack.c.l.b16 %v2658
      %v2700 = vunpack.c.l.b16 %v2659
      %v2701 = vunpack.c.l.b16 %v2660
      %v2702 = vunpack.c.l.b16 %v2661
      %v2703 = vpack.c.b16 %v2688, %v2687
      %v2704 = vpack.c.b16 %v2690, %v2689
      %v2705 = vpack.c.b16 %v2692, %v2691
      %v2706 = vpack.c.b16 %v2694, %v2693
      %v2707 = vpack.c.b16 %v2696, %v2695
      %v2708 = vpack.c.b16 %v2698, %v2697
      %v2709 = vpack.c.b16 %v2700, %v2699
      %v2710 = vpack.c.b16 %v2702, %v2701
      %v2719 = vunpack.c.l.b16 %v2663
      %v2720 = vunpack.c.l.b16 %v2664
      %v2721 = vunpack.c.l.b16 %v2665
      %v2722 = vunpack.c.l.b16 %v2666
      %v2723 = vunpack.c.l.b16 %v2667
      %v2724 = vunpack.c.l.b16 %v2668
      %v2725 = vunpack.c.l.b16 %v2669
      %v2726 = vunpack.c.l.b16 %v2670
      %v2727 = vpack.c.b16 %v2720, %v2719
      %v2728 = vpack.c.b16 %v2722, %v2721
      %v2729 = vpack.c.b16 %v2724, %v2723
      %v2730 = vpack.c.b16 %v2726, %v2725
      %v2736 = vsel %vm1143, %v2703, 0
      %v2739 = vsel %vm1143, %v2704, 0
      %v2742 = vsel %vm1143, %v2705, 0
      %v2745 = vsel %vm1143, %v2706, 0
      %v2748 = vsel %vm1143, %v2707, 0
      %v2751 = vsel %vm1143, %v2708, 0
      %v2754 = vsel %vm1143, %v2709, 0
      %v2757 = vsel %vm1143, %v2710, 0
      %2759 = vmatprep.subr.bf16.mxu0 0
      %2760 = vmatpush1.bf16.msra.mxu0 0
      %2761 = vmatprep.subr.bf16.mxu0 0
      %2762 = vmatpush1.bf16.msra.mxu0 0
      %2763 = vmatprep.subr.bf16.mxu0 0
      %2764 = vmatpush1.bf16.msra.mxu0 0
      %2765 = vmatprep.subr.bf16.mxu0 0
      %2766 = vmatpush1.bf16.msra.mxu0 0
      %2767 = vmatprep.subr.bf16.mxu0 0
      %2768 = vmatpush1.bf16.msra.mxu0 %v2730
      %2769 = vmatprep.subr.bf16.mxu0 0
      %2770 = vmatpush1.bf16.msra.mxu0 %v2729
      %2771 = vmatprep.subr.bf16.mxu0 0
      %2772 = vmatpush1.bf16.msra.mxu0 %v2728
      %2773 = vmatprep.subr.bf16.mxu0 0
      %2774 = vmatpush1.bf16.msra.mxu0 %v2727
      %2775 = vmatprep.subr.bf16.mxu0 0
      %2776 = vmatpush2.bf16.msra.mxu0 0
      %2777 = vmatprep.subr.bf16.mxu0 0
      %2778 = vmatpush2.bf16.msra.mxu0 0
      %2779 = vmatprep.subr.bf16.mxu0 0
      %2780 = vmatpush2.bf16.msra.mxu0 0
      %2781 = vmatprep.subr.bf16.mxu0 0
      %2782 = vmatpush2.bf16.msra.mxu0 0
      %2783 = vmatprep.subr.bf16.mxu0 0
      %2784 = vmatpush2.bf16.msra.mxu0 0
      %2785 = vmatprep.subr.bf16.mxu0 0
      %2786 = vmatpush2.bf16.msra.mxu0 0
      %2787 = vmatprep.subr.bf16.mxu0 0
      %2788 = vmatpush2.bf16.msra.mxu0 0
      %2789 = vmatprep.subr.bf16.mxu0 0
      %2790 = vmatpush2.bf16.msra.mxu0 0
      %2791 = vmatprep.mubr.bf16.mxu0 0
      %2792 = vmatmul.mubr.bf16.gmra.mxu0 %v2736
      %v2793 = vpop.f32.mrf.mxu0
      %v2794 = vadd.f32 0.0, %v2793
      %v2795 = vpop.f32.mrf.mxu0
      %v2796 = vpop.f32.mrf.mxu0
      %v2797 = vadd.f32 0.0, %v2796
      %v2798 = vpop.f32.mrf.mxu0
      %2799 = vmatprep.mubr.bf16.mxu0 0
      %2800 = vmatmul.mubr.bf16.gmra.mxu0 %v2739
      %v2801 = vpop.f32.mrf.mxu0
      %v2802 = vadd.f32 0.0, %v2801
      %v2803 = vpop.f32.mrf.mxu0
      %v2804 = vpop.f32.mrf.mxu0
      %v2805 = vadd.f32 0.0, %v2804
      %v2806 = vpop.f32.mrf.mxu0
      %2807 = vmatprep.mubr.bf16.mxu0 0
      %2808 = vmatmul.mubr.bf16.gmra.mxu0 %v2742
      %v2809 = vpop.f32.mrf.mxu0
      %v2810 = vadd.f32 0.0, %v2809
      %v2811 = vpop.f32.mrf.mxu0
      %v2812 = vpop.f32.mrf.mxu0
      %v2813 = vadd.f32 0.0, %v2812
      %v2814 = vpop.f32.mrf.mxu0
      %2815 = vmatprep.mubr.bf16.mxu0 0
      %2816 = vmatmul.mubr.bf16.gmra.mxu0 %v2745
      %v2817 = vpop.f32.mrf.mxu0
      %v2818 = vadd.f32 0.0, %v2817
      %v2819 = vpop.f32.mrf.mxu0
      %v2820 = vpop.f32.mrf.mxu0
      %v2821 = vadd.f32 0.0, %v2820
      %v2822 = vpop.f32.mrf.mxu0
      %2823 = vmatprep.mubr.bf16.mxu0 0
      %2824 = vmatmul.mubr.bf16.gmra.mxu0 %v2748
      %v2825 = vpop.f32.mrf.mxu0
      %v2826 = vadd.f32 0.0, %v2825
      %v2827 = vpop.f32.mrf.mxu0
      %v2828 = vpop.f32.mrf.mxu0
      %v2829 = vadd.f32 0.0, %v2828
      %v2830 = vpop.f32.mrf.mxu0
      %2831 = vmatprep.mubr.bf16.mxu0 0
      %2832 = vmatmul.mubr.bf16.gmra.mxu0 %v2751
      %v2833 = vpop.f32.mrf.mxu0
      %v2834 = vadd.f32 0.0, %v2833
      %v2835 = vpop.f32.mrf.mxu0
      %v2836 = vpop.f32.mrf.mxu0
      %v2837 = vadd.f32 0.0, %v2836
      %v2838 = vpop.f32.mrf.mxu0
      %2839 = vmatprep.mubr.bf16.mxu0 0
      %2840 = vmatmul.mubr.bf16.gmra.mxu0 %v2754
      %v2841 = vpop.f32.mrf.mxu0
      %v2842 = vadd.f32 0.0, %v2841
      %v2843 = vpop.f32.mrf.mxu0
      %v2844 = vpop.f32.mrf.mxu0
      %v2845 = vadd.f32 0.0, %v2844
      %v2846 = vpop.f32.mrf.mxu0
      %2847 = vmatprep.mubr.bf16.mxu0 0
      %2848 = vmatmul.mubr.bf16.gmra.mxu0 %v2757
      %v2849 = vpop.f32.mrf.mxu0
      %v2850 = vadd.f32 0.0, %v2849
      %v2851 = vpop.f32.mrf.mxu0
      %v2852 = vpop.f32.mrf.mxu0
      %v2853 = vadd.f32 0.0, %v2852
      %v2854 = vpop.f32.mrf.mxu0
      %2855 = vdwg.mxu0
      %v2856 = vadd.f32 %v2629, %v2794
      %v2857 = vadd.f32 %v2630, %v2797
      %v2858 = vadd.f32 %v2631, %v2802
      %v2859 = vadd.f32 %v2632, %v2805
      %v2860 = vadd.f32 %v2633, %v2810
      %v2861 = vadd.f32 %v2634, %v2813
      %v2862 = vadd.f32 %v2635, %v2818
      %v2863 = vadd.f32 %v2636, %v2821
      %v2864 = vadd.f32 %v2637, %v2826
      %v2865 = vadd.f32 %v2638, %v2829
      %v2866 = vadd.f32 %v2639, %v2834
      %v2867 = vadd.f32 %v2640, %v2837
      %v2868 = vadd.f32 %v2641, %v2842
      %v2869 = vadd.f32 %v2642, %v2845
      %v2870 = vadd.f32 %v2643, %v2850
      %v2871 = vadd.f32 %v2644, %v2853
      %v2872 = vld [vmem:[%s2645] sm:$0xf]
      %v2873 = vld [vmem:[%s2645 + $0x4] sm:$0xf]
      %v2874 = vld [vmem:[%s2645 + $0x8] sm:$0x1]
      %v2875 = vld [vmem:[%s2645 + $0xc] sm:$0xf]
      %v2876 = vld [vmem:[%s2645 + $0x10] sm:$0xf]
      %v2877 = vld [vmem:[%s2645 + $0x14] sm:$0x1]
      %v2878 = vld [vmem:[%s2645 + $0x18] sm:$0xf]
      %v2879 = vld [vmem:[%s2645 + $0x1c] sm:$0xf]
      %v2880 = vld [vmem:[%s2645 + $0x20] sm:$0x1]
      %v2881 = vld [vmem:[%s2645 + $0x24] sm:$0xf]
      %v2882 = vld [vmem:[%s2645 + $0x28] sm:$0xf]
      %v2883 = vld [vmem:[%s2645 + $0x2c] sm:$0x1]
      %v2884 = vld [vmem:[%s2645 + $0x30] sm:$0xf]
      %v2885 = vld [vmem:[%s2645 + $0x34] sm:$0xf]
      %v2886 = vld [vmem:[%s2645 + $0x38] sm:$0x1]
      %v2887 = vld [vmem:[%s2645 + $0x3c] sm:$0xf]
      %v2888 = vld [vmem:[%s2645 + $0x40] sm:$0xf]
      %v2889 = vld [vmem:[%s2645 + $0x44] sm:$0x1]
      %v2890 = vld [vmem:[%s2645 + $0x48] sm:$0xf]
      %v2891 = vld [vmem:[%s2645 + $0x4c] sm:$0xf]
      %v2892 = vld [vmem:[%s2645 + $0x50] sm:$0x1]
      %v2893 = vld [vmem:[%s2645 + $0x54] sm:$0xf]
      %v2894 = vld [vmem:[%s2645 + $0x58] sm:$0xf]
      %v2895 = vld [vmem:[%s2645 + $0x5c] sm:$0x1]
      %v2897 = vshrl.u32 %v2872, 16
      %v2899 = vrot.slane %v2897, 4
      %v2900 = vshll.u32 %v2872, 16
      %v2902 = vrot.slane %v2900, 5
      %v2903 = vor.u32 %v2899, %v2902
      %v2904 = vrot.slane %v2903, 4
      %v2906 = vshll.u32 %v2873, 16
      %v2908 = vrot.slane %v2906, 5
      %v2909 = vsel %vm893, %v2904, %v2908
      %v2910 = vshrl.u32 %v2873, 16
      %v2912 = vrot.slane %v2910, 4
      %v2913 = vor.u32 %v2912, %v2908
      %v2914 = vrot.slane %v2913, 4
      %v2916 = vshll.u32 %v2874, 16
      %v2918 = vrot.slane %v2916, 5
      %v2919 = vsel %vm893, %v2914, %v2918
      %v2921 = vshrl.u32 %v2875, 16
      %v2923 = vrot.slane %v2921, 4
      %v2924 = vshll.u32 %v2875, 16
      %v2926 = vrot.slane %v2924, 5
      %v2927 = vor.u32 %v2923, %v2926
      %v2928 = vrot.slane %v2927, 4
      %v2930 = vshll.u32 %v2876, 16
      %v2932 = vrot.slane %v2930, 5
      %v2933 = vsel %vm893, %v2928, %v2932
      %v2934 = vshrl.u32 %v2876, 16
      %v2936 = vrot.slane %v2934, 4
      %v2937 = vor.u32 %v2936, %v2932
      %v2938 = vrot.slane %v2937, 4
      %v2940 = vshll.u32 %v2877, 16
      %v2942 = vrot.slane %v2940, 5
      %v2943 = vsel %vm893, %v2938, %v2942
      %v2945 = vshrl.u32 %v2878, 16
      %v2947 = vrot.slane %v2945, 4
      %v2948 = vshll.u32 %v2878, 16
      %v2950 = vrot.slane %v2948, 5
      %v2951 = vor.u32 %v2947, %v2950
      %v2952 = vrot.slane %v2951, 4
      %v2954 = vshll.u32 %v2879, 16
      %v2956 = vrot.slane %v2954, 5
      %v2957 = vsel %vm893, %v2952, %v2956
      %v2958 = vshrl.u32 %v2879, 16
      %v2960 = vrot.slane %v2958, 4
      %v2961 = vor.u32 %v2960, %v2956
      %v2962 = vrot.slane %v2961, 4
      %v2964 = vshll.u32 %v2880, 16
      %v2966 = vrot.slane %v2964, 5
      %v2967 = vsel %vm893, %v2962, %v2966
      %v2969 = vshrl.u32 %v2881, 16
      %v2971 = vrot.slane %v2969, 4
      %v2972 = vshll.u32 %v2881, 16
      %v2974 = vrot.slane %v2972, 5
      %v2975 = vor.u32 %v2971, %v2974
      %v2976 = vrot.slane %v2975, 4
      %v2978 = vshll.u32 %v2882, 16
      %v2980 = vrot.slane %v2978, 5
      %v2981 = vsel %vm893, %v2976, %v2980
      %v2982 = vshrl.u32 %v2882, 16
      %v2984 = vrot.slane %v2982, 4
      %v2985 = vor.u32 %v2984, %v2980
      %v2986 = vrot.slane %v2985, 4
      %v2988 = vshll.u32 %v2883, 16
      %v2990 = vrot.slane %v2988, 5
      %v2991 = vsel %vm893, %v2986, %v2990
      %v2993 = vshrl.u32 %v2884, 16
      %v2995 = vrot.slane %v2993, 4
      %v2996 = vshll.u32 %v2884, 16
      %v2998 = vrot.slane %v2996, 5
      %v2999 = vor.u32 %v2995, %v2998
      %v3000 = vrot.slane %v2999, 4
      %v3002 = vshll.u32 %v2885, 16
      %v3004 = vrot.slane %v3002, 5
      %v3005 = vsel %vm893, %v3000, %v3004
      %v3006 = vshrl.u32 %v2885, 16
      %v3008 = vrot.slane %v3006, 4
      %v3009 = vor.u32 %v3008, %v3004
      %v3010 = vrot.slane %v3009, 4
      %v3012 = vshll.u32 %v2886, 16
      %v3014 = vrot.slane %v3012, 5
      %v3015 = vsel %vm893, %v3010, %v3014
      %v3017 = vshrl.u32 %v2887, 16
      %v3019 = vrot.slane %v3017, 4
      %v3020 = vshll.u32 %v2887, 16
      %v3022 = vrot.slane %v3020, 5
      %v3023 = vor.u32 %v3019, %v3022
      %v3024 = vrot.slane %v3023, 4
      %v3026 = vshll.u32 %v2888, 16
      %v3028 = vrot.slane %v3026, 5
      %v3029 = vsel %vm893, %v3024, %v3028
      %v3030 = vshrl.u32 %v2888, 16
      %v3032 = vrot.slane %v3030, 4
      %v3033 = vor.u32 %v3032, %v3028
      %v3034 = vrot.slane %v3033, 4
      %v3036 = vshll.u32 %v2889, 16
      %v3038 = vrot.slane %v3036, 5
      %v3039 = vsel %vm893, %v3034, %v3038
      %v3041 = vshrl.u32 %v2890, 16
      %v3043 = vrot.slane %v3041, 4
      %v3044 = vshll.u32 %v2890, 16
      %v3046 = vrot.slane %v3044, 5
      %v3047 = vor.u32 %v3043, %v3046
      %v3048 = vrot.slane %v3047, 4
      %v3050 = vshll.u32 %v2891, 16
      %v3052 = vrot.slane %v3050, 5
      %v3053 = vsel %vm893, %v3048, %v3052
      %v3054 = vshrl.u32 %v2891, 16
      %v3056 = vrot.slane %v3054, 4
      %v3057 = vor.u32 %v3056, %v3052
      %v3058 = vrot.slane %v3057, 4
      %v3060 = vshll.u32 %v2892, 16
      %v3062 = vrot.slane %v3060, 5
      %v3063 = vsel %vm893, %v3058, %v3062
      %v3065 = vshrl.u32 %v2893, 16
      %v3067 = vrot.slane %v3065, 4
      %v3068 = vshll.u32 %v2893, 16
      %v3070 = vrot.slane %v3068, 5
      %v3071 = vor.u32 %v3067, %v3070
      %v3072 = vrot.slane %v3071, 4
      %v3074 = vshll.u32 %v2894, 16
      %v3076 = vrot.slane %v3074, 5
      %v3077 = vsel %vm893, %v3072, %v3076
      %v3078 = vshrl.u32 %v2894, 16
      %v3080 = vrot.slane %v3078, 4
      %v3081 = vor.u32 %v3080, %v3076
      %v3082 = vrot.slane %v3081, 4
      %v3084 = vshll.u32 %v2895, 16
      %v3086 = vrot.slane %v3084, 5
      %v3087 = vsel %vm893, %v3082, %v3086
      %s3088 = scalar_lea.vmem %s1, 224
      %v3089 = vld [vmem:[%s3088] sm:$0xf]
      %v3090 = vld [vmem:[%s3088 + $0x4] sm:$0xf]
      %v3091 = vld [vmem:[%s3088 + $0x8] sm:$0xf]
      %v3092 = vld [vmem:[%s3088 + $0xc] sm:$0xf]
      %v3093 = vld [vmem:[%s3088 + $0x10] sm:$0xf]
      %v3094 = vld [vmem:[%s3088 + $0x14] sm:$0xf]
      %v3095 = vld [vmem:[%s3088 + $0x18] sm:$0xf]
      %v3096 = vld [vmem:[%s3088 + $0x1c] sm:$0xf]
      %v3097 = vunpack.c.l.b16 %v2909
      %v3098 = vunpack.c.l.b16 %v2919
      %v3099 = vunpack.c.l.b16 %v2933
      %v3100 = vunpack.c.l.b16 %v2943
      %v3101 = vunpack.c.l.b16 %v2957
      %v3102 = vunpack.c.l.b16 %v2967
      %v3103 = vunpack.c.l.b16 %v2981
      %v3104 = vunpack.c.l.b16 %v2991
      %v3105 = vunpack.c.l.b16 %v3005
      %v3106 = vunpack.c.l.b16 %v3015
      %v3107 = vunpack.c.l.b16 %v3029
      %v3108 = vunpack.c.l.b16 %v3039
      %v3109 = vunpack.c.l.b16 %v3053
      %v3110 = vunpack.c.l.b16 %v3063
      %v3111 = vunpack.c.l.b16 %v3077
      %v3112 = vunpack.c.l.b16 %v3087
      %v3113 = vpack.c.b16 %v3098, %v3097
      %v3114 = vpack.c.b16 %v3100, %v3099
      %v3115 = vpack.c.b16 %v3102, %v3101
      %v3116 = vpack.c.b16 %v3104, %v3103
      %v3117 = vpack.c.b16 %v3106, %v3105
      %v3118 = vpack.c.b16 %v3108, %v3107
      %v3119 = vpack.c.b16 %v3110, %v3109
      %v3120 = vpack.c.b16 %v3112, %v3111
      %v3129 = vunpack.c.l.b16 %v3089
      %v3130 = vunpack.c.l.b16 %v3090
      %v3131 = vunpack.c.l.b16 %v3091
      %v3132 = vunpack.c.l.b16 %v3092
      %v3133 = vunpack.c.l.b16 %v3093
      %v3134 = vunpack.c.l.b16 %v3094
      %v3135 = vunpack.c.l.b16 %v3095
      %v3136 = vunpack.c.l.b16 %v3096
      %v3137 = vpack.c.b16 %v3130, %v3129
      %v3138 = vpack.c.b16 %v3132, %v3131
      %v3139 = vpack.c.b16 %v3134, %v3133
      %v3140 = vpack.c.b16 %v3136, %v3135
      %v3146 = vsel %vm1143, %v3113, 0
      %v3149 = vsel %vm1143, %v3114, 0
      %v3152 = vsel %vm1143, %v3115, 0
      %v3155 = vsel %vm1143, %v3116, 0
      %v3158 = vsel %vm1143, %v3117, 0
      %v3161 = vsel %vm1143, %v3118, 0
      %v3164 = vsel %vm1143, %v3119, 0
      %v3167 = vsel %vm1143, %v3120, 0
      %3169 = vmatprep.subr.bf16.mxu0 0
      %3170 = vmatpush1.bf16.msra.mxu0 0
      %3171 = vmatprep.subr.bf16.mxu0 0
      %3172 = vmatpush1.bf16.msra.mxu0 0
      %3173 = vmatprep.subr.bf16.mxu0 0
      %3174 = vmatpush1.bf16.msra.mxu0 0
      %3175 = vmatprep.subr.bf16.mxu0 0
      %3176 = vmatpush1.bf16.msra.mxu0 0
      %3177 = vmatprep.subr.bf16.mxu0 0
      %3178 = vmatpush1.bf16.msra.mxu0 %v3140
      %3179 = vmatprep.subr.bf16.mxu0 0
      %3180 = vmatpush1.bf16.msra.mxu0 %v3139
      %3181 = vmatprep.subr.bf16.mxu0 0
      %3182 = vmatpush1.bf16.msra.mxu0 %v3138
      %3183 = vmatprep.subr.bf16.mxu0 0
      %3184 = vmatpush1.bf16.msra.mxu0 %v3137
      %3185 = vmatprep.subr.bf16.mxu0 0
      %3186 = vmatpush2.bf16.msra.mxu0 0
      %3187 = vmatprep.subr.bf16.mxu0 0
      %3188 = vmatpush2.bf16.msra.mxu0 0
      %3189 = vmatprep.subr.bf16.mxu0 0
      %3190 = vmatpush2.bf16.msra.mxu0 0
      %3191 = vmatprep.subr.bf16.mxu0 0
      %3192 = vmatpush2.bf16.msra.mxu0 0
      %3193 = vmatprep.subr.bf16.mxu0 0
      %3194 = vmatpush2.bf16.msra.mxu0 0
      %3195 = vmatprep.subr.bf16.mxu0 0
      %3196 = vmatpush2.bf16.msra.mxu0 0
      %3197 = vmatprep.subr.bf16.mxu0 0
      %3198 = vmatpush2.bf16.msra.mxu0 0
      %3199 = vmatprep.subr.bf16.mxu0 0
      %3200 = vmatpush2.bf16.msra.mxu0 0
      %3201 = vmatprep.mubr.bf16.mxu0 0
      %3202 = vmatmul.mubr.bf16.gmra.mxu0 %v3146
      %v3203 = vpop.f32.mrf.mxu0
      %v3204 = vadd.f32 0.0, %v3203
      %v3205 = vpop.f32.mrf.mxu0
      %v3206 = vpop.f32.mrf.mxu0
      %v3207 = vadd.f32 0.0, %v3206
      %v3208 = vpop.f32.mrf.mxu0
      %3209 = vmatprep.mubr.bf16.mxu0 0
      %3210 = vmatmul.mubr.bf16.gmra.mxu0 %v3149
      %v3211 = vpop.f32.mrf.mxu0
      %v3212 = vadd.f32 0.0, %v3211
      %v3213 = vpop.f32.mrf.mxu0
      %v3214 = vpop.f32.mrf.mxu0
      %v3215 = vadd.f32 0.0, %v3214
      %v3216 = vpop.f32.mrf.mxu0
      %3217 = vmatprep.mubr.bf16.mxu0 0
      %3218 = vmatmul.mubr.bf16.gmra.mxu0 %v3152
      %v3219 = vpop.f32.mrf.mxu0
      %v3220 = vadd.f32 0.0, %v3219
      %v3221 = vpop.f32.mrf.mxu0
      %v3222 = vpop.f32.mrf.mxu0
      %v3223 = vadd.f32 0.0, %v3222
      %v3224 = vpop.f32.mrf.mxu0
      %3225 = vmatprep.mubr.bf16.mxu0 0
      %3226 = vmatmul.mubr.bf16.gmra.mxu0 %v3155
      %v3227 = vpop.f32.mrf.mxu0
      %v3228 = vadd.f32 0.0, %v3227
      %v3229 = vpop.f32.mrf.mxu0
      %v3230 = vpop.f32.mrf.mxu0
      %v3231 = vadd.f32 0.0, %v3230
      %v3232 = vpop.f32.mrf.mxu0
      %3233 = vmatprep.mubr.bf16.mxu0 0
      %3234 = vmatmul.mubr.bf16.gmra.mxu0 %v3158
      %v3235 = vpop.f32.mrf.mxu0
      %v3236 = vadd.f32 0.0, %v3235
      %v3237 = vpop.f32.mrf.mxu0
      %v3238 = vpop.f32.mrf.mxu0
      %v3239 = vadd.f32 0.0, %v3238
      %v3240 = vpop.f32.mrf.mxu0
      %3241 = vmatprep.mubr.bf16.mxu0 0
      %3242 = vmatmul.mubr.bf16.gmra.mxu0 %v3161
      %v3243 = vpop.f32.mrf.mxu0
      %v3244 = vadd.f32 0.0, %v3243
      %v3245 = vpop.f32.mrf.mxu0
      %v3246 = vpop.f32.mrf.mxu0
      %v3247 = vadd.f32 0.0, %v3246
      %v3248 = vpop.f32.mrf.mxu0
      %3249 = vmatprep.mubr.bf16.mxu0 0
      %3250 = vmatmul.mubr.bf16.gmra.mxu0 %v3164
      %v3251 = vpop.f32.mrf.mxu0
      %v3252 = vadd.f32 0.0, %v3251
      %v3253 = vpop.f32.mrf.mxu0
      %v3254 = vpop.f32.mrf.mxu0
      %v3255 = vadd.f32 0.0, %v3254
      %v3256 = vpop.f32.mrf.mxu0
      %3257 = vmatprep.mubr.bf16.mxu0 0
      %3258 = vmatmul.mubr.bf16.gmra.mxu0 %v3167
      %v3259 = vpop.f32.mrf.mxu0
      %v3260 = vadd.f32 0.0, %v3259
      %v3261 = vpop.f32.mrf.mxu0
      %v3262 = vpop.f32.mrf.mxu0
      %v3263 = vadd.f32 0.0, %v3262
      %v3264 = vpop.f32.mrf.mxu0
      %3265 = vdwg.mxu0
      %v3266 = vadd.f32 %v2856, %v3204
      %v3267 = vadd.f32 %v2857, %v3207
      %v3268 = vadd.f32 %v2858, %v3212
      %v3269 = vadd.f32 %v2859, %v3215
      %v3270 = vadd.f32 %v2860, %v3220
      %v3271 = vadd.f32 %v2861, %v3223
      %v3272 = vadd.f32 %v2862, %v3228
      %v3273 = vadd.f32 %v2863, %v3231
      %v3274 = vadd.f32 %v2864, %v3236
      %v3275 = vadd.f32 %v2865, %v3239
      %v3276 = vadd.f32 %v2866, %v3244
      %v3277 = vadd.f32 %v2867, %v3247
      %v3278 = vadd.f32 %v2868, %v3252
      %v3279 = vadd.f32 %v2869, %v3255
      %v3280 = vadd.f32 %v2870, %v3260
      %v3281 = vadd.f32 %v2871, %v3263
      %v3282 = vld [vmem:[%s2645] sm:$0xe]
      %v3283 = vld [vmem:[%s2645 + $0xc] sm:$0xe]
      %v3284 = vld [vmem:[%s2645 + $0x18] sm:$0xe]
      %v3285 = vld [vmem:[%s2645 + $0x24] sm:$0xe]
      %v3286 = vld [vmem:[%s2645 + $0x30] sm:$0xe]
      %v3287 = vld [vmem:[%s2645 + $0x3c] sm:$0xe]
      %v3288 = vld [vmem:[%s2645 + $0x48] sm:$0xe]
      %v3289 = vld [vmem:[%s2645 + $0x54] sm:$0xe]
      %v3314 = vrot.slane %v3282, 5
      %v3315 = vrot.slane %v3314, 4
      %v3316 = vrot.slane %v2873, 5
      %v3317 = vsel %vm1476, %v3315, %v3316
      %v3318 = vrot.slane %v3316, 4
      %v3319 = vrot.slane %v2874, 5
      %v3320 = vsel %vm1476, %v3318, %v3319
      %v3321 = vrot.slane %v3283, 5
      %v3322 = vrot.slane %v3321, 4
      %v3323 = vrot.slane %v2876, 5
      %v3324 = vsel %vm1476, %v3322, %v3323
      %v3325 = vrot.slane %v3323, 4
      %v3326 = vrot.slane %v2877, 5
      %v3327 = vsel %vm1476, %v3325, %v3326
      %v3328 = vrot.slane %v3284, 5
      %v3329 = vrot.slane %v3328, 4
      %v3330 = vrot.slane %v2879, 5
      %v3331 = vsel %vm1476, %v3329, %v3330
      %v3332 = vrot.slane %v3330, 4
      %v3333 = vrot.slane %v2880, 5
      %v3334 = vsel %vm1476, %v3332, %v3333
      %v3335 = vrot.slane %v3285, 5
      %v3336 = vrot.slane %v3335, 4
      %v3337 = vrot.slane %v2882, 5
      %v3338 = vsel %vm1476, %v3336, %v3337
      %v3339 = vrot.slane %v3337, 4
      %v3340 = vrot.slane %v2883, 5
      %v3341 = vsel %vm1476, %v3339, %v3340
      %v3342 = vrot.slane %v3286, 5
      %v3343 = vrot.slane %v3342, 4
      %v3344 = vrot.slane %v2885, 5
      %v3345 = vsel %vm1476, %v3343, %v3344
      %v3346 = vrot.slane %v3344, 4
      %v3347 = vrot.slane %v2886, 5
      %v3348 = vsel %vm1476, %v3346, %v3347
      %v3349 = vrot.slane %v3287, 5
      %v3350 = vrot.slane %v3349, 4
      %v3351 = vrot.slane %v2888, 5
      %v3352 = vsel %vm1476, %v3350, %v3351
      %v3353 = vrot.slane %v3351, 4
      %v3354 = vrot.slane %v2889, 5
      %v3355 = vsel %vm1476, %v3353, %v3354
      %v3356 = vrot.slane %v3288, 5
      %v3357 = vrot.slane %v3356, 4
      %v3358 = vrot.slane %v2891, 5
      %v3359 = vsel %vm1476, %v3357, %v3358
      %v3360 = vrot.slane %v3358, 4
      %v3361 = vrot.slane %v2892, 5
      %v3362 = vsel %vm1476, %v3360, %v3361
      %v3363 = vrot.slane %v3289, 5
      %v3364 = vrot.slane %v3363, 4
      %v3365 = vrot.slane %v2894, 5
      %v3366 = vsel %vm1476, %v3364, %v3365
      %v3367 = vrot.slane %v3365, 4
      %v3368 = vrot.slane %v2895, 5
      %v3369 = vsel %vm1476, %v3367, %v3368
      %s3370 = scalar_lea.vmem %s1, 256
      %v3371 = vld [vmem:[%s3370] sm:$0xf]
      %v3372 = vld [vmem:[%s3370 + $0x4] sm:$0xf]
      %v3373 = vld [vmem:[%s3370 + $0x8] sm:$0xf]
      %v3374 = vld [vmem:[%s3370 + $0xc] sm:$0xf]
      %v3375 = vld [vmem:[%s3370 + $0x10] sm:$0xf]
      %v3376 = vld [vmem:[%s3370 + $0x14] sm:$0xf]
      %v3377 = vld [vmem:[%s3370 + $0x18] sm:$0xf]
      %v3378 = vld [vmem:[%s3370 + $0x1c] sm:$0xf]
      %v3379 = vunpack.c.l.b16 %v3317
      %v3380 = vunpack.c.l.b16 %v3320
      %v3381 = vunpack.c.l.b16 %v3324
      %v3382 = vunpack.c.l.b16 %v3327
      %v3383 = vunpack.c.l.b16 %v3331
      %v3384 = vunpack.c.l.b16 %v3334
      %v3385 = vunpack.c.l.b16 %v3338
      %v3386 = vunpack.c.l.b16 %v3341
      %v3387 = vunpack.c.l.b16 %v3345
      %v3388 = vunpack.c.l.b16 %v3348
      %v3389 = vunpack.c.l.b16 %v3352
      %v3390 = vunpack.c.l.b16 %v3355
      %v3391 = vunpack.c.l.b16 %v3359
      %v3392 = vunpack.c.l.b16 %v3362
      %v3393 = vunpack.c.l.b16 %v3366
      %v3394 = vunpack.c.l.b16 %v3369
      %v3395 = vpack.c.b16 %v3380, %v3379
      %v3396 = vpack.c.b16 %v3382, %v3381
      %v3397 = vpack.c.b16 %v3384, %v3383
      %v3398 = vpack.c.b16 %v3386, %v3385
      %v3399 = vpack.c.b16 %v3388, %v3387
      %v3400 = vpack.c.b16 %v3390, %v3389
      %v3401 = vpack.c.b16 %v3392, %v3391
      %v3402 = vpack.c.b16 %v3394, %v3393
      %v3411 = vunpack.c.l.b16 %v3371
      %v3412 = vunpack.c.l.b16 %v3372
      %v3413 = vunpack.c.l.b16 %v3373
      %v3414 = vunpack.c.l.b16 %v3374
      %v3415 = vunpack.c.l.b16 %v3375
      %v3416 = vunpack.c.l.b16 %v3376
      %v3417 = vunpack.c.l.b16 %v3377
      %v3418 = vunpack.c.l.b16 %v3378
      %v3419 = vpack.c.b16 %v3412, %v3411
      %v3420 = vpack.c.b16 %v3414, %v3413
      %v3421 = vpack.c.b16 %v3416, %v3415
      %v3422 = vpack.c.b16 %v3418, %v3417
      %v3428 = vsel %vm1143, %v3395, 0
      %v3431 = vsel %vm1143, %v3396, 0
      %v3434 = vsel %vm1143, %v3397, 0
      %v3437 = vsel %vm1143, %v3398, 0
      %v3440 = vsel %vm1143, %v3399, 0
      %v3443 = vsel %vm1143, %v3400, 0
      %v3446 = vsel %vm1143, %v3401, 0
      %v3449 = vsel %vm1143, %v3402, 0
      %3451 = vmatprep.subr.bf16.mxu0 0
      %3452 = vmatpush1.bf16.msra.mxu0 0
      %3453 = vmatprep.subr.bf16.mxu0 0
      %3454 = vmatpush1.bf16.msra.mxu0 0
      %3455 = vmatprep.subr.bf16.mxu0 0
      %3456 = vmatpush1.bf16.msra.mxu0 0
      %3457 = vmatprep.subr.bf16.mxu0 0
      %3458 = vmatpush1.bf16.msra.mxu0 0
      %3459 = vmatprep.subr.bf16.mxu0 0
      %3460 = vmatpush1.bf16.msra.mxu0 %v3422
      %3461 = vmatprep.subr.bf16.mxu0 0
      %3462 = vmatpush1.bf16.msra.mxu0 %v3421
      %3463 = vmatprep.subr.bf16.mxu0 0
      %3464 = vmatpush1.bf16.msra.mxu0 %v3420
      %3465 = vmatprep.subr.bf16.mxu0 0
      %3466 = vmatpush1.bf16.msra.mxu0 %v3419
      %3467 = vmatprep.subr.bf16.mxu0 0
      %3468 = vmatpush2.bf16.msra.mxu0 0
      %3469 = vmatprep.subr.bf16.mxu0 0
      %3470 = vmatpush2.bf16.msra.mxu0 0
      %3471 = vmatprep.subr.bf16.mxu0 0
      %3472 = vmatpush2.bf16.msra.mxu0 0
      %3473 = vmatprep.subr.bf16.mxu0 0
      %3474 = vmatpush2.bf16.msra.mxu0 0
      %3475 = vmatprep.subr.bf16.mxu0 0
      %3476 = vmatpush2.bf16.msra.mxu0 0
      %3477 = vmatprep.subr.bf16.mxu0 0
      %3478 = vmatpush2.bf16.msra.mxu0 0
      %3479 = vmatprep.subr.bf16.mxu0 0
      %3480 = vmatpush2.bf16.msra.mxu0 0
      %3481 = vmatprep.subr.bf16.mxu0 0
      %3482 = vmatpush2.bf16.msra.mxu0 0
      %3483 = vmatprep.mubr.bf16.mxu0 0
      %3484 = vmatmul.mubr.bf16.gmra.mxu0 %v3428
      %v3485 = vpop.f32.mrf.mxu0
      %v3486 = vadd.f32 0.0, %v3485
      %v3487 = vpop.f32.mrf.mxu0
      %v3488 = vpop.f32.mrf.mxu0
      %v3489 = vadd.f32 0.0, %v3488
      %v3490 = vpop.f32.mrf.mxu0
      %3491 = vmatprep.mubr.bf16.mxu0 0
      %3492 = vmatmul.mubr.bf16.gmra.mxu0 %v3431
      %v3493 = vpop.f32.mrf.mxu0
      %v3494 = vadd.f32 0.0, %v3493
      %v3495 = vpop.f32.mrf.mxu0
      %v3496 = vpop.f32.mrf.mxu0
      %v3497 = vadd.f32 0.0, %v3496
      %v3498 = vpop.f32.mrf.mxu0
      %3499 = vmatprep.mubr.bf16.mxu0 0
      %3500 = vmatmul.mubr.bf16.gmra.mxu0 %v3434
      %v3501 = vpop.f32.mrf.mxu0
      %v3502 = vadd.f32 0.0, %v3501
      %v3503 = vpop.f32.mrf.mxu0
      %v3504 = vpop.f32.mrf.mxu0
      %v3505 = vadd.f32 0.0, %v3504
      %v3506 = vpop.f32.mrf.mxu0
      %3507 = vmatprep.mubr.bf16.mxu0 0
      %3508 = vmatmul.mubr.bf16.gmra.mxu0 %v3437
      %v3509 = vpop.f32.mrf.mxu0
      %v3510 = vadd.f32 0.0, %v3509
      %v3511 = vpop.f32.mrf.mxu0
      %v3512 = vpop.f32.mrf.mxu0
      %v3513 = vadd.f32 0.0, %v3512
      %v3514 = vpop.f32.mrf.mxu0
      %3515 = vmatprep.mubr.bf16.mxu0 0
      %3516 = vmatmul.mubr.bf16.gmra.mxu0 %v3440
      %v3517 = vpop.f32.mrf.mxu0
      %v3518 = vadd.f32 0.0, %v3517
      %v3519 = vpop.f32.mrf.mxu0
      %v3520 = vpop.f32.mrf.mxu0
      %v3521 = vadd.f32 0.0, %v3520
      %v3522 = vpop.f32.mrf.mxu0
      %3523 = vmatprep.mubr.bf16.mxu0 0
      %3524 = vmatmul.mubr.bf16.gmra.mxu0 %v3443
      %v3525 = vpop.f32.mrf.mxu0
      %v3526 = vadd.f32 0.0, %v3525
      %v3527 = vpop.f32.mrf.mxu0
      %v3528 = vpop.f32.mrf.mxu0
      %v3529 = vadd.f32 0.0, %v3528
      %v3530 = vpop.f32.mrf.mxu0
      %3531 = vmatprep.mubr.bf16.mxu0 0
      %3532 = vmatmul.mubr.bf16.gmra.mxu0 %v3446
      %v3533 = vpop.f32.mrf.mxu0
      %v3534 = vadd.f32 0.0, %v3533
      %v3535 = vpop.f32.mrf.mxu0
      %v3536 = vpop.f32.mrf.mxu0
      %v3537 = vadd.f32 0.0, %v3536
      %v3538 = vpop.f32.mrf.mxu0
      %3539 = vmatprep.mubr.bf16.mxu0 0
      %3540 = vmatmul.mubr.bf16.gmra.mxu0 %v3449
      %v3541 = vpop.f32.mrf.mxu0
      %v3542 = vadd.f32 0.0, %v3541
      %v3543 = vpop.f32.mrf.mxu0
      %v3544 = vpop.f32.mrf.mxu0
      %v3545 = vadd.f32 0.0, %v3544
      %v3546 = vpop.f32.mrf.mxu0
      %3547 = vdwg.mxu0
      %v3548 = vadd.f32 %v3266, %v3486
      %v3549 = vadd.f32 %v3267, %v3489
      %v3550 = vadd.f32 %v3268, %v3494
      %v3551 = vadd.f32 %v3269, %v3497
      %v3552 = vadd.f32 %v3270, %v3502
      %v3553 = vadd.f32 %v3271, %v3505
      %v3554 = vadd.f32 %v3272, %v3510
      %v3555 = vadd.f32 %v3273, %v3513
      %v3556 = vadd.f32 %v3274, %v3518
      %v3557 = vadd.f32 %v3275, %v3521
      %v3558 = vadd.f32 %v3276, %v3526
      %v3559 = vadd.f32 %v3277, %v3529
      %v3560 = vadd.f32 %v3278, %v3534
      %v3561 = vadd.f32 %v3279, %v3537
      %v3562 = vadd.f32 %v3280, %v3542
      %v3563 = vadd.f32 %v3281, %v3545
      %v3564 = vadd.f32 %v3548, %v3549
      %v3565 = vadd.f32 %v3564, %v3550
      %v3566 = vadd.f32 %v3565, %v3551
      %v3567 = vadd.f32 %v3566, %v3552
      %v3568 = vadd.f32 %v3567, %v3553
      %v3569 = vadd.f32 %v3568, %v3554
      %v3570 = vadd.f32 %v3569, %v3555
      %v3571 = vadd.f32 %v3570, %v3556
      %v3572 = vadd.f32 %v3571, %v3557
      %v3573 = vadd.f32 %v3572, %v3558
      %v3574 = vadd.f32 %v3573, %v3559
      %v3575 = vadd.f32 %v3574, %v3560
      %v3576 = vadd.f32 %v3575, %v3561
      %v3577 = vadd.f32 %v3576, %v3562
      %v3578 = vadd.f32 %v3577, %v3563
      %v3579 = vrot.slane %v3578, 4
      %v3580 = vadd.f32 %v3578, %v3579
      %v3581 = vrot.slane %v3580, 2
      %v3582 = vadd.f32 %v3580, %v3581
      %v3583 = vrot.slane %v3582, 1
      %v3584 = vadd.f32 %v3582, %v3583
      %v3585 = vmul.f32 %v3584, 0.0078125
      %v3586 = vsub.f32 %v3548, %v3585
      %v3587 = vsub.f32 %v3549, %v3585
      %v3588 = vsub.f32 %v3550, %v3585
      %v3589 = vsub.f32 %v3551, %v3585
      %v3590 = vsub.f32 %v3552, %v3585
      %v3591 = vsub.f32 %v3553, %v3585
      %v3592 = vsub.f32 %v3554, %v3585
      %v3593 = vsub.f32 %v3555, %v3585
      %v3594 = vsub.f32 %v3556, %v3585
      %v3595 = vsub.f32 %v3557, %v3585
      %v3596 = vsub.f32 %v3558, %v3585
      %v3597 = vsub.f32 %v3559, %v3585
      %v3598 = vsub.f32 %v3560, %v3585
      %v3599 = vsub.f32 %v3561, %v3585
      %v3600 = vsub.f32 %v3562, %v3585
      %v3601 = vsub.f32 %v3563, %v3585
      %3602 = vst [vmem:[%s304] sm:$0x1] %v3584
      %v3603 = vmul.f32 %v3586, %v3586
      %v3604 = vmul.f32 %v3587, %v3587
      %v3605 = vmul.f32 %v3588, %v3588
      %v3606 = vmul.f32 %v3589, %v3589
      %v3607 = vmul.f32 %v3590, %v3590
      %v3608 = vmul.f32 %v3591, %v3591
      %v3609 = vmul.f32 %v3592, %v3592
      %v3610 = vmul.f32 %v3593, %v3593
      %v3611 = vmul.f32 %v3594, %v3594
      %v3612 = vmul.f32 %v3595, %v3595
      %v3613 = vmul.f32 %v3596, %v3596
      %v3614 = vmul.f32 %v3597, %v3597
      %v3615 = vmul.f32 %v3598, %v3598
      %v3616 = vmul.f32 %v3599, %v3599
      %v3617 = vmul.f32 %v3600, %v3600
      %v3618 = vmul.f32 %v3601, %v3601
      %v3619 = vadd.f32 %v3603, %v3604
      %v3620 = vadd.f32 %v3619, %v3605
      %v3621 = vadd.f32 %v3620, %v3606
      %v3622 = vadd.f32 %v3621, %v3607
      %v3623 = vadd.f32 %v3622, %v3608
      %v3624 = vadd.f32 %v3623, %v3609
      %v3625 = vadd.f32 %v3624, %v3610
      %v3626 = vadd.f32 %v3625, %v3611
      %v3627 = vadd.f32 %v3626, %v3612
      %v3628 = vadd.f32 %v3627, %v3613
      %v3629 = vadd.f32 %v3628, %v3614
      %v3630 = vadd.f32 %v3629, %v3615
      %v3631 = vadd.f32 %v3630, %v3616
      %v3632 = vadd.f32 %v3631, %v3617
      %v3633 = vadd.f32 %v3632, %v3618
      %v3634 = vrot.slane %v3633, 4
      %v3635 = vadd.f32 %v3633, %v3634
      %v3636 = vrot.slane %v3635, 2
      %v3637 = vadd.f32 %v3635, %v3636
      %v3638 = vrot.slane %v3637, 1
      %v3639 = vadd.f32 %v3637, %v3638
      %3640 = vst [vmem:[%s311] sm:$0x1] %v3639
      %v3641 = vpack.c.bf16 %v3549, %v3548
      %v3642 = vpack.c.bf16 %v3551, %v3550
      %v3643 = vpack.c.bf16 %v3553, %v3552
      %v3644 = vpack.c.bf16 %v3555, %v3554
      %v3645 = vpack.c.bf16 %v3557, %v3556
      %v3646 = vpack.c.bf16 %v3559, %v3558
      %v3647 = vpack.c.bf16 %v3561, %v3560
      %v3648 = vpack.c.bf16 %v3563, %v3562
      %v3657 = vunpack.c.l.b16 %v3641
      %v3658 = vunpack.c.h.b16 %v3641
      %v3659 = vunpack.c.l.b16 %v3642
      %v3660 = vunpack.c.h.b16 %v3642
      %v3661 = vunpack.c.l.b16 %v3643
      %v3662 = vunpack.c.h.b16 %v3643
      %v3663 = vunpack.c.l.b16 %v3644
      %v3664 = vunpack.c.h.b16 %v3644
      %v3665 = vunpack.c.l.b16 %v3645
      %v3666 = vunpack.c.h.b16 %v3645
      %v3667 = vunpack.c.l.b16 %v3646
      %v3668 = vunpack.c.h.b16 %v3646
      %v3669 = vunpack.c.l.b16 %v3647
      %v3670 = vunpack.c.h.b16 %v3647
      %v3671 = vunpack.c.l.b16 %v3648
      %v3672 = vunpack.c.h.b16 %v3648
      %v3673 = vpack.c.b16 %v3657, %v3657
      %v3674 = vpack.c.b16 %v3658, %v3658
      %v3675 = vpack.c.b16 %v3659, %v3659
      %v3676 = vpack.c.b16 %v3660, %v3660
      %v3677 = vpack.c.b16 %v3661, %v3661
      %v3678 = vpack.c.b16 %v3662, %v3662
      %v3679 = vpack.c.b16 %v3663, %v3663
      %v3680 = vpack.c.b16 %v3664, %v3664
      %v3681 = vpack.c.b16 %v3665, %v3665
      %v3682 = vpack.c.b16 %v3666, %v3666
      %v3683 = vpack.c.b16 %v3667, %v3667
      %v3684 = vpack.c.b16 %v3668, %v3668
      %v3685 = vpack.c.b16 %v3669, %v3669
      %v3686 = vpack.c.b16 %v3670, %v3670
      %v3687 = vpack.c.b16 %v3671, %v3671
      %v3688 = vpack.c.b16 %v3672, %v3672
      %3705 = vst [vmem:[%s298] sm:$0xf] %v3673
      %3706 = vst [vmem:[%s298 + $0x4] sm:$0xf] %v3674
      %3707 = vst [vmem:[%s298 + $0x8] sm:$0xf] %v3675
      %3708 = vst [vmem:[%s298 + $0xc] sm:$0xf] %v3676
      %3709 = vst [vmem:[%s298 + $0x10] sm:$0xf] %v3677
      %3710 = vst [vmem:[%s298 + $0x14] sm:$0xf] %v3678
      %3711 = vst [vmem:[%s298 + $0x18] sm:$0xf] %v3679
      %3712 = vst [vmem:[%s298 + $0x1c] sm:$0xf] %v3680
      %3713 = vst [vmem:[%s298 + $0x20] sm:$0xf] %v3681
      %3714 = vst [vmem:[%s298 + $0x24] sm:$0xf] %v3682
      %3715 = vst [vmem:[%s298 + $0x28] sm:$0xf] %v3683
      %3716 = vst [vmem:[%s298 + $0x2c] sm:$0xf] %v3684
      %3717 = vst [vmem:[%s298 + $0x30] sm:$0xf] %v3685
      %3718 = vst [vmem:[%s298 + $0x34] sm:$0xf] %v3686
      %3719 = vst [vmem:[%s298 + $0x38] sm:$0xf] %v3687
      %3720 = vst [vmem:[%s298 + $0x3c] sm:$0xf] %v3688
      %s3721 = smul.u32 8, %s23
      %p3722 = scmp.lt.s32.totalorder %s22, 1
      %s3723 = scalar_select %p3722, %s22, 1
      %p3724 = scmp.lt.s32.totalorder %s3721, 15
      %s3725 = scalar_select %p3724, %s3721, 15
      %s3726 = smul.addr %s3725, 2
      %s3727 = smul.addr %s3723, 32
      %s3728 = sadd.s32 %s3726, %s3727
      %s3729 = smul.addr %s3728, 4
      %s3730 = scalar_lea.vmem %s4, %s3729
      %s3731 = smul.u32 %s22, 2
      %s3732 = sadd.s32 %s3731, %s23
      %p3733 = scmp.lt.s32.totalorder %s3732, 3
      %s3734 = scalar_select %p3733, %s3732, 3
      %s3735 = scalar_lea.vmem %s5, %s3734
      %s3736 = smul.u32 %s22, 2
      %s3737 = sadd.s32 %s3736, %s23
      %p3738 = scmp.lt.s32.totalorder %s3737, 3
      %s3739 = scalar_select %p3738, %s3737, 3
      %s3740 = scalar_lea.vmem %s6, %s3739
      // Predicated region
      $region37: #{autoencoder_forward.14} parent=35 // pred_check
        %p3741 = pneg %p139
      $region38: #{autoencoder_forward.14} parent=35 // pred_check_branch
        %3743 = sbr.rel (%p3741) target = $region40
      $region39: #{autoencoder_forward.14} parent=35 // pred_region
        %s3744 = smul.u32 8, %s23
      $region40: #{autoencoder_forward.14} parent=35 // pred_fallthru
        _
      // Predicated region
      $region41: #{autoencoder_forward.14} parent=35 // pred_check
        %p3745 = pneg %p169
      $region42: #{autoencoder_forward.14} parent=35 // pred_check_branch
        %3747 = sbr.rel (%p3745) target = $region44
      $region43: #{autoencoder_forward.14} parent=35 // pred_region
        %s3748 = smul.u32 %s22, 2
        %s3749 = sadd.s32 %s3748, %s23
      $region44: #{autoencoder_forward.14} parent=35 // pred_fallthru
        _
      // Predicated region
      $region45: #{autoencoder_forward.14} parent=35 // pred_check
        %p3750 = pneg %p199
      $region46: #{autoencoder_forward.14} parent=35 // pred_check_branch
        %3752 = sbr.rel (%p3750) target = $region48
      $region47: #{autoencoder_forward.14} parent=35 // pred_region
        %s3753 = smul.u32 %s22, 2
        %s3754 = sadd.s32 %s3753, %s23
      $region48: #{autoencoder_forward.14} parent=35 // pred_fallthru
        _
    $region36: #{autoencoder_forward.14} parent=5 // pred_fallthru
      _
    %p3755 = scmp.le.s32.totalorder 2, %s13
    // Predicated region
    $region49: #{autoencoder_forward.14} parent=5 // pred_check
      %p3756 = pneg %p3755
    $region50: #{autoencoder_forward.14} parent=5 // pred_check_branch
      %3758 = sbr.rel (%p3756) target = $region52
    $region51: #{autoencoder_forward.14} parent=5 // pred_region
      %s3759 = ssub.s32 %s13, 2
      // Predicated region
      $region53: #{autoencoder_forward.14} parent=51 // pred_check
        %p3760 = pneg %p145
      $region54: #{autoencoder_forward.14} parent=51 // pred_check_branch
        %3762 = sbr.rel (%p3760) target = $region56
      $region55: #{autoencoder_forward.14} parent=51 // pred_region
        %s3763 = smul.u32 8, %s25
        %p3764 = scmp.lt.s32.totalorder %s24, 1
        %s3765 = scalar_select %p3764, %s24, 1
        %p3766 = scmp.lt.s32.totalorder %s3763, 15
        %s3767 = scalar_select %p3766, %s3763, 15
        %s3768 = smul.addr %s3767, 2
        %s3769 = smul.addr %s3765, 32
        %s3770 = sadd.s32 %s3768, %s3769
        %s3771 = smul.addr %s3770, 4
        %s3772 = scalar_lea.vmem %s4, %s3771
      $region56: #{autoencoder_forward.14} parent=51 // pred_fallthru
        _
      // Predicated region
      $region57: #{autoencoder_forward.14} parent=51 // pred_check
        %p3773 = pneg %p175
      $region58: #{autoencoder_forward.14} parent=51 // pred_check_branch
        %3775 = sbr.rel (%p3773) target = $region60
      $region59: #{autoencoder_forward.14} parent=51 // pred_region
        %s3776 = smul.u32 %s24, 2
        %s3777 = sadd.s32 %s3776, %s25
        %p3778 = scmp.lt.s32.totalorder %s3777, 3
        %s3779 = scalar_select %p3778, %s3777, 3
        %s3780 = scalar_lea.vmem %s5, %s3779
      $region60: #{autoencoder_forward.14} parent=51 // pred_fallthru
        _
      // Predicated region
      $region61: #{autoencoder_forward.14} parent=51 // pred_check
        %p3781 = pneg %p205
      $region62: #{autoencoder_forward.14} parent=51 // pred_check_branch
        %3783 = sbr.rel (%p3781) target = $region64
      $region63: #{autoencoder_forward.14} parent=51 // pred_region
        %s3784 = smul.u32 %s24, 2
        %s3785 = sadd.s32 %s3784, %s25
        %p3786 = scmp.lt.s32.totalorder %s3785, 3
        %s3787 = scalar_select %p3786, %s3785, 3
        %s3788 = scalar_lea.vmem %s6, %s3787
      $region64: #{autoencoder_forward.14} parent=51 // pred_fallthru
        _
    $region52: #{autoencoder_forward.14} parent=5 // pred_fallthru
      _
  $region6: #{autoencoder_forward.14} parent=0 // loop_footer
    %s17 = sadd.s32 1, %s13
  $region7: #{autoencoder_forward.14} parent=0 // loop_footer_branch
    %12 = sbr.rel target = $region3
  $region8: #{autoencoder_forward.14} parent=0 // loop_exit
    _

</llo_original>
